<compile_context>
chip_gen: v7x
topology: tpu7x:2x2x1
jax: 0.10.0
libtpu: 0.0.40
codegen_flags: <defaults>
</compile_context>

<pallas_src>
import jax
import jax.numpy as jnp
from jax.experimental import pallas as pl
from jax.experimental.pallas import tpu as pltpu

NUM_CLASSES = 10
IMG_FLAT = 28 * 28                    # 784 (sublane-aligned K for layer 1)
IN_DIM = IMG_FLAT + NUM_CLASSES       # 794 (only used by the reference path)
H1, H2, H3 = 1024, 512, 256
OUT = 1
OUT_PAD = 128                         # lane-dense padded final layer width
TILE_B = 128                          # batch tile (saturates MXU M on all gens)


def _leaky_relu(x, slope=0.2):
    return jnp.where(x > 0, x, slope * x)


def discriminator_kernel(x_ref, cb1_ref,
                         w1_ref, w2_ref, b2_ref,
                         w3_ref, b3_ref, w4_ref, b4_ref,
                         o_ref):
    """One batch tile of the 4-layer MLP; weights stay VMEM-resident."""
    # Layer 1: bf16 x @ bf16 W1_head (f32 acc) + per-sample f32 correction
    # cb1 = emb[label] @ W1_tail + b1 (precomputed in the wrapper).
    h = jnp.dot(x_ref[...], w1_ref[...], preferred_element_type=jnp.float32)
    h = _leaky_relu(h + cb1_ref[...])                        # (TILE_B, 1024) f32

    h = jnp.dot(h.astype(jnp.bfloat16), w2_ref[...],
                preferred_element_type=jnp.float32) + b2_ref[...]
    h = _leaky_relu(h)                                       # (TILE_B, 512)

    h = jnp.dot(h.astype(jnp.bfloat16), w3_ref[...],
                preferred_element_type=jnp.float32) + b3_ref[...]
    h = _leaky_relu(h)                                       # (TILE_B, 256)

    # Final layer padded from N=1 to N=128 so the output store is lane-dense.
    h = jnp.dot(h.astype(jnp.bfloat16), w4_ref[...],
                preferred_element_type=jnp.float32) + b4_ref[...]
    o_ref[...] = jax.nn.sigmoid(h)                           # (TILE_B, 128)


def discriminator_forward(x_nchw, labels, params, tile_b=TILE_B):
    """x_nchw: (B, 1, 28, 28) float32, labels: (B,) int32 -> (B, 1) float32."""
    B = x_nchw.shape[0]
    x_flat = x_nchw.reshape(B, IMG_FLAT)                     # row-major flatten

    # Fold the embedding path + first bias into a per-class (10, H1) table,
    # gathered per sample (tiny plain-JAX glue; keeps kernel K at 784).
    label_tbl = params["emb"] @ params["w1"][IMG_FLAT:] + params["b1"]  # (10, H1)
    cb1 = jnp.take(label_tbl, labels, axis=0)                           # (B, H1)

    # Pad batch to a multiple of tile_b (padded rows discarded below).
    B_pad = pl.cdiv(B, tile_b) * tile_b
    pad = B_pad - B
    x_bf = jnp.pad(x_flat, ((0, pad), (0, 0))).astype(jnp.bfloat16)
    cb1 = jnp.pad(cb1, ((0, pad), (0, 0))).astype(jnp.float32)

    # bf16 weights (MXU-rate inputs, f32 accumulation inside the kernel).
    w1h = params["w1"][:IMG_FLAT].astype(jnp.bfloat16)                  # (784, H1)
    w2 = params["w2"].astype(jnp.bfloat16)
    w3 = params["w3"].astype(jnp.bfloat16)
    w4 = jnp.pad(params["w4"], ((0, 0), (0, OUT_PAD - OUT))).astype(jnp.bfloat16)
    b2 = params["b2"].astype(jnp.float32)
    b3 = params["b3"].astype(jnp.float32)
    b4 = jnp.pad(params["b4"], ((0, 0), (0, OUT_PAD - OUT))).astype(jnp.float32)

    tiled = lambda shape: pl.BlockSpec(shape, lambda i: (i, 0))
    resident = lambda shape: pl.BlockSpec(shape, lambda i: (0, 0))

    out = pl.pallas_call(
        discriminator_kernel,
        out_shape=jax.ShapeDtypeStruct((B_pad, OUT_PAD), jnp.float32),
        grid_spec=pltpu.PrefetchScalarGridSpec(
            num_scalar_prefetch=0,
            grid=(B_pad // tile_b,),
            in_specs=[
                tiled((tile_b, IMG_FLAT)),      # x tile        (bf16)
                tiled((tile_b, H1)),            # cb1 tile      (f32)
                resident((IMG_FLAT, H1)),       # W1_head       (bf16)
                resident((H1, H2)),             # W2            (bf16)
                resident((1, H2)),              # b2            (f32)
                resident((H2, H3)),             # W3            (bf16)
                resident((1, H3)),              # b3            (f32)
                resident((H3, OUT_PAD)),        # W4 (padded)   (bf16)
                resident((1, OUT_PAD)),         # b4 (padded)   (f32)
            ],
            out_specs=tiled((tile_b, OUT_PAD)),
        ),
        compiler_params=pltpu.CompilerParams(
            dimension_semantics=("parallel",),   # v7x: shard batch over 2 TCs
            vmem_limit_bytes=32 << 20,           # fits v7x's 64 MiB physical VMEM
        ),
    )(x_bf, cb1, w1h, w2, b2, w3, b3, w4, b4)

    return out[:B, :OUT]                                      # (B, 1)


def init_params(key):
    ks = jax.random.split(key, 9)
    s = 0.02
    return {
        "emb": jax.random.normal(ks[0], (NUM_CLASSES, NUM_CLASSES), jnp.float32) * s,
        "w1": jax.random.normal(ks[1], (IN_DIM, H1), jnp.float32) * s,
        "b1": jax.random.normal(ks[2], (1, H1), jnp.float32) * s,
        "w2": jax.random.normal(ks[3], (H1, H2), jnp.float32) * s,
        "b2": jax.random.normal(ks[4], (1, H2), jnp.float32) * s,
        "w3": jax.random.normal(ks[5], (H2, H3), jnp.float32) * s,
        "b3": jax.random.normal(ks[6], (1, H3), jnp.float32) * s,
        "w4": jax.random.normal(ks[7], (H3, OUT), jnp.float32) * s,
        "b4": jax.random.normal(ks[8], (1, OUT), jnp.float32) * s,
    }


if __name__ == "__main__":
    key = jax.random.PRNGKey(0)
    k_params, k_img, k_lbl = jax.random.split(key, 3)

    params = init_params(k_params)

    B = 8
    x = jax.random.normal(k_img, (B, 1, 28, 28), jnp.float32)     # NCHW like PyTorch
    labels = jax.random.randint(k_lbl, (B,), 0, NUM_CLASSES, jnp.int32)

    out = discriminator_forward(x, labels, params)
    out = jax.block_until_ready(out)

    # Sanity: shape/dtype and sigmoid range.
    assert out.shape == (B, OUT) and out.dtype == jnp.float32
    assert bool(jnp.all((out >= 0.0) & (out <= 1.0)))

    # Cross-check against a plain-JAX f32 reference of the same MLP
    # (kernel uses bf16 matmul inputs with f32 accumulation -> loose atol).
    c = jnp.take(params["emb"], labels, axis=0)
    h = jnp.concatenate([x.reshape(B, -1), c], axis=1)
    lrelu = lambda v: jnp.where(v > 0, v, 0.2 * v)
    h = lrelu(h @ params["w1"] + params["b1"])
    h = lrelu(h @ params["w2"] + params["b2"])
    h = lrelu(h @ params["w3"] + params["b3"])
    ref = jax.nn.sigmoid(h @ params["w4"] + params["b4"])
    assert bool(jnp.allclose(out, ref, atol=1e-2, rtol=0.0)), (out, ref)

    print("KERNEL_OK")
</pallas_src>

<mosaic_0001>
module attributes {stable_mosaic.version = 11 : i64} {
  func.func @discriminator_kernel(%arg0: i32, %arg1: memref<128x784xbf16, #tpu.memory_space<vmem>>, %arg2: memref<128x1024xf32, #tpu.memory_space<vmem>>, %arg3: memref<784x1024xbf16, #tpu.memory_space<vmem>>, %arg4: memref<1024x512xbf16, #tpu.memory_space<vmem>>, %arg5: memref<1x512xf32, #tpu.memory_space<vmem>>, %arg6: memref<512x256xbf16, #tpu.memory_space<vmem>>, %arg7: memref<1x256xf32, #tpu.memory_space<vmem>>, %arg8: memref<256x128xbf16, #tpu.memory_space<vmem>>, %arg9: memref<1x128xf32, #tpu.memory_space<vmem>>, %arg10: memref<128x128xf32, #tpu.memory_space<vmem>>) attributes {dimension_semantics = [#tpu.dimension_semantics<parallel>], iteration_bounds = array<i64: 1>, scalar_prefetch = 0 : i64, scratch_operands = 0 : i64, tpu.core_type = #tpu.core_type<tc>, window_params = [{transform_indices = @transform_0, window_bounds = array<i64: 128, 784>}, {transform_indices = @transform_1, window_bounds = array<i64: 128, 1024>}, {pipeline_mode = #tpu.pipeline_mode<synchronous>, transform_indices = @transform_2, window_bounds = array<i64: 784, 1024>}, {pipeline_mode = #tpu.pipeline_mode<synchronous>, transform_indices = @transform_3, window_bounds = array<i64: 1024, 512>}, {pipeline_mode = #tpu.pipeline_mode<synchronous>, transform_indices = @transform_4, window_bounds = array<i64: 1, 512>}, {pipeline_mode = #tpu.pipeline_mode<synchronous>, transform_indices = @transform_5, window_bounds = array<i64: 512, 256>}, {pipeline_mode = #tpu.pipeline_mode<synchronous>, transform_indices = @transform_6, window_bounds = array<i64: 1, 256>}, {pipeline_mode = #tpu.pipeline_mode<synchronous>, transform_indices = @transform_7, window_bounds = array<i64: 256, 128>}, {pipeline_mode = #tpu.pipeline_mode<synchronous>, transform_indices = @transform_8, window_bounds = array<i64: 1, 128>}, {transform_indices = @transform_9, window_bounds = array<i64: 128, 128>}]} {
    %c0 = arith.constant 0 : index
    %c0_0 = arith.constant 0 : index
    %0 = vector.load %arg1[%c0, %c0_0] : memref<128x784xbf16, #tpu.memory_space<vmem>>, vector<128x784xbf16>
    %c0_1 = arith.constant 0 : index
    %c0_2 = arith.constant 0 : index
    %1 = vector.load %arg3[%c0_1, %c0_2] : memref<784x1024xbf16, #tpu.memory_space<vmem>>, vector<784x1024xbf16>
    %cst = arith.constant dense<0.000000e+00> : vector<128x1024xf32>
    %2 = tpu.matmul %0, %1, %cst {dimension_numbers = #tpu.dot_dimension_numbers<[1], [0], [0], [1], [0, 0, 1, 1], [], []>} : vector<128x784xbf16>, vector<784x1024xbf16>, vector<128x1024xf32> -> vector<128x1024xf32>
    %c0_3 = arith.constant 0 : index
    %c0_4 = arith.constant 0 : index
    %3 = vector.load %arg2[%c0_3, %c0_4] : memref<128x1024xf32, #tpu.memory_space<vmem>>, vector<128x1024xf32>
    %4 = arith.addf %2, %3 : vector<128x1024xf32>
    %cst_5 = arith.constant 0.000000e+00 : f32
    %5 = vector.broadcast %cst_5 : f32 to vector<128x1024xf32>
    %6 = arith.cmpf ogt, %4, %5 : vector<128x1024xf32>
    %cst_6 = arith.constant 2.000000e-01 : f32
    %7 = vector.broadcast %cst_6 : f32 to vector<128x1024xf32>
    %8 = arith.mulf %7, %4 : vector<128x1024xf32>
    %9 = arith.select %6, %4, %8 : vector<128x1024xi1>, vector<128x1024xf32>
    %10 = arith.truncf %9 : vector<128x1024xf32> to vector<128x1024xbf16>
    %c0_7 = arith.constant 0 : index
    %c0_8 = arith.constant 0 : index
    %11 = vector.load %arg4[%c0_7, %c0_8] : memref<1024x512xbf16, #tpu.memory_space<vmem>>, vector<1024x512xbf16>
    %cst_9 = arith.constant dense<0.000000e+00> : vector<128x512xf32>
    %12 = tpu.matmul %10, %11, %cst_9 {dimension_numbers = #tpu.dot_dimension_numbers<[1], [0], [0], [1], [0, 0, 1, 1], [], []>} : vector<128x1024xbf16>, vector<1024x512xbf16>, vector<128x512xf32> -> vector<128x512xf32>
    %c0_10 = arith.constant 0 : index
    %c0_11 = arith.constant 0 : index
    %13 = vector.load %arg5[%c0_10, %c0_11] : memref<1x512xf32, #tpu.memory_space<vmem>>, vector<1x512xf32>
    %14 = vector.broadcast %13 : vector<1x512xf32> to vector<128x512xf32>
    %15 = arith.addf %12, %14 : vector<128x512xf32>
    %cst_12 = arith.constant 0.000000e+00 : f32
    %16 = vector.broadcast %cst_12 : f32 to vector<128x512xf32>
    %17 = arith.cmpf ogt, %15, %16 : vector<128x512xf32>
    %cst_13 = arith.constant 2.000000e-01 : f32
    %18 = vector.broadcast %cst_13 : f32 to vector<128x512xf32>
    %19 = arith.mulf %18, %15 : vector<128x512xf32>
    %20 = arith.select %17, %15, %19 : vector<128x512xi1>, vector<128x512xf32>
    %21 = arith.truncf %20 : vector<128x512xf32> to vector<128x512xbf16>
    %c0_14 = arith.constant 0 : index
    %c0_15 = arith.constant 0 : index
    %22 = vector.load %arg6[%c0_14, %c0_15] : memref<512x256xbf16, #tpu.memory_space<vmem>>, vector<512x256xbf16>
    %cst_16 = arith.constant dense<0.000000e+00> : vector<128x256xf32>
    %23 = tpu.matmul %21, %22, %cst_16 {dimension_numbers = #tpu.dot_dimension_numbers<[1], [0], [0], [1], [0, 0, 1, 1], [], []>} : vector<128x512xbf16>, vector<512x256xbf16>, vector<128x256xf32> -> vector<128x256xf32>
    %c0_17 = arith.constant 0 : index
    %c0_18 = arith.constant 0 : index
    %24 = vector.load %arg7[%c0_17, %c0_18] : memref<1x256xf32, #tpu.memory_space<vmem>>, vector<1x256xf32>
    %25 = vector.broadcast %24 : vector<1x256xf32> to vector<128x256xf32>
    %26 = arith.addf %23, %25 : vector<128x256xf32>
    %cst_19 = arith.constant 0.000000e+00 : f32
    %27 = vector.broadcast %cst_19 : f32 to vector<128x256xf32>
    %28 = arith.cmpf ogt, %26, %27 : vector<128x256xf32>
    %cst_20 = arith.constant 2.000000e-01 : f32
    %29 = vector.broadcast %cst_20 : f32 to vector<128x256xf32>
    %30 = arith.mulf %29, %26 : vector<128x256xf32>
    %31 = arith.select %28, %26, %30 : vector<128x256xi1>, vector<128x256xf32>
    %32 = arith.truncf %31 : vector<128x256xf32> to vector<128x256xbf16>
    %c0_21 = arith.constant 0 : index
    %c0_22 = arith.constant 0 : index
    %33 = vector.load %arg8[%c0_21, %c0_22] : memref<256x128xbf16, #tpu.memory_space<vmem>>, vector<256x128xbf16>
    %cst_23 = arith.constant dense<0.000000e+00> : vector<128x128xf32>
    %34 = tpu.matmul %32, %33, %cst_23 {dimension_numbers = #tpu.dot_dimension_numbers<[1], [0], [0], [1], [0, 0, 1, 1], [], []>} : vector<128x256xbf16>, vector<256x128xbf16>, vector<128x128xf32> -> vector<128x128xf32>
    %c0_24 = arith.constant 0 : index
    %c0_25 = arith.constant 0 : index
    %35 = vector.load %arg9[%c0_24, %c0_25] : memref<1x128xf32, #tpu.memory_space<vmem>>, vector<1x128xf32>
    %36 = vector.broadcast %35 : vector<1x128xf32> to vector<128x128xf32>
    %37 = arith.addf %34, %36 : vector<128x128xf32>
    %38 = arith.negf %37 : vector<128x128xf32>
    %39 = math.exp %38 : vector<128x128xf32>
    %cst_26 = arith.constant 1.000000e+00 : f32
    %40 = vector.broadcast %cst_26 : f32 to vector<128x128xf32>
    %41 = arith.addf %40, %39 : vector<128x128xf32>
    %42 = arith.divf %40, %41 : vector<128x128xf32>
    %c0_27 = arith.constant 0 : index
    %c0_28 = arith.constant 0 : index
    %43 = vector.load %arg10[%c0_27, %c0_28] : memref<128x128xf32, #tpu.memory_space<vmem>>, vector<128x128xf32>
    tpu.vector_store %arg10[%c0_27, %c0_28], %42 {strides = array<i32>} : memref<128x128xf32, #tpu.memory_space<vmem>>, vector<128x128xf32>,
    return
  }
  func.func @transform_0(%arg0: i32) -> (i32, i32) {
    %c0_i32 = arith.constant 0 : i32
    %c0_i32_0 = arith.constant 0 : i32
    return %arg0, %c0_i32 : i32, i32
  }
  func.func @transform_1(%arg0: i32) -> (i32, i32) {
    %c0_i32 = arith.constant 0 : i32
    %c0_i32_0 = arith.constant 0 : i32
    return %arg0, %c0_i32 : i32, i32
  }
  func.func @transform_2(%arg0: i32) -> (i32, i32) {
    %c0_i32 = arith.constant 0 : i32
    %c0_i32_0 = arith.constant 0 : i32
    %c0_i32_1 = arith.constant 0 : i32
    return %c0_i32, %c0_i32_0 : i32, i32
  }
  func.func @transform_3(%arg0: i32) -> (i32, i32) {
    %c0_i32 = arith.constant 0 : i32
    %c0_i32_0 = arith.constant 0 : i32
    %c0_i32_1 = arith.constant 0 : i32
    return %c0_i32, %c0_i32_0 : i32, i32
  }
  func.func @transform_4(%arg0: i32) -> (i32, i32) {
    %c0_i32 = arith.constant 0 : i32
    %c0_i32_0 = arith.constant 0 : i32
    %c0_i32_1 = arith.constant 0 : i32
    return %c0_i32, %c0_i32_0 : i32, i32
  }
  func.func @transform_5(%arg0: i32) -> (i32, i32) {
    %c0_i32 = arith.constant 0 : i32
    %c0_i32_0 = arith.constant 0 : i32
    %c0_i32_1 = arith.constant 0 : i32
    return %c0_i32, %c0_i32_0 : i32, i32
  }
  func.func @transform_6(%arg0: i32) -> (i32, i32) {
    %c0_i32 = arith.constant 0 : i32
    %c0_i32_0 = arith.constant 0 : i32
    %c0_i32_1 = arith.constant 0 : i32
    return %c0_i32, %c0_i32_0 : i32, i32
  }
  func.func @transform_7(%arg0: i32) -> (i32, i32) {
    %c0_i32 = arith.constant 0 : i32
    %c0_i32_0 = arith.constant 0 : i32
    %c0_i32_1 = arith.constant 0 : i32
    return %c0_i32, %c0_i32_0 : i32, i32
  }
  func.func @transform_8(%arg0: i32) -> (i32, i32) {
    %c0_i32 = arith.constant 0 : i32
    %c0_i32_0 = arith.constant 0 : i32
    %c0_i32_1 = arith.constant 0 : i32
    return %c0_i32, %c0_i32_0 : i32, i32
  }
  func.func @transform_9(%arg0: i32) -> (i32, i32) {
    %c0_i32 = arith.constant 0 : i32
    %c0_i32_0 = arith.constant 0 : i32
    return %arg0, %c0_i32 : i32, i32
  }
}

</mosaic_0001>

<llo_original>
// kernel: tpu_custom_call.1
$region0: #{tpu_custom_call.1}
  #allocation0 [shape = 'u32[]', space=smem, size = 0x4, offset = 0x4, fixed_abs, tag = 'smem constant byte address 0x4 - core index']
  #allocation1 [shape = 'u32[144,128]{1,0:T(1,128)}', space=vmem, size = 0x12000, scoped, tag = 'internal scratch']
  %s0 = inlined_call_operand.vmem [shape: bf16[128,784], index: 0, kind: input, shape index: {}]
  %s1 = inlined_call_operand.hbm [shape: f32[128,1024], index: 1, kind: input, shape index: {}]
  %s2 = inlined_call_operand.hbm [shape: bf16[784,1024], index: 2, kind: input, shape index: {}]
  %s3 = inlined_call_operand.hbm [shape: bf16[1024,512], index: 3, kind: input, shape index: {}]
  %s4 = inlined_call_operand.hbm [shape: f32[1,512], index: 4, kind: input, shape index: {}]
  %s5 = inlined_call_operand.hbm [shape: bf16[512,256], index: 5, kind: input, shape index: {}]
  %s6 = inlined_call_operand.hbm [shape: f32[1,256], index: 6, kind: input, shape index: {}]
  %s7 = inlined_call_operand.hbm [shape: bf16[256,128], index: 7, kind: input, shape index: {}]
  %s8 = inlined_call_operand.hbm [shape: f32[1,128], index: 8, kind: input, shape index: {}]
  %s9 = inlined_call_operand.hbm [shape: f32[128,128], index: 9, kind: output, shape index: {}]
  %s10 = sld [smem:[#allocation0]]
  $region78: #{tpu_custom_call.1} parent=0
    _
  %s12 = ssub.s32 1, %s10
  %s13 = scalar_select 0, %s12, %s10
  $region1: #{tpu_custom_call.1} parent=0
    #allocation2 [shape = 'u8[524288]{0}', space=vmem, size = 0x80000, scoped, tag = 'input window, operand 1, single buffered']
    #allocation3 [shape = 's32[1]{0}', space=sflag, size = 0x4, scoped, tag = 'scoped memory for tpu_custom_call.1']
    #allocation4 [shape = 's32[1]{0}', space=sflag, size = 0x4, scoped, tag = 'scoped memory for tpu_custom_call.1']
    #allocation5 [shape = 'u8[1605632]{0}', space=vmem, size = 0x188000, scoped, tag = 'input window, operand 2, single buffered']
    #allocation6 [shape = 's32[1]{0}', space=sflag, size = 0x4, scoped, tag = 'scoped memory for tpu_custom_call.1']
    #allocation7 [shape = 'u8[1048576]{0}', space=vmem, size = 0x100000, scoped, tag = 'input window, operand 3, single buffered']
    #allocation8 [shape = 'u8[2048]{0}', space=vmem, size = 0x800, scoped, tag = 'input window, operand 4, single buffered']
    #allocation9 [shape = 's32[1]{0}', space=sflag, size = 0x4, scoped, tag = 'scoped memory for tpu_custom_call.1']
    #allocation10 [shape = 'u8[262144]{0}', space=vmem, size = 0x40000, scoped, tag = 'input window, operand 5, single buffered']
    #allocation11 [shape = 'u8[1024]{0}', space=vmem, size = 0x400, scoped, tag = 'input window, operand 6, single buffered']
    #allocation12 [shape = 's32[1]{0}', space=sflag, size = 0x4, scoped, tag = 'scoped memory for tpu_custom_call.1']
    #allocation13 [shape = 'u8[65536]{0}', space=vmem, size = 0x10000, scoped, tag = 'input window, operand 7, single buffered']
    #allocation14 [shape = 'u8[512]{0}', space=vmem, size = 0x400, scoped, tag = 'input window, operand 8, single buffered']
    #allocation15 [shape = 's32[1]{0}', space=sflag, size = 0x4, scoped, tag = 'scoped memory for tpu_custom_call.1']
    #allocation16 [shape = 'u8[65536]{0}', space=vmem, size = 0x10000, scoped, tag = 'output window, operand 0, single buffered']
    %14 = vsyncpa [#allocation3], 0
    %15 = vsyncpa [#allocation6], 0
    %16 = vsyncpa [#allocation9], 0
    %17 = vsyncpa [#allocation12], 0
    %18 = vsyncpa [#allocation15], 0
    %19 = vsyncpa [#allocation4], 0
    // Predicated region
    $region2: #{tpu_custom_call.1} parent=1 // pred_check
      _
    $region3: #{tpu_custom_call.1} parent=1 // pred_check_branch
      %21 = sbr.rel (0) target = $region5
    $region4: #{tpu_custom_call.1} parent=1 // pred_region
      _
    $region5: #{tpu_custom_call.1} parent=1 // pred_fallthru
      _
    // Predicated region
    $region6: #{tpu_custom_call.1} parent=1 // pred_check
      _
    $region7: #{tpu_custom_call.1} parent=1 // pred_check_branch
      %23 = sbr.rel (0) target = $region9
    $region8: #{tpu_custom_call.1} parent=1 // pred_region
      %s25 = ssub.s32 16384, 16384
      %26 = vsyncadd [#allocation3], %s25
      %s27 = sshll.u32 [#allocation2], 4
      %s28 = int_to_ptr.vmem [resolvable:$true] %s27
      %33 = dma.hbm_to_vmem [thread:$0]  %s1, 16384, %s28, [#allocation3], 1024, 1024, 64
    $region9: #{tpu_custom_call.1} parent=1 // pred_fallthru
      _
    // Predicated region
    $region10: #{tpu_custom_call.1} parent=1 // pred_check
      _
    $region11: #{tpu_custom_call.1} parent=1 // pred_check_branch
      %35 = sbr.rel (0) target = $region13
    $region12: #{tpu_custom_call.1} parent=1 // pred_region
      %s37 = ssub.s32 50176, 50176
      %38 = vsyncadd [#allocation6], %s37
      %s39 = sshll.u32 [#allocation5], 4
      %s40 = int_to_ptr.vmem [resolvable:$true] %s39
      %45 = dma.hbm_to_vmem [thread:$0]  %s2, 50176, %s40, [#allocation6], 512, 512, 32
    $region13: #{tpu_custom_call.1} parent=1 // pred_fallthru
      _
    // Predicated region
    $region14: #{tpu_custom_call.1} parent=1 // pred_check
      _
    $region15: #{tpu_custom_call.1} parent=1 // pred_check_branch
      %47 = sbr.rel (0) target = $region17
    $region16: #{tpu_custom_call.1} parent=1 // pred_region
      %s49 = ssub.s32 32768, 32768
      %50 = vsyncadd [#allocation6], %s49
      %s51 = sshll.u32 [#allocation7], 4
      %s52 = int_to_ptr.vmem [resolvable:$true] %s51
      %57 = dma.hbm_to_vmem [thread:$0]  %s3, 32768, %s52, [#allocation6], 256, 256, 16
    $region17: #{tpu_custom_call.1} parent=1 // pred_fallthru
      _
    // Predicated region
    $region18: #{tpu_custom_call.1} parent=1 // pred_check
      _
    $region19: #{tpu_custom_call.1} parent=1 // pred_check_branch
      %59 = sbr.rel (0) target = $region21
    $region20: #{tpu_custom_call.1} parent=1 // pred_region
      %s61 = ssub.s32 64, 64
      %62 = vsyncadd [#allocation9], %s61
      %s64 = sshll.u32 [#allocation8], 4
      %s65 = int_to_ptr.vmem [resolvable:$true] %s64
      %67 = dma.hbm_to_vmem [thread:$0]  %s4, 64, %s65, [#allocation9]
    $region21: #{tpu_custom_call.1} parent=1 // pred_fallthru
      _
    // Predicated region
    $region22: #{tpu_custom_call.1} parent=1 // pred_check
      _
    $region23: #{tpu_custom_call.1} parent=1 // pred_check_branch
      %69 = sbr.rel (0) target = $region25
    $region24: #{tpu_custom_call.1} parent=1 // pred_region
      %s71 = ssub.s32 8192, 8192
      %72 = vsyncadd [#allocation9], %s71
      %s73 = sshll.u32 [#allocation10], 4
      %s74 = int_to_ptr.vmem [resolvable:$true] %s73
      %79 = dma.hbm_to_vmem [thread:$0]  %s5, 8192, %s74, [#allocation9], 128, 128, 8
    $region25: #{tpu_custom_call.1} parent=1 // pred_fallthru
      _
    // Predicated region
    $region26: #{tpu_custom_call.1} parent=1 // pred_check
      _
    $region27: #{tpu_custom_call.1} parent=1 // pred_check_branch
      %81 = sbr.rel (0) target = $region29
    $region28: #{tpu_custom_call.1} parent=1 // pred_region
      %s83 = ssub.s32 32, 32
      %84 = vsyncadd [#allocation12], %s83
      %s86 = sshll.u32 [#allocation11], 4
      %s87 = int_to_ptr.vmem [resolvable:$true] %s86
      %89 = dma.hbm_to_vmem [thread:$0]  %s6, 32, %s87, [#allocation12]
    $region29: #{tpu_custom_call.1} parent=1 // pred_fallthru
      _
    // Predicated region
    $region30: #{tpu_custom_call.1} parent=1 // pred_check
      _
    $region31: #{tpu_custom_call.1} parent=1 // pred_check_branch
      %91 = sbr.rel (0) target = $region33
    $region32: #{tpu_custom_call.1} parent=1 // pred_region
      %s93 = ssub.s32 2048, 2048
      %94 = vsyncadd [#allocation12], %s93
      %s95 = sshll.u32 [#allocation13], 4
      %s96 = int_to_ptr.vmem [resolvable:$true] %s95
      %101 = dma.hbm_to_vmem [thread:$0]  %s7, 2048, %s96, [#allocation12], 64, 64, 4
    $region33: #{tpu_custom_call.1} parent=1 // pred_fallthru
      _
    // Predicated region
    $region34: #{tpu_custom_call.1} parent=1 // pred_check
      _
    $region35: #{tpu_custom_call.1} parent=1 // pred_check_branch
      %103 = sbr.rel (0) target = $region37
    $region36: #{tpu_custom_call.1} parent=1 // pred_region
      %s105 = ssub.s32 16, 16
      %106 = vsyncadd [#allocation15], %s105
      %s108 = sshll.u32 [#allocation14], 4
      %s109 = int_to_ptr.vmem [resolvable:$true] %s108
      %111 = dma.hbm_to_vmem [thread:$0]  %s8, 16, %s109, [#allocation15]
    $region37: #{tpu_custom_call.1} parent=1 // pred_fallthru
      _
    // Predicated region
    $region38: #{tpu_custom_call.1} parent=1 // pred_check
      _
    $region39: #{tpu_custom_call.1} parent=1 // pred_check_branch
      %113 = sbr.rel (0) target = $region41
    $region40: #{tpu_custom_call.1} parent=1 // pred_region
      %114 = dma.done [#allocation3], 16384
    $region41: #{tpu_custom_call.1} parent=1 // pred_fallthru
      _
    // Predicated region
    $region42: #{tpu_custom_call.1} parent=1 // pred_check
      _
    $region43: #{tpu_custom_call.1} parent=1 // pred_check_branch
      %116 = sbr.rel (0) target = $region45
    $region44: #{tpu_custom_call.1} parent=1 // pred_region
      %117 = dma.done [#allocation6], 50176
    $region45: #{tpu_custom_call.1} parent=1 // pred_fallthru
      _
    // Predicated region
    $region46: #{tpu_custom_call.1} parent=1 // pred_check
      _
    $region47: #{tpu_custom_call.1} parent=1 // pred_check_branch
      %119 = sbr.rel (0) target = $region49
    $region48: #{tpu_custom_call.1} parent=1 // pred_region
      %120 = dma.done [#allocation6], 32768
    $region49: #{tpu_custom_call.1} parent=1 // pred_fallthru
      _
    // Predicated region
    $region50: #{tpu_custom_call.1} parent=1 // pred_check
      _
    $region51: #{tpu_custom_call.1} parent=1 // pred_check_branch
      %122 = sbr.rel (0) target = $region53
    $region52: #{tpu_custom_call.1} parent=1 // pred_region
      %123 = dma.done [#allocation9], 64
    $region53: #{tpu_custom_call.1} parent=1 // pred_fallthru
      _
    // Predicated region
    $region54: #{tpu_custom_call.1} parent=1 // pred_check
      _
    $region55: #{tpu_custom_call.1} parent=1 // pred_check_branch
      %125 = sbr.rel (0) target = $region57
    $region56: #{tpu_custom_call.1} parent=1 // pred_region
      %126 = dma.done [#allocation9], 8192
    $region57: #{tpu_custom_call.1} parent=1 // pred_fallthru
      _
    // Predicated region
    $region58: #{tpu_custom_call.1} parent=1 // pred_check
      _
    $region59: #{tpu_custom_call.1} parent=1 // pred_check_branch
      %128 = sbr.rel (0) target = $region61
    $region60: #{tpu_custom_call.1} parent=1 // pred_region
      %129 = dma.done [#allocation12], 32
    $region61: #{tpu_custom_call.1} parent=1 // pred_fallthru
      _
    // Predicated region
    $region62: #{tpu_custom_call.1} parent=1 // pred_check
      _
    $region63: #{tpu_custom_call.1} parent=1 // pred_check_branch
      %131 = sbr.rel (0) target = $region65
    $region64: #{tpu_custom_call.1} parent=1 // pred_region
      %132 = dma.done [#allocation12], 2048
    $region65: #{tpu_custom_call.1} parent=1 // pred_fallthru
      _
    // Predicated region
    $region66: #{tpu_custom_call.1} parent=1 // pred_check
      _
    $region67: #{tpu_custom_call.1} parent=1 // pred_check_branch
      %134 = sbr.rel (0) target = $region69
    $region68: #{tpu_custom_call.1} parent=1 // pred_region
      %135 = dma.done [#allocation15], 16
    $region69: #{tpu_custom_call.1} parent=1 // pred_fallthru
      _
    %v137 = vld [vmem:[%s0] sm:$0xff]
    %v138 = vld [vmem:[%s0 + $0x8] sm:$0xff]
    %v139 = vld [vmem:[%s0 + $0x10] sm:$0xff]
    %v140 = vld [vmem:[%s0 + $0x18] sm:$0xf]
    %v141 = vld [vmem:[%s0 + $0x1c] sm:$0xff]
    %v142 = vld [vmem:[%s0 + $0x24] sm:$0xff]
    %v143 = vld [vmem:[%s0 + $0x2c] sm:$0xff]
    %v144 = vld [vmem:[%s0 + $0x34] sm:$0xf]
    %v145 = vld [vmem:[%s0 + $0x38] sm:$0xff]
    %v146 = vld [vmem:[%s0 + $0x40] sm:$0xff]
    %v147 = vld [vmem:[%s0 + $0x48] sm:$0xff]
    %v148 = vld [vmem:[%s0 + $0x50] sm:$0xf]
    %v149 = vld [vmem:[%s0 + $0x54] sm:$0xff]
    %v150 = vld [vmem:[%s0 + $0x5c] sm:$0xff]
    %v151 = vld [vmem:[%s0 + $0x64] sm:$0xff]
    %v152 = vld [vmem:[%s0 + $0x6c] sm:$0xf]
    %v153 = vld [vmem:[%s0 + $0x70] sm:$0xff]
    %v154 = vld [vmem:[%s0 + $0x78] sm:$0xff]
    %v155 = vld [vmem:[%s0 + $0x80] sm:$0xff]
    %v156 = vld [vmem:[%s0 + $0x88] sm:$0xf]
    %v157 = vld [vmem:[%s0 + $0x8c] sm:$0xff]
    %v158 = vld [vmem:[%s0 + $0x94] sm:$0xff]
    %v159 = vld [vmem:[%s0 + $0x9c] sm:$0xff]
    %v160 = vld [vmem:[%s0 + $0xa4] sm:$0xf]
    %v161 = vld [vmem:[%s0 + $0xa8] sm:$0xff]
    %v162 = vld [vmem:[%s0 + $0xb0] sm:$0xff]
    %v163 = vld [vmem:[%s0 + $0xb8] sm:$0xff]
    %v164 = vld [vmem:[%s0 + $0xc0] sm:$0xf]
    %v165 = vld [vmem:[%s0 + $0xc4] sm:$0xff]
    %v166 = vld [vmem:[%s0 + $0xcc] sm:$0xff]
    %v167 = vld [vmem:[%s0 + $0xd4] sm:$0xff]
    %v168 = vld [vmem:[%s0 + $0xdc] sm:$0xf]
    %v169 = vld [vmem:[%s0 + $0xe0] sm:$0xff]
    %v170 = vld [vmem:[%s0 + $0xe8] sm:$0xff]
    %v171 = vld [vmem:[%s0 + $0xf0] sm:$0xff]
    %v172 = vld [vmem:[%s0 + $0xf8] sm:$0xf]
    %v173 = vld [vmem:[%s0 + $0xfc] sm:$0xff]
    %v174 = vld [vmem:[%s0 + $0x104] sm:$0xff]
    %v175 = vld [vmem:[%s0 + $0x10c] sm:$0xff]
    %v176 = vld [vmem:[%s0 + $0x114] sm:$0xf]
    %v177 = vld [vmem:[%s0 + $0x118] sm:$0xff]
    %v178 = vld [vmem:[%s0 + $0x120] sm:$0xff]
    %v179 = vld [vmem:[%s0 + $0x128] sm:$0xff]
    %v180 = vld [vmem:[%s0 + $0x130] sm:$0xf]
    %v181 = vld [vmem:[%s0 + $0x134] sm:$0xff]
    %v182 = vld [vmem:[%s0 + $0x13c] sm:$0xff]
    %v183 = vld [vmem:[%s0 + $0x144] sm:$0xff]
    %v184 = vld [vmem:[%s0 + $0x14c] sm:$0xf]
    %v185 = vld [vmem:[%s0 + $0x150] sm:$0xff]
    %v186 = vld [vmem:[%s0 + $0x158] sm:$0xff]
    %v187 = vld [vmem:[%s0 + $0x160] sm:$0xff]
    %v188 = vld [vmem:[%s0 + $0x168] sm:$0xf]
    %v189 = vld [vmem:[%s0 + $0x16c] sm:$0xff]
    %v190 = vld [vmem:[%s0 + $0x174] sm:$0xff]
    %v191 = vld [vmem:[%s0 + $0x17c] sm:$0xff]
    %v192 = vld [vmem:[%s0 + $0x184] sm:$0xf]
    %v193 = vld [vmem:[%s0 + $0x188] sm:$0xff]
    %v194 = vld [vmem:[%s0 + $0x190] sm:$0xff]
    %v195 = vld [vmem:[%s0 + $0x198] sm:$0xff]
    %v196 = vld [vmem:[%s0 + $0x1a0] sm:$0xf]
    %v197 = vld [vmem:[%s0 + $0x1a4] sm:$0xff]
    %v198 = vld [vmem:[%s0 + $0x1ac] sm:$0xff]
    %v199 = vld [vmem:[%s0 + $0x1b4] sm:$0xff]
    %v200 = vld [vmem:[%s0 + $0x1bc] sm:$0xf]
    %v201 = vld [vmem:[#allocation5] sm:$0xff]
    %v202 = vld [vmem:[#allocation5 + $0x8] sm:$0xff]
    %v203 = vld [vmem:[#allocation5 + $0x10] sm:$0xff]
    %v204 = vld [vmem:[#allocation5 + $0x18] sm:$0xff]
    %v205 = vld [vmem:[#allocation5 + $0x20] sm:$0xff]
    %v206 = vld [vmem:[#allocation5 + $0x28] sm:$0xff]
    %v207 = vld [vmem:[#allocation5 + $0x30] sm:$0xff]
    %v208 = vld [vmem:[#allocation5 + $0x38] sm:$0xff]
    %v209 = vld [vmem:[#allocation5 + $0x40] sm:$0xff]
    %v210 = vld [vmem:[#allocation5 + $0x48] sm:$0xff]
    %v211 = vld [vmem:[#allocation5 + $0x50] sm:$0xff]
    %v212 = vld [vmem:[#allocation5 + $0x58] sm:$0xff]
    %v213 = vld [vmem:[#allocation5 + $0x60] sm:$0xff]
    %v214 = vld [vmem:[#allocation5 + $0x68] sm:$0xff]
    %v215 = vld [vmem:[#allocation5 + $0x70] sm:$0xff]
    %v216 = vld [vmem:[#allocation5 + $0x78] sm:$0xff]
    %v217 = vld [vmem:[#allocation5 + $0x80] sm:$0xff]
    %v218 = vld [vmem:[#allocation5 + $0x88] sm:$0xff]
    %v219 = vld [vmem:[#allocation5 + $0x90] sm:$0xff]
    %v220 = vld [vmem:[#allocation5 + $0x98] sm:$0xff]
    %v221 = vld [vmem:[#allocation5 + $0xa0] sm:$0xff]
    %v222 = vld [vmem:[#allocation5 + $0xa8] sm:$0xff]
    %v223 = vld [vmem:[#allocation5 + $0xb0] sm:$0xff]
    %v224 = vld [vmem:[#allocation5 + $0xb8] sm:$0xff]
    %v225 = vld [vmem:[#allocation5 + $0xc0] sm:$0xff]
    %v226 = vld [vmem:[#allocation5 + $0xc8] sm:$0xff]
    %v227 = vld [vmem:[#allocation5 + $0xd0] sm:$0xff]
    %v228 = vld [vmem:[#allocation5 + $0xd8] sm:$0xff]
    %v229 = vld [vmem:[#allocation5 + $0xe0] sm:$0xff]
    %v230 = vld [vmem:[#allocation5 + $0xe8] sm:$0xff]
    %v231 = vld [vmem:[#allocation5 + $0xf0] sm:$0xff]
    %v232 = vld [vmem:[#allocation5 + $0xf8] sm:$0xff]
    %v233 = vld [vmem:[#allocation5 + $0x100] sm:$0xff]
    %v234 = vld [vmem:[#allocation5 + $0x108] sm:$0xff]
    %v235 = vld [vmem:[#allocation5 + $0x110] sm:$0xff]
    %v236 = vld [vmem:[#allocation5 + $0x118] sm:$0xff]
    %v237 = vld [vmem:[#allocation5 + $0x120] sm:$0xff]
    %v238 = vld [vmem:[#allocation5 + $0x128] sm:$0xff]
    %v239 = vld [vmem:[#allocation5 + $0x130] sm:$0xff]
    %v240 = vld [vmem:[#allocation5 + $0x138] sm:$0xff]
    %v241 = vld [vmem:[#allocation5 + $0x140] sm:$0xff]
    %v242 = vld [vmem:[#allocation5 + $0x148] sm:$0xff]
    %v243 = vld [vmem:[#allocation5 + $0x150] sm:$0xff]
    %v244 = vld [vmem:[#allocation5 + $0x158] sm:$0xff]
    %v245 = vld [vmem:[#allocation5 + $0x160] sm:$0xff]
    %v246 = vld [vmem:[#allocation5 + $0x168] sm:$0xff]
    %v247 = vld [vmem:[#allocation5 + $0x170] sm:$0xff]
    %v248 = vld [vmem:[#allocation5 + $0x178] sm:$0xff]
    %v249 = vld [vmem:[#allocation5 + $0x180] sm:$0xff]
    %v250 = vld [vmem:[#allocation5 + $0x188] sm:$0xff]
    %v251 = vld [vmem:[#allocation5 + $0x190] sm:$0xff]
    %v252 = vld [vmem:[#allocation5 + $0x198] sm:$0xff]
    %v253 = vld [vmem:[#allocation5 + $0x1a0] sm:$0xff]
    %v254 = vld [vmem:[#allocation5 + $0x1a8] sm:$0xff]
    %v255 = vld [vmem:[#allocation5 + $0x1b0] sm:$0xff]
    %v256 = vld [vmem:[#allocation5 + $0x1b8] sm:$0xff]
    %v257 = vld [vmem:[#allocation5 + $0x1c0] sm:$0xff]
    %v258 = vld [vmem:[#allocation5 + $0x1c8] sm:$0xff]
    %v259 = vld [vmem:[#allocation5 + $0x1d0] sm:$0xff]
    %v260 = vld [vmem:[#allocation5 + $0x1d8] sm:$0xff]
    %v261 = vld [vmem:[#allocation5 + $0x1e0] sm:$0xff]
    %v262 = vld [vmem:[#allocation5 + $0x1e8] sm:$0xff]
    %v263 = vld [vmem:[#allocation5 + $0x1f0] sm:$0xff]
    %v264 = vld [vmem:[#allocation5 + $0x1f8] sm:$0xff]
    %v265 = vld [vmem:[#allocation5 + $0x200] sm:$0xff]
    %v266 = vld [vmem:[#allocation5 + $0x208] sm:$0xff]
    %v267 = vld [vmem:[#allocation5 + $0x210] sm:$0xff]
    %v268 = vld [vmem:[#allocation5 + $0x218] sm:$0xff]
    %v269 = vld [vmem:[#allocation5 + $0x220] sm:$0xff]
    %v270 = vld [vmem:[#allocation5 + $0x228] sm:$0xff]
    %v271 = vld [vmem:[#allocation5 + $0x230] sm:$0xff]
    %v272 = vld [vmem:[#allocation5 + $0x238] sm:$0xff]
    %v273 = vld [vmem:[#allocation5 + $0x240] sm:$0xff]
    %v274 = vld [vmem:[#allocation5 + $0x248] sm:$0xff]
    %v275 = vld [vmem:[#allocation5 + $0x250] sm:$0xff]
    %v276 = vld [vmem:[#allocation5 + $0x258] sm:$0xff]
    %v277 = vld [vmem:[#allocation5 + $0x260] sm:$0xff]
    %v278 = vld [vmem:[#allocation5 + $0x268] sm:$0xff]
    %v279 = vld [vmem:[#allocation5 + $0x270] sm:$0xff]
    %v280 = vld [vmem:[#allocation5 + $0x278] sm:$0xff]
    %v281 = vld [vmem:[#allocation5 + $0x280] sm:$0xff]
    %v282 = vld [vmem:[#allocation5 + $0x288] sm:$0xff]
    %v283 = vld [vmem:[#allocation5 + $0x290] sm:$0xff]
    %v284 = vld [vmem:[#allocation5 + $0x298] sm:$0xff]
    %v285 = vld [vmem:[#allocation5 + $0x2a0] sm:$0xff]
    %v286 = vld [vmem:[#allocation5 + $0x2a8] sm:$0xff]
    %v287 = vld [vmem:[#allocation5 + $0x2b0] sm:$0xff]
    %v288 = vld [vmem:[#allocation5 + $0x2b8] sm:$0xff]
    %v289 = vld [vmem:[#allocation5 + $0x2c0] sm:$0xff]
    %v290 = vld [vmem:[#allocation5 + $0x2c8] sm:$0xff]
    %v291 = vld [vmem:[#allocation5 + $0x2d0] sm:$0xff]
    %v292 = vld [vmem:[#allocation5 + $0x2d8] sm:$0xff]
    %v293 = vld [vmem:[#allocation5 + $0x2e0] sm:$0xff]
    %v294 = vld [vmem:[#allocation5 + $0x2e8] sm:$0xff]
    %v295 = vld [vmem:[#allocation5 + $0x2f0] sm:$0xff]
    %v296 = vld [vmem:[#allocation5 + $0x2f8] sm:$0xff]
    %v297 = vld [vmem:[#allocation5 + $0x300] sm:$0xff]
    %v298 = vld [vmem:[#allocation5 + $0x308] sm:$0xff]
    %v299 = vld [vmem:[#allocation5 + $0x310] sm:$0xff]
    %v300 = vld [vmem:[#allocation5 + $0x318] sm:$0xff]
    %v301 = vld [vmem:[#allocation5 + $0x320] sm:$0xff]
    %v302 = vld [vmem:[#allocation5 + $0x328] sm:$0xff]
    %v303 = vld [vmem:[#allocation5 + $0x330] sm:$0xff]
    %v304 = vld [vmem:[#allocation5 + $0x338] sm:$0xff]
    %v305 = vld [vmem:[#allocation5 + $0x340] sm:$0xff]
    %v306 = vld [vmem:[#allocation5 + $0x348] sm:$0xff]
    %v307 = vld [vmem:[#allocation5 + $0x350] sm:$0xff]
    %v308 = vld [vmem:[#allocation5 + $0x358] sm:$0xff]
    %v309 = vld [vmem:[#allocation5 + $0x360] sm:$0xff]
    %v310 = vld [vmem:[#allocation5 + $0x368] sm:$0xff]
    %v311 = vld [vmem:[#allocation5 + $0x370] sm:$0xff]
    %v312 = vld [vmem:[#allocation5 + $0x378] sm:$0xff]
    %v313 = vld [vmem:[#allocation5 + $0x380] sm:$0xff]
    %v314 = vld [vmem:[#allocation5 + $0x388] sm:$0xff]
    %v315 = vld [vmem:[#allocation5 + $0x390] sm:$0xff]
    %v316 = vld [vmem:[#allocation5 + $0x398] sm:$0xff]
    %v317 = vld [vmem:[#allocation5 + $0x3a0] sm:$0xff]
    %v318 = vld [vmem:[#allocation5 + $0x3a8] sm:$0xff]
    %v319 = vld [vmem:[#allocation5 + $0x3b0] sm:$0xff]
    %v320 = vld [vmem:[#allocation5 + $0x3b8] sm:$0xff]
    %v321 = vld [vmem:[#allocation5 + $0x3c0] sm:$0xff]
    %v322 = vld [vmem:[#allocation5 + $0x3c8] sm:$0xff]
    %v323 = vld [vmem:[#allocation5 + $0x3d0] sm:$0xff]
    %v324 = vld [vmem:[#allocation5 + $0x3d8] sm:$0xff]
    %v325 = vld [vmem:[#allocation5 + $0x3e0] sm:$0xff]
    %v326 = vld [vmem:[#allocation5 + $0x3e8] sm:$0xff]
    %v327 = vld [vmem:[#allocation5 + $0x3f0] sm:$0xff]
    %v328 = vld [vmem:[#allocation5 + $0x3f8] sm:$0xff]
    %v329 = vld [vmem:[#allocation5 + $0x400] sm:$0xff]
    %v330 = vld [vmem:[#allocation5 + $0x408] sm:$0xff]
    %v331 = vld [vmem:[#allocation5 + $0x410] sm:$0xff]
    %v332 = vld [vmem:[#allocation5 + $0x418] sm:$0xff]
    %v333 = vld [vmem:[#allocation5 + $0x420] sm:$0xff]
    %v334 = vld [vmem:[#allocation5 + $0x428] sm:$0xff]
    %v335 = vld [vmem:[#allocation5 + $0x430] sm:$0xff]
    %v336 = vld [vmem:[#allocation5 + $0x438] sm:$0xff]
    %v337 = vld [vmem:[#allocation5 + $0x440] sm:$0xff]
    %v338 = vld [vmem:[#allocation5 + $0x448] sm:$0xff]
    %v339 = vld [vmem:[#allocation5 + $0x450] sm:$0xff]
    %v340 = vld [vmem:[#allocation5 + $0x458] sm:$0xff]
    %v341 = vld [vmem:[#allocation5 + $0x460] sm:$0xff]
    %v342 = vld [vmem:[#allocation5 + $0x468] sm:$0xff]
    %v343 = vld [vmem:[#allocation5 + $0x470] sm:$0xff]
    %v344 = vld [vmem:[#allocation5 + $0x478] sm:$0xff]
    %v345 = vld [vmem:[#allocation5 + $0x480] sm:$0xff]
    %v346 = vld [vmem:[#allocation5 + $0x488] sm:$0xff]
    %v347 = vld [vmem:[#allocation5 + $0x490] sm:$0xff]
    %v348 = vld [vmem:[#allocation5 + $0x498] sm:$0xff]
    %v349 = vld [vmem:[#allocation5 + $0x4a0] sm:$0xff]
    %v350 = vld [vmem:[#allocation5 + $0x4a8] sm:$0xff]
    %v351 = vld [vmem:[#allocation5 + $0x4b0] sm:$0xff]
    %v352 = vld [vmem:[#allocation5 + $0x4b8] sm:$0xff]
    %v353 = vld [vmem:[#allocation5 + $0x4c0] sm:$0xff]
    %v354 = vld [vmem:[#allocation5 + $0x4c8] sm:$0xff]
    %v355 = vld [vmem:[#allocation5 + $0x4d0] sm:$0xff]
    %v356 = vld [vmem:[#allocation5 + $0x4d8] sm:$0xff]
    %v357 = vld [vmem:[#allocation5 + $0x4e0] sm:$0xff]
    %v358 = vld [vmem:[#allocation5 + $0x4e8] sm:$0xff]
    %v359 = vld [vmem:[#allocation5 + $0x4f0] sm:$0xff]
    %v360 = vld [vmem:[#allocation5 + $0x4f8] sm:$0xff]
    %v361 = vld [vmem:[#allocation5 + $0x500] sm:$0xff]
    %v362 = vld [vmem:[#allocation5 + $0x508] sm:$0xff]
    %v363 = vld [vmem:[#allocation5 + $0x510] sm:$0xff]
    %v364 = vld [vmem:[#allocation5 + $0x518] sm:$0xff]
    %v365 = vld [vmem:[#allocation5 + $0x520] sm:$0xff]
    %v366 = vld [vmem:[#allocation5 + $0x528] sm:$0xff]
    %v367 = vld [vmem:[#allocation5 + $0x530] sm:$0xff]
    %v368 = vld [vmem:[#allocation5 + $0x538] sm:$0xff]
    %v369 = vld [vmem:[#allocation5 + $0x540] sm:$0xff]
    %v370 = vld [vmem:[#allocation5 + $0x548] sm:$0xff]
    %v371 = vld [vmem:[#allocation5 + $0x550] sm:$0xff]
    %v372 = vld [vmem:[#allocation5 + $0x558] sm:$0xff]
    %v373 = vld [vmem:[#allocation5 + $0x560] sm:$0xff]
    %v374 = vld [vmem:[#allocation5 + $0x568] sm:$0xff]
    %v375 = vld [vmem:[#allocation5 + $0x570] sm:$0xff]
    %v376 = vld [vmem:[#allocation5 + $0x578] sm:$0xff]
    %v377 = vld [vmem:[#allocation5 + $0x580] sm:$0xff]
    %v378 = vld [vmem:[#allocation5 + $0x588] sm:$0xff]
    %v379 = vld [vmem:[#allocation5 + $0x590] sm:$0xff]
    %v380 = vld [vmem:[#allocation5 + $0x598] sm:$0xff]
    %v381 = vld [vmem:[#allocation5 + $0x5a0] sm:$0xff]
    %v382 = vld [vmem:[#allocation5 + $0x5a8] sm:$0xff]
    %v383 = vld [vmem:[#allocation5 + $0x5b0] sm:$0xff]
    %v384 = vld [vmem:[#allocation5 + $0x5b8] sm:$0xff]
    %v385 = vld [vmem:[#allocation5 + $0x5c0] sm:$0xff]
    %v386 = vld [vmem:[#allocation5 + $0x5c8] sm:$0xff]
    %v387 = vld [vmem:[#allocation5 + $0x5d0] sm:$0xff]
    %v388 = vld [vmem:[#allocation5 + $0x5d8] sm:$0xff]
    %v389 = vld [vmem:[#allocation5 + $0x5e0] sm:$0xff]
    %v390 = vld [vmem:[#allocation5 + $0x5e8] sm:$0xff]
    %v391 = vld [vmem:[#allocation5 + $0x5f0] sm:$0xff]
    %v392 = vld [vmem:[#allocation5 + $0x5f8] sm:$0xff]
    %v393 = vld [vmem:[#allocation5 + $0x600] sm:$0xff]
    %v394 = vld [vmem:[#allocation5 + $0x608] sm:$0xff]
    %v395 = vld [vmem:[#allocation5 + $0x610] sm:$0xff]
    %v396 = vld [vmem:[#allocation5 + $0x618] sm:$0xff]
    %v397 = vld [vmem:[#allocation5 + $0x620] sm:$0xff]
    %v398 = vld [vmem:[#allocation5 + $0x628] sm:$0xff]
    %v399 = vld [vmem:[#allocation5 + $0x630] sm:$0xff]
    %v400 = vld [vmem:[#allocation5 + $0x638] sm:$0xff]
    %v401 = vld [vmem:[#allocation5 + $0x640] sm:$0xff]
    %v402 = vld [vmem:[#allocation5 + $0x648] sm:$0xff]
    %v403 = vld [vmem:[#allocation5 + $0x650] sm:$0xff]
    %v404 = vld [vmem:[#allocation5 + $0x658] sm:$0xff]
    %v405 = vld [vmem:[#allocation5 + $0x660] sm:$0xff]
    %v406 = vld [vmem:[#allocation5 + $0x668] sm:$0xff]
    %v407 = vld [vmem:[#allocation5 + $0x670] sm:$0xff]
    %v408 = vld [vmem:[#allocation5 + $0x678] sm:$0xff]
    %v409 = vld [vmem:[#allocation5 + $0x680] sm:$0xff]
    %v410 = vld [vmem:[#allocation5 + $0x688] sm:$0xff]
    %v411 = vld [vmem:[#allocation5 + $0x690] sm:$0xff]
    %v412 = vld [vmem:[#allocation5 + $0x698] sm:$0xff]
    %v413 = vld [vmem:[#allocation5 + $0x6a0] sm:$0xff]
    %v414 = vld [vmem:[#allocation5 + $0x6a8] sm:$0xff]
    %v415 = vld [vmem:[#allocation5 + $0x6b0] sm:$0xff]
    %v416 = vld [vmem:[#allocation5 + $0x6b8] sm:$0xff]
    %v417 = vld [vmem:[#allocation5 + $0x6c0] sm:$0xff]
    %v418 = vld [vmem:[#allocation5 + $0x6c8] sm:$0xff]
    %v419 = vld [vmem:[#allocation5 + $0x6d0] sm:$0xff]
    %v420 = vld [vmem:[#allocation5 + $0x6d8] sm:$0xff]
    %v421 = vld [vmem:[#allocation5 + $0x6e0] sm:$0xff]
    %v422 = vld [vmem:[#allocation5 + $0x6e8] sm:$0xff]
    %v423 = vld [vmem:[#allocation5 + $0x6f0] sm:$0xff]
    %v424 = vld [vmem:[#allocation5 + $0x6f8] sm:$0xff]
    %v425 = vld [vmem:[#allocation5 + $0x700] sm:$0xff]
    %v426 = vld [vmem:[#allocation5 + $0x708] sm:$0xff]
    %v427 = vld [vmem:[#allocation5 + $0x710] sm:$0xff]
    %v428 = vld [vmem:[#allocation5 + $0x718] sm:$0xff]
    %v429 = vld [vmem:[#allocation5 + $0x720] sm:$0xff]
    %v430 = vld [vmem:[#allocation5 + $0x728] sm:$0xff]
    %v431 = vld [vmem:[#allocation5 + $0x730] sm:$0xff]
    %v432 = vld [vmem:[#allocation5 + $0x738] sm:$0xff]
    %v433 = vld [vmem:[#allocation5 + $0x740] sm:$0xff]
    %v434 = vld [vmem:[#allocation5 + $0x748] sm:$0xff]
    %v435 = vld [vmem:[#allocation5 + $0x750] sm:$0xff]
    %v436 = vld [vmem:[#allocation5 + $0x758] sm:$0xff]
    %v437 = vld [vmem:[#allocation5 + $0x760] sm:$0xff]
    %v438 = vld [vmem:[#allocation5 + $0x768] sm:$0xff]
    %v439 = vld [vmem:[#allocation5 + $0x770] sm:$0xff]
    %v440 = vld [vmem:[#allocation5 + $0x778] sm:$0xff]
    %v441 = vld [vmem:[#allocation5 + $0x780] sm:$0xff]
    %v442 = vld [vmem:[#allocation5 + $0x788] sm:$0xff]
    %v443 = vld [vmem:[#allocation5 + $0x790] sm:$0xff]
    %v444 = vld [vmem:[#allocation5 + $0x798] sm:$0xff]
    %v445 = vld [vmem:[#allocation5 + $0x7a0] sm:$0xff]
    %v446 = vld [vmem:[#allocation5 + $0x7a8] sm:$0xff]
    %v447 = vld [vmem:[#allocation5 + $0x7b0] sm:$0xff]
    %v448 = vld [vmem:[#allocation5 + $0x7b8] sm:$0xff]
    %v449 = vld [vmem:[#allocation5 + $0x7c0] sm:$0xff]
    %v450 = vld [vmem:[#allocation5 + $0x7c8] sm:$0xff]
    %v451 = vld [vmem:[#allocation5 + $0x7d0] sm:$0xff]
    %v452 = vld [vmem:[#allocation5 + $0x7d8] sm:$0xff]
    %v453 = vld [vmem:[#allocation5 + $0x7e0] sm:$0xff]
    %v454 = vld [vmem:[#allocation5 + $0x7e8] sm:$0xff]
    %v455 = vld [vmem:[#allocation5 + $0x7f0] sm:$0xff]
    %v456 = vld [vmem:[#allocation5 + $0x7f8] sm:$0xff]
    %v457 = vld [vmem:[#allocation5 + $0x800] sm:$0xff]
    %v458 = vld [vmem:[#allocation5 + $0x808] sm:$0xff]
    %v459 = vld [vmem:[#allocation5 + $0x810] sm:$0xff]
    %v460 = vld [vmem:[#allocation5 + $0x818] sm:$0xff]
    %v461 = vld [vmem:[#allocation5 + $0x820] sm:$0xff]
    %v462 = vld [vmem:[#allocation5 + $0x828] sm:$0xff]
    %v463 = vld [vmem:[#allocation5 + $0x830] sm:$0xff]
    %v464 = vld [vmem:[#allocation5 + $0x838] sm:$0xff]
    %v465 = vld [vmem:[#allocation5 + $0x840] sm:$0xff]
    %v466 = vld [vmem:[#allocation5 + $0x848] sm:$0xff]
    %v467 = vld [vmem:[#allocation5 + $0x850] sm:$0xff]
    %v468 = vld [vmem:[#allocation5 + $0x858] sm:$0xff]
    %v469 = vld [vmem:[#allocation5 + $0x860] sm:$0xff]
    %v470 = vld [vmem:[#allocation5 + $0x868] sm:$0xff]
    %v471 = vld [vmem:[#allocation5 + $0x870] sm:$0xff]
    %v472 = vld [vmem:[#allocation5 + $0x878] sm:$0xff]
    %v473 = vld [vmem:[#allocation5 + $0x880] sm:$0xff]
    %v474 = vld [vmem:[#allocation5 + $0x888] sm:$0xff]
    %v475 = vld [vmem:[#allocation5 + $0x890] sm:$0xff]
    %v476 = vld [vmem:[#allocation5 + $0x898] sm:$0xff]
    %v477 = vld [vmem:[#allocation5 + $0x8a0] sm:$0xff]
    %v478 = vld [vmem:[#allocation5 + $0x8a8] sm:$0xff]
    %v479 = vld [vmem:[#allocation5 + $0x8b0] sm:$0xff]
    %v480 = vld [vmem:[#allocation5 + $0x8b8] sm:$0xff]
    %v481 = vld [vmem:[#allocation5 + $0x8c0] sm:$0xff]
    %v482 = vld [vmem:[#allocation5 + $0x8c8] sm:$0xff]
    %v483 = vld [vmem:[#allocation5 + $0x8d0] sm:$0xff]
    %v484 = vld [vmem:[#allocation5 + $0x8d8] sm:$0xff]
    %v485 = vld [vmem:[#allocation5 + $0x8e0] sm:$0xff]
    %v486 = vld [vmem:[#allocation5 + $0x8e8] sm:$0xff]
    %v487 = vld [vmem:[#allocation5 + $0x8f0] sm:$0xff]
    %v488 = vld [vmem:[#allocation5 + $0x8f8] sm:$0xff]
    %v489 = vld [vmem:[#allocation5 + $0x900] sm:$0xff]
    %v490 = vld [vmem:[#allocation5 + $0x908] sm:$0xff]
    %v491 = vld [vmem:[#allocation5 + $0x910] sm:$0xff]
    %v492 = vld [vmem:[#allocation5 + $0x918] sm:$0xff]
    %v493 = vld [vmem:[#allocation5 + $0x920] sm:$0xff]
    %v494 = vld [vmem:[#allocation5 + $0x928] sm:$0xff]
    %v495 = vld [vmem:[#allocation5 + $0x930] sm:$0xff]
    %v496 = vld [vmem:[#allocation5 + $0x938] sm:$0xff]
    %v497 = vld [vmem:[#allocation5 + $0x940] sm:$0xff]
    %v498 = vld [vmem:[#allocation5 + $0x948] sm:$0xff]
    %v499 = vld [vmem:[#allocation5 + $0x950] sm:$0xff]
    %v500 = vld [vmem:[#allocation5 + $0x958] sm:$0xff]
    %v501 = vld [vmem:[#allocation5 + $0x960] sm:$0xff]
    %v502 = vld [vmem:[#allocation5 + $0x968] sm:$0xff]
    %v503 = vld [vmem:[#allocation5 + $0x970] sm:$0xff]
    %v504 = vld [vmem:[#allocation5 + $0x978] sm:$0xff]
    %v505 = vld [vmem:[#allocation5 + $0x980] sm:$0xff]
    %v506 = vld [vmem:[#allocation5 + $0x988] sm:$0xff]
    %v507 = vld [vmem:[#allocation5 + $0x990] sm:$0xff]
    %v508 = vld [vmem:[#allocation5 + $0x998] sm:$0xff]
    %v509 = vld [vmem:[#allocation5 + $0x9a0] sm:$0xff]
    %v510 = vld [vmem:[#allocation5 + $0x9a8] sm:$0xff]
    %v511 = vld [vmem:[#allocation5 + $0x9b0] sm:$0xff]
    %v512 = vld [vmem:[#allocation5 + $0x9b8] sm:$0xff]
    %v513 = vld [vmem:[#allocation5 + $0x9c0] sm:$0xff]
    %v514 = vld [vmem:[#allocation5 + $0x9c8] sm:$0xff]
    %v515 = vld [vmem:[#allocation5 + $0x9d0] sm:$0xff]
    %v516 = vld [vmem:[#allocation5 + $0x9d8] sm:$0xff]
    %v517 = vld [vmem:[#allocation5 + $0x9e0] sm:$0xff]
    %v518 = vld [vmem:[#allocation5 + $0x9e8] sm:$0xff]
    %v519 = vld [vmem:[#allocation5 + $0x9f0] sm:$0xff]
    %v520 = vld [vmem:[#allocation5 + $0x9f8] sm:$0xff]
    %v521 = vld [vmem:[#allocation5 + $0xa00] sm:$0xff]
    %v522 = vld [vmem:[#allocation5 + $0xa08] sm:$0xff]
    %v523 = vld [vmem:[#allocation5 + $0xa10] sm:$0xff]
    %v524 = vld [vmem:[#allocation5 + $0xa18] sm:$0xff]
    %v525 = vld [vmem:[#allocation5 + $0xa20] sm:$0xff]
    %v526 = vld [vmem:[#allocation5 + $0xa28] sm:$0xff]
    %v527 = vld [vmem:[#allocation5 + $0xa30] sm:$0xff]
    %v528 = vld [vmem:[#allocation5 + $0xa38] sm:$0xff]
    %v529 = vld [vmem:[#allocation5 + $0xa40] sm:$0xff]
    %v530 = vld [vmem:[#allocation5 + $0xa48] sm:$0xff]
    %v531 = vld [vmem:[#allocation5 + $0xa50] sm:$0xff]
    %v532 = vld [vmem:[#allocation5 + $0xa58] sm:$0xff]
    %v533 = vld [vmem:[#allocation5 + $0xa60] sm:$0xff]
    %v534 = vld [vmem:[#allocation5 + $0xa68] sm:$0xff]
    %v535 = vld [vmem:[#allocation5 + $0xa70] sm:$0xff]
    %v536 = vld [vmem:[#allocation5 + $0xa78] sm:$0xff]
    %v537 = vld [vmem:[#allocation5 + $0xa80] sm:$0xff]
    %v538 = vld [vmem:[#allocation5 + $0xa88] sm:$0xff]
    %v539 = vld [vmem:[#allocation5 + $0xa90] sm:$0xff]
    %v540 = vld [vmem:[#allocation5 + $0xa98] sm:$0xff]
    %v541 = vld [vmem:[#allocation5 + $0xaa0] sm:$0xff]
    %v542 = vld [vmem:[#allocation5 + $0xaa8] sm:$0xff]
    %v543 = vld [vmem:[#allocation5 + $0xab0] sm:$0xff]
    %v544 = vld [vmem:[#allocation5 + $0xab8] sm:$0xff]
    %v545 = vld [vmem:[#allocation5 + $0xac0] sm:$0xff]
    %v546 = vld [vmem:[#allocation5 + $0xac8] sm:$0xff]
    %v547 = vld [vmem:[#allocation5 + $0xad0] sm:$0xff]
    %v548 = vld [vmem:[#allocation5 + $0xad8] sm:$0xff]
    %v549 = vld [vmem:[#allocation5 + $0xae0] sm:$0xff]
    %v550 = vld [vmem:[#allocation5 + $0xae8] sm:$0xff]
    %v551 = vld [vmem:[#allocation5 + $0xaf0] sm:$0xff]
    %v552 = vld [vmem:[#allocation5 + $0xaf8] sm:$0xff]
    %v553 = vld [vmem:[#allocation5 + $0xb00] sm:$0xff]
    %v554 = vld [vmem:[#allocation5 + $0xb08] sm:$0xff]
    %v555 = vld [vmem:[#allocation5 + $0xb10] sm:$0xff]
    %v556 = vld [vmem:[#allocation5 + $0xb18] sm:$0xff]
    %v557 = vld [vmem:[#allocation5 + $0xb20] sm:$0xff]
    %v558 = vld [vmem:[#allocation5 + $0xb28] sm:$0xff]
    %v559 = vld [vmem:[#allocation5 + $0xb30] sm:$0xff]
    %v560 = vld [vmem:[#allocation5 + $0xb38] sm:$0xff]
    %v561 = vld [vmem:[#allocation5 + $0xb40] sm:$0xff]
    %v562 = vld [vmem:[#allocation5 + $0xb48] sm:$0xff]
    %v563 = vld [vmem:[#allocation5 + $0xb50] sm:$0xff]
    %v564 = vld [vmem:[#allocation5 + $0xb58] sm:$0xff]
    %v565 = vld [vmem:[#allocation5 + $0xb60] sm:$0xff]
    %v566 = vld [vmem:[#allocation5 + $0xb68] sm:$0xff]
    %v567 = vld [vmem:[#allocation5 + $0xb70] sm:$0xff]
    %v568 = vld [vmem:[#allocation5 + $0xb78] sm:$0xff]
    %v569 = vld [vmem:[#allocation5 + $0xb80] sm:$0xff]
    %v570 = vld [vmem:[#allocation5 + $0xb88] sm:$0xff]
    %v571 = vld [vmem:[#allocation5 + $0xb90] sm:$0xff]
    %v572 = vld [vmem:[#allocation5 + $0xb98] sm:$0xff]
    %v573 = vld [vmem:[#allocation5 + $0xba0] sm:$0xff]
    %v574 = vld [vmem:[#allocation5 + $0xba8] sm:$0xff]
    %v575 = vld [vmem:[#allocation5 + $0xbb0] sm:$0xff]
    %v576 = vld [vmem:[#allocation5 + $0xbb8] sm:$0xff]
    %v577 = vld [vmem:[#allocation5 + $0xbc0] sm:$0xff]
    %v578 = vld [vmem:[#allocation5 + $0xbc8] sm:$0xff]
    %v579 = vld [vmem:[#allocation5 + $0xbd0] sm:$0xff]
    %v580 = vld [vmem:[#allocation5 + $0xbd8] sm:$0xff]
    %v581 = vld [vmem:[#allocation5 + $0xbe0] sm:$0xff]
    %v582 = vld [vmem:[#allocation5 + $0xbe8] sm:$0xff]
    %v583 = vld [vmem:[#allocation5 + $0xbf0] sm:$0xff]
    %v584 = vld [vmem:[#allocation5 + $0xbf8] sm:$0xff]
    %v585 = vld [vmem:[#allocation5 + $0xc00] sm:$0xff]
    %v586 = vld [vmem:[#allocation5 + $0xc08] sm:$0xff]
    %v587 = vld [vmem:[#allocation5 + $0xc10] sm:$0xff]
    %v588 = vld [vmem:[#allocation5 + $0xc18] sm:$0xff]
    %v589 = vld [vmem:[#allocation5 + $0xc20] sm:$0xff]
    %v590 = vld [vmem:[#allocation5 + $0xc28] sm:$0xff]
    %v591 = vld [vmem:[#allocation5 + $0xc30] sm:$0xff]
    %v592 = vld [vmem:[#allocation5 + $0xc38] sm:$0xff]
    %v593 = vld [vmem:[#allocation2] sm:$0xff]
    %v594 = vld [vmem:[#allocation2 + $0x8] sm:$0xff]
    %v595 = vld [vmem:[#allocation2 + $0x10] sm:$0xff]
    %v596 = vld [vmem:[#allocation2 + $0x18] sm:$0xff]
    %v597 = vld [vmem:[#allocation2 + $0x20] sm:$0xff]
    %v598 = vld [vmem:[#allocation2 + $0x28] sm:$0xff]
    %v599 = vld [vmem:[#allocation2 + $0x30] sm:$0xff]
    %v600 = vld [vmem:[#allocation2 + $0x38] sm:$0xff]
    %v601 = vld [vmem:[#allocation2 + $0x40] sm:$0xff]
    %v602 = vld [vmem:[#allocation2 + $0x48] sm:$0xff]
    %v603 = vld [vmem:[#allocation2 + $0x50] sm:$0xff]
    %v604 = vld [vmem:[#allocation2 + $0x58] sm:$0xff]
    %v605 = vld [vmem:[#allocation2 + $0x60] sm:$0xff]
    %v606 = vld [vmem:[#allocation2 + $0x68] sm:$0xff]
    %v607 = vld [vmem:[#allocation2 + $0x70] sm:$0xff]
    %v608 = vld [vmem:[#allocation2 + $0x78] sm:$0xff]
    %v609 = vld [vmem:[#allocation2 + $0x80] sm:$0xff]
    %v610 = vld [vmem:[#allocation2 + $0x88] sm:$0xff]
    %v611 = vld [vmem:[#allocation2 + $0x90] sm:$0xff]
    %v612 = vld [vmem:[#allocation2 + $0x98] sm:$0xff]
    %v613 = vld [vmem:[#allocation2 + $0xa0] sm:$0xff]
    %v614 = vld [vmem:[#allocation2 + $0xa8] sm:$0xff]
    %v615 = vld [vmem:[#allocation2 + $0xb0] sm:$0xff]
    %v616 = vld [vmem:[#allocation2 + $0xb8] sm:$0xff]
    %v617 = vld [vmem:[#allocation2 + $0xc0] sm:$0xff]
    %v618 = vld [vmem:[#allocation2 + $0xc8] sm:$0xff]
    %v619 = vld [vmem:[#allocation2 + $0xd0] sm:$0xff]
    %v620 = vld [vmem:[#allocation2 + $0xd8] sm:$0xff]
    %v621 = vld [vmem:[#allocation2 + $0xe0] sm:$0xff]
    %v622 = vld [vmem:[#allocation2 + $0xe8] sm:$0xff]
    %v623 = vld [vmem:[#allocation2 + $0xf0] sm:$0xff]
    %v624 = vld [vmem:[#allocation2 + $0xf8] sm:$0xff]
    %v625 = vld [vmem:[#allocation2 + $0x100] sm:$0xff]
    %v626 = vld [vmem:[#allocation2 + $0x108] sm:$0xff]
    %v627 = vld [vmem:[#allocation2 + $0x110] sm:$0xff]
    %v628 = vld [vmem:[#allocation2 + $0x118] sm:$0xff]
    %v629 = vld [vmem:[#allocation2 + $0x120] sm:$0xff]
    %v630 = vld [vmem:[#allocation2 + $0x128] sm:$0xff]
    %v631 = vld [vmem:[#allocation2 + $0x130] sm:$0xff]
    %v632 = vld [vmem:[#allocation2 + $0x138] sm:$0xff]
    %v633 = vld [vmem:[#allocation2 + $0x140] sm:$0xff]
    %v634 = vld [vmem:[#allocation2 + $0x148] sm:$0xff]
    %v635 = vld [vmem:[#allocation2 + $0x150] sm:$0xff]
    %v636 = vld [vmem:[#allocation2 + $0x158] sm:$0xff]
    %v637 = vld [vmem:[#allocation2 + $0x160] sm:$0xff]
    %v638 = vld [vmem:[#allocation2 + $0x168] sm:$0xff]
    %v639 = vld [vmem:[#allocation2 + $0x170] sm:$0xff]
    %v640 = vld [vmem:[#allocation2 + $0x178] sm:$0xff]
    %v641 = vld [vmem:[#allocation2 + $0x180] sm:$0xff]
    %v642 = vld [vmem:[#allocation2 + $0x188] sm:$0xff]
    %v643 = vld [vmem:[#allocation2 + $0x190] sm:$0xff]
    %v644 = vld [vmem:[#allocation2 + $0x198] sm:$0xff]
    %v645 = vld [vmem:[#allocation2 + $0x1a0] sm:$0xff]
    %v646 = vld [vmem:[#allocation2 + $0x1a8] sm:$0xff]
    %v647 = vld [vmem:[#allocation2 + $0x1b0] sm:$0xff]
    %v648 = vld [vmem:[#allocation2 + $0x1b8] sm:$0xff]
    %v649 = vld [vmem:[#allocation2 + $0x1c0] sm:$0xff]
    %v650 = vld [vmem:[#allocation2 + $0x1c8] sm:$0xff]
    %v651 = vld [vmem:[#allocation2 + $0x1d0] sm:$0xff]
    %v652 = vld [vmem:[#allocation2 + $0x1d8] sm:$0xff]
    %v653 = vld [vmem:[#allocation2 + $0x1e0] sm:$0xff]
    %v654 = vld [vmem:[#allocation2 + $0x1e8] sm:$0xff]
    %v655 = vld [vmem:[#allocation2 + $0x1f0] sm:$0xff]
    %v656 = vld [vmem:[#allocation2 + $0x1f8] sm:$0xff]
    %v657 = vld [vmem:[#allocation2 + $0x200] sm:$0xff]
    %v658 = vld [vmem:[#allocation2 + $0x208] sm:$0xff]
    %v659 = vld [vmem:[#allocation2 + $0x210] sm:$0xff]
    %v660 = vld [vmem:[#allocation2 + $0x218] sm:$0xff]
    %v661 = vld [vmem:[#allocation2 + $0x220] sm:$0xff]
    %v662 = vld [vmem:[#allocation2 + $0x228] sm:$0xff]
    %v663 = vld [vmem:[#allocation2 + $0x230] sm:$0xff]
    %v664 = vld [vmem:[#allocation2 + $0x238] sm:$0xff]
    %v665 = vld [vmem:[#allocation2 + $0x240] sm:$0xff]
    %v666 = vld [vmem:[#allocation2 + $0x248] sm:$0xff]
    %v667 = vld [vmem:[#allocation2 + $0x250] sm:$0xff]
    %v668 = vld [vmem:[#allocation2 + $0x258] sm:$0xff]
    %v669 = vld [vmem:[#allocation2 + $0x260] sm:$0xff]
    %v670 = vld [vmem:[#allocation2 + $0x268] sm:$0xff]
    %v671 = vld [vmem:[#allocation2 + $0x270] sm:$0xff]
    %v672 = vld [vmem:[#allocation2 + $0x278] sm:$0xff]
    %v673 = vld [vmem:[#allocation2 + $0x280] sm:$0xff]
    %v674 = vld [vmem:[#allocation2 + $0x288] sm:$0xff]
    %v675 = vld [vmem:[#allocation2 + $0x290] sm:$0xff]
    %v676 = vld [vmem:[#allocation2 + $0x298] sm:$0xff]
    %v677 = vld [vmem:[#allocation2 + $0x2a0] sm:$0xff]
    %v678 = vld [vmem:[#allocation2 + $0x2a8] sm:$0xff]
    %v679 = vld [vmem:[#allocation2 + $0x2b0] sm:$0xff]
    %v680 = vld [vmem:[#allocation2 + $0x2b8] sm:$0xff]
    %v681 = vld [vmem:[#allocation2 + $0x2c0] sm:$0xff]
    %v682 = vld [vmem:[#allocation2 + $0x2c8] sm:$0xff]
    %v683 = vld [vmem:[#allocation2 + $0x2d0] sm:$0xff]
    %v684 = vld [vmem:[#allocation2 + $0x2d8] sm:$0xff]
    %v685 = vld [vmem:[#allocation2 + $0x2e0] sm:$0xff]
    %v686 = vld [vmem:[#allocation2 + $0x2e8] sm:$0xff]
    %v687 = vld [vmem:[#allocation2 + $0x2f0] sm:$0xff]
    %v688 = vld [vmem:[#allocation2 + $0x2f8] sm:$0xff]
    %v689 = vld [vmem:[#allocation2 + $0x300] sm:$0xff]
    %v690 = vld [vmem:[#allocation2 + $0x308] sm:$0xff]
    %v691 = vld [vmem:[#allocation2 + $0x310] sm:$0xff]
    %v692 = vld [vmem:[#allocation2 + $0x318] sm:$0xff]
    %v693 = vld [vmem:[#allocation2 + $0x320] sm:$0xff]
    %v694 = vld [vmem:[#allocation2 + $0x328] sm:$0xff]
    %v695 = vld [vmem:[#allocation2 + $0x330] sm:$0xff]
    %v696 = vld [vmem:[#allocation2 + $0x338] sm:$0xff]
    %v697 = vld [vmem:[#allocation2 + $0x340] sm:$0xff]
    %v698 = vld [vmem:[#allocation2 + $0x348] sm:$0xff]
    %v699 = vld [vmem:[#allocation2 + $0x350] sm:$0xff]
    %v700 = vld [vmem:[#allocation2 + $0x358] sm:$0xff]
    %v701 = vld [vmem:[#allocation2 + $0x360] sm:$0xff]
    %v702 = vld [vmem:[#allocation2 + $0x368] sm:$0xff]
    %v703 = vld [vmem:[#allocation2 + $0x370] sm:$0xff]
    %v704 = vld [vmem:[#allocation2 + $0x378] sm:$0xff]
    %v705 = vld [vmem:[#allocation2 + $0x380] sm:$0xff]
    %v706 = vld [vmem:[#allocation2 + $0x388] sm:$0xff]
    %v707 = vld [vmem:[#allocation2 + $0x390] sm:$0xff]
    %v708 = vld [vmem:[#allocation2 + $0x398] sm:$0xff]
    %v709 = vld [vmem:[#allocation2 + $0x3a0] sm:$0xff]
    %v710 = vld [vmem:[#allocation2 + $0x3a8] sm:$0xff]
    %v711 = vld [vmem:[#allocation2 + $0x3b0] sm:$0xff]
    %v712 = vld [vmem:[#allocation2 + $0x3b8] sm:$0xff]
    %v713 = vld [vmem:[#allocation2 + $0x3c0] sm:$0xff]
    %v714 = vld [vmem:[#allocation2 + $0x3c8] sm:$0xff]
    %v715 = vld [vmem:[#allocation2 + $0x3d0] sm:$0xff]
    %v716 = vld [vmem:[#allocation2 + $0x3d8] sm:$0xff]
    %v717 = vld [vmem:[#allocation2 + $0x3e0] sm:$0xff]
    %v718 = vld [vmem:[#allocation2 + $0x3e8] sm:$0xff]
    %v719 = vld [vmem:[#allocation2 + $0x3f0] sm:$0xff]
    %v720 = vld [vmem:[#allocation2 + $0x3f8] sm:$0xff]
    %v785 = vunpack.c.l.b16 %v137
    %v786 = vunpack.c.h.b16 %v137
    %v787 = vunpack.c.l.b16 %v138
    %v788 = vunpack.c.h.b16 %v138
    %v789 = vunpack.c.l.b16 %v139
    %v790 = vunpack.c.h.b16 %v139
    %v791 = vunpack.c.l.b16 %v140
    %v792 = vunpack.c.l.b16 %v141
    %v793 = vunpack.c.h.b16 %v141
    %v794 = vunpack.c.l.b16 %v142
    %v795 = vunpack.c.h.b16 %v142
    %v796 = vunpack.c.l.b16 %v143
    %v797 = vunpack.c.h.b16 %v143
    %v798 = vunpack.c.l.b16 %v144
    %v799 = vunpack.c.l.b16 %v145
    %v800 = vunpack.c.h.b16 %v145
    %v801 = vunpack.c.l.b16 %v146
    %v802 = vunpack.c.h.b16 %v146
    %v803 = vunpack.c.l.b16 %v147
    %v804 = vunpack.c.h.b16 %v147
    %v805 = vunpack.c.l.b16 %v148
    %v806 = vunpack.c.l.b16 %v149
    %v807 = vunpack.c.h.b16 %v149
    %v808 = vunpack.c.l.b16 %v150
    %v809 = vunpack.c.h.b16 %v150
    %v810 = vunpack.c.l.b16 %v151
    %v811 = vunpack.c.h.b16 %v151
    %v812 = vunpack.c.l.b16 %v152
    %v813 = vunpack.c.l.b16 %v153
    %v814 = vunpack.c.h.b16 %v153
    %v815 = vunpack.c.l.b16 %v154
    %v816 = vunpack.c.h.b16 %v154
    %v817 = vunpack.c.l.b16 %v155
    %v818 = vunpack.c.h.b16 %v155
    %v819 = vunpack.c.l.b16 %v156
    %v820 = vunpack.c.l.b16 %v157
    %v821 = vunpack.c.h.b16 %v157
    %v822 = vunpack.c.l.b16 %v158
    %v823 = vunpack.c.h.b16 %v158
    %v824 = vunpack.c.l.b16 %v159
    %v825 = vunpack.c.h.b16 %v159
    %v826 = vunpack.c.l.b16 %v160
    %v827 = vunpack.c.l.b16 %v161
    %v828 = vunpack.c.h.b16 %v161
    %v829 = vunpack.c.l.b16 %v162
    %v830 = vunpack.c.h.b16 %v162
    %v831 = vunpack.c.l.b16 %v163
    %v832 = vunpack.c.h.b16 %v163
    %v833 = vunpack.c.l.b16 %v164
    %v834 = vunpack.c.l.b16 %v165
    %v835 = vunpack.c.h.b16 %v165
    %v836 = vunpack.c.l.b16 %v166
    %v837 = vunpack.c.h.b16 %v166
    %v838 = vunpack.c.l.b16 %v167
    %v839 = vunpack.c.h.b16 %v167
    %v840 = vunpack.c.l.b16 %v168
    %v841 = vunpack.c.l.b16 %v169
    %v842 = vunpack.c.h.b16 %v169
    %v843 = vunpack.c.l.b16 %v170
    %v844 = vunpack.c.h.b16 %v170
    %v845 = vunpack.c.l.b16 %v171
    %v846 = vunpack.c.h.b16 %v171
    %v847 = vunpack.c.l.b16 %v172
    %v848 = vunpack.c.l.b16 %v173
    %v849 = vunpack.c.h.b16 %v173
    %v850 = vunpack.c.l.b16 %v174
    %v851 = vunpack.c.h.b16 %v174
    %v852 = vunpack.c.l.b16 %v175
    %v853 = vunpack.c.h.b16 %v175
    %v854 = vunpack.c.l.b16 %v176
    %v855 = vunpack.c.l.b16 %v177
    %v856 = vunpack.c.h.b16 %v177
    %v857 = vunpack.c.l.b16 %v178
    %v858 = vunpack.c.h.b16 %v178
    %v859 = vunpack.c.l.b16 %v179
    %v860 = vunpack.c.h.b16 %v179
    %v861 = vunpack.c.l.b16 %v180
    %v862 = vunpack.c.l.b16 %v181
    %v863 = vunpack.c.h.b16 %v181
    %v864 = vunpack.c.l.b16 %v182
    %v865 = vunpack.c.h.b16 %v182
    %v866 = vunpack.c.l.b16 %v183
    %v867 = vunpack.c.h.b16 %v183
    %v868 = vunpack.c.l.b16 %v184
    %v869 = vunpack.c.l.b16 %v185
    %v870 = vunpack.c.h.b16 %v185
    %v871 = vunpack.c.l.b16 %v186
    %v872 = vunpack.c.h.b16 %v186
    %v873 = vunpack.c.l.b16 %v187
    %v874 = vunpack.c.h.b16 %v187
    %v875 = vunpack.c.l.b16 %v188
    %v876 = vunpack.c.l.b16 %v189
    %v877 = vunpack.c.h.b16 %v189
    %v878 = vunpack.c.l.b16 %v190
    %v879 = vunpack.c.h.b16 %v190
    %v880 = vunpack.c.l.b16 %v191
    %v881 = vunpack.c.h.b16 %v191
    %v882 = vunpack.c.l.b16 %v192
    %v883 = vunpack.c.l.b16 %v193
    %v884 = vunpack.c.h.b16 %v193
    %v885 = vunpack.c.l.b16 %v194
    %v886 = vunpack.c.h.b16 %v194
    %v887 = vunpack.c.l.b16 %v195
    %v888 = vunpack.c.h.b16 %v195
    %v889 = vunpack.c.l.b16 %v196
    %v890 = vunpack.c.l.b16 %v197
    %v891 = vunpack.c.h.b16 %v197
    %v892 = vunpack.c.l.b16 %v198
    %v893 = vunpack.c.h.b16 %v198
    %v894 = vunpack.c.l.b16 %v199
    %v895 = vunpack.c.h.b16 %v199
    %v896 = vunpack.c.l.b16 %v200
    %v897 = vpack.c.b16 %v792, %v785
    %v898 = vpack.c.b16 %v793, %v786
    %v899 = vpack.c.b16 %v794, %v787
    %v900 = vpack.c.b16 %v795, %v788
    %v901 = vpack.c.b16 %v796, %v789
    %v902 = vpack.c.b16 %v797, %v790
    %v903 = vpack.c.b16 %v798, %v791
    %v904 = vpack.c.b16 %v806, %v799
    %v905 = vpack.c.b16 %v807, %v800
    %v906 = vpack.c.b16 %v808, %v801
    %v907 = vpack.c.b16 %v809, %v802
    %v908 = vpack.c.b16 %v810, %v803
    %v909 = vpack.c.b16 %v811, %v804
    %v910 = vpack.c.b16 %v812, %v805
    %v911 = vpack.c.b16 %v820, %v813
    %v912 = vpack.c.b16 %v821, %v814
    %v913 = vpack.c.b16 %v822, %v815
    %v914 = vpack.c.b16 %v823, %v816
    %v915 = vpack.c.b16 %v824, %v817
    %v916 = vpack.c.b16 %v825, %v818
    %v917 = vpack.c.b16 %v826, %v819
    %v918 = vpack.c.b16 %v834, %v827
    %v919 = vpack.c.b16 %v835, %v828
    %v920 = vpack.c.b16 %v836, %v829
    %v921 = vpack.c.b16 %v837, %v830
    %v922 = vpack.c.b16 %v838, %v831
    %v923 = vpack.c.b16 %v839, %v832
    %v924 = vpack.c.b16 %v840, %v833
    %v925 = vpack.c.b16 %v848, %v841
    %v926 = vpack.c.b16 %v849, %v842
    %v927 = vpack.c.b16 %v850, %v843
    %v928 = vpack.c.b16 %v851, %v844
    %v929 = vpack.c.b16 %v852, %v845
    %v930 = vpack.c.b16 %v853, %v846
    %v931 = vpack.c.b16 %v854, %v847
    %v932 = vpack.c.b16 %v862, %v855
    %v933 = vpack.c.b16 %v863, %v856
    %v934 = vpack.c.b16 %v864, %v857
    %v935 = vpack.c.b16 %v865, %v858
    %v936 = vpack.c.b16 %v866, %v859
    %v937 = vpack.c.b16 %v867, %v860
    %v938 = vpack.c.b16 %v868, %v861
    %v939 = vpack.c.b16 %v876, %v869
    %v940 = vpack.c.b16 %v877, %v870
    %v941 = vpack.c.b16 %v878, %v871
    %v942 = vpack.c.b16 %v879, %v872
    %v943 = vpack.c.b16 %v880, %v873
    %v944 = vpack.c.b16 %v881, %v874
    %v945 = vpack.c.b16 %v882, %v875
    %v946 = vpack.c.b16 %v890, %v883
    %v947 = vpack.c.b16 %v891, %v884
    %v948 = vpack.c.b16 %v892, %v885
    %v949 = vpack.c.b16 %v893, %v886
    %v950 = vpack.c.b16 %v894, %v887
    %v951 = vpack.c.b16 %v895, %v888
    %v952 = vpack.c.b16 %v896, %v889
    %v1393 = vunpack.c.l.b16 %v201
    %v1394 = vunpack.c.h.b16 %v201
    %v1395 = vunpack.c.l.b16 %v202
    %v1396 = vunpack.c.h.b16 %v202
    %v1397 = vunpack.c.l.b16 %v203
    %v1398 = vunpack.c.h.b16 %v203
    %v1399 = vunpack.c.l.b16 %v204
    %v1400 = vunpack.c.h.b16 %v204
    %v1401 = vunpack.c.l.b16 %v205
    %v1402 = vunpack.c.h.b16 %v205
    %v1403 = vunpack.c.l.b16 %v206
    %v1404 = vunpack.c.h.b16 %v206
    %v1405 = vunpack.c.l.b16 %v207
    %v1406 = vunpack.c.h.b16 %v207
    %v1407 = vunpack.c.l.b16 %v208
    %v1408 = vunpack.c.h.b16 %v208
    %v1409 = vunpack.c.l.b16 %v209
    %v1410 = vunpack.c.h.b16 %v209
    %v1411 = vunpack.c.l.b16 %v210
    %v1412 = vunpack.c.h.b16 %v210
    %v1413 = vunpack.c.l.b16 %v211
    %v1414 = vunpack.c.h.b16 %v211
    %v1415 = vunpack.c.l.b16 %v212
    %v1416 = vunpack.c.h.b16 %v212
    %v1417 = vunpack.c.l.b16 %v213
    %v1418 = vunpack.c.h.b16 %v213
    %v1419 = vunpack.c.l.b16 %v214
    %v1420 = vunpack.c.h.b16 %v214
    %v1421 = vunpack.c.l.b16 %v215
    %v1422 = vunpack.c.h.b16 %v215
    %v1423 = vunpack.c.l.b16 %v216
    %v1424 = vunpack.c.h.b16 %v216
    %v1425 = vunpack.c.l.b16 %v217
    %v1426 = vunpack.c.h.b16 %v217
    %v1427 = vunpack.c.l.b16 %v218
    %v1428 = vunpack.c.h.b16 %v218
    %v1429 = vunpack.c.l.b16 %v219
    %v1430 = vunpack.c.h.b16 %v219
    %v1431 = vunpack.c.l.b16 %v220
    %v1432 = vunpack.c.h.b16 %v220
    %v1433 = vunpack.c.l.b16 %v221
    %v1434 = vunpack.c.h.b16 %v221
    %v1435 = vunpack.c.l.b16 %v222
    %v1436 = vunpack.c.h.b16 %v222
    %v1437 = vunpack.c.l.b16 %v223
    %v1438 = vunpack.c.h.b16 %v223
    %v1439 = vunpack.c.l.b16 %v224
    %v1440 = vunpack.c.h.b16 %v224
    %v1441 = vunpack.c.l.b16 %v225
    %v1442 = vunpack.c.h.b16 %v225
    %v1443 = vunpack.c.l.b16 %v226
    %v1444 = vunpack.c.h.b16 %v226
    %v1445 = vunpack.c.l.b16 %v227
    %v1446 = vunpack.c.h.b16 %v227
    %v1447 = vunpack.c.l.b16 %v228
    %v1448 = vunpack.c.h.b16 %v228
    %v1449 = vunpack.c.l.b16 %v229
    %v1450 = vunpack.c.h.b16 %v229
    %v1451 = vunpack.c.l.b16 %v230
    %v1452 = vunpack.c.h.b16 %v230
    %v1453 = vunpack.c.l.b16 %v231
    %v1454 = vunpack.c.h.b16 %v231
    %v1455 = vunpack.c.l.b16 %v232
    %v1456 = vunpack.c.h.b16 %v232
    %v1457 = vunpack.c.l.b16 %v233
    %v1458 = vunpack.c.h.b16 %v233
    %v1459 = vunpack.c.l.b16 %v234
    %v1460 = vunpack.c.h.b16 %v234
    %v1461 = vunpack.c.l.b16 %v235
    %v1462 = vunpack.c.h.b16 %v235
    %v1463 = vunpack.c.l.b16 %v236
    %v1464 = vunpack.c.h.b16 %v236
    %v1465 = vunpack.c.l.b16 %v237
    %v1466 = vunpack.c.h.b16 %v237
    %v1467 = vunpack.c.l.b16 %v238
    %v1468 = vunpack.c.h.b16 %v238
    %v1469 = vunpack.c.l.b16 %v239
    %v1470 = vunpack.c.h.b16 %v239
    %v1471 = vunpack.c.l.b16 %v240
    %v1472 = vunpack.c.h.b16 %v240
    %v1473 = vunpack.c.l.b16 %v241
    %v1474 = vunpack.c.h.b16 %v241
    %v1475 = vunpack.c.l.b16 %v242
    %v1476 = vunpack.c.h.b16 %v242
    %v1477 = vunpack.c.l.b16 %v243
    %v1478 = vunpack.c.h.b16 %v243
    %v1479 = vunpack.c.l.b16 %v244
    %v1480 = vunpack.c.h.b16 %v244
    %v1481 = vunpack.c.l.b16 %v245
    %v1482 = vunpack.c.h.b16 %v245
    %v1483 = vunpack.c.l.b16 %v246
    %v1484 = vunpack.c.h.b16 %v246
    %v1485 = vunpack.c.l.b16 %v247
    %v1486 = vunpack.c.h.b16 %v247
    %v1487 = vunpack.c.l.b16 %v248
    %v1488 = vunpack.c.h.b16 %v248
    %v1489 = vunpack.c.l.b16 %v249
    %v1490 = vunpack.c.h.b16 %v249
    %v1491 = vunpack.c.l.b16 %v250
    %v1492 = vunpack.c.h.b16 %v250
    %v1493 = vunpack.c.l.b16 %v251
    %v1494 = vunpack.c.h.b16 %v251
    %v1495 = vunpack.c.l.b16 %v252
    %v1496 = vunpack.c.h.b16 %v252
    %v1497 = vunpack.c.l.b16 %v253
    %v1498 = vunpack.c.h.b16 %v253
    %v1499 = vunpack.c.l.b16 %v254
    %v1500 = vunpack.c.h.b16 %v254
    %v1501 = vunpack.c.l.b16 %v255
    %v1502 = vunpack.c.h.b16 %v255
    %v1503 = vunpack.c.l.b16 %v256
    %v1504 = vunpack.c.h.b16 %v256
    %v1505 = vunpack.c.l.b16 %v257
    %v1506 = vunpack.c.h.b16 %v257
    %v1507 = vunpack.c.l.b16 %v258
    %v1508 = vunpack.c.h.b16 %v258
    %v1509 = vunpack.c.l.b16 %v259
    %v1510 = vunpack.c.h.b16 %v259
    %v1511 = vunpack.c.l.b16 %v260
    %v1512 = vunpack.c.h.b16 %v260
    %v1513 = vunpack.c.l.b16 %v261
    %v1514 = vunpack.c.h.b16 %v261
    %v1515 = vunpack.c.l.b16 %v262
    %v1516 = vunpack.c.h.b16 %v262
    %v1517 = vunpack.c.l.b16 %v263
    %v1518 = vunpack.c.h.b16 %v263
    %v1519 = vunpack.c.l.b16 %v264
    %v1520 = vunpack.c.h.b16 %v264
    %v1521 = vunpack.c.l.b16 %v265
    %v1522 = vunpack.c.h.b16 %v265
    %v1523 = vunpack.c.l.b16 %v266
    %v1524 = vunpack.c.h.b16 %v266
    %v1525 = vunpack.c.l.b16 %v267
    %v1526 = vunpack.c.h.b16 %v267
    %v1527 = vunpack.c.l.b16 %v268
    %v1528 = vunpack.c.h.b16 %v268
    %v1529 = vunpack.c.l.b16 %v269
    %v1530 = vunpack.c.h.b16 %v269
    %v1531 = vunpack.c.l.b16 %v270
    %v1532 = vunpack.c.h.b16 %v270
    %v1533 = vunpack.c.l.b16 %v271
    %v1534 = vunpack.c.h.b16 %v271
    %v1535 = vunpack.c.l.b16 %v272
    %v1536 = vunpack.c.h.b16 %v272
    %v1537 = vunpack.c.l.b16 %v273
    %v1538 = vunpack.c.h.b16 %v273
    %v1539 = vunpack.c.l.b16 %v274
    %v1540 = vunpack.c.h.b16 %v274
    %v1541 = vunpack.c.l.b16 %v275
    %v1542 = vunpack.c.h.b16 %v275
    %v1543 = vunpack.c.l.b16 %v276
    %v1544 = vunpack.c.h.b16 %v276
    %v1545 = vunpack.c.l.b16 %v277
    %v1546 = vunpack.c.h.b16 %v277
    %v1547 = vunpack.c.l.b16 %v278
    %v1548 = vunpack.c.h.b16 %v278
    %v1549 = vunpack.c.l.b16 %v279
    %v1550 = vunpack.c.h.b16 %v279
    %v1551 = vunpack.c.l.b16 %v280
    %v1552 = vunpack.c.h.b16 %v280
    %v1553 = vunpack.c.l.b16 %v281
    %v1554 = vunpack.c.h.b16 %v281
    %v1555 = vunpack.c.l.b16 %v282
    %v1556 = vunpack.c.h.b16 %v282
    %v1557 = vunpack.c.l.b16 %v283
    %v1558 = vunpack.c.h.b16 %v283
    %v1559 = vunpack.c.l.b16 %v284
    %v1560 = vunpack.c.h.b16 %v284
    %v1561 = vunpack.c.l.b16 %v285
    %v1562 = vunpack.c.h.b16 %v285
    %v1563 = vunpack.c.l.b16 %v286
    %v1564 = vunpack.c.h.b16 %v286
    %v1565 = vunpack.c.l.b16 %v287
    %v1566 = vunpack.c.h.b16 %v287
    %v1567 = vunpack.c.l.b16 %v288
    %v1568 = vunpack.c.h.b16 %v288
    %v1569 = vunpack.c.l.b16 %v289
    %v1570 = vunpack.c.h.b16 %v289
    %v1571 = vunpack.c.l.b16 %v290
    %v1572 = vunpack.c.h.b16 %v290
    %v1573 = vunpack.c.l.b16 %v291
    %v1574 = vunpack.c.h.b16 %v291
    %v1575 = vunpack.c.l.b16 %v292
    %v1576 = vunpack.c.h.b16 %v292
    %v1577 = vunpack.c.l.b16 %v293
    %v1578 = vunpack.c.h.b16 %v293
    %v1579 = vunpack.c.l.b16 %v294
    %v1580 = vunpack.c.h.b16 %v294
    %v1581 = vunpack.c.l.b16 %v295
    %v1582 = vunpack.c.h.b16 %v295
    %v1583 = vunpack.c.l.b16 %v296
    %v1584 = vunpack.c.h.b16 %v296
    %v1585 = vunpack.c.l.b16 %v297
    %v1586 = vunpack.c.h.b16 %v297
    %v1587 = vunpack.c.l.b16 %v298
    %v1588 = vunpack.c.h.b16 %v298
    %v1589 = vunpack.c.l.b16 %v299
    %v1590 = vunpack.c.h.b16 %v299
    %v1591 = vunpack.c.l.b16 %v300
    %v1592 = vunpack.c.h.b16 %v300
    %v1593 = vunpack.c.l.b16 %v301
    %v1594 = vunpack.c.h.b16 %v301
    %v1595 = vunpack.c.l.b16 %v302
    %v1596 = vunpack.c.h.b16 %v302
    %v1597 = vunpack.c.l.b16 %v303
    %v1598 = vunpack.c.h.b16 %v303
    %v1599 = vunpack.c.l.b16 %v304
    %v1600 = vunpack.c.h.b16 %v304
    %v1601 = vunpack.c.l.b16 %v305
    %v1602 = vunpack.c.h.b16 %v305
    %v1603 = vunpack.c.l.b16 %v306
    %v1604 = vunpack.c.h.b16 %v306
    %v1605 = vunpack.c.l.b16 %v307
    %v1606 = vunpack.c.h.b16 %v307
    %v1607 = vunpack.c.l.b16 %v308
    %v1608 = vunpack.c.h.b16 %v308
    %v1609 = vunpack.c.l.b16 %v309
    %v1610 = vunpack.c.h.b16 %v309
    %v1611 = vunpack.c.l.b16 %v310
    %v1612 = vunpack.c.h.b16 %v310
    %v1613 = vunpack.c.l.b16 %v311
    %v1614 = vunpack.c.h.b16 %v311
    %v1615 = vunpack.c.l.b16 %v312
    %v1616 = vunpack.c.h.b16 %v312
    %v1617 = vunpack.c.l.b16 %v313
    %v1618 = vunpack.c.h.b16 %v313
    %v1619 = vunpack.c.l.b16 %v314
    %v1620 = vunpack.c.h.b16 %v314
    %v1621 = vunpack.c.l.b16 %v315
    %v1622 = vunpack.c.h.b16 %v315
    %v1623 = vunpack.c.l.b16 %v316
    %v1624 = vunpack.c.h.b16 %v316
    %v1625 = vunpack.c.l.b16 %v317
    %v1626 = vunpack.c.h.b16 %v317
    %v1627 = vunpack.c.l.b16 %v318
    %v1628 = vunpack.c.h.b16 %v318
    %v1629 = vunpack.c.l.b16 %v319
    %v1630 = vunpack.c.h.b16 %v319
    %v1631 = vunpack.c.l.b16 %v320
    %v1632 = vunpack.c.h.b16 %v320
    %v1633 = vunpack.c.l.b16 %v321
    %v1634 = vunpack.c.h.b16 %v321
    %v1635 = vunpack.c.l.b16 %v322
    %v1636 = vunpack.c.h.b16 %v322
    %v1637 = vunpack.c.l.b16 %v323
    %v1638 = vunpack.c.h.b16 %v323
    %v1639 = vunpack.c.l.b16 %v324
    %v1640 = vunpack.c.h.b16 %v324
    %v1641 = vunpack.c.l.b16 %v325
    %v1642 = vunpack.c.h.b16 %v325
    %v1643 = vunpack.c.l.b16 %v326
    %v1644 = vunpack.c.h.b16 %v326
    %v1645 = vunpack.c.l.b16 %v327
    %v1646 = vunpack.c.h.b16 %v327
    %v1647 = vunpack.c.l.b16 %v328
    %v1648 = vunpack.c.h.b16 %v328
    %v1649 = vunpack.c.l.b16 %v329
    %v1650 = vunpack.c.h.b16 %v329
    %v1651 = vunpack.c.l.b16 %v330
    %v1652 = vunpack.c.h.b16 %v330
    %v1653 = vunpack.c.l.b16 %v331
    %v1654 = vunpack.c.h.b16 %v331
    %v1655 = vunpack.c.l.b16 %v332
    %v1656 = vunpack.c.h.b16 %v332
    %v1657 = vunpack.c.l.b16 %v333
    %v1658 = vunpack.c.h.b16 %v333
    %v1659 = vunpack.c.l.b16 %v334
    %v1660 = vunpack.c.h.b16 %v334
    %v1661 = vunpack.c.l.b16 %v335
    %v1662 = vunpack.c.h.b16 %v335
    %v1663 = vunpack.c.l.b16 %v336
    %v1664 = vunpack.c.h.b16 %v336
    %v1665 = vunpack.c.l.b16 %v337
    %v1666 = vunpack.c.h.b16 %v337
    %v1667 = vunpack.c.l.b16 %v338
    %v1668 = vunpack.c.h.b16 %v338
    %v1669 = vunpack.c.l.b16 %v339
    %v1670 = vunpack.c.h.b16 %v339
    %v1671 = vunpack.c.l.b16 %v340
    %v1672 = vunpack.c.h.b16 %v340
    %v1673 = vunpack.c.l.b16 %v341
    %v1674 = vunpack.c.h.b16 %v341
    %v1675 = vunpack.c.l.b16 %v342
    %v1676 = vunpack.c.h.b16 %v342
    %v1677 = vunpack.c.l.b16 %v343
    %v1678 = vunpack.c.h.b16 %v343
    %v1679 = vunpack.c.l.b16 %v344
    %v1680 = vunpack.c.h.b16 %v344
    %v1681 = vunpack.c.l.b16 %v345
    %v1682 = vunpack.c.h.b16 %v345
    %v1683 = vunpack.c.l.b16 %v346
    %v1684 = vunpack.c.h.b16 %v346
    %v1685 = vunpack.c.l.b16 %v347
    %v1686 = vunpack.c.h.b16 %v347
    %v1687 = vunpack.c.l.b16 %v348
    %v1688 = vunpack.c.h.b16 %v348
    %v1689 = vunpack.c.l.b16 %v349
    %v1690 = vunpack.c.h.b16 %v349
    %v1691 = vunpack.c.l.b16 %v350
    %v1692 = vunpack.c.h.b16 %v350
    %v1693 = vunpack.c.l.b16 %v351
    %v1694 = vunpack.c.h.b16 %v351
    %v1695 = vunpack.c.l.b16 %v352
    %v1696 = vunpack.c.h.b16 %v352
    %v1697 = vunpack.c.l.b16 %v353
    %v1698 = vunpack.c.h.b16 %v353
    %v1699 = vunpack.c.l.b16 %v354
    %v1700 = vunpack.c.h.b16 %v354
    %v1701 = vunpack.c.l.b16 %v355
    %v1702 = vunpack.c.h.b16 %v355
    %v1703 = vunpack.c.l.b16 %v356
    %v1704 = vunpack.c.h.b16 %v356
    %v1705 = vunpack.c.l.b16 %v357
    %v1706 = vunpack.c.h.b16 %v357
    %v1707 = vunpack.c.l.b16 %v358
    %v1708 = vunpack.c.h.b16 %v358
    %v1709 = vunpack.c.l.b16 %v359
    %v1710 = vunpack.c.h.b16 %v359
    %v1711 = vunpack.c.l.b16 %v360
    %v1712 = vunpack.c.h.b16 %v360
    %v1713 = vunpack.c.l.b16 %v361
    %v1714 = vunpack.c.h.b16 %v361
    %v1715 = vunpack.c.l.b16 %v362
    %v1716 = vunpack.c.h.b16 %v362
    %v1717 = vunpack.c.l.b16 %v363
    %v1718 = vunpack.c.h.b16 %v363
    %v1719 = vunpack.c.l.b16 %v364
    %v1720 = vunpack.c.h.b16 %v364
    %v1721 = vunpack.c.l.b16 %v365
    %v1722 = vunpack.c.h.b16 %v365
    %v1723 = vunpack.c.l.b16 %v366
    %v1724 = vunpack.c.h.b16 %v366
    %v1725 = vunpack.c.l.b16 %v367
    %v1726 = vunpack.c.h.b16 %v367
    %v1727 = vunpack.c.l.b16 %v368
    %v1728 = vunpack.c.h.b16 %v368
    %v1729 = vunpack.c.l.b16 %v369
    %v1730 = vunpack.c.h.b16 %v369
    %v1731 = vunpack.c.l.b16 %v370
    %v1732 = vunpack.c.h.b16 %v370
    %v1733 = vunpack.c.l.b16 %v371
    %v1734 = vunpack.c.h.b16 %v371
    %v1735 = vunpack.c.l.b16 %v372
    %v1736 = vunpack.c.h.b16 %v372
    %v1737 = vunpack.c.l.b16 %v373
    %v1738 = vunpack.c.h.b16 %v373
    %v1739 = vunpack.c.l.b16 %v374
    %v1740 = vunpack.c.h.b16 %v374
    %v1741 = vunpack.c.l.b16 %v375
    %v1742 = vunpack.c.h.b16 %v375
    %v1743 = vunpack.c.l.b16 %v376
    %v1744 = vunpack.c.h.b16 %v376
    %v1745 = vunpack.c.l.b16 %v377
    %v1746 = vunpack.c.h.b16 %v377
    %v1747 = vunpack.c.l.b16 %v378
    %v1748 = vunpack.c.h.b16 %v378
    %v1749 = vunpack.c.l.b16 %v379
    %v1750 = vunpack.c.h.b16 %v379
    %v1751 = vunpack.c.l.b16 %v380
    %v1752 = vunpack.c.h.b16 %v380
    %v1753 = vunpack.c.l.b16 %v381
    %v1754 = vunpack.c.h.b16 %v381
    %v1755 = vunpack.c.l.b16 %v382
    %v1756 = vunpack.c.h.b16 %v382
    %v1757 = vunpack.c.l.b16 %v383
    %v1758 = vunpack.c.h.b16 %v383
    %v1759 = vunpack.c.l.b16 %v384
    %v1760 = vunpack.c.h.b16 %v384
    %v1761 = vunpack.c.l.b16 %v385
    %v1762 = vunpack.c.h.b16 %v385
    %v1763 = vunpack.c.l.b16 %v386
    %v1764 = vunpack.c.h.b16 %v386
    %v1765 = vunpack.c.l.b16 %v387
    %v1766 = vunpack.c.h.b16 %v387
    %v1767 = vunpack.c.l.b16 %v388
    %v1768 = vunpack.c.h.b16 %v388
    %v1769 = vunpack.c.l.b16 %v389
    %v1770 = vunpack.c.h.b16 %v389
    %v1771 = vunpack.c.l.b16 %v390
    %v1772 = vunpack.c.h.b16 %v390
    %v1773 = vunpack.c.l.b16 %v391
    %v1774 = vunpack.c.h.b16 %v391
    %v1775 = vunpack.c.l.b16 %v392
    %v1776 = vunpack.c.h.b16 %v392
    %v1777 = vunpack.c.l.b16 %v393
    %v1778 = vunpack.c.h.b16 %v393
    %v1779 = vunpack.c.l.b16 %v394
    %v1780 = vunpack.c.h.b16 %v394
    %v1781 = vunpack.c.l.b16 %v395
    %v1782 = vunpack.c.h.b16 %v395
    %v1783 = vunpack.c.l.b16 %v396
    %v1784 = vunpack.c.h.b16 %v396
    %v1785 = vunpack.c.l.b16 %v397
    %v1786 = vunpack.c.h.b16 %v397
    %v1787 = vunpack.c.l.b16 %v398
    %v1788 = vunpack.c.h.b16 %v398
    %v1789 = vunpack.c.l.b16 %v399
    %v1790 = vunpack.c.h.b16 %v399
    %v1791 = vunpack.c.l.b16 %v400
    %v1792 = vunpack.c.h.b16 %v400
    %v1793 = vunpack.c.l.b16 %v401
    %v1794 = vunpack.c.h.b16 %v401
    %v1795 = vunpack.c.l.b16 %v402
    %v1796 = vunpack.c.h.b16 %v402
    %v1797 = vunpack.c.l.b16 %v403
    %v1798 = vunpack.c.h.b16 %v403
    %v1799 = vunpack.c.l.b16 %v404
    %v1800 = vunpack.c.h.b16 %v404
    %v1801 = vunpack.c.l.b16 %v405
    %v1802 = vunpack.c.h.b16 %v405
    %v1803 = vunpack.c.l.b16 %v406
    %v1804 = vunpack.c.h.b16 %v406
    %v1805 = vunpack.c.l.b16 %v407
    %v1806 = vunpack.c.h.b16 %v407
    %v1807 = vunpack.c.l.b16 %v408
    %v1808 = vunpack.c.h.b16 %v408
    %v1809 = vunpack.c.l.b16 %v409
    %v1810 = vunpack.c.h.b16 %v409
    %v1811 = vunpack.c.l.b16 %v410
    %v1812 = vunpack.c.h.b16 %v410
    %v1813 = vunpack.c.l.b16 %v411
    %v1814 = vunpack.c.h.b16 %v411
    %v1815 = vunpack.c.l.b16 %v412
    %v1816 = vunpack.c.h.b16 %v412
    %v1817 = vunpack.c.l.b16 %v413
    %v1818 = vunpack.c.h.b16 %v413
    %v1819 = vunpack.c.l.b16 %v414
    %v1820 = vunpack.c.h.b16 %v414
    %v1821 = vunpack.c.l.b16 %v415
    %v1822 = vunpack.c.h.b16 %v415
    %v1823 = vunpack.c.l.b16 %v416
    %v1824 = vunpack.c.h.b16 %v416
    %v1825 = vunpack.c.l.b16 %v417
    %v1826 = vunpack.c.h.b16 %v417
    %v1827 = vunpack.c.l.b16 %v418
    %v1828 = vunpack.c.h.b16 %v418
    %v1829 = vunpack.c.l.b16 %v419
    %v1830 = vunpack.c.h.b16 %v419
    %v1831 = vunpack.c.l.b16 %v420
    %v1832 = vunpack.c.h.b16 %v420
    %v1833 = vunpack.c.l.b16 %v421
    %v1834 = vunpack.c.h.b16 %v421
    %v1835 = vunpack.c.l.b16 %v422
    %v1836 = vunpack.c.h.b16 %v422
    %v1837 = vunpack.c.l.b16 %v423
    %v1838 = vunpack.c.h.b16 %v423
    %v1839 = vunpack.c.l.b16 %v424
    %v1840 = vunpack.c.h.b16 %v424
    %v1841 = vunpack.c.l.b16 %v425
    %v1842 = vunpack.c.h.b16 %v425
    %v1843 = vunpack.c.l.b16 %v426
    %v1844 = vunpack.c.h.b16 %v426
    %v1845 = vunpack.c.l.b16 %v427
    %v1846 = vunpack.c.h.b16 %v427
    %v1847 = vunpack.c.l.b16 %v428
    %v1848 = vunpack.c.h.b16 %v428
    %v1849 = vunpack.c.l.b16 %v429
    %v1850 = vunpack.c.h.b16 %v429
    %v1851 = vunpack.c.l.b16 %v430
    %v1852 = vunpack.c.h.b16 %v430
    %v1853 = vunpack.c.l.b16 %v431
    %v1854 = vunpack.c.h.b16 %v431
    %v1855 = vunpack.c.l.b16 %v432
    %v1856 = vunpack.c.h.b16 %v432
    %v1857 = vunpack.c.l.b16 %v433
    %v1858 = vunpack.c.h.b16 %v433
    %v1859 = vunpack.c.l.b16 %v434
    %v1860 = vunpack.c.h.b16 %v434
    %v1861 = vunpack.c.l.b16 %v435
    %v1862 = vunpack.c.h.b16 %v435
    %v1863 = vunpack.c.l.b16 %v436
    %v1864 = vunpack.c.h.b16 %v436
    %v1865 = vunpack.c.l.b16 %v437
    %v1866 = vunpack.c.h.b16 %v437
    %v1867 = vunpack.c.l.b16 %v438
    %v1868 = vunpack.c.h.b16 %v438
    %v1869 = vunpack.c.l.b16 %v439
    %v1870 = vunpack.c.h.b16 %v439
    %v1871 = vunpack.c.l.b16 %v440
    %v1872 = vunpack.c.h.b16 %v440
    %v1873 = vunpack.c.l.b16 %v441
    %v1874 = vunpack.c.h.b16 %v441
    %v1875 = vunpack.c.l.b16 %v442
    %v1876 = vunpack.c.h.b16 %v442
    %v1877 = vunpack.c.l.b16 %v443
    %v1878 = vunpack.c.h.b16 %v443
    %v1879 = vunpack.c.l.b16 %v444
    %v1880 = vunpack.c.h.b16 %v444
    %v1881 = vunpack.c.l.b16 %v445
    %v1882 = vunpack.c.h.b16 %v445
    %v1883 = vunpack.c.l.b16 %v446
    %v1884 = vunpack.c.h.b16 %v446
    %v1885 = vunpack.c.l.b16 %v447
    %v1886 = vunpack.c.h.b16 %v447
    %v1887 = vunpack.c.l.b16 %v448
    %v1888 = vunpack.c.h.b16 %v448
    %v1889 = vunpack.c.l.b16 %v449
    %v1890 = vunpack.c.h.b16 %v449
    %v1891 = vunpack.c.l.b16 %v450
    %v1892 = vunpack.c.h.b16 %v450
    %v1893 = vunpack.c.l.b16 %v451
    %v1894 = vunpack.c.h.b16 %v451
    %v1895 = vunpack.c.l.b16 %v452
    %v1896 = vunpack.c.h.b16 %v452
    %v1897 = vunpack.c.l.b16 %v453
    %v1898 = vunpack.c.h.b16 %v453
    %v1899 = vunpack.c.l.b16 %v454
    %v1900 = vunpack.c.h.b16 %v454
    %v1901 = vunpack.c.l.b16 %v455
    %v1902 = vunpack.c.h.b16 %v455
    %v1903 = vunpack.c.l.b16 %v456
    %v1904 = vunpack.c.h.b16 %v456
    %v1905 = vunpack.c.l.b16 %v457
    %v1906 = vunpack.c.h.b16 %v457
    %v1907 = vunpack.c.l.b16 %v458
    %v1908 = vunpack.c.h.b16 %v458
    %v1909 = vunpack.c.l.b16 %v459
    %v1910 = vunpack.c.h.b16 %v459
    %v1911 = vunpack.c.l.b16 %v460
    %v1912 = vunpack.c.h.b16 %v460
    %v1913 = vunpack.c.l.b16 %v461
    %v1914 = vunpack.c.h.b16 %v461
    %v1915 = vunpack.c.l.b16 %v462
    %v1916 = vunpack.c.h.b16 %v462
    %v1917 = vunpack.c.l.b16 %v463
    %v1918 = vunpack.c.h.b16 %v463
    %v1919 = vunpack.c.l.b16 %v464
    %v1920 = vunpack.c.h.b16 %v464
    %v1921 = vunpack.c.l.b16 %v465
    %v1922 = vunpack.c.h.b16 %v465
    %v1923 = vunpack.c.l.b16 %v466
    %v1924 = vunpack.c.h.b16 %v466
    %v1925 = vunpack.c.l.b16 %v467
    %v1926 = vunpack.c.h.b16 %v467
    %v1927 = vunpack.c.l.b16 %v468
    %v1928 = vunpack.c.h.b16 %v468
    %v1929 = vunpack.c.l.b16 %v469
    %v1930 = vunpack.c.h.b16 %v469
    %v1931 = vunpack.c.l.b16 %v470
    %v1932 = vunpack.c.h.b16 %v470
    %v1933 = vunpack.c.l.b16 %v471
    %v1934 = vunpack.c.h.b16 %v471
    %v1935 = vunpack.c.l.b16 %v472
    %v1936 = vunpack.c.h.b16 %v472
    %v1937 = vunpack.c.l.b16 %v473
    %v1938 = vunpack.c.h.b16 %v473
    %v1939 = vunpack.c.l.b16 %v474
    %v1940 = vunpack.c.h.b16 %v474
    %v1941 = vunpack.c.l.b16 %v475
    %v1942 = vunpack.c.h.b16 %v475
    %v1943 = vunpack.c.l.b16 %v476
    %v1944 = vunpack.c.h.b16 %v476
    %v1945 = vunpack.c.l.b16 %v477
    %v1946 = vunpack.c.h.b16 %v477
    %v1947 = vunpack.c.l.b16 %v478
    %v1948 = vunpack.c.h.b16 %v478
    %v1949 = vunpack.c.l.b16 %v479
    %v1950 = vunpack.c.h.b16 %v479
    %v1951 = vunpack.c.l.b16 %v480
    %v1952 = vunpack.c.h.b16 %v480
    %v1953 = vunpack.c.l.b16 %v481
    %v1954 = vunpack.c.h.b16 %v481
    %v1955 = vunpack.c.l.b16 %v482
    %v1956 = vunpack.c.h.b16 %v482
    %v1957 = vunpack.c.l.b16 %v483
    %v1958 = vunpack.c.h.b16 %v483
    %v1959 = vunpack.c.l.b16 %v484
    %v1960 = vunpack.c.h.b16 %v484
    %v1961 = vunpack.c.l.b16 %v485
    %v1962 = vunpack.c.h.b16 %v485
    %v1963 = vunpack.c.l.b16 %v486
    %v1964 = vunpack.c.h.b16 %v486
    %v1965 = vunpack.c.l.b16 %v487
    %v1966 = vunpack.c.h.b16 %v487
    %v1967 = vunpack.c.l.b16 %v488
    %v1968 = vunpack.c.h.b16 %v488
    %v1969 = vunpack.c.l.b16 %v489
    %v1970 = vunpack.c.h.b16 %v489
    %v1971 = vunpack.c.l.b16 %v490
    %v1972 = vunpack.c.h.b16 %v490
    %v1973 = vunpack.c.l.b16 %v491
    %v1974 = vunpack.c.h.b16 %v491
    %v1975 = vunpack.c.l.b16 %v492
    %v1976 = vunpack.c.h.b16 %v492
    %v1977 = vunpack.c.l.b16 %v493
    %v1978 = vunpack.c.h.b16 %v493
    %v1979 = vunpack.c.l.b16 %v494
    %v1980 = vunpack.c.h.b16 %v494
    %v1981 = vunpack.c.l.b16 %v495
    %v1982 = vunpack.c.h.b16 %v495
    %v1983 = vunpack.c.l.b16 %v496
    %v1984 = vunpack.c.h.b16 %v496
    %v1985 = vunpack.c.l.b16 %v497
    %v1986 = vunpack.c.h.b16 %v497
    %v1987 = vunpack.c.l.b16 %v498
    %v1988 = vunpack.c.h.b16 %v498
    %v1989 = vunpack.c.l.b16 %v499
    %v1990 = vunpack.c.h.b16 %v499
    %v1991 = vunpack.c.l.b16 %v500
    %v1992 = vunpack.c.h.b16 %v500
    %v1993 = vunpack.c.l.b16 %v501
    %v1994 = vunpack.c.h.b16 %v501
    %v1995 = vunpack.c.l.b16 %v502
    %v1996 = vunpack.c.h.b16 %v502
    %v1997 = vunpack.c.l.b16 %v503
    %v1998 = vunpack.c.h.b16 %v503
    %v1999 = vunpack.c.l.b16 %v504
    %v2000 = vunpack.c.h.b16 %v504
    %v2001 = vunpack.c.l.b16 %v505
    %v2002 = vunpack.c.h.b16 %v505
    %v2003 = vunpack.c.l.b16 %v506
    %v2004 = vunpack.c.h.b16 %v506
    %v2005 = vunpack.c.l.b16 %v507
    %v2006 = vunpack.c.h.b16 %v507
    %v2007 = vunpack.c.l.b16 %v508
    %v2008 = vunpack.c.h.b16 %v508
    %v2009 = vunpack.c.l.b16 %v509
    %v2010 = vunpack.c.h.b16 %v509
    %v2011 = vunpack.c.l.b16 %v510
    %v2012 = vunpack.c.h.b16 %v510
    %v2013 = vunpack.c.l.b16 %v511
    %v2014 = vunpack.c.h.b16 %v511
    %v2015 = vunpack.c.l.b16 %v512
    %v2016 = vunpack.c.h.b16 %v512
    %v2017 = vunpack.c.l.b16 %v513
    %v2018 = vunpack.c.h.b16 %v513
    %v2019 = vunpack.c.l.b16 %v514
    %v2020 = vunpack.c.h.b16 %v514
    %v2021 = vunpack.c.l.b16 %v515
    %v2022 = vunpack.c.h.b16 %v515
    %v2023 = vunpack.c.l.b16 %v516
    %v2024 = vunpack.c.h.b16 %v516
    %v2025 = vunpack.c.l.b16 %v517
    %v2026 = vunpack.c.h.b16 %v517
    %v2027 = vunpack.c.l.b16 %v518
    %v2028 = vunpack.c.h.b16 %v518
    %v2029 = vunpack.c.l.b16 %v519
    %v2030 = vunpack.c.h.b16 %v519
    %v2031 = vunpack.c.l.b16 %v520
    %v2032 = vunpack.c.h.b16 %v520
    %v2033 = vunpack.c.l.b16 %v521
    %v2034 = vunpack.c.h.b16 %v521
    %v2035 = vunpack.c.l.b16 %v522
    %v2036 = vunpack.c.h.b16 %v522
    %v2037 = vunpack.c.l.b16 %v523
    %v2038 = vunpack.c.h.b16 %v523
    %v2039 = vunpack.c.l.b16 %v524
    %v2040 = vunpack.c.h.b16 %v524
    %v2041 = vunpack.c.l.b16 %v525
    %v2042 = vunpack.c.h.b16 %v525
    %v2043 = vunpack.c.l.b16 %v526
    %v2044 = vunpack.c.h.b16 %v526
    %v2045 = vunpack.c.l.b16 %v527
    %v2046 = vunpack.c.h.b16 %v527
    %v2047 = vunpack.c.l.b16 %v528
    %v2048 = vunpack.c.h.b16 %v528
    %v2049 = vunpack.c.l.b16 %v529
    %v2050 = vunpack.c.h.b16 %v529
    %v2051 = vunpack.c.l.b16 %v530
    %v2052 = vunpack.c.h.b16 %v530
    %v2053 = vunpack.c.l.b16 %v531
    %v2054 = vunpack.c.h.b16 %v531
    %v2055 = vunpack.c.l.b16 %v532
    %v2056 = vunpack.c.h.b16 %v532
    %v2057 = vunpack.c.l.b16 %v533
    %v2058 = vunpack.c.h.b16 %v533
    %v2059 = vunpack.c.l.b16 %v534
    %v2060 = vunpack.c.h.b16 %v534
    %v2061 = vunpack.c.l.b16 %v535
    %v2062 = vunpack.c.h.b16 %v535
    %v2063 = vunpack.c.l.b16 %v536
    %v2064 = vunpack.c.h.b16 %v536
    %v2065 = vunpack.c.l.b16 %v537
    %v2066 = vunpack.c.h.b16 %v537
    %v2067 = vunpack.c.l.b16 %v538
    %v2068 = vunpack.c.h.b16 %v538
    %v2069 = vunpack.c.l.b16 %v539
    %v2070 = vunpack.c.h.b16 %v539
    %v2071 = vunpack.c.l.b16 %v540
    %v2072 = vunpack.c.h.b16 %v540
    %v2073 = vunpack.c.l.b16 %v541
    %v2074 = vunpack.c.h.b16 %v541
    %v2075 = vunpack.c.l.b16 %v542
    %v2076 = vunpack.c.h.b16 %v542
    %v2077 = vunpack.c.l.b16 %v543
    %v2078 = vunpack.c.h.b16 %v543
    %v2079 = vunpack.c.l.b16 %v544
    %v2080 = vunpack.c.h.b16 %v544
    %v2081 = vunpack.c.l.b16 %v545
    %v2082 = vunpack.c.h.b16 %v545
    %v2083 = vunpack.c.l.b16 %v546
    %v2084 = vunpack.c.h.b16 %v546
    %v2085 = vunpack.c.l.b16 %v547
    %v2086 = vunpack.c.h.b16 %v547
    %v2087 = vunpack.c.l.b16 %v548
    %v2088 = vunpack.c.h.b16 %v548
    %v2089 = vunpack.c.l.b16 %v549
    %v2090 = vunpack.c.h.b16 %v549
    %v2091 = vunpack.c.l.b16 %v550
    %v2092 = vunpack.c.h.b16 %v550
    %v2093 = vunpack.c.l.b16 %v551
    %v2094 = vunpack.c.h.b16 %v551
    %v2095 = vunpack.c.l.b16 %v552
    %v2096 = vunpack.c.h.b16 %v552
    %v2097 = vunpack.c.l.b16 %v553
    %v2098 = vunpack.c.h.b16 %v553
    %v2099 = vunpack.c.l.b16 %v554
    %v2100 = vunpack.c.h.b16 %v554
    %v2101 = vunpack.c.l.b16 %v555
    %v2102 = vunpack.c.h.b16 %v555
    %v2103 = vunpack.c.l.b16 %v556
    %v2104 = vunpack.c.h.b16 %v556
    %v2105 = vunpack.c.l.b16 %v557
    %v2106 = vunpack.c.h.b16 %v557
    %v2107 = vunpack.c.l.b16 %v558
    %v2108 = vunpack.c.h.b16 %v558
    %v2109 = vunpack.c.l.b16 %v559
    %v2110 = vunpack.c.h.b16 %v559
    %v2111 = vunpack.c.l.b16 %v560
    %v2112 = vunpack.c.h.b16 %v560
    %v2113 = vunpack.c.l.b16 %v561
    %v2114 = vunpack.c.h.b16 %v561
    %v2115 = vunpack.c.l.b16 %v562
    %v2116 = vunpack.c.h.b16 %v562
    %v2117 = vunpack.c.l.b16 %v563
    %v2118 = vunpack.c.h.b16 %v563
    %v2119 = vunpack.c.l.b16 %v564
    %v2120 = vunpack.c.h.b16 %v564
    %v2121 = vunpack.c.l.b16 %v565
    %v2122 = vunpack.c.h.b16 %v565
    %v2123 = vunpack.c.l.b16 %v566
    %v2124 = vunpack.c.h.b16 %v566
    %v2125 = vunpack.c.l.b16 %v567
    %v2126 = vunpack.c.h.b16 %v567
    %v2127 = vunpack.c.l.b16 %v568
    %v2128 = vunpack.c.h.b16 %v568
    %v2129 = vunpack.c.l.b16 %v569
    %v2130 = vunpack.c.h.b16 %v569
    %v2131 = vunpack.c.l.b16 %v570
    %v2132 = vunpack.c.h.b16 %v570
    %v2133 = vunpack.c.l.b16 %v571
    %v2134 = vunpack.c.h.b16 %v571
    %v2135 = vunpack.c.l.b16 %v572
    %v2136 = vunpack.c.h.b16 %v572
    %v2137 = vunpack.c.l.b16 %v573
    %v2138 = vunpack.c.h.b16 %v573
    %v2139 = vunpack.c.l.b16 %v574
    %v2140 = vunpack.c.h.b16 %v574
    %v2141 = vunpack.c.l.b16 %v575
    %v2142 = vunpack.c.h.b16 %v575
    %v2143 = vunpack.c.l.b16 %v576
    %v2144 = vunpack.c.h.b16 %v576
    %v2145 = vunpack.c.l.b16 %v577
    %v2146 = vunpack.c.h.b16 %v577
    %v2147 = vunpack.c.l.b16 %v578
    %v2148 = vunpack.c.h.b16 %v578
    %v2149 = vunpack.c.l.b16 %v579
    %v2150 = vunpack.c.h.b16 %v579
    %v2151 = vunpack.c.l.b16 %v580
    %v2152 = vunpack.c.h.b16 %v580
    %v2153 = vunpack.c.l.b16 %v581
    %v2154 = vunpack.c.h.b16 %v581
    %v2155 = vunpack.c.l.b16 %v582
    %v2156 = vunpack.c.h.b16 %v582
    %v2157 = vunpack.c.l.b16 %v583
    %v2158 = vunpack.c.h.b16 %v583
    %v2159 = vunpack.c.l.b16 %v584
    %v2160 = vunpack.c.h.b16 %v584
    %v2161 = vunpack.c.l.b16 %v585
    %v2162 = vunpack.c.h.b16 %v585
    %v2163 = vunpack.c.l.b16 %v586
    %v2164 = vunpack.c.h.b16 %v586
    %v2165 = vunpack.c.l.b16 %v587
    %v2166 = vunpack.c.h.b16 %v587
    %v2167 = vunpack.c.l.b16 %v588
    %v2168 = vunpack.c.h.b16 %v588
    %v2169 = vunpack.c.l.b16 %v589
    %v2170 = vunpack.c.h.b16 %v589
    %v2171 = vunpack.c.l.b16 %v590
    %v2172 = vunpack.c.h.b16 %v590
    %v2173 = vunpack.c.l.b16 %v591
    %v2174 = vunpack.c.h.b16 %v591
    %v2175 = vunpack.c.l.b16 %v592
    %v2176 = vunpack.c.h.b16 %v592
    %v2177 = vpack.c.b16 %v1401, %v1393
    %v2178 = vpack.c.b16 %v1402, %v1394
    %v2179 = vpack.c.b16 %v1403, %v1395
    %v2180 = vpack.c.b16 %v1404, %v1396
    %v2181 = vpack.c.b16 %v1405, %v1397
    %v2182 = vpack.c.b16 %v1406, %v1398
    %v2183 = vpack.c.b16 %v1407, %v1399
    %v2184 = vpack.c.b16 %v1408, %v1400
    %v2185 = vpack.c.b16 %v1417, %v1409
    %v2186 = vpack.c.b16 %v1418, %v1410
    %v2187 = vpack.c.b16 %v1419, %v1411
    %v2188 = vpack.c.b16 %v1420, %v1412
    %v2189 = vpack.c.b16 %v1421, %v1413
    %v2190 = vpack.c.b16 %v1422, %v1414
    %v2191 = vpack.c.b16 %v1423, %v1415
    %v2192 = vpack.c.b16 %v1424, %v1416
    %v2193 = vpack.c.b16 %v1433, %v1425
    %v2194 = vpack.c.b16 %v1434, %v1426
    %v2195 = vpack.c.b16 %v1435, %v1427
    %v2196 = vpack.c.b16 %v1436, %v1428
    %v2197 = vpack.c.b16 %v1437, %v1429
    %v2198 = vpack.c.b16 %v1438, %v1430
    %v2199 = vpack.c.b16 %v1439, %v1431
    %v2200 = vpack.c.b16 %v1440, %v1432
    %v2201 = vpack.c.b16 %v1449, %v1441
    %v2202 = vpack.c.b16 %v1450, %v1442
    %v2203 = vpack.c.b16 %v1451, %v1443
    %v2204 = vpack.c.b16 %v1452, %v1444
    %v2205 = vpack.c.b16 %v1453, %v1445
    %v2206 = vpack.c.b16 %v1454, %v1446
    %v2207 = vpack.c.b16 %v1455, %v1447
    %v2208 = vpack.c.b16 %v1456, %v1448
    %v2209 = vpack.c.b16 %v1465, %v1457
    %v2210 = vpack.c.b16 %v1466, %v1458
    %v2211 = vpack.c.b16 %v1467, %v1459
    %v2212 = vpack.c.b16 %v1468, %v1460
    %v2213 = vpack.c.b16 %v1469, %v1461
    %v2214 = vpack.c.b16 %v1470, %v1462
    %v2215 = vpack.c.b16 %v1471, %v1463
    %v2216 = vpack.c.b16 %v1472, %v1464
    %v2217 = vpack.c.b16 %v1481, %v1473
    %v2218 = vpack.c.b16 %v1482, %v1474
    %v2219 = vpack.c.b16 %v1483, %v1475
    %v2220 = vpack.c.b16 %v1484, %v1476
    %v2221 = vpack.c.b16 %v1485, %v1477
    %v2222 = vpack.c.b16 %v1486, %v1478
    %v2223 = vpack.c.b16 %v1487, %v1479
    %v2224 = vpack.c.b16 %v1488, %v1480
    %v2225 = vpack.c.b16 %v1497, %v1489
    %v2226 = vpack.c.b16 %v1498, %v1490
    %v2227 = vpack.c.b16 %v1499, %v1491
    %v2228 = vpack.c.b16 %v1500, %v1492
    %v2229 = vpack.c.b16 %v1501, %v1493
    %v2230 = vpack.c.b16 %v1502, %v1494
    %v2231 = vpack.c.b16 %v1503, %v1495
    %v2232 = vpack.c.b16 %v1504, %v1496
    %v2233 = vpack.c.b16 %v1513, %v1505
    %v2234 = vpack.c.b16 %v1514, %v1506
    %v2235 = vpack.c.b16 %v1515, %v1507
    %v2236 = vpack.c.b16 %v1516, %v1508
    %v2237 = vpack.c.b16 %v1517, %v1509
    %v2238 = vpack.c.b16 %v1518, %v1510
    %v2239 = vpack.c.b16 %v1519, %v1511
    %v2240 = vpack.c.b16 %v1520, %v1512
    %v2241 = vpack.c.b16 %v1529, %v1521
    %v2242 = vpack.c.b16 %v1530, %v1522
    %v2243 = vpack.c.b16 %v1531, %v1523
    %v2244 = vpack.c.b16 %v1532, %v1524
    %v2245 = vpack.c.b16 %v1533, %v1525
    %v2246 = vpack.c.b16 %v1534, %v1526
    %v2247 = vpack.c.b16 %v1535, %v1527
    %v2248 = vpack.c.b16 %v1536, %v1528
    %v2249 = vpack.c.b16 %v1545, %v1537
    %v2250 = vpack.c.b16 %v1546, %v1538
    %v2251 = vpack.c.b16 %v1547, %v1539
    %v2252 = vpack.c.b16 %v1548, %v1540
    %v2253 = vpack.c.b16 %v1549, %v1541
    %v2254 = vpack.c.b16 %v1550, %v1542
    %v2255 = vpack.c.b16 %v1551, %v1543
    %v2256 = vpack.c.b16 %v1552, %v1544
    %v2257 = vpack.c.b16 %v1561, %v1553
    %v2258 = vpack.c.b16 %v1562, %v1554
    %v2259 = vpack.c.b16 %v1563, %v1555
    %v2260 = vpack.c.b16 %v1564, %v1556
    %v2261 = vpack.c.b16 %v1565, %v1557
    %v2262 = vpack.c.b16 %v1566, %v1558
    %v2263 = vpack.c.b16 %v1567, %v1559
    %v2264 = vpack.c.b16 %v1568, %v1560
    %v2265 = vpack.c.b16 %v1577, %v1569
    %v2266 = vpack.c.b16 %v1578, %v1570
    %v2267 = vpack.c.b16 %v1579, %v1571
    %v2268 = vpack.c.b16 %v1580, %v1572
    %v2269 = vpack.c.b16 %v1581, %v1573
    %v2270 = vpack.c.b16 %v1582, %v1574
    %v2271 = vpack.c.b16 %v1583, %v1575
    %v2272 = vpack.c.b16 %v1584, %v1576
    %v2273 = vpack.c.b16 %v1593, %v1585
    %v2274 = vpack.c.b16 %v1594, %v1586
    %v2275 = vpack.c.b16 %v1595, %v1587
    %v2276 = vpack.c.b16 %v1596, %v1588
    %v2277 = vpack.c.b16 %v1597, %v1589
    %v2278 = vpack.c.b16 %v1598, %v1590
    %v2279 = vpack.c.b16 %v1599, %v1591
    %v2280 = vpack.c.b16 %v1600, %v1592
    %v2281 = vpack.c.b16 %v1609, %v1601
    %v2282 = vpack.c.b16 %v1610, %v1602
    %v2283 = vpack.c.b16 %v1611, %v1603
    %v2284 = vpack.c.b16 %v1612, %v1604
    %v2285 = vpack.c.b16 %v1613, %v1605
    %v2286 = vpack.c.b16 %v1614, %v1606
    %v2287 = vpack.c.b16 %v1615, %v1607
    %v2288 = vpack.c.b16 %v1616, %v1608
    %v2289 = vpack.c.b16 %v1625, %v1617
    %v2290 = vpack.c.b16 %v1626, %v1618
    %v2291 = vpack.c.b16 %v1627, %v1619
    %v2292 = vpack.c.b16 %v1628, %v1620
    %v2293 = vpack.c.b16 %v1629, %v1621
    %v2294 = vpack.c.b16 %v1630, %v1622
    %v2295 = vpack.c.b16 %v1631, %v1623
    %v2296 = vpack.c.b16 %v1632, %v1624
    %v2297 = vpack.c.b16 %v1641, %v1633
    %v2298 = vpack.c.b16 %v1642, %v1634
    %v2299 = vpack.c.b16 %v1643, %v1635
    %v2300 = vpack.c.b16 %v1644, %v1636
    %v2301 = vpack.c.b16 %v1645, %v1637
    %v2302 = vpack.c.b16 %v1646, %v1638
    %v2303 = vpack.c.b16 %v1647, %v1639
    %v2304 = vpack.c.b16 %v1648, %v1640
    %v2305 = vpack.c.b16 %v1657, %v1649
    %v2306 = vpack.c.b16 %v1658, %v1650
    %v2307 = vpack.c.b16 %v1659, %v1651
    %v2308 = vpack.c.b16 %v1660, %v1652
    %v2309 = vpack.c.b16 %v1661, %v1653
    %v2310 = vpack.c.b16 %v1662, %v1654
    %v2311 = vpack.c.b16 %v1663, %v1655
    %v2312 = vpack.c.b16 %v1664, %v1656
    %v2313 = vpack.c.b16 %v1673, %v1665
    %v2314 = vpack.c.b16 %v1674, %v1666
    %v2315 = vpack.c.b16 %v1675, %v1667
    %v2316 = vpack.c.b16 %v1676, %v1668
    %v2317 = vpack.c.b16 %v1677, %v1669
    %v2318 = vpack.c.b16 %v1678, %v1670
    %v2319 = vpack.c.b16 %v1679, %v1671
    %v2320 = vpack.c.b16 %v1680, %v1672
    %v2321 = vpack.c.b16 %v1689, %v1681
    %v2322 = vpack.c.b16 %v1690, %v1682
    %v2323 = vpack.c.b16 %v1691, %v1683
    %v2324 = vpack.c.b16 %v1692, %v1684
    %v2325 = vpack.c.b16 %v1693, %v1685
    %v2326 = vpack.c.b16 %v1694, %v1686
    %v2327 = vpack.c.b16 %v1695, %v1687
    %v2328 = vpack.c.b16 %v1696, %v1688
    %v2329 = vpack.c.b16 %v1705, %v1697
    %v2330 = vpack.c.b16 %v1706, %v1698
    %v2331 = vpack.c.b16 %v1707, %v1699
    %v2332 = vpack.c.b16 %v1708, %v1700
    %v2333 = vpack.c.b16 %v1709, %v1701
    %v2334 = vpack.c.b16 %v1710, %v1702
    %v2335 = vpack.c.b16 %v1711, %v1703
    %v2336 = vpack.c.b16 %v1712, %v1704
    %v2337 = vpack.c.b16 %v1721, %v1713
    %v2338 = vpack.c.b16 %v1722, %v1714
    %v2339 = vpack.c.b16 %v1723, %v1715
    %v2340 = vpack.c.b16 %v1724, %v1716
    %v2341 = vpack.c.b16 %v1725, %v1717
    %v2342 = vpack.c.b16 %v1726, %v1718
    %v2343 = vpack.c.b16 %v1727, %v1719
    %v2344 = vpack.c.b16 %v1728, %v1720
    %v2345 = vpack.c.b16 %v1737, %v1729
    %v2346 = vpack.c.b16 %v1738, %v1730
    %v2347 = vpack.c.b16 %v1739, %v1731
    %v2348 = vpack.c.b16 %v1740, %v1732
    %v2349 = vpack.c.b16 %v1741, %v1733
    %v2350 = vpack.c.b16 %v1742, %v1734
    %v2351 = vpack.c.b16 %v1743, %v1735
    %v2352 = vpack.c.b16 %v1744, %v1736
    %v2353 = vpack.c.b16 %v1753, %v1745
    %v2354 = vpack.c.b16 %v1754, %v1746
    %v2355 = vpack.c.b16 %v1755, %v1747
    %v2356 = vpack.c.b16 %v1756, %v1748
    %v2357 = vpack.c.b16 %v1757, %v1749
    %v2358 = vpack.c.b16 %v1758, %v1750
    %v2359 = vpack.c.b16 %v1759, %v1751
    %v2360 = vpack.c.b16 %v1760, %v1752
    %v2361 = vpack.c.b16 %v1769, %v1761
    %v2362 = vpack.c.b16 %v1770, %v1762
    %v2363 = vpack.c.b16 %v1771, %v1763
    %v2364 = vpack.c.b16 %v1772, %v1764
    %v2365 = vpack.c.b16 %v1773, %v1765
    %v2366 = vpack.c.b16 %v1774, %v1766
    %v2367 = vpack.c.b16 %v1775, %v1767
    %v2368 = vpack.c.b16 %v1776, %v1768
    %v2369 = vpack.c.b16 %v1785, %v1777
    %v2370 = vpack.c.b16 %v1786, %v1778
    %v2371 = vpack.c.b16 %v1787, %v1779
    %v2372 = vpack.c.b16 %v1788, %v1780
    %v2373 = vpack.c.b16 %v1789, %v1781
    %v2374 = vpack.c.b16 %v1790, %v1782
    %v2375 = vpack.c.b16 %v1791, %v1783
    %v2376 = vpack.c.b16 %v1792, %v1784
    %v2377 = vpack.c.b16 %v1801, %v1793
    %v2378 = vpack.c.b16 %v1802, %v1794
    %v2379 = vpack.c.b16 %v1803, %v1795
    %v2380 = vpack.c.b16 %v1804, %v1796
    %v2381 = vpack.c.b16 %v1805, %v1797
    %v2382 = vpack.c.b16 %v1806, %v1798
    %v2383 = vpack.c.b16 %v1807, %v1799
    %v2384 = vpack.c.b16 %v1808, %v1800
    %v2385 = vpack.c.b16 %v1817, %v1809
    %v2386 = vpack.c.b16 %v1818, %v1810
    %v2387 = vpack.c.b16 %v1819, %v1811
    %v2388 = vpack.c.b16 %v1820, %v1812
    %v2389 = vpack.c.b16 %v1821, %v1813
    %v2390 = vpack.c.b16 %v1822, %v1814
    %v2391 = vpack.c.b16 %v1823, %v1815
    %v2392 = vpack.c.b16 %v1824, %v1816
    %v2393 = vpack.c.b16 %v1833, %v1825
    %v2394 = vpack.c.b16 %v1834, %v1826
    %v2395 = vpack.c.b16 %v1835, %v1827
    %v2396 = vpack.c.b16 %v1836, %v1828
    %v2397 = vpack.c.b16 %v1837, %v1829
    %v2398 = vpack.c.b16 %v1838, %v1830
    %v2399 = vpack.c.b16 %v1839, %v1831
    %v2400 = vpack.c.b16 %v1840, %v1832
    %v2401 = vpack.c.b16 %v1849, %v1841
    %v2402 = vpack.c.b16 %v1850, %v1842
    %v2403 = vpack.c.b16 %v1851, %v1843
    %v2404 = vpack.c.b16 %v1852, %v1844
    %v2405 = vpack.c.b16 %v1853, %v1845
    %v2406 = vpack.c.b16 %v1854, %v1846
    %v2407 = vpack.c.b16 %v1855, %v1847
    %v2408 = vpack.c.b16 %v1856, %v1848
    %v2409 = vpack.c.b16 %v1865, %v1857
    %v2410 = vpack.c.b16 %v1866, %v1858
    %v2411 = vpack.c.b16 %v1867, %v1859
    %v2412 = vpack.c.b16 %v1868, %v1860
    %v2413 = vpack.c.b16 %v1869, %v1861
    %v2414 = vpack.c.b16 %v1870, %v1862
    %v2415 = vpack.c.b16 %v1871, %v1863
    %v2416 = vpack.c.b16 %v1872, %v1864
    %v2417 = vpack.c.b16 %v1881, %v1873
    %v2418 = vpack.c.b16 %v1882, %v1874
    %v2419 = vpack.c.b16 %v1883, %v1875
    %v2420 = vpack.c.b16 %v1884, %v1876
    %v2421 = vpack.c.b16 %v1885, %v1877
    %v2422 = vpack.c.b16 %v1886, %v1878
    %v2423 = vpack.c.b16 %v1887, %v1879
    %v2424 = vpack.c.b16 %v1888, %v1880
    %v2425 = vpack.c.b16 %v1897, %v1889
    %v2426 = vpack.c.b16 %v1898, %v1890
    %v2427 = vpack.c.b16 %v1899, %v1891
    %v2428 = vpack.c.b16 %v1900, %v1892
    %v2429 = vpack.c.b16 %v1901, %v1893
    %v2430 = vpack.c.b16 %v1902, %v1894
    %v2431 = vpack.c.b16 %v1903, %v1895
    %v2432 = vpack.c.b16 %v1904, %v1896
    %v2433 = vpack.c.b16 %v1913, %v1905
    %v2434 = vpack.c.b16 %v1914, %v1906
    %v2435 = vpack.c.b16 %v1915, %v1907
    %v2436 = vpack.c.b16 %v1916, %v1908
    %v2437 = vpack.c.b16 %v1917, %v1909
    %v2438 = vpack.c.b16 %v1918, %v1910
    %v2439 = vpack.c.b16 %v1919, %v1911
    %v2440 = vpack.c.b16 %v1920, %v1912
    %v2441 = vpack.c.b16 %v1929, %v1921
    %v2442 = vpack.c.b16 %v1930, %v1922
    %v2443 = vpack.c.b16 %v1931, %v1923
    %v2444 = vpack.c.b16 %v1932, %v1924
    %v2445 = vpack.c.b16 %v1933, %v1925
    %v2446 = vpack.c.b16 %v1934, %v1926
    %v2447 = vpack.c.b16 %v1935, %v1927
    %v2448 = vpack.c.b16 %v1936, %v1928
    %v2449 = vpack.c.b16 %v1945, %v1937
    %v2450 = vpack.c.b16 %v1946, %v1938
    %v2451 = vpack.c.b16 %v1947, %v1939
    %v2452 = vpack.c.b16 %v1948, %v1940
    %v2453 = vpack.c.b16 %v1949, %v1941
    %v2454 = vpack.c.b16 %v1950, %v1942
    %v2455 = vpack.c.b16 %v1951, %v1943
    %v2456 = vpack.c.b16 %v1952, %v1944
    %v2457 = vpack.c.b16 %v1961, %v1953
    %v2458 = vpack.c.b16 %v1962, %v1954
    %v2459 = vpack.c.b16 %v1963, %v1955
    %v2460 = vpack.c.b16 %v1964, %v1956
    %v2461 = vpack.c.b16 %v1965, %v1957
    %v2462 = vpack.c.b16 %v1966, %v1958
    %v2463 = vpack.c.b16 %v1967, %v1959
    %v2464 = vpack.c.b16 %v1968, %v1960
    %v2465 = vpack.c.b16 %v1977, %v1969
    %v2466 = vpack.c.b16 %v1978, %v1970
    %v2467 = vpack.c.b16 %v1979, %v1971
    %v2468 = vpack.c.b16 %v1980, %v1972
    %v2469 = vpack.c.b16 %v1981, %v1973
    %v2470 = vpack.c.b16 %v1982, %v1974
    %v2471 = vpack.c.b16 %v1983, %v1975
    %v2472 = vpack.c.b16 %v1984, %v1976
    %v2473 = vpack.c.b16 %v1993, %v1985
    %v2474 = vpack.c.b16 %v1994, %v1986
    %v2475 = vpack.c.b16 %v1995, %v1987
    %v2476 = vpack.c.b16 %v1996, %v1988
    %v2477 = vpack.c.b16 %v1997, %v1989
    %v2478 = vpack.c.b16 %v1998, %v1990
    %v2479 = vpack.c.b16 %v1999, %v1991
    %v2480 = vpack.c.b16 %v2000, %v1992
    %v2481 = vpack.c.b16 %v2009, %v2001
    %v2482 = vpack.c.b16 %v2010, %v2002
    %v2483 = vpack.c.b16 %v2011, %v2003
    %v2484 = vpack.c.b16 %v2012, %v2004
    %v2485 = vpack.c.b16 %v2013, %v2005
    %v2486 = vpack.c.b16 %v2014, %v2006
    %v2487 = vpack.c.b16 %v2015, %v2007
    %v2488 = vpack.c.b16 %v2016, %v2008
    %v2489 = vpack.c.b16 %v2025, %v2017
    %v2490 = vpack.c.b16 %v2026, %v2018
    %v2491 = vpack.c.b16 %v2027, %v2019
    %v2492 = vpack.c.b16 %v2028, %v2020
    %v2493 = vpack.c.b16 %v2029, %v2021
    %v2494 = vpack.c.b16 %v2030, %v2022
    %v2495 = vpack.c.b16 %v2031, %v2023
    %v2496 = vpack.c.b16 %v2032, %v2024
    %v2497 = vpack.c.b16 %v2041, %v2033
    %v2498 = vpack.c.b16 %v2042, %v2034
    %v2499 = vpack.c.b16 %v2043, %v2035
    %v2500 = vpack.c.b16 %v2044, %v2036
    %v2501 = vpack.c.b16 %v2045, %v2037
    %v2502 = vpack.c.b16 %v2046, %v2038
    %v2503 = vpack.c.b16 %v2047, %v2039
    %v2504 = vpack.c.b16 %v2048, %v2040
    %v2505 = vpack.c.b16 %v2057, %v2049
    %v2506 = vpack.c.b16 %v2058, %v2050
    %v2507 = vpack.c.b16 %v2059, %v2051
    %v2508 = vpack.c.b16 %v2060, %v2052
    %v2509 = vpack.c.b16 %v2061, %v2053
    %v2510 = vpack.c.b16 %v2062, %v2054
    %v2511 = vpack.c.b16 %v2063, %v2055
    %v2512 = vpack.c.b16 %v2064, %v2056
    %v2513 = vpack.c.b16 %v2073, %v2065
    %v2514 = vpack.c.b16 %v2074, %v2066
    %v2515 = vpack.c.b16 %v2075, %v2067
    %v2516 = vpack.c.b16 %v2076, %v2068
    %v2517 = vpack.c.b16 %v2077, %v2069
    %v2518 = vpack.c.b16 %v2078, %v2070
    %v2519 = vpack.c.b16 %v2079, %v2071
    %v2520 = vpack.c.b16 %v2080, %v2072
    %v2521 = vpack.c.b16 %v2089, %v2081
    %v2522 = vpack.c.b16 %v2090, %v2082
    %v2523 = vpack.c.b16 %v2091, %v2083
    %v2524 = vpack.c.b16 %v2092, %v2084
    %v2525 = vpack.c.b16 %v2093, %v2085
    %v2526 = vpack.c.b16 %v2094, %v2086
    %v2527 = vpack.c.b16 %v2095, %v2087
    %v2528 = vpack.c.b16 %v2096, %v2088
    %v2529 = vpack.c.b16 %v2105, %v2097
    %v2530 = vpack.c.b16 %v2106, %v2098
    %v2531 = vpack.c.b16 %v2107, %v2099
    %v2532 = vpack.c.b16 %v2108, %v2100
    %v2533 = vpack.c.b16 %v2109, %v2101
    %v2534 = vpack.c.b16 %v2110, %v2102
    %v2535 = vpack.c.b16 %v2111, %v2103
    %v2536 = vpack.c.b16 %v2112, %v2104
    %v2537 = vpack.c.b16 %v2121, %v2113
    %v2538 = vpack.c.b16 %v2122, %v2114
    %v2539 = vpack.c.b16 %v2123, %v2115
    %v2540 = vpack.c.b16 %v2124, %v2116
    %v2541 = vpack.c.b16 %v2125, %v2117
    %v2542 = vpack.c.b16 %v2126, %v2118
    %v2543 = vpack.c.b16 %v2127, %v2119
    %v2544 = vpack.c.b16 %v2128, %v2120
    %v2545 = vpack.c.b16 %v2137, %v2129
    %v2546 = vpack.c.b16 %v2138, %v2130
    %v2547 = vpack.c.b16 %v2139, %v2131
    %v2548 = vpack.c.b16 %v2140, %v2132
    %v2549 = vpack.c.b16 %v2141, %v2133
    %v2550 = vpack.c.b16 %v2142, %v2134
    %v2551 = vpack.c.b16 %v2143, %v2135
    %v2552 = vpack.c.b16 %v2144, %v2136
    %v2553 = vpack.c.b16 %v2153, %v2145
    %v2554 = vpack.c.b16 %v2154, %v2146
    %v2555 = vpack.c.b16 %v2155, %v2147
    %v2556 = vpack.c.b16 %v2156, %v2148
    %v2557 = vpack.c.b16 %v2157, %v2149
    %v2558 = vpack.c.b16 %v2158, %v2150
    %v2559 = vpack.c.b16 %v2159, %v2151
    %v2560 = vpack.c.b16 %v2160, %v2152
    %v2561 = vpack.c.b16 %v2169, %v2161
    %v2562 = vpack.c.b16 %v2170, %v2162
    %v2563 = vpack.c.b16 %v2171, %v2163
    %v2564 = vpack.c.b16 %v2172, %v2164
    %v2565 = vpack.c.b16 %v2173, %v2165
    %v2566 = vpack.c.b16 %v2174, %v2166
    %v2567 = vpack.c.b16 %v2175, %v2167
    %v2568 = vpack.c.b16 %v2176, %v2168
    %vm2961 = vcmask 130048
    %v2963 = vsel %vm2961, %v903, 0
    %v2966 = vsel %vm2961, %v910, 0
    %v2969 = vsel %vm2961, %v917, 0
    %v2972 = vsel %vm2961, %v924, 0
    %v2975 = vsel %vm2961, %v931, 0
    %v2978 = vsel %vm2961, %v938, 0
    %v2981 = vsel %vm2961, %v945, 0
    %v2984 = vsel %vm2961, %v952, 0
    %2986 = vmatprep.subr.bf16.mxu0 %v2178
    %2987 = vmatpush1.bf16.msra.mxu0 %v2177
    %2988 = vmatprep.subr.bf16.mxu0 %v2186
    %2989 = vmatpush1.bf16.msra.mxu0 %v2185
    %2990 = vmatprep.subr.bf16.mxu0 %v2194
    %2991 = vmatpush1.bf16.msra.mxu0 %v2193
    %2992 = vmatprep.subr.bf16.mxu0 %v2202
    %2993 = vmatpush1.bf16.msra.mxu0 %v2201
    %2994 = vmatprep.subr.bf16.mxu0 %v2210
    %2995 = vmatpush1.bf16.msra.mxu0 %v2209
    %2996 = vmatprep.subr.bf16.mxu0 %v2218
    %2997 = vmatpush1.bf16.msra.mxu0 %v2217
    %2998 = vmatprep.subr.bf16.mxu0 %v2226
    %2999 = vmatpush1.bf16.msra.mxu0 %v2225
    %3000 = vmatprep.subr.bf16.mxu0 %v2234
    %3001 = vmatpush1.bf16.msra.mxu0 %v2233
    %3002 = vmatprep.subr.bf16.mxu0 %v2242
    %3003 = vmatpush1.bf16.msra.mxu0 %v2241
    %3004 = vmatprep.subr.bf16.mxu0 %v2250
    %3005 = vmatpush1.bf16.msra.mxu0 %v2249
    %3006 = vmatprep.subr.bf16.mxu0 %v2258
    %3007 = vmatpush1.bf16.msra.mxu0 %v2257
    %3008 = vmatprep.subr.bf16.mxu0 %v2266
    %3009 = vmatpush1.bf16.msra.mxu0 %v2265
    %3010 = vmatprep.subr.bf16.mxu0 %v2274
    %3011 = vmatpush1.bf16.msra.mxu0 %v2273
    %3012 = vmatprep.subr.bf16.mxu0 %v2282
    %3013 = vmatpush1.bf16.msra.mxu0 %v2281
    %3014 = vmatprep.subr.bf16.mxu0 %v2290
    %3015 = vmatpush1.bf16.msra.mxu0 %v2289
    %3016 = vmatprep.subr.bf16.mxu0 %v2298
    %3017 = vmatpush1.bf16.msra.mxu0 %v2297
    %3018 = vmatprep.mubr.bf16.mxu0 %v898
    %3019 = vmatmul.mubr.bf16.gmra.mrb[0].mxu0 %v897
    %v3020 = vpop.f32.mrb[0].mxu0
    %v3021 = vadd.f32 %v593, %v3020
    %v3022 = vpop.f32.mrb[0].mxu0
    %v3023 = vadd.f32 %v594, %v3022
    %v3024 = vpop.f32.mrb[0].mxu0
    %v3025 = vadd.f32 %v601, %v3024
    %v3026 = vpop.f32.mrb[0].mxu0
    %v3027 = vadd.f32 %v602, %v3026
    %3028 = vmatprep.mubr.bf16.mxu0 %v905
    %3029 = vmatmul.mubr.bf16.gmra.mrb[0].mxu0 %v904
    %v3030 = vpop.f32.mrb[0].mxu0
    %v3031 = vadd.f32 %v609, %v3030
    %v3032 = vpop.f32.mrb[0].mxu0
    %v3033 = vadd.f32 %v610, %v3032
    %v3034 = vpop.f32.mrb[0].mxu0
    %v3035 = vadd.f32 %v617, %v3034
    %v3036 = vpop.f32.mrb[0].mxu0
    %v3037 = vadd.f32 %v618, %v3036
    %3038 = vmatprep.mubr.bf16.mxu0 %v912
    %3039 = vmatmul.mubr.bf16.gmra.mrb[0].mxu0 %v911
    %v3040 = vpop.f32.mrb[0].mxu0
    %v3041 = vadd.f32 %v625, %v3040
    %v3042 = vpop.f32.mrb[0].mxu0
    %v3043 = vadd.f32 %v626, %v3042
    %v3044 = vpop.f32.mrb[0].mxu0
    %v3045 = vadd.f32 %v633, %v3044
    %v3046 = vpop.f32.mrb[0].mxu0
    %v3047 = vadd.f32 %v634, %v3046
    %3048 = vmatprep.mubr.bf16.mxu0 %v919
    %3049 = vmatmul.mubr.bf16.gmra.mrb[0].mxu0 %v918
    %v3050 = vpop.f32.mrb[0].mxu0
    %v3051 = vadd.f32 %v641, %v3050
    %v3052 = vpop.f32.mrb[0].mxu0
    %v3053 = vadd.f32 %v642, %v3052
    %v3054 = vpop.f32.mrb[0].mxu0
    %v3055 = vadd.f32 %v649, %v3054
    %v3056 = vpop.f32.mrb[0].mxu0
    %v3057 = vadd.f32 %v650, %v3056
    %3058 = vmatprep.mubr.bf16.mxu0 %v926
    %3059 = vmatmul.mubr.bf16.gmra.mrb[0].mxu0 %v925
    %v3060 = vpop.f32.mrb[0].mxu0
    %v3061 = vadd.f32 %v657, %v3060
    %v3062 = vpop.f32.mrb[0].mxu0
    %v3063 = vadd.f32 %v658, %v3062
    %v3064 = vpop.f32.mrb[0].mxu0
    %v3065 = vadd.f32 %v665, %v3064
    %v3066 = vpop.f32.mrb[0].mxu0
    %v3067 = vadd.f32 %v666, %v3066
    %3068 = vmatprep.mubr.bf16.mxu0 %v933
    %3069 = vmatmul.mubr.bf16.gmra.mrb[0].mxu0 %v932
    %v3070 = vpop.f32.mrb[0].mxu0
    %v3071 = vadd.f32 %v673, %v3070
    %v3072 = vpop.f32.mrb[0].mxu0
    %v3073 = vadd.f32 %v674, %v3072
    %v3074 = vpop.f32.mrb[0].mxu0
    %v3075 = vadd.f32 %v681, %v3074
    %v3076 = vpop.f32.mrb[0].mxu0
    %v3077 = vadd.f32 %v682, %v3076
    %3078 = vmatprep.mubr.bf16.mxu0 %v940
    %3079 = vmatmul.mubr.bf16.gmra.mrb[0].mxu0 %v939
    %v3080 = vpop.f32.mrb[0].mxu0
    %v3081 = vadd.f32 %v689, %v3080
    %v3082 = vpop.f32.mrb[0].mxu0
    %v3083 = vadd.f32 %v690, %v3082
    %v3084 = vpop.f32.mrb[0].mxu0
    %v3085 = vadd.f32 %v697, %v3084
    %v3086 = vpop.f32.mrb[0].mxu0
    %v3087 = vadd.f32 %v698, %v3086
    %3088 = vmatprep.mubr.bf16.mxu0 %v947
    %3089 = vmatmul.mubr.bf16.gmra.mrb[0].mxu0 %v946
    %v3090 = vpop.f32.mrb[0].mxu0
    %v3091 = vadd.f32 %v705, %v3090
    %v3092 = vpop.f32.mrb[0].mxu0
    %v3093 = vadd.f32 %v706, %v3092
    %v3094 = vpop.f32.mrb[0].mxu0
    %v3095 = vadd.f32 %v713, %v3094
    %v3096 = vpop.f32.mrb[0].mxu0
    %v3097 = vadd.f32 %v714, %v3096
    %3098 = vdwg.mxu0
    %3099 = vmatprep.subr.bf16.mxu0 %v2306
    %3100 = vmatpush1.bf16.msra.mxu0 %v2305
    %3101 = vmatprep.subr.bf16.mxu0 %v2314
    %3102 = vmatpush1.bf16.msra.mxu0 %v2313
    %3103 = vmatprep.subr.bf16.mxu0 %v2322
    %3104 = vmatpush1.bf16.msra.mxu0 %v2321
    %3105 = vmatprep.subr.bf16.mxu0 %v2330
    %3106 = vmatpush1.bf16.msra.mxu0 %v2329
    %3107 = vmatprep.subr.bf16.mxu0 %v2338
    %3108 = vmatpush1.bf16.msra.mxu0 %v2337
    %3109 = vmatprep.subr.bf16.mxu0 %v2346
    %3110 = vmatpush1.bf16.msra.mxu0 %v2345
    %3111 = vmatprep.subr.bf16.mxu0 %v2354
    %3112 = vmatpush1.bf16.msra.mxu0 %v2353
    %3113 = vmatprep.subr.bf16.mxu0 %v2362
    %3114 = vmatpush1.bf16.msra.mxu0 %v2361
    %3115 = vmatprep.subr.bf16.mxu0 %v2370
    %3116 = vmatpush1.bf16.msra.mxu0 %v2369
    %3117 = vmatprep.subr.bf16.mxu0 %v2378
    %3118 = vmatpush1.bf16.msra.mxu0 %v2377
    %3119 = vmatprep.subr.bf16.mxu0 %v2386
    %3120 = vmatpush1.bf16.msra.mxu0 %v2385
    %3121 = vmatprep.subr.bf16.mxu0 %v2394
    %3122 = vmatpush1.bf16.msra.mxu0 %v2393
    %3123 = vmatprep.subr.bf16.mxu0 %v2402
    %3124 = vmatpush1.bf16.msra.mxu0 %v2401
    %3125 = vmatprep.subr.bf16.mxu0 %v2410
    %3126 = vmatpush1.bf16.msra.mxu0 %v2409
    %3127 = vmatprep.subr.bf16.mxu0 %v2418
    %3128 = vmatpush1.bf16.msra.mxu0 %v2417
    %3129 = vmatprep.subr.bf16.mxu0 %v2426
    %3130 = vmatpush1.bf16.msra.mxu0 %v2425
    %3131 = vmatprep.mubr.bf16.mxu0 %v900
    %3132 = vmatmul.mubr.bf16.gmra.mrb[0].mxu0 %v899
    %v3133 = vpop.f32.mrb[0].mxu0
    %v3134 = vadd.f32 %v3021, %v3133
    %v3135 = vpop.f32.mrb[0].mxu0
    %v3136 = vadd.f32 %v3023, %v3135
    %v3137 = vpop.f32.mrb[0].mxu0
    %v3138 = vadd.f32 %v3025, %v3137
    %v3139 = vpop.f32.mrb[0].mxu0
    %v3140 = vadd.f32 %v3027, %v3139
    %3141 = vmatprep.mubr.bf16.mxu0 %v907
    %3142 = vmatmul.mubr.bf16.gmra.mrb[0].mxu0 %v906
    %v3143 = vpop.f32.mrb[0].mxu0
    %v3144 = vadd.f32 %v3031, %v3143
    %v3145 = vpop.f32.mrb[0].mxu0
    %v3146 = vadd.f32 %v3033, %v3145
    %v3147 = vpop.f32.mrb[0].mxu0
    %v3148 = vadd.f32 %v3035, %v3147
    %v3149 = vpop.f32.mrb[0].mxu0
    %v3150 = vadd.f32 %v3037, %v3149
    %3151 = vmatprep.mubr.bf16.mxu0 %v914
    %3152 = vmatmul.mubr.bf16.gmra.mrb[0].mxu0 %v913
    %v3153 = vpop.f32.mrb[0].mxu0
    %v3154 = vadd.f32 %v3041, %v3153
    %v3155 = vpop.f32.mrb[0].mxu0
    %v3156 = vadd.f32 %v3043, %v3155
    %v3157 = vpop.f32.mrb[0].mxu0
    %v3158 = vadd.f32 %v3045, %v3157
    %v3159 = vpop.f32.mrb[0].mxu0
    %v3160 = vadd.f32 %v3047, %v3159
    %3161 = vmatprep.mubr.bf16.mxu0 %v921
    %3162 = vmatmul.mubr.bf16.gmra.mrb[0].mxu0 %v920
    %v3163 = vpop.f32.mrb[0].mxu0
    %v3164 = vadd.f32 %v3051, %v3163
    %v3165 = vpop.f32.mrb[0].mxu0
    %v3166 = vadd.f32 %v3053, %v3165
    %v3167 = vpop.f32.mrb[0].mxu0
    %v3168 = vadd.f32 %v3055, %v3167
    %v3169 = vpop.f32.mrb[0].mxu0
    %v3170 = vadd.f32 %v3057, %v3169
    %3171 = vmatprep.mubr.bf16.mxu0 %v928
    %3172 = vmatmul.mubr.bf16.gmra.mrb[0].mxu0 %v927
    %v3173 = vpop.f32.mrb[0].mxu0
    %v3174 = vadd.f32 %v3061, %v3173
    %v3175 = vpop.f32.mrb[0].mxu0
    %v3176 = vadd.f32 %v3063, %v3175
    %v3177 = vpop.f32.mrb[0].mxu0
    %v3178 = vadd.f32 %v3065, %v3177
    %v3179 = vpop.f32.mrb[0].mxu0
    %v3180 = vadd.f32 %v3067, %v3179
    %3181 = vmatprep.mubr.bf16.mxu0 %v935
    %3182 = vmatmul.mubr.bf16.gmra.mrb[0].mxu0 %v934
    %v3183 = vpop.f32.mrb[0].mxu0
    %v3184 = vadd.f32 %v3071, %v3183
    %v3185 = vpop.f32.mrb[0].mxu0
    %v3186 = vadd.f32 %v3073, %v3185
    %v3187 = vpop.f32.mrb[0].mxu0
    %v3188 = vadd.f32 %v3075, %v3187
    %v3189 = vpop.f32.mrb[0].mxu0
    %v3190 = vadd.f32 %v3077, %v3189
    %3191 = vmatprep.mubr.bf16.mxu0 %v942
    %3192 = vmatmul.mubr.bf16.gmra.mrb[0].mxu0 %v941
    %v3193 = vpop.f32.mrb[0].mxu0
    %v3194 = vadd.f32 %v3081, %v3193
    %v3195 = vpop.f32.mrb[0].mxu0
    %v3196 = vadd.f32 %v3083, %v3195
    %v3197 = vpop.f32.mrb[0].mxu0
    %v3198 = vadd.f32 %v3085, %v3197
    %v3199 = vpop.f32.mrb[0].mxu0
    %v3200 = vadd.f32 %v3087, %v3199
    %3201 = vmatprep.mubr.bf16.mxu0 %v949
    %3202 = vmatmul.mubr.bf16.gmra.mrb[0].mxu0 %v948
    %v3203 = vpop.f32.mrb[0].mxu0
    %v3204 = vadd.f32 %v3091, %v3203
    %v3205 = vpop.f32.mrb[0].mxu0
    %v3206 = vadd.f32 %v3093, %v3205
    %v3207 = vpop.f32.mrb[0].mxu0
    %v3208 = vadd.f32 %v3095, %v3207
    %v3209 = vpop.f32.mrb[0].mxu0
    %v3210 = vadd.f32 %v3097, %v3209
    %3211 = vdwg.mxu0
    %3212 = vmatprep.subr.bf16.mxu0 %v2434
    %3213 = vmatpush1.bf16.msra.mxu0 %v2433
    %3214 = vmatprep.subr.bf16.mxu0 %v2442
    %3215 = vmatpush1.bf16.msra.mxu0 %v2441
    %3216 = vmatprep.subr.bf16.mxu0 %v2450
    %3217 = vmatpush1.bf16.msra.mxu0 %v2449
    %3218 = vmatprep.subr.bf16.mxu0 %v2458
    %3219 = vmatpush1.bf16.msra.mxu0 %v2457
    %3220 = vmatprep.subr.bf16.mxu0 %v2466
    %3221 = vmatpush1.bf16.msra.mxu0 %v2465
    %3222 = vmatprep.subr.bf16.mxu0 %v2474
    %3223 = vmatpush1.bf16.msra.mxu0 %v2473
    %3224 = vmatprep.subr.bf16.mxu0 %v2482
    %3225 = vmatpush1.bf16.msra.mxu0 %v2481
    %3226 = vmatprep.subr.bf16.mxu0 %v2490
    %3227 = vmatpush1.bf16.msra.mxu0 %v2489
    %3228 = vmatprep.subr.bf16.mxu0 %v2498
    %3229 = vmatpush1.bf16.msra.mxu0 %v2497
    %3230 = vmatprep.subr.bf16.mxu0 %v2506
    %3231 = vmatpush1.bf16.msra.mxu0 %v2505
    %3232 = vmatprep.subr.bf16.mxu0 %v2514
    %3233 = vmatpush1.bf16.msra.mxu0 %v2513
    %3234 = vmatprep.subr.bf16.mxu0 %v2522
    %3235 = vmatpush1.bf16.msra.mxu0 %v2521
    %3236 = vmatprep.subr.bf16.mxu0 %v2530
    %3237 = vmatpush1.bf16.msra.mxu0 %v2529
    %3238 = vmatprep.subr.bf16.mxu0 %v2538
    %3239 = vmatpush1.bf16.msra.mxu0 %v2537
    %3240 = vmatprep.subr.bf16.mxu0 %v2546
    %3241 = vmatpush1.bf16.msra.mxu0 %v2545
    %3242 = vmatprep.subr.bf16.mxu0 %v2554
    %3243 = vmatpush1.bf16.msra.mxu0 %v2553
    %3244 = vmatprep.mubr.bf16.mxu0 %v902
    %3245 = vmatmul.mubr.bf16.gmra.mrb[0].mxu0 %v901
    %v3246 = vpop.f32.mrb[0].mxu0
    %v3247 = vadd.f32 %v3134, %v3246
    %v3248 = vpop.f32.mrb[0].mxu0
    %v3249 = vadd.f32 %v3136, %v3248
    %v3250 = vpop.f32.mrb[0].mxu0
    %v3251 = vadd.f32 %v3138, %v3250
    %v3252 = vpop.f32.mrb[0].mxu0
    %v3253 = vadd.f32 %v3140, %v3252
    %3254 = vmatprep.mubr.bf16.mxu0 %v909
    %3255 = vmatmul.mubr.bf16.gmra.mrb[0].mxu0 %v908
    %v3256 = vpop.f32.mrb[0].mxu0
    %v3257 = vadd.f32 %v3144, %v3256
    %v3258 = vpop.f32.mrb[0].mxu0
    %v3259 = vadd.f32 %v3146, %v3258
    %v3260 = vpop.f32.mrb[0].mxu0
    %v3261 = vadd.f32 %v3148, %v3260
    %v3262 = vpop.f32.mrb[0].mxu0
    %v3263 = vadd.f32 %v3150, %v3262
    %3264 = vmatprep.mubr.bf16.mxu0 %v916
    %3265 = vmatmul.mubr.bf16.gmra.mrb[0].mxu0 %v915
    %v3266 = vpop.f32.mrb[0].mxu0
    %v3267 = vadd.f32 %v3154, %v3266
    %v3268 = vpop.f32.mrb[0].mxu0
    %v3269 = vadd.f32 %v3156, %v3268
    %v3270 = vpop.f32.mrb[0].mxu0
    %v3271 = vadd.f32 %v3158, %v3270
    %v3272 = vpop.f32.mrb[0].mxu0
    %v3273 = vadd.f32 %v3160, %v3272
    %3274 = vmatprep.mubr.bf16.mxu0 %v923
    %3275 = vmatmul.mubr.bf16.gmra.mrb[0].mxu0 %v922
    %v3276 = vpop.f32.mrb[0].mxu0
    %v3277 = vadd.f32 %v3164, %v3276
    %v3278 = vpop.f32.mrb[0].mxu0
    %v3279 = vadd.f32 %v3166, %v3278
    %v3280 = vpop.f32.mrb[0].mxu0
    %v3281 = vadd.f32 %v3168, %v3280
    %v3282 = vpop.f32.mrb[0].mxu0
    %v3283 = vadd.f32 %v3170, %v3282
    %3284 = vmatprep.mubr.bf16.mxu0 %v930
    %3285 = vmatmul.mubr.bf16.gmra.mrb[0].mxu0 %v929
    %v3286 = vpop.f32.mrb[0].mxu0
    %v3287 = vadd.f32 %v3174, %v3286
    %v3288 = vpop.f32.mrb[0].mxu0
    %v3289 = vadd.f32 %v3176, %v3288
    %v3290 = vpop.f32.mrb[0].mxu0
    %v3291 = vadd.f32 %v3178, %v3290
    %v3292 = vpop.f32.mrb[0].mxu0
    %v3293 = vadd.f32 %v3180, %v3292
    %3294 = vmatprep.mubr.bf16.mxu0 %v937
    %3295 = vmatmul.mubr.bf16.gmra.mrb[0].mxu0 %v936
    %v3296 = vpop.f32.mrb[0].mxu0
    %v3297 = vadd.f32 %v3184, %v3296
    %v3298 = vpop.f32.mrb[0].mxu0
    %v3299 = vadd.f32 %v3186, %v3298
    %v3300 = vpop.f32.mrb[0].mxu0
    %v3301 = vadd.f32 %v3188, %v3300
    %v3302 = vpop.f32.mrb[0].mxu0
    %v3303 = vadd.f32 %v3190, %v3302
    %3304 = vmatprep.mubr.bf16.mxu0 %v944
    %3305 = vmatmul.mubr.bf16.gmra.mrb[0].mxu0 %v943
    %v3306 = vpop.f32.mrb[0].mxu0
    %v3307 = vadd.f32 %v3194, %v3306
    %v3308 = vpop.f32.mrb[0].mxu0
    %v3309 = vadd.f32 %v3196, %v3308
    %v3310 = vpop.f32.mrb[0].mxu0
    %v3311 = vadd.f32 %v3198, %v3310
    %v3312 = vpop.f32.mrb[0].mxu0
    %v3313 = vadd.f32 %v3200, %v3312
    %3314 = vmatprep.mubr.bf16.mxu0 %v951
    %3315 = vmatmul.mubr.bf16.gmra.mrb[0].mxu0 %v950
    %v3316 = vpop.f32.mrb[0].mxu0
    %v3317 = vadd.f32 %v3204, %v3316
    %v3318 = vpop.f32.mrb[0].mxu0
    %v3319 = vadd.f32 %v3206, %v3318
    %v3320 = vpop.f32.mrb[0].mxu0
    %v3321 = vadd.f32 %v3208, %v3320
    %v3322 = vpop.f32.mrb[0].mxu0
    %v3323 = vadd.f32 %v3210, %v3322
    %3324 = vdwg.mxu0
    %3325 = vmatprep.subr.bf16.mxu0 %v2562
    %3326 = vmatpush1.bf16.msra.mxu0 %v2561
    %3327 = vmatprep.subr.bf16.mxu0 0
    %3328 = vmatpush1.bf16.msra.mxu0 0
    %3329 = vmatprep.subr.bf16.mxu0 0
    %3330 = vmatpush1.bf16.msra.mxu0 0
    %3331 = vmatprep.subr.bf16.mxu0 0
    %3332 = vmatpush1.bf16.msra.mxu0 0
    %3333 = vmatprep.subr.bf16.mxu0 0
    %3334 = vmatpush1.bf16.msra.mxu0 0
    %3335 = vmatprep.subr.bf16.mxu0 0
    %3336 = vmatpush1.bf16.msra.mxu0 0
    %3337 = vmatprep.subr.bf16.mxu0 0
    %3338 = vmatpush1.bf16.msra.mxu0 0
    %3339 = vmatprep.subr.bf16.mxu0 0
    %3340 = vmatpush1.bf16.msra.mxu0 0
    %3341 = vmatprep.subr.bf16.mxu0 0
    %3342 = vmatpush1.bf16.msra.mxu0 0
    %3343 = vmatprep.subr.bf16.mxu0 0
    %3344 = vmatpush1.bf16.msra.mxu0 0
    %3345 = vmatprep.subr.bf16.mxu0 0
    %3346 = vmatpush1.bf16.msra.mxu0 0
    %3347 = vmatprep.subr.bf16.mxu0 0
    %3348 = vmatpush1.bf16.msra.mxu0 0
    %3349 = vmatprep.subr.bf16.mxu0 0
    %3350 = vmatpush1.bf16.msra.mxu0 0
    %3351 = vmatprep.subr.bf16.mxu0 0
    %3352 = vmatpush1.bf16.msra.mxu0 0
    %3353 = vmatprep.subr.bf16.mxu0 0
    %3354 = vmatpush1.bf16.msra.mxu0 0
    %3355 = vmatprep.subr.bf16.mxu0 0
    %3356 = vmatpush1.bf16.msra.mxu0 0
    %3357 = vmatprep.mubr.bf16.mxu0 0
    %3358 = vmatmul.mubr.bf16.gmra.mrb[0].mxu0 %v2963
    %v3359 = vpop.f32.mrb[0].mxu0
    %v3360 = vadd.f32 %v3247, %v3359
    %v3361 = vpop.f32.mrb[0].mxu0
    %v3362 = vadd.f32 %v3249, %v3361
    %v3363 = vpop.f32.mrb[0].mxu0
    %v3364 = vadd.f32 %v3251, %v3363
    %v3365 = vpop.f32.mrb[0].mxu0
    %v3366 = vadd.f32 %v3253, %v3365
    %3367 = vmatprep.mubr.bf16.mxu0 0
    %3368 = vmatmul.mubr.bf16.gmra.mrb[0].mxu0 %v2966
    %v3369 = vpop.f32.mrb[0].mxu0
    %v3370 = vadd.f32 %v3257, %v3369
    %v3371 = vpop.f32.mrb[0].mxu0
    %v3372 = vadd.f32 %v3259, %v3371
    %v3373 = vpop.f32.mrb[0].mxu0
    %v3374 = vadd.f32 %v3261, %v3373
    %v3375 = vpop.f32.mrb[0].mxu0
    %v3376 = vadd.f32 %v3263, %v3375
    %3377 = vmatprep.mubr.bf16.mxu0 0
    %3378 = vmatmul.mubr.bf16.gmra.mrb[0].mxu0 %v2969
    %v3379 = vpop.f32.mrb[0].mxu0
    %v3380 = vadd.f32 %v3267, %v3379
    %v3381 = vpop.f32.mrb[0].mxu0
    %v3382 = vadd.f32 %v3269, %v3381
    %v3383 = vpop.f32.mrb[0].mxu0
    %v3384 = vadd.f32 %v3271, %v3383
    %v3385 = vpop.f32.mrb[0].mxu0
    %v3386 = vadd.f32 %v3273, %v3385
    %3387 = vmatprep.mubr.bf16.mxu0 0
    %3388 = vmatmul.mubr.bf16.gmra.mrb[0].mxu0 %v2972
    %v3389 = vpop.f32.mrb[0].mxu0
    %v3390 = vadd.f32 %v3277, %v3389
    %v3391 = vpop.f32.mrb[0].mxu0
    %v3392 = vadd.f32 %v3279, %v3391
    %v3393 = vpop.f32.mrb[0].mxu0
    %v3394 = vadd.f32 %v3281, %v3393
    %v3395 = vpop.f32.mrb[0].mxu0
    %v3396 = vadd.f32 %v3283, %v3395
    %3397 = vmatprep.mubr.bf16.mxu0 0
    %3398 = vmatmul.mubr.bf16.gmra.mrb[0].mxu0 %v2975
    %v3399 = vpop.f32.mrb[0].mxu0
    %v3400 = vadd.f32 %v3287, %v3399
    %v3401 = vpop.f32.mrb[0].mxu0
    %v3402 = vadd.f32 %v3289, %v3401
    %v3403 = vpop.f32.mrb[0].mxu0
    %v3404 = vadd.f32 %v3291, %v3403
    %v3405 = vpop.f32.mrb[0].mxu0
    %v3406 = vadd.f32 %v3293, %v3405
    %3407 = vmatprep.mubr.bf16.mxu0 0
    %3408 = vmatmul.mubr.bf16.gmra.mrb[0].mxu0 %v2978
    %v3409 = vpop.f32.mrb[0].mxu0
    %v3410 = vadd.f32 %v3297, %v3409
    %v3411 = vpop.f32.mrb[0].mxu0
    %v3412 = vadd.f32 %v3299, %v3411
    %v3413 = vpop.f32.mrb[0].mxu0
    %v3414 = vadd.f32 %v3301, %v3413
    %v3415 = vpop.f32.mrb[0].mxu0
    %v3416 = vadd.f32 %v3303, %v3415
    %3417 = vmatprep.mubr.bf16.mxu0 0
    %3418 = vmatmul.mubr.bf16.gmra.mrb[0].mxu0 %v2981
    %v3419 = vpop.f32.mrb[0].mxu0
    %v3420 = vadd.f32 %v3307, %v3419
    %v3421 = vpop.f32.mrb[0].mxu0
    %v3422 = vadd.f32 %v3309, %v3421
    %v3423 = vpop.f32.mrb[0].mxu0
    %v3424 = vadd.f32 %v3311, %v3423
    %v3425 = vpop.f32.mrb[0].mxu0
    %v3426 = vadd.f32 %v3313, %v3425
    %3427 = vmatprep.mubr.bf16.mxu0 0
    %3428 = vmatmul.mubr.bf16.gmra.mrb[0].mxu0 %v2984
    %v3429 = vpop.f32.mrb[0].mxu0
    %v3430 = vadd.f32 %v3317, %v3429
    %v3431 = vpop.f32.mrb[0].mxu0
    %v3432 = vadd.f32 %v3319, %v3431
    %v3433 = vpop.f32.mrb[0].mxu0
    %v3434 = vadd.f32 %v3321, %v3433
    %v3435 = vpop.f32.mrb[0].mxu0
    %v3436 = vadd.f32 %v3323, %v3435
    %3437 = vdwg.mxu0
    %3438 = vmatprep.subr.bf16.mxu0 %v2180
    %3439 = vmatpush1.bf16.msra.mxu0 %v2179
    %3440 = vmatprep.subr.bf16.mxu0 %v2188
    %3441 = vmatpush1.bf16.msra.mxu0 %v2187
    %3442 = vmatprep.subr.bf16.mxu0 %v2196
    %3443 = vmatpush1.bf16.msra.mxu0 %v2195
    %3444 = vmatprep.subr.bf16.mxu0 %v2204
    %3445 = vmatpush1.bf16.msra.mxu0 %v2203
    %3446 = vmatprep.subr.bf16.mxu0 %v2212
    %3447 = vmatpush1.bf16.msra.mxu0 %v2211
    %3448 = vmatprep.subr.bf16.mxu0 %v2220
    %3449 = vmatpush1.bf16.msra.mxu0 %v2219
    %3450 = vmatprep.subr.bf16.mxu0 %v2228
    %3451 = vmatpush1.bf16.msra.mxu0 %v2227
    %3452 = vmatprep.subr.bf16.mxu0 %v2236
    %3453 = vmatpush1.bf16.msra.mxu0 %v2235
    %3454 = vmatprep.subr.bf16.mxu0 %v2244
    %3455 = vmatpush1.bf16.msra.mxu0 %v2243
    %3456 = vmatprep.subr.bf16.mxu0 %v2252
    %3457 = vmatpush1.bf16.msra.mxu0 %v2251
    %3458 = vmatprep.subr.bf16.mxu0 %v2260
    %3459 = vmatpush1.bf16.msra.mxu0 %v2259
    %3460 = vmatprep.subr.bf16.mxu0 %v2268
    %3461 = vmatpush1.bf16.msra.mxu0 %v2267
    %3462 = vmatprep.subr.bf16.mxu0 %v2276
    %3463 = vmatpush1.bf16.msra.mxu0 %v2275
    %3464 = vmatprep.subr.bf16.mxu0 %v2284
    %3465 = vmatpush1.bf16.msra.mxu0 %v2283
    %3466 = vmatprep.subr.bf16.mxu0 %v2292
    %3467 = vmatpush1.bf16.msra.mxu0 %v2291
    %3468 = vmatprep.subr.bf16.mxu0 %v2300
    %3469 = vmatpush1.bf16.msra.mxu0 %v2299
    %3470 = vmatprep.mubr.bf16.mxu0 %v898
    %3471 = vmatmul.mubr.bf16.gmra.mrb[0].mxu0 %v897
    %v3472 = vpop.f32.mrb[0].mxu0
    %v3473 = vadd.f32 %v595, %v3472
    %v3474 = vpop.f32.mrb[0].mxu0
    %v3475 = vadd.f32 %v596, %v3474
    %v3476 = vpop.f32.mrb[0].mxu0
    %v3477 = vadd.f32 %v603, %v3476
    %v3478 = vpop.f32.mrb[0].mxu0
    %v3479 = vadd.f32 %v604, %v3478
    %3480 = vmatprep.mubr.bf16.mxu0 %v905
    %3481 = vmatmul.mubr.bf16.gmra.mrb[0].mxu0 %v904
    %v3482 = vpop.f32.mrb[0].mxu0
    %v3483 = vadd.f32 %v611, %v3482
    %v3484 = vpop.f32.mrb[0].mxu0
    %v3485 = vadd.f32 %v612, %v3484
    %v3486 = vpop.f32.mrb[0].mxu0
    %v3487 = vadd.f32 %v619, %v3486
    %v3488 = vpop.f32.mrb[0].mxu0
    %v3489 = vadd.f32 %v620, %v3488
    %3490 = vmatprep.mubr.bf16.mxu0 %v912
    %3491 = vmatmul.mubr.bf16.gmra.mrb[0].mxu0 %v911
    %v3492 = vpop.f32.mrb[0].mxu0
    %v3493 = vadd.f32 %v627, %v3492
    %v3494 = vpop.f32.mrb[0].mxu0
    %v3495 = vadd.f32 %v628, %v3494
    %v3496 = vpop.f32.mrb[0].mxu0
    %v3497 = vadd.f32 %v635, %v3496
    %v3498 = vpop.f32.mrb[0].mxu0
    %v3499 = vadd.f32 %v636, %v3498
    %3500 = vmatprep.mubr.bf16.mxu0 %v919
    %3501 = vmatmul.mubr.bf16.gmra.mrb[0].mxu0 %v918
    %v3502 = vpop.f32.mrb[0].mxu0
    %v3503 = vadd.f32 %v643, %v3502
    %v3504 = vpop.f32.mrb[0].mxu0
    %v3505 = vadd.f32 %v644, %v3504
    %v3506 = vpop.f32.mrb[0].mxu0
    %v3507 = vadd.f32 %v651, %v3506
    %v3508 = vpop.f32.mrb[0].mxu0
    %v3509 = vadd.f32 %v652, %v3508
    %3510 = vmatprep.mubr.bf16.mxu0 %v926
    %3511 = vmatmul.mubr.bf16.gmra.mrb[0].mxu0 %v925
    %v3512 = vpop.f32.mrb[0].mxu0
    %v3513 = vadd.f32 %v659, %v3512
    %v3514 = vpop.f32.mrb[0].mxu0
    %v3515 = vadd.f32 %v660, %v3514
    %v3516 = vpop.f32.mrb[0].mxu0
    %v3517 = vadd.f32 %v667, %v3516
    %v3518 = vpop.f32.mrb[0].mxu0
    %v3519 = vadd.f32 %v668, %v3518
    %3520 = vmatprep.mubr.bf16.mxu0 %v933
    %3521 = vmatmul.mubr.bf16.gmra.mrb[0].mxu0 %v932
    %v3522 = vpop.f32.mrb[0].mxu0
    %v3523 = vadd.f32 %v675, %v3522
    %v3524 = vpop.f32.mrb[0].mxu0
    %v3525 = vadd.f32 %v676, %v3524
    %v3526 = vpop.f32.mrb[0].mxu0
    %v3527 = vadd.f32 %v683, %v3526
    %v3528 = vpop.f32.mrb[0].mxu0
    %v3529 = vadd.f32 %v684, %v3528
    %3530 = vmatprep.mubr.bf16.mxu0 %v940
    %3531 = vmatmul.mubr.bf16.gmra.mrb[0].mxu0 %v939
    %v3532 = vpop.f32.mrb[0].mxu0
    %v3533 = vadd.f32 %v691, %v3532
    %v3534 = vpop.f32.mrb[0].mxu0
    %v3535 = vadd.f32 %v692, %v3534
    %v3536 = vpop.f32.mrb[0].mxu0
    %v3537 = vadd.f32 %v699, %v3536
    %v3538 = vpop.f32.mrb[0].mxu0
    %v3539 = vadd.f32 %v700, %v3538
    %3540 = vmatprep.mubr.bf16.mxu0 %v947
    %3541 = vmatmul.mubr.bf16.gmra.mrb[0].mxu0 %v946
    %v3542 = vpop.f32.mrb[0].mxu0
    %v3543 = vadd.f32 %v707, %v3542
    %v3544 = vpop.f32.mrb[0].mxu0
    %v3545 = vadd.f32 %v708, %v3544
    %v3546 = vpop.f32.mrb[0].mxu0
    %v3547 = vadd.f32 %v715, %v3546
    %v3548 = vpop.f32.mrb[0].mxu0
    %v3549 = vadd.f32 %v716, %v3548
    %3550 = vdwg.mxu0
    %3551 = vmatprep.subr.bf16.mxu0 %v2308
    %3552 = vmatpush1.bf16.msra.mxu0 %v2307
    %3553 = vmatprep.subr.bf16.mxu0 %v2316
    %3554 = vmatpush1.bf16.msra.mxu0 %v2315
    %3555 = vmatprep.subr.bf16.mxu0 %v2324
    %3556 = vmatpush1.bf16.msra.mxu0 %v2323
    %3557 = vmatprep.subr.bf16.mxu0 %v2332
    %3558 = vmatpush1.bf16.msra.mxu0 %v2331
    %3559 = vmatprep.subr.bf16.mxu0 %v2340
    %3560 = vmatpush1.bf16.msra.mxu0 %v2339
    %3561 = vmatprep.subr.bf16.mxu0 %v2348
    %3562 = vmatpush1.bf16.msra.mxu0 %v2347
    %3563 = vmatprep.subr.bf16.mxu0 %v2356
    %3564 = vmatpush1.bf16.msra.mxu0 %v2355
    %3565 = vmatprep.subr.bf16.mxu0 %v2364
    %3566 = vmatpush1.bf16.msra.mxu0 %v2363
    %3567 = vmatprep.subr.bf16.mxu0 %v2372
    %3568 = vmatpush1.bf16.msra.mxu0 %v2371
    %3569 = vmatprep.subr.bf16.mxu0 %v2380
    %3570 = vmatpush1.bf16.msra.mxu0 %v2379
    %3571 = vmatprep.subr.bf16.mxu0 %v2388
    %3572 = vmatpush1.bf16.msra.mxu0 %v2387
    %3573 = vmatprep.subr.bf16.mxu0 %v2396
    %3574 = vmatpush1.bf16.msra.mxu0 %v2395
    %3575 = vmatprep.subr.bf16.mxu0 %v2404
    %3576 = vmatpush1.bf16.msra.mxu0 %v2403
    %3577 = vmatprep.subr.bf16.mxu0 %v2412
    %3578 = vmatpush1.bf16.msra.mxu0 %v2411
    %3579 = vmatprep.subr.bf16.mxu0 %v2420
    %3580 = vmatpush1.bf16.msra.mxu0 %v2419
    %3581 = vmatprep.subr.bf16.mxu0 %v2428
    %3582 = vmatpush1.bf16.msra.mxu0 %v2427
    %3583 = vmatprep.mubr.bf16.mxu0 %v900
    %3584 = vmatmul.mubr.bf16.gmra.mrb[0].mxu0 %v899
    %v3585 = vpop.f32.mrb[0].mxu0
    %v3586 = vadd.f32 %v3473, %v3585
    %v3587 = vpop.f32.mrb[0].mxu0
    %v3588 = vadd.f32 %v3475, %v3587
    %v3589 = vpop.f32.mrb[0].mxu0
    %v3590 = vadd.f32 %v3477, %v3589
    %v3591 = vpop.f32.mrb[0].mxu0
    %v3592 = vadd.f32 %v3479, %v3591
    %3593 = vmatprep.mubr.bf16.mxu0 %v907
    %3594 = vmatmul.mubr.bf16.gmra.mrb[0].mxu0 %v906
    %v3595 = vpop.f32.mrb[0].mxu0
    %v3596 = vadd.f32 %v3483, %v3595
    %v3597 = vpop.f32.mrb[0].mxu0
    %v3598 = vadd.f32 %v3485, %v3597
    %v3599 = vpop.f32.mrb[0].mxu0
    %v3600 = vadd.f32 %v3487, %v3599
    %v3601 = vpop.f32.mrb[0].mxu0
    %v3602 = vadd.f32 %v3489, %v3601
    %3603 = vmatprep.mubr.bf16.mxu0 %v914
    %3604 = vmatmul.mubr.bf16.gmra.mrb[0].mxu0 %v913
    %v3605 = vpop.f32.mrb[0].mxu0
    %v3606 = vadd.f32 %v3493, %v3605
    %v3607 = vpop.f32.mrb[0].mxu0
    %v3608 = vadd.f32 %v3495, %v3607
    %v3609 = vpop.f32.mrb[0].mxu0
    %v3610 = vadd.f32 %v3497, %v3609
    %v3611 = vpop.f32.mrb[0].mxu0
    %v3612 = vadd.f32 %v3499, %v3611
    %3613 = vmatprep.mubr.bf16.mxu0 %v921
    %3614 = vmatmul.mubr.bf16.gmra.mrb[0].mxu0 %v920
    %v3615 = vpop.f32.mrb[0].mxu0
    %v3616 = vadd.f32 %v3503, %v3615
    %v3617 = vpop.f32.mrb[0].mxu0
    %v3618 = vadd.f32 %v3505, %v3617
    %v3619 = vpop.f32.mrb[0].mxu0
    %v3620 = vadd.f32 %v3507, %v3619
    %v3621 = vpop.f32.mrb[0].mxu0
    %v3622 = vadd.f32 %v3509, %v3621
    %3623 = vmatprep.mubr.bf16.mxu0 %v928
    %3624 = vmatmul.mubr.bf16.gmra.mrb[0].mxu0 %v927
    %v3625 = vpop.f32.mrb[0].mxu0
    %v3626 = vadd.f32 %v3513, %v3625
    %v3627 = vpop.f32.mrb[0].mxu0
    %v3628 = vadd.f32 %v3515, %v3627
    %v3629 = vpop.f32.mrb[0].mxu0
    %v3630 = vadd.f32 %v3517, %v3629
    %v3631 = vpop.f32.mrb[0].mxu0
    %v3632 = vadd.f32 %v3519, %v3631
    %3633 = vmatprep.mubr.bf16.mxu0 %v935
    %3634 = vmatmul.mubr.bf16.gmra.mrb[0].mxu0 %v934
    %v3635 = vpop.f32.mrb[0].mxu0
    %v3636 = vadd.f32 %v3523, %v3635
    %v3637 = vpop.f32.mrb[0].mxu0
    %v3638 = vadd.f32 %v3525, %v3637
    %v3639 = vpop.f32.mrb[0].mxu0
    %v3640 = vadd.f32 %v3527, %v3639
    %v3641 = vpop.f32.mrb[0].mxu0
    %v3642 = vadd.f32 %v3529, %v3641
    %3643 = vmatprep.mubr.bf16.mxu0 %v942
    %3644 = vmatmul.mubr.bf16.gmra.mrb[0].mxu0 %v941
    %v3645 = vpop.f32.mrb[0].mxu0
    %v3646 = vadd.f32 %v3533, %v3645
    %v3647 = vpop.f32.mrb[0].mxu0
    %v3648 = vadd.f32 %v3535, %v3647
    %v3649 = vpop.f32.mrb[0].mxu0
    %v3650 = vadd.f32 %v3537, %v3649
    %v3651 = vpop.f32.mrb[0].mxu0
    %v3652 = vadd.f32 %v3539, %v3651
    %3653 = vmatprep.mubr.bf16.mxu0 %v949
    %3654 = vmatmul.mubr.bf16.gmra.mrb[0].mxu0 %v948
    %v3655 = vpop.f32.mrb[0].mxu0
    %v3656 = vadd.f32 %v3543, %v3655
    %v3657 = vpop.f32.mrb[0].mxu0
    %v3658 = vadd.f32 %v3545, %v3657
    %v3659 = vpop.f32.mrb[0].mxu0
    %v3660 = vadd.f32 %v3547, %v3659
    %v3661 = vpop.f32.mrb[0].mxu0
    %v3662 = vadd.f32 %v3549, %v3661
    %3663 = vdwg.mxu0
    %3664 = vmatprep.subr.bf16.mxu0 %v2436
    %3665 = vmatpush1.bf16.msra.mxu0 %v2435
    %3666 = vmatprep.subr.bf16.mxu0 %v2444
    %3667 = vmatpush1.bf16.msra.mxu0 %v2443
    %3668 = vmatprep.subr.bf16.mxu0 %v2452
    %3669 = vmatpush1.bf16.msra.mxu0 %v2451
    %3670 = vmatprep.subr.bf16.mxu0 %v2460
    %3671 = vmatpush1.bf16.msra.mxu0 %v2459
    %3672 = vmatprep.subr.bf16.mxu0 %v2468
    %3673 = vmatpush1.bf16.msra.mxu0 %v2467
    %3674 = vmatprep.subr.bf16.mxu0 %v2476
    %3675 = vmatpush1.bf16.msra.mxu0 %v2475
    %3676 = vmatprep.subr.bf16.mxu0 %v2484
    %3677 = vmatpush1.bf16.msra.mxu0 %v2483
    %3678 = vmatprep.subr.bf16.mxu0 %v2492
    %3679 = vmatpush1.bf16.msra.mxu0 %v2491
    %3680 = vmatprep.subr.bf16.mxu0 %v2500
    %3681 = vmatpush1.bf16.msra.mxu0 %v2499
    %3682 = vmatprep.subr.bf16.mxu0 %v2508
    %3683 = vmatpush1.bf16.msra.mxu0 %v2507
    %3684 = vmatprep.subr.bf16.mxu0 %v2516
    %3685 = vmatpush1.bf16.msra.mxu0 %v2515
    %3686 = vmatprep.subr.bf16.mxu0 %v2524
    %3687 = vmatpush1.bf16.msra.mxu0 %v2523
    %3688 = vmatprep.subr.bf16.mxu0 %v2532
    %3689 = vmatpush1.bf16.msra.mxu0 %v2531
    %3690 = vmatprep.subr.bf16.mxu0 %v2540
    %3691 = vmatpush1.bf16.msra.mxu0 %v2539
    %3692 = vmatprep.subr.bf16.mxu0 %v2548
    %3693 = vmatpush1.bf16.msra.mxu0 %v2547
    %3694 = vmatprep.subr.bf16.mxu0 %v2556
    %3695 = vmatpush1.bf16.msra.mxu0 %v2555
    %3696 = vmatprep.mubr.bf16.mxu0 %v902
    %3697 = vmatmul.mubr.bf16.gmra.mrb[0].mxu0 %v901
    %v3698 = vpop.f32.mrb[0].mxu0
    %v3699 = vadd.f32 %v3586, %v3698
    %v3700 = vpop.f32.mrb[0].mxu0
    %v3701 = vadd.f32 %v3588, %v3700
    %v3702 = vpop.f32.mrb[0].mxu0
    %v3703 = vadd.f32 %v3590, %v3702
    %v3704 = vpop.f32.mrb[0].mxu0
    %v3705 = vadd.f32 %v3592, %v3704
    %3706 = vmatprep.mubr.bf16.mxu0 %v909
    %3707 = vmatmul.mubr.bf16.gmra.mrb[0].mxu0 %v908
    %v3708 = vpop.f32.mrb[0].mxu0
    %v3709 = vadd.f32 %v3596, %v3708
    %v3710 = vpop.f32.mrb[0].mxu0
    %v3711 = vadd.f32 %v3598, %v3710
    %v3712 = vpop.f32.mrb[0].mxu0
    %v3713 = vadd.f32 %v3600, %v3712
    %v3714 = vpop.f32.mrb[0].mxu0
    %v3715 = vadd.f32 %v3602, %v3714
    %3716 = vmatprep.mubr.bf16.mxu0 %v916
    %3717 = vmatmul.mubr.bf16.gmra.mrb[0].mxu0 %v915
    %v3718 = vpop.f32.mrb[0].mxu0
    %v3719 = vadd.f32 %v3606, %v3718
    %v3720 = vpop.f32.mrb[0].mxu0
    %v3721 = vadd.f32 %v3608, %v3720
    %v3722 = vpop.f32.mrb[0].mxu0
    %v3723 = vadd.f32 %v3610, %v3722
    %v3724 = vpop.f32.mrb[0].mxu0
    %v3725 = vadd.f32 %v3612, %v3724
    %3726 = vmatprep.mubr.bf16.mxu0 %v923
    %3727 = vmatmul.mubr.bf16.gmra.mrb[0].mxu0 %v922
    %v3728 = vpop.f32.mrb[0].mxu0
    %v3729 = vadd.f32 %v3616, %v3728
    %v3730 = vpop.f32.mrb[0].mxu0
    %v3731 = vadd.f32 %v3618, %v3730
    %v3732 = vpop.f32.mrb[0].mxu0
    %v3733 = vadd.f32 %v3620, %v3732
    %v3734 = vpop.f32.mrb[0].mxu0
    %v3735 = vadd.f32 %v3622, %v3734
    %3736 = vmatprep.mubr.bf16.mxu0 %v930
    %3737 = vmatmul.mubr.bf16.gmra.mrb[0].mxu0 %v929
    %v3738 = vpop.f32.mrb[0].mxu0
    %v3739 = vadd.f32 %v3626, %v3738
    %v3740 = vpop.f32.mrb[0].mxu0
    %v3741 = vadd.f32 %v3628, %v3740
    %v3742 = vpop.f32.mrb[0].mxu0
    %v3743 = vadd.f32 %v3630, %v3742
    %v3744 = vpop.f32.mrb[0].mxu0
    %v3745 = vadd.f32 %v3632, %v3744
    %3746 = vmatprep.mubr.bf16.mxu0 %v937
    %3747 = vmatmul.mubr.bf16.gmra.mrb[0].mxu0 %v936
    %v3748 = vpop.f32.mrb[0].mxu0
    %v3749 = vadd.f32 %v3636, %v3748
    %v3750 = vpop.f32.mrb[0].mxu0
    %v3751 = vadd.f32 %v3638, %v3750
    %v3752 = vpop.f32.mrb[0].mxu0
    %v3753 = vadd.f32 %v3640, %v3752
    %v3754 = vpop.f32.mrb[0].mxu0
    %v3755 = vadd.f32 %v3642, %v3754
    %3756 = vmatprep.mubr.bf16.mxu0 %v944
    %3757 = vmatmul.mubr.bf16.gmra.mrb[0].mxu0 %v943
    %v3758 = vpop.f32.mrb[0].mxu0
    %v3759 = vadd.f32 %v3646, %v3758
    %v3760 = vpop.f32.mrb[0].mxu0
    %v3761 = vadd.f32 %v3648, %v3760
    %v3762 = vpop.f32.mrb[0].mxu0
    %v3763 = vadd.f32 %v3650, %v3762
    %v3764 = vpop.f32.mrb[0].mxu0
    %v3765 = vadd.f32 %v3652, %v3764
    %3766 = vmatprep.mubr.bf16.mxu0 %v951
    %3767 = vmatmul.mubr.bf16.gmra.mrb[0].mxu0 %v950
    %v3768 = vpop.f32.mrb[0].mxu0
    %v3769 = vadd.f32 %v3656, %v3768
    %v3770 = vpop.f32.mrb[0].mxu0
    %v3771 = vadd.f32 %v3658, %v3770
    %v3772 = vpop.f32.mrb[0].mxu0
    %v3773 = vadd.f32 %v3660, %v3772
    %v3774 = vpop.f32.mrb[0].mxu0
    %v3775 = vadd.f32 %v3662, %v3774
    %3776 = vdwg.mxu0
    %3777 = vmatprep.subr.bf16.mxu0 %v2564
    %3778 = vmatpush1.bf16.msra.mxu0 %v2563
    %3779 = vmatprep.subr.bf16.mxu0 0
    %3780 = vmatpush1.bf16.msra.mxu0 0
    %3781 = vmatprep.subr.bf16.mxu0 0
    %3782 = vmatpush1.bf16.msra.mxu0 0
    %3783 = vmatprep.subr.bf16.mxu0 0
    %3784 = vmatpush1.bf16.msra.mxu0 0
    %3785 = vmatprep.subr.bf16.mxu0 0
    %3786 = vmatpush1.bf16.msra.mxu0 0
    %3787 = vmatprep.subr.bf16.mxu0 0
    %3788 = vmatpush1.bf16.msra.mxu0 0
    %3789 = vmatprep.subr.bf16.mxu0 0
    %3790 = vmatpush1.bf16.msra.mxu0 0
    %3791 = vmatprep.subr.bf16.mxu0 0
    %3792 = vmatpush1.bf16.msra.mxu0 0
    %3793 = vmatprep.subr.bf16.mxu0 0
    %3794 = vmatpush1.bf16.msra.mxu0 0
    %3795 = vmatprep.subr.bf16.mxu0 0
    %3796 = vmatpush1.bf16.msra.mxu0 0
    %3797 = vmatprep.subr.bf16.mxu0 0
    %3798 = vmatpush1.bf16.msra.mxu0 0
    %3799 = vmatprep.subr.bf16.mxu0 0
    %3800 = vmatpush1.bf16.msra.mxu0 0
    %3801 = vmatprep.subr.bf16.mxu0 0
    %3802 = vmatpush1.bf16.msra.mxu0 0
    %3803 = vmatprep.subr.bf16.mxu0 0
    %3804 = vmatpush1.bf16.msra.mxu0 0
    %3805 = vmatprep.subr.bf16.mxu0 0
    %3806 = vmatpush1.bf16.msra.mxu0 0
    %3807 = vmatprep.subr.bf16.mxu0 0
    %3808 = vmatpush1.bf16.msra.mxu0 0
    %3809 = vmatprep.mubr.bf16.mxu0 0
    %3810 = vmatmul.mubr.bf16.gmra.mrb[0].mxu0 %v2963
    %v3811 = vpop.f32.mrb[0].mxu0
    %v3812 = vadd.f32 %v3699, %v3811
    %v3813 = vpop.f32.mrb[0].mxu0
    %v3814 = vadd.f32 %v3701, %v3813
    %v3815 = vpop.f32.mrb[0].mxu0
    %v3816 = vadd.f32 %v3703, %v3815
    %v3817 = vpop.f32.mrb[0].mxu0
    %v3818 = vadd.f32 %v3705, %v3817
    %3819 = vmatprep.mubr.bf16.mxu0 0
    %3820 = vmatmul.mubr.bf16.gmra.mrb[0].mxu0 %v2966
    %v3821 = vpop.f32.mrb[0].mxu0
    %v3822 = vadd.f32 %v3709, %v3821
    %v3823 = vpop.f32.mrb[0].mxu0
    %v3824 = vadd.f32 %v3711, %v3823
    %v3825 = vpop.f32.mrb[0].mxu0
    %v3826 = vadd.f32 %v3713, %v3825
    %v3827 = vpop.f32.mrb[0].mxu0
    %v3828 = vadd.f32 %v3715, %v3827
    %3829 = vmatprep.mubr.bf16.mxu0 0
    %3830 = vmatmul.mubr.bf16.gmra.mrb[0].mxu0 %v2969
    %v3831 = vpop.f32.mrb[0].mxu0
    %v3832 = vadd.f32 %v3719, %v3831
    %v3833 = vpop.f32.mrb[0].mxu0
    %v3834 = vadd.f32 %v3721, %v3833
    %v3835 = vpop.f32.mrb[0].mxu0
    %v3836 = vadd.f32 %v3723, %v3835
    %v3837 = vpop.f32.mrb[0].mxu0
    %v3838 = vadd.f32 %v3725, %v3837
    %3839 = vmatprep.mubr.bf16.mxu0 0
    %3840 = vmatmul.mubr.bf16.gmra.mrb[0].mxu0 %v2972
    %v3841 = vpop.f32.mrb[0].mxu0
    %v3842 = vadd.f32 %v3729, %v3841
    %v3843 = vpop.f32.mrb[0].mxu0
    %v3844 = vadd.f32 %v3731, %v3843
    %v3845 = vpop.f32.mrb[0].mxu0
    %v3846 = vadd.f32 %v3733, %v3845
    %v3847 = vpop.f32.mrb[0].mxu0
    %v3848 = vadd.f32 %v3735, %v3847
    %3849 = vmatprep.mubr.bf16.mxu0 0
    %3850 = vmatmul.mubr.bf16.gmra.mrb[0].mxu0 %v2975
    %v3851 = vpop.f32.mrb[0].mxu0
    %v3852 = vadd.f32 %v3739, %v3851
    %v3853 = vpop.f32.mrb[0].mxu0
    %v3854 = vadd.f32 %v3741, %v3853
    %v3855 = vpop.f32.mrb[0].mxu0
    %v3856 = vadd.f32 %v3743, %v3855
    %v3857 = vpop.f32.mrb[0].mxu0
    %v3858 = vadd.f32 %v3745, %v3857
    %3859 = vmatprep.mubr.bf16.mxu0 0
    %3860 = vmatmul.mubr.bf16.gmra.mrb[0].mxu0 %v2978
    %v3861 = vpop.f32.mrb[0].mxu0
    %v3862 = vadd.f32 %v3749, %v3861
    %v3863 = vpop.f32.mrb[0].mxu0
    %v3864 = vadd.f32 %v3751, %v3863
    %v3865 = vpop.f32.mrb[0].mxu0
    %v3866 = vadd.f32 %v3753, %v3865
    %v3867 = vpop.f32.mrb[0].mxu0
    %v3868 = vadd.f32 %v3755, %v3867
    %3869 = vmatprep.mubr.bf16.mxu0 0
    %3870 = vmatmul.mubr.bf16.gmra.mrb[0].mxu0 %v2981
    %v3871 = vpop.f32.mrb[0].mxu0
    %v3872 = vadd.f32 %v3759, %v3871
    %v3873 = vpop.f32.mrb[0].mxu0
    %v3874 = vadd.f32 %v3761, %v3873
    %v3875 = vpop.f32.mrb[0].mxu0
    %v3876 = vadd.f32 %v3763, %v3875
    %v3877 = vpop.f32.mrb[0].mxu0
    %v3878 = vadd.f32 %v3765, %v3877
    %3879 = vmatprep.mubr.bf16.mxu0 0
    %3880 = vmatmul.mubr.bf16.gmra.mrb[0].mxu0 %v2984
    %v3881 = vpop.f32.mrb[0].mxu0
    %v3882 = vadd.f32 %v3769, %v3881
    %v3883 = vpop.f32.mrb[0].mxu0
    %v3884 = vadd.f32 %v3771, %v3883
    %v3885 = vpop.f32.mrb[0].mxu0
    %v3886 = vadd.f32 %v3773, %v3885
    %v3887 = vpop.f32.mrb[0].mxu0
    %v3888 = vadd.f32 %v3775, %v3887
    %3889 = vdwg.mxu0
    %3890 = vmatprep.subr.bf16.mxu0 %v2182
    %3891 = vmatpush1.bf16.msra.mxu0 %v2181
    %3892 = vmatprep.subr.bf16.mxu0 %v2190
    %3893 = vmatpush1.bf16.msra.mxu0 %v2189
    %3894 = vmatprep.subr.bf16.mxu0 %v2198
    %3895 = vmatpush1.bf16.msra.mxu0 %v2197
    %3896 = vmatprep.subr.bf16.mxu0 %v2206
    %3897 = vmatpush1.bf16.msra.mxu0 %v2205
    %3898 = vmatprep.subr.bf16.mxu0 %v2214
    %3899 = vmatpush1.bf16.msra.mxu0 %v2213
    %3900 = vmatprep.subr.bf16.mxu0 %v2222
    %3901 = vmatpush1.bf16.msra.mxu0 %v2221
    %3902 = vmatprep.subr.bf16.mxu0 %v2230
    %3903 = vmatpush1.bf16.msra.mxu0 %v2229
    %3904 = vmatprep.subr.bf16.mxu0 %v2238
    %3905 = vmatpush1.bf16.msra.mxu0 %v2237
    %3906 = vmatprep.subr.bf16.mxu0 %v2246
    %3907 = vmatpush1.bf16.msra.mxu0 %v2245
    %3908 = vmatprep.subr.bf16.mxu0 %v2254
    %3909 = vmatpush1.bf16.msra.mxu0 %v2253
    %3910 = vmatprep.subr.bf16.mxu0 %v2262
    %3911 = vmatpush1.bf16.msra.mxu0 %v2261
    %3912 = vmatprep.subr.bf16.mxu0 %v2270
    %3913 = vmatpush1.bf16.msra.mxu0 %v2269
    %3914 = vmatprep.subr.bf16.mxu0 %v2278
    %3915 = vmatpush1.bf16.msra.mxu0 %v2277
    %3916 = vmatprep.subr.bf16.mxu0 %v2286
    %3917 = vmatpush1.bf16.msra.mxu0 %v2285
    %3918 = vmatprep.subr.bf16.mxu0 %v2294
    %3919 = vmatpush1.bf16.msra.mxu0 %v2293
    %3920 = vmatprep.subr.bf16.mxu0 %v2302
    %3921 = vmatpush1.bf16.msra.mxu0 %v2301
    %3922 = vmatprep.mubr.bf16.mxu0 %v898
    %3923 = vmatmul.mubr.bf16.gmra.mrb[0].mxu0 %v897
    %v3924 = vpop.f32.mrb[0].mxu0
    %v3925 = vadd.f32 %v597, %v3924
    %v3926 = vpop.f32.mrb[0].mxu0
    %v3927 = vadd.f32 %v598, %v3926
    %v3928 = vpop.f32.mrb[0].mxu0
    %v3929 = vadd.f32 %v605, %v3928
    %v3930 = vpop.f32.mrb[0].mxu0
    %v3931 = vadd.f32 %v606, %v3930
    %3932 = vmatprep.mubr.bf16.mxu0 %v905
    %3933 = vmatmul.mubr.bf16.gmra.mrb[0].mxu0 %v904
    %v3934 = vpop.f32.mrb[0].mxu0
    %v3935 = vadd.f32 %v613, %v3934
    %v3936 = vpop.f32.mrb[0].mxu0
    %v3937 = vadd.f32 %v614, %v3936
    %v3938 = vpop.f32.mrb[0].mxu0
    %v3939 = vadd.f32 %v621, %v3938
    %v3940 = vpop.f32.mrb[0].mxu0
    %v3941 = vadd.f32 %v622, %v3940
    %3942 = vmatprep.mubr.bf16.mxu0 %v912
    %3943 = vmatmul.mubr.bf16.gmra.mrb[0].mxu0 %v911
    %v3944 = vpop.f32.mrb[0].mxu0
    %v3945 = vadd.f32 %v629, %v3944
    %v3946 = vpop.f32.mrb[0].mxu0
    %v3947 = vadd.f32 %v630, %v3946
    %v3948 = vpop.f32.mrb[0].mxu0
    %v3949 = vadd.f32 %v637, %v3948
    %v3950 = vpop.f32.mrb[0].mxu0
    %v3951 = vadd.f32 %v638, %v3950
    %3952 = vmatprep.mubr.bf16.mxu0 %v919
    %3953 = vmatmul.mubr.bf16.gmra.mrb[0].mxu0 %v918
    %v3954 = vpop.f32.mrb[0].mxu0
    %v3955 = vadd.f32 %v645, %v3954
    %v3956 = vpop.f32.mrb[0].mxu0
    %v3957 = vadd.f32 %v646, %v3956
    %v3958 = vpop.f32.mrb[0].mxu0
    %v3959 = vadd.f32 %v653, %v3958
    %v3960 = vpop.f32.mrb[0].mxu0
    %v3961 = vadd.f32 %v654, %v3960
    %3962 = vmatprep.mubr.bf16.mxu0 %v926
    %3963 = vmatmul.mubr.bf16.gmra.mrb[0].mxu0 %v925
    %v3964 = vpop.f32.mrb[0].mxu0
    %v3965 = vadd.f32 %v661, %v3964
    %v3966 = vpop.f32.mrb[0].mxu0
    %v3967 = vadd.f32 %v662, %v3966
    %v3968 = vpop.f32.mrb[0].mxu0
    %v3969 = vadd.f32 %v669, %v3968
    %v3970 = vpop.f32.mrb[0].mxu0
    %v3971 = vadd.f32 %v670, %v3970
    %3972 = vmatprep.mubr.bf16.mxu0 %v933
    %3973 = vmatmul.mubr.bf16.gmra.mrb[0].mxu0 %v932
    %v3974 = vpop.f32.mrb[0].mxu0
    %v3975 = vadd.f32 %v677, %v3974
    %v3976 = vpop.f32.mrb[0].mxu0
    %v3977 = vadd.f32 %v678, %v3976
    %v3978 = vpop.f32.mrb[0].mxu0
    %v3979 = vadd.f32 %v685, %v3978
    %v3980 = vpop.f32.mrb[0].mxu0
    %v3981 = vadd.f32 %v686, %v3980
    %3982 = vmatprep.mubr.bf16.mxu0 %v940
    %3983 = vmatmul.mubr.bf16.gmra.mrb[0].mxu0 %v939
    %v3984 = vpop.f32.mrb[0].mxu0
    %v3985 = vadd.f32 %v693, %v3984
    %v3986 = vpop.f32.mrb[0].mxu0
    %v3987 = vadd.f32 %v694, %v3986
    %v3988 = vpop.f32.mrb[0].mxu0
    %v3989 = vadd.f32 %v701, %v3988
    %v3990 = vpop.f32.mrb[0].mxu0
    %v3991 = vadd.f32 %v702, %v3990
    %3992 = vmatprep.mubr.bf16.mxu0 %v947
    %3993 = vmatmul.mubr.bf16.gmra.mrb[0].mxu0 %v946
    %v3994 = vpop.f32.mrb[0].mxu0
    %v3995 = vadd.f32 %v709, %v3994
    %v3996 = vpop.f32.mrb[0].mxu0
    %v3997 = vadd.f32 %v710, %v3996
    %v3998 = vpop.f32.mrb[0].mxu0
    %v3999 = vadd.f32 %v717, %v3998
    %v4000 = vpop.f32.mrb[0].mxu0
    %v4001 = vadd.f32 %v718, %v4000
    %4002 = vdwg.mxu0
    %4003 = vmatprep.subr.bf16.mxu0 %v2310
    %4004 = vmatpush1.bf16.msra.mxu0 %v2309
    %4005 = vmatprep.subr.bf16.mxu0 %v2318
    %4006 = vmatpush1.bf16.msra.mxu0 %v2317
    %4007 = vmatprep.subr.bf16.mxu0 %v2326
    %4008 = vmatpush1.bf16.msra.mxu0 %v2325
    %4009 = vmatprep.subr.bf16.mxu0 %v2334
    %4010 = vmatpush1.bf16.msra.mxu0 %v2333
    %4011 = vmatprep.subr.bf16.mxu0 %v2342
    %4012 = vmatpush1.bf16.msra.mxu0 %v2341
    %4013 = vmatprep.subr.bf16.mxu0 %v2350
    %4014 = vmatpush1.bf16.msra.mxu0 %v2349
    %4015 = vmatprep.subr.bf16.mxu0 %v2358
    %4016 = vmatpush1.bf16.msra.mxu0 %v2357
    %4017 = vmatprep.subr.bf16.mxu0 %v2366
    %4018 = vmatpush1.bf16.msra.mxu0 %v2365
    %4019 = vmatprep.subr.bf16.mxu0 %v2374
    %4020 = vmatpush1.bf16.msra.mxu0 %v2373
    %4021 = vmatprep.subr.bf16.mxu0 %v2382
    %4022 = vmatpush1.bf16.msra.mxu0 %v2381
    %4023 = vmatprep.subr.bf16.mxu0 %v2390
    %4024 = vmatpush1.bf16.msra.mxu0 %v2389
    %4025 = vmatprep.subr.bf16.mxu0 %v2398
    %4026 = vmatpush1.bf16.msra.mxu0 %v2397
    %4027 = vmatprep.subr.bf16.mxu0 %v2406
    %4028 = vmatpush1.bf16.msra.mxu0 %v2405
    %4029 = vmatprep.subr.bf16.mxu0 %v2414
    %4030 = vmatpush1.bf16.msra.mxu0 %v2413
    %4031 = vmatprep.subr.bf16.mxu0 %v2422
    %4032 = vmatpush1.bf16.msra.mxu0 %v2421
    %4033 = vmatprep.subr.bf16.mxu0 %v2430
    %4034 = vmatpush1.bf16.msra.mxu0 %v2429
    %4035 = vmatprep.mubr.bf16.mxu0 %v900
    %4036 = vmatmul.mubr.bf16.gmra.mrb[0].mxu0 %v899
    %v4037 = vpop.f32.mrb[0].mxu0
    %v4038 = vadd.f32 %v3925, %v4037
    %v4039 = vpop.f32.mrb[0].mxu0
    %v4040 = vadd.f32 %v3927, %v4039
    %v4041 = vpop.f32.mrb[0].mxu0
    %v4042 = vadd.f32 %v3929, %v4041
    %v4043 = vpop.f32.mrb[0].mxu0
    %v4044 = vadd.f32 %v3931, %v4043
    %4045 = vmatprep.mubr.bf16.mxu0 %v907
    %4046 = vmatmul.mubr.bf16.gmra.mrb[0].mxu0 %v906
    %v4047 = vpop.f32.mrb[0].mxu0
    %v4048 = vadd.f32 %v3935, %v4047
    %v4049 = vpop.f32.mrb[0].mxu0
    %v4050 = vadd.f32 %v3937, %v4049
    %v4051 = vpop.f32.mrb[0].mxu0
    %v4052 = vadd.f32 %v3939, %v4051
    %v4053 = vpop.f32.mrb[0].mxu0
    %v4054 = vadd.f32 %v3941, %v4053
    %4055 = vmatprep.mubr.bf16.mxu0 %v914
    %4056 = vmatmul.mubr.bf16.gmra.mrb[0].mxu0 %v913
    %v4057 = vpop.f32.mrb[0].mxu0
    %v4058 = vadd.f32 %v3945, %v4057
    %v4059 = vpop.f32.mrb[0].mxu0
    %v4060 = vadd.f32 %v3947, %v4059
    %v4061 = vpop.f32.mrb[0].mxu0
    %v4062 = vadd.f32 %v3949, %v4061
    %v4063 = vpop.f32.mrb[0].mxu0
    %v4064 = vadd.f32 %v3951, %v4063
    %4065 = vmatprep.mubr.bf16.mxu0 %v921
    %4066 = vmatmul.mubr.bf16.gmra.mrb[0].mxu0 %v920
    %v4067 = vpop.f32.mrb[0].mxu0
    %v4068 = vadd.f32 %v3955, %v4067
    %v4069 = vpop.f32.mrb[0].mxu0
    %v4070 = vadd.f32 %v3957, %v4069
    %v4071 = vpop.f32.mrb[0].mxu0
    %v4072 = vadd.f32 %v3959, %v4071
    %v4073 = vpop.f32.mrb[0].mxu0
    %v4074 = vadd.f32 %v3961, %v4073
    %4075 = vmatprep.mubr.bf16.mxu0 %v928
    %4076 = vmatmul.mubr.bf16.gmra.mrb[0].mxu0 %v927
    %v4077 = vpop.f32.mrb[0].mxu0
    %v4078 = vadd.f32 %v3965, %v4077
    %v4079 = vpop.f32.mrb[0].mxu0
    %v4080 = vadd.f32 %v3967, %v4079
    %v4081 = vpop.f32.mrb[0].mxu0
    %v4082 = vadd.f32 %v3969, %v4081
    %v4083 = vpop.f32.mrb[0].mxu0
    %v4084 = vadd.f32 %v3971, %v4083
    %4085 = vmatprep.mubr.bf16.mxu0 %v935
    %4086 = vmatmul.mubr.bf16.gmra.mrb[0].mxu0 %v934
    %v4087 = vpop.f32.mrb[0].mxu0
    %v4088 = vadd.f32 %v3975, %v4087
    %v4089 = vpop.f32.mrb[0].mxu0
    %v4090 = vadd.f32 %v3977, %v4089
    %v4091 = vpop.f32.mrb[0].mxu0
    %v4092 = vadd.f32 %v3979, %v4091
    %v4093 = vpop.f32.mrb[0].mxu0
    %v4094 = vadd.f32 %v3981, %v4093
    %4095 = vmatprep.mubr.bf16.mxu0 %v942
    %4096 = vmatmul.mubr.bf16.gmra.mrb[0].mxu0 %v941
    %v4097 = vpop.f32.mrb[0].mxu0
    %v4098 = vadd.f32 %v3985, %v4097
    %v4099 = vpop.f32.mrb[0].mxu0
    %v4100 = vadd.f32 %v3987, %v4099
    %v4101 = vpop.f32.mrb[0].mxu0
    %v4102 = vadd.f32 %v3989, %v4101
    %v4103 = vpop.f32.mrb[0].mxu0
    %v4104 = vadd.f32 %v3991, %v4103
    %4105 = vmatprep.mubr.bf16.mxu0 %v949
    %4106 = vmatmul.mubr.bf16.gmra.mrb[0].mxu0 %v948
    %v4107 = vpop.f32.mrb[0].mxu0
    %v4108 = vadd.f32 %v3995, %v4107
    %v4109 = vpop.f32.mrb[0].mxu0
    %v4110 = vadd.f32 %v3997, %v4109
    %v4111 = vpop.f32.mrb[0].mxu0
    %v4112 = vadd.f32 %v3999, %v4111
    %v4113 = vpop.f32.mrb[0].mxu0
    %v4114 = vadd.f32 %v4001, %v4113
    %4115 = vdwg.mxu0
    %4116 = vmatprep.subr.bf16.mxu0 %v2438
    %4117 = vmatpush1.bf16.msra.mxu0 %v2437
    %4118 = vmatprep.subr.bf16.mxu0 %v2446
    %4119 = vmatpush1.bf16.msra.mxu0 %v2445
    %4120 = vmatprep.subr.bf16.mxu0 %v2454
    %4121 = vmatpush1.bf16.msra.mxu0 %v2453
    %4122 = vmatprep.subr.bf16.mxu0 %v2462
    %4123 = vmatpush1.bf16.msra.mxu0 %v2461
    %4124 = vmatprep.subr.bf16.mxu0 %v2470
    %4125 = vmatpush1.bf16.msra.mxu0 %v2469
    %4126 = vmatprep.subr.bf16.mxu0 %v2478
    %4127 = vmatpush1.bf16.msra.mxu0 %v2477
    %4128 = vmatprep.subr.bf16.mxu0 %v2486
    %4129 = vmatpush1.bf16.msra.mxu0 %v2485
    %4130 = vmatprep.subr.bf16.mxu0 %v2494
    %4131 = vmatpush1.bf16.msra.mxu0 %v2493
    %4132 = vmatprep.subr.bf16.mxu0 %v2502
    %4133 = vmatpush1.bf16.msra.mxu0 %v2501
    %4134 = vmatprep.subr.bf16.mxu0 %v2510
    %4135 = vmatpush1.bf16.msra.mxu0 %v2509
    %4136 = vmatprep.subr.bf16.mxu0 %v2518
    %4137 = vmatpush1.bf16.msra.mxu0 %v2517
    %4138 = vmatprep.subr.bf16.mxu0 %v2526
    %4139 = vmatpush1.bf16.msra.mxu0 %v2525
    %4140 = vmatprep.subr.bf16.mxu0 %v2534
    %4141 = vmatpush1.bf16.msra.mxu0 %v2533
    %4142 = vmatprep.subr.bf16.mxu0 %v2542
    %4143 = vmatpush1.bf16.msra.mxu0 %v2541
    %4144 = vmatprep.subr.bf16.mxu0 %v2550
    %4145 = vmatpush1.bf16.msra.mxu0 %v2549
    %4146 = vmatprep.subr.bf16.mxu0 %v2558
    %4147 = vmatpush1.bf16.msra.mxu0 %v2557
    %4148 = vmatprep.mubr.bf16.mxu0 %v902
    %4149 = vmatmul.mubr.bf16.gmra.mrb[0].mxu0 %v901
    %v4150 = vpop.f32.mrb[0].mxu0
    %v4151 = vadd.f32 %v4038, %v4150
    %v4152 = vpop.f32.mrb[0].mxu0
    %v4153 = vadd.f32 %v4040, %v4152
    %v4154 = vpop.f32.mrb[0].mxu0
    %v4155 = vadd.f32 %v4042, %v4154
    %v4156 = vpop.f32.mrb[0].mxu0
    %v4157 = vadd.f32 %v4044, %v4156
    %4158 = vmatprep.mubr.bf16.mxu0 %v909
    %4159 = vmatmul.mubr.bf16.gmra.mrb[0].mxu0 %v908
    %v4160 = vpop.f32.mrb[0].mxu0
    %v4161 = vadd.f32 %v4048, %v4160
    %v4162 = vpop.f32.mrb[0].mxu0
    %v4163 = vadd.f32 %v4050, %v4162
    %v4164 = vpop.f32.mrb[0].mxu0
    %v4165 = vadd.f32 %v4052, %v4164
    %v4166 = vpop.f32.mrb[0].mxu0
    %v4167 = vadd.f32 %v4054, %v4166
    %4168 = vmatprep.mubr.bf16.mxu0 %v916
    %4169 = vmatmul.mubr.bf16.gmra.mrb[0].mxu0 %v915
    %v4170 = vpop.f32.mrb[0].mxu0
    %v4171 = vadd.f32 %v4058, %v4170
    %v4172 = vpop.f32.mrb[0].mxu0
    %v4173 = vadd.f32 %v4060, %v4172
    %v4174 = vpop.f32.mrb[0].mxu0
    %v4175 = vadd.f32 %v4062, %v4174
    %v4176 = vpop.f32.mrb[0].mxu0
    %v4177 = vadd.f32 %v4064, %v4176
    %4178 = vmatprep.mubr.bf16.mxu0 %v923
    %4179 = vmatmul.mubr.bf16.gmra.mrb[0].mxu0 %v922
    %v4180 = vpop.f32.mrb[0].mxu0
    %v4181 = vadd.f32 %v4068, %v4180
    %v4182 = vpop.f32.mrb[0].mxu0
    %v4183 = vadd.f32 %v4070, %v4182
    %v4184 = vpop.f32.mrb[0].mxu0
    %v4185 = vadd.f32 %v4072, %v4184
    %v4186 = vpop.f32.mrb[0].mxu0
    %v4187 = vadd.f32 %v4074, %v4186
    %4188 = vmatprep.mubr.bf16.mxu0 %v930
    %4189 = vmatmul.mubr.bf16.gmra.mrb[0].mxu0 %v929
    %v4190 = vpop.f32.mrb[0].mxu0
    %v4191 = vadd.f32 %v4078, %v4190
    %v4192 = vpop.f32.mrb[0].mxu0
    %v4193 = vadd.f32 %v4080, %v4192
    %v4194 = vpop.f32.mrb[0].mxu0
    %v4195 = vadd.f32 %v4082, %v4194
    %v4196 = vpop.f32.mrb[0].mxu0
    %v4197 = vadd.f32 %v4084, %v4196
    %4198 = vmatprep.mubr.bf16.mxu0 %v937
    %4199 = vmatmul.mubr.bf16.gmra.mrb[0].mxu0 %v936
    %v4200 = vpop.f32.mrb[0].mxu0
    %v4201 = vadd.f32 %v4088, %v4200
    %v4202 = vpop.f32.mrb[0].mxu0
    %v4203 = vadd.f32 %v4090, %v4202
    %v4204 = vpop.f32.mrb[0].mxu0
    %v4205 = vadd.f32 %v4092, %v4204
    %v4206 = vpop.f32.mrb[0].mxu0
    %v4207 = vadd.f32 %v4094, %v4206
    %4208 = vmatprep.mubr.bf16.mxu0 %v944
    %4209 = vmatmul.mubr.bf16.gmra.mrb[0].mxu0 %v943
    %v4210 = vpop.f32.mrb[0].mxu0
    %v4211 = vadd.f32 %v4098, %v4210
    %v4212 = vpop.f32.mrb[0].mxu0
    %v4213 = vadd.f32 %v4100, %v4212
    %v4214 = vpop.f32.mrb[0].mxu0
    %v4215 = vadd.f32 %v4102, %v4214
    %v4216 = vpop.f32.mrb[0].mxu0
    %v4217 = vadd.f32 %v4104, %v4216
    %4218 = vmatprep.mubr.bf16.mxu0 %v951
    %4219 = vmatmul.mubr.bf16.gmra.mrb[0].mxu0 %v950
    %v4220 = vpop.f32.mrb[0].mxu0
    %v4221 = vadd.f32 %v4108, %v4220
    %v4222 = vpop.f32.mrb[0].mxu0
    %v4223 = vadd.f32 %v4110, %v4222
    %v4224 = vpop.f32.mrb[0].mxu0
    %v4225 = vadd.f32 %v4112, %v4224
    %v4226 = vpop.f32.mrb[0].mxu0
    %v4227 = vadd.f32 %v4114, %v4226
    %4228 = vdwg.mxu0
    %4229 = vmatprep.subr.bf16.mxu0 %v2566
    %4230 = vmatpush1.bf16.msra.mxu0 %v2565
    %4231 = vmatprep.subr.bf16.mxu0 0
    %4232 = vmatpush1.bf16.msra.mxu0 0
    %4233 = vmatprep.subr.bf16.mxu0 0
    %4234 = vmatpush1.bf16.msra.mxu0 0
    %4235 = vmatprep.subr.bf16.mxu0 0
    %4236 = vmatpush1.bf16.msra.mxu0 0
    %4237 = vmatprep.subr.bf16.mxu0 0
    %4238 = vmatpush1.bf16.msra.mxu0 0
    %4239 = vmatprep.subr.bf16.mxu0 0
    %4240 = vmatpush1.bf16.msra.mxu0 0
    %4241 = vmatprep.subr.bf16.mxu0 0
    %4242 = vmatpush1.bf16.msra.mxu0 0
    %4243 = vmatprep.subr.bf16.mxu0 0
    %4244 = vmatpush1.bf16.msra.mxu0 0
    %4245 = vmatprep.subr.bf16.mxu0 0
    %4246 = vmatpush1.bf16.msra.mxu0 0
    %4247 = vmatprep.subr.bf16.mxu0 0
    %4248 = vmatpush1.bf16.msra.mxu0 0
    %4249 = vmatprep.subr.bf16.mxu0 0
    %4250 = vmatpush1.bf16.msra.mxu0 0
    %4251 = vmatprep.subr.bf16.mxu0 0
    %4252 = vmatpush1.bf16.msra.mxu0 0
    %4253 = vmatprep.subr.bf16.mxu0 0
    %4254 = vmatpush1.bf16.msra.mxu0 0
    %4255 = vmatprep.subr.bf16.mxu0 0
    %4256 = vmatpush1.bf16.msra.mxu0 0
    %4257 = vmatprep.subr.bf16.mxu0 0
    %4258 = vmatpush1.bf16.msra.mxu0 0
    %4259 = vmatprep.subr.bf16.mxu0 0
    %4260 = vmatpush1.bf16.msra.mxu0 0
    %4261 = vmatprep.mubr.bf16.mxu0 0
    %4262 = vmatmul.mubr.bf16.gmra.mrb[0].mxu0 %v2963
    %v4263 = vpop.f32.mrb[0].mxu0
    %v4264 = vadd.f32 %v4151, %v4263
    %v4265 = vpop.f32.mrb[0].mxu0
    %v4266 = vadd.f32 %v4153, %v4265
    %v4267 = vpop.f32.mrb[0].mxu0
    %v4268 = vadd.f32 %v4155, %v4267
    %v4269 = vpop.f32.mrb[0].mxu0
    %v4270 = vadd.f32 %v4157, %v4269
    %4271 = vmatprep.mubr.bf16.mxu0 0
    %4272 = vmatmul.mubr.bf16.gmra.mrb[0].mxu0 %v2966
    %v4273 = vpop.f32.mrb[0].mxu0
    %v4274 = vadd.f32 %v4161, %v4273
    %v4275 = vpop.f32.mrb[0].mxu0
    %v4276 = vadd.f32 %v4163, %v4275
    %v4277 = vpop.f32.mrb[0].mxu0
    %v4278 = vadd.f32 %v4165, %v4277
    %v4279 = vpop.f32.mrb[0].mxu0
    %v4280 = vadd.f32 %v4167, %v4279
    %4281 = vmatprep.mubr.bf16.mxu0 0
    %4282 = vmatmul.mubr.bf16.gmra.mrb[0].mxu0 %v2969
    %v4283 = vpop.f32.mrb[0].mxu0
    %v4284 = vadd.f32 %v4171, %v4283
    %v4285 = vpop.f32.mrb[0].mxu0
    %v4286 = vadd.f32 %v4173, %v4285
    %v4287 = vpop.f32.mrb[0].mxu0
    %v4288 = vadd.f32 %v4175, %v4287
    %v4289 = vpop.f32.mrb[0].mxu0
    %v4290 = vadd.f32 %v4177, %v4289
    %4291 = vmatprep.mubr.bf16.mxu0 0
    %4292 = vmatmul.mubr.bf16.gmra.mrb[0].mxu0 %v2972
    %v4293 = vpop.f32.mrb[0].mxu0
    %v4294 = vadd.f32 %v4181, %v4293
    %v4295 = vpop.f32.mrb[0].mxu0
    %v4296 = vadd.f32 %v4183, %v4295
    %v4297 = vpop.f32.mrb[0].mxu0
    %v4298 = vadd.f32 %v4185, %v4297
    %v4299 = vpop.f32.mrb[0].mxu0
    %v4300 = vadd.f32 %v4187, %v4299
    %4301 = vmatprep.mubr.bf16.mxu0 0
    %4302 = vmatmul.mubr.bf16.gmra.mrb[0].mxu0 %v2975
    %v4303 = vpop.f32.mrb[0].mxu0
    %v4304 = vadd.f32 %v4191, %v4303
    %v4305 = vpop.f32.mrb[0].mxu0
    %v4306 = vadd.f32 %v4193, %v4305
    %v4307 = vpop.f32.mrb[0].mxu0
    %v4308 = vadd.f32 %v4195, %v4307
    %v4309 = vpop.f32.mrb[0].mxu0
    %v4310 = vadd.f32 %v4197, %v4309
    %4311 = vmatprep.mubr.bf16.mxu0 0
    %4312 = vmatmul.mubr.bf16.gmra.mrb[0].mxu0 %v2978
    %v4313 = vpop.f32.mrb[0].mxu0
    %v4314 = vadd.f32 %v4201, %v4313
    %v4315 = vpop.f32.mrb[0].mxu0
    %v4316 = vadd.f32 %v4203, %v4315
    %v4317 = vpop.f32.mrb[0].mxu0
    %v4318 = vadd.f32 %v4205, %v4317
    %v4319 = vpop.f32.mrb[0].mxu0
    %v4320 = vadd.f32 %v4207, %v4319
    %4321 = vmatprep.mubr.bf16.mxu0 0
    %4322 = vmatmul.mubr.bf16.gmra.mrb[0].mxu0 %v2981
    %v4323 = vpop.f32.mrb[0].mxu0
    %v4324 = vadd.f32 %v4211, %v4323
    %v4325 = vpop.f32.mrb[0].mxu0
    %v4326 = vadd.f32 %v4213, %v4325
    %v4327 = vpop.f32.mrb[0].mxu0
    %v4328 = vadd.f32 %v4215, %v4327
    %v4329 = vpop.f32.mrb[0].mxu0
    %v4330 = vadd.f32 %v4217, %v4329
    %4331 = vmatprep.mubr.bf16.mxu0 0
    %4332 = vmatmul.mubr.bf16.gmra.mrb[0].mxu0 %v2984
    %v4333 = vpop.f32.mrb[0].mxu0
    %v4334 = vadd.f32 %v4221, %v4333
    %v4335 = vpop.f32.mrb[0].mxu0
    %v4336 = vadd.f32 %v4223, %v4335
    %v4337 = vpop.f32.mrb[0].mxu0
    %v4338 = vadd.f32 %v4225, %v4337
    %v4339 = vpop.f32.mrb[0].mxu0
    %v4340 = vadd.f32 %v4227, %v4339
    %4341 = vdwg.mxu0
    %4342 = vmatprep.subr.bf16.mxu0 %v2184
    %4343 = vmatpush1.bf16.msra.mxu0 %v2183
    %4344 = vmatprep.subr.bf16.mxu0 %v2192
    %4345 = vmatpush1.bf16.msra.mxu0 %v2191
    %4346 = vmatprep.subr.bf16.mxu0 %v2200
    %4347 = vmatpush1.bf16.msra.mxu0 %v2199
    %4348 = vmatprep.subr.bf16.mxu0 %v2208
    %4349 = vmatpush1.bf16.msra.mxu0 %v2207
    %4350 = vmatprep.subr.bf16.mxu0 %v2216
    %4351 = vmatpush1.bf16.msra.mxu0 %v2215
    %4352 = vmatprep.subr.bf16.mxu0 %v2224
    %4353 = vmatpush1.bf16.msra.mxu0 %v2223
    %4354 = vmatprep.subr.bf16.mxu0 %v2232
    %4355 = vmatpush1.bf16.msra.mxu0 %v2231
    %4356 = vmatprep.subr.bf16.mxu0 %v2240
    %4357 = vmatpush1.bf16.msra.mxu0 %v2239
    %4358 = vmatprep.subr.bf16.mxu0 %v2248
    %4359 = vmatpush1.bf16.msra.mxu0 %v2247
    %4360 = vmatprep.subr.bf16.mxu0 %v2256
    %4361 = vmatpush1.bf16.msra.mxu0 %v2255
    %4362 = vmatprep.subr.bf16.mxu0 %v2264
    %4363 = vmatpush1.bf16.msra.mxu0 %v2263
    %4364 = vmatprep.subr.bf16.mxu0 %v2272
    %4365 = vmatpush1.bf16.msra.mxu0 %v2271
    %4366 = vmatprep.subr.bf16.mxu0 %v2280
    %4367 = vmatpush1.bf16.msra.mxu0 %v2279
    %4368 = vmatprep.subr.bf16.mxu0 %v2288
    %4369 = vmatpush1.bf16.msra.mxu0 %v2287
    %4370 = vmatprep.subr.bf16.mxu0 %v2296
    %4371 = vmatpush1.bf16.msra.mxu0 %v2295
    %4372 = vmatprep.subr.bf16.mxu0 %v2304
    %4373 = vmatpush1.bf16.msra.mxu0 %v2303
    %4374 = vmatprep.mubr.bf16.mxu0 %v898
    %4375 = vmatmul.mubr.bf16.gmra.mrb[0].mxu0 %v897
    %v4376 = vpop.f32.mrb[0].mxu0
    %v4377 = vadd.f32 %v599, %v4376
    %v4378 = vpop.f32.mrb[0].mxu0
    %v4379 = vadd.f32 %v600, %v4378
    %v4380 = vpop.f32.mrb[0].mxu0
    %v4381 = vadd.f32 %v607, %v4380
    %v4382 = vpop.f32.mrb[0].mxu0
    %v4383 = vadd.f32 %v608, %v4382
    %4384 = vmatprep.mubr.bf16.mxu0 %v905
    %4385 = vmatmul.mubr.bf16.gmra.mrb[0].mxu0 %v904
    %v4386 = vpop.f32.mrb[0].mxu0
    %v4387 = vadd.f32 %v615, %v4386
    %v4388 = vpop.f32.mrb[0].mxu0
    %v4389 = vadd.f32 %v616, %v4388
    %v4390 = vpop.f32.mrb[0].mxu0
    %v4391 = vadd.f32 %v623, %v4390
    %v4392 = vpop.f32.mrb[0].mxu0
    %v4393 = vadd.f32 %v624, %v4392
    %4394 = vmatprep.mubr.bf16.mxu0 %v912
    %4395 = vmatmul.mubr.bf16.gmra.mrb[0].mxu0 %v911
    %v4396 = vpop.f32.mrb[0].mxu0
    %v4397 = vadd.f32 %v631, %v4396
    %v4398 = vpop.f32.mrb[0].mxu0
    %v4399 = vadd.f32 %v632, %v4398
    %v4400 = vpop.f32.mrb[0].mxu0
    %v4401 = vadd.f32 %v639, %v4400
    %v4402 = vpop.f32.mrb[0].mxu0
    %v4403 = vadd.f32 %v640, %v4402
    %4404 = vmatprep.mubr.bf16.mxu0 %v919
    %4405 = vmatmul.mubr.bf16.gmra.mrb[0].mxu0 %v918
    %v4406 = vpop.f32.mrb[0].mxu0
    %v4407 = vadd.f32 %v647, %v4406
    %v4408 = vpop.f32.mrb[0].mxu0
    %v4409 = vadd.f32 %v648, %v4408
    %v4410 = vpop.f32.mrb[0].mxu0
    %v4411 = vadd.f32 %v655, %v4410
    %v4412 = vpop.f32.mrb[0].mxu0
    %v4413 = vadd.f32 %v656, %v4412
    %4414 = vmatprep.mubr.bf16.mxu0 %v926
    %4415 = vmatmul.mubr.bf16.gmra.mrb[0].mxu0 %v925
    %v4416 = vpop.f32.mrb[0].mxu0
    %v4417 = vadd.f32 %v663, %v4416
    %v4418 = vpop.f32.mrb[0].mxu0
    %v4419 = vadd.f32 %v664, %v4418
    %v4420 = vpop.f32.mrb[0].mxu0
    %v4421 = vadd.f32 %v671, %v4420
    %v4422 = vpop.f32.mrb[0].mxu0
    %v4423 = vadd.f32 %v672, %v4422
    %4424 = vmatprep.mubr.bf16.mxu0 %v933
    %4425 = vmatmul.mubr.bf16.gmra.mrb[0].mxu0 %v932
    %v4426 = vpop.f32.mrb[0].mxu0
    %v4427 = vadd.f32 %v679, %v4426
    %v4428 = vpop.f32.mrb[0].mxu0
    %v4429 = vadd.f32 %v680, %v4428
    %v4430 = vpop.f32.mrb[0].mxu0
    %v4431 = vadd.f32 %v687, %v4430
    %v4432 = vpop.f32.mrb[0].mxu0
    %v4433 = vadd.f32 %v688, %v4432
    %4434 = vmatprep.mubr.bf16.mxu0 %v940
    %4435 = vmatmul.mubr.bf16.gmra.mrb[0].mxu0 %v939
    %v4436 = vpop.f32.mrb[0].mxu0
    %v4437 = vadd.f32 %v695, %v4436
    %v4438 = vpop.f32.mrb[0].mxu0
    %v4439 = vadd.f32 %v696, %v4438
    %v4440 = vpop.f32.mrb[0].mxu0
    %v4441 = vadd.f32 %v703, %v4440
    %v4442 = vpop.f32.mrb[0].mxu0
    %v4443 = vadd.f32 %v704, %v4442
    %4444 = vmatprep.mubr.bf16.mxu0 %v947
    %4445 = vmatmul.mubr.bf16.gmra.mrb[0].mxu0 %v946
    %v4446 = vpop.f32.mrb[0].mxu0
    %v4447 = vadd.f32 %v711, %v4446
    %v4448 = vpop.f32.mrb[0].mxu0
    %v4449 = vadd.f32 %v712, %v4448
    %v4450 = vpop.f32.mrb[0].mxu0
    %v4451 = vadd.f32 %v719, %v4450
    %v4452 = vpop.f32.mrb[0].mxu0
    %v4453 = vadd.f32 %v720, %v4452
    %4454 = vdwg.mxu0
    %4455 = vmatprep.subr.bf16.mxu0 %v2312
    %4456 = vmatpush1.bf16.msra.mxu0 %v2311
    %4457 = vmatprep.subr.bf16.mxu0 %v2320
    %4458 = vmatpush1.bf16.msra.mxu0 %v2319
    %4459 = vmatprep.subr.bf16.mxu0 %v2328
    %4460 = vmatpush1.bf16.msra.mxu0 %v2327
    %4461 = vmatprep.subr.bf16.mxu0 %v2336
    %4462 = vmatpush1.bf16.msra.mxu0 %v2335
    %4463 = vmatprep.subr.bf16.mxu0 %v2344
    %4464 = vmatpush1.bf16.msra.mxu0 %v2343
    %4465 = vmatprep.subr.bf16.mxu0 %v2352
    %4466 = vmatpush1.bf16.msra.mxu0 %v2351
    %4467 = vmatprep.subr.bf16.mxu0 %v2360
    %4468 = vmatpush1.bf16.msra.mxu0 %v2359
    %4469 = vmatprep.subr.bf16.mxu0 %v2368
    %4470 = vmatpush1.bf16.msra.mxu0 %v2367
    %4471 = vmatprep.subr.bf16.mxu0 %v2376
    %4472 = vmatpush1.bf16.msra.mxu0 %v2375
    %4473 = vmatprep.subr.bf16.mxu0 %v2384
    %4474 = vmatpush1.bf16.msra.mxu0 %v2383
    %4475 = vmatprep.subr.bf16.mxu0 %v2392
    %4476 = vmatpush1.bf16.msra.mxu0 %v2391
    %4477 = vmatprep.subr.bf16.mxu0 %v2400
    %4478 = vmatpush1.bf16.msra.mxu0 %v2399
    %4479 = vmatprep.subr.bf16.mxu0 %v2408
    %4480 = vmatpush1.bf16.msra.mxu0 %v2407
    %4481 = vmatprep.subr.bf16.mxu0 %v2416
    %4482 = vmatpush1.bf16.msra.mxu0 %v2415
    %4483 = vmatprep.subr.bf16.mxu0 %v2424
    %4484 = vmatpush1.bf16.msra.mxu0 %v2423
    %4485 = vmatprep.subr.bf16.mxu0 %v2432
    %4486 = vmatpush1.bf16.msra.mxu0 %v2431
    %4487 = vmatprep.mubr.bf16.mxu0 %v900
    %4488 = vmatmul.mubr.bf16.gmra.mrb[0].mxu0 %v899
    %v4489 = vpop.f32.mrb[0].mxu0
    %v4490 = vadd.f32 %v4377, %v4489
    %v4491 = vpop.f32.mrb[0].mxu0
    %v4492 = vadd.f32 %v4379, %v4491
    %v4493 = vpop.f32.mrb[0].mxu0
    %v4494 = vadd.f32 %v4381, %v4493
    %v4495 = vpop.f32.mrb[0].mxu0
    %v4496 = vadd.f32 %v4383, %v4495
    %4497 = vmatprep.mubr.bf16.mxu0 %v907
    %4498 = vmatmul.mubr.bf16.gmra.mrb[0].mxu0 %v906
    %v4499 = vpop.f32.mrb[0].mxu0
    %v4500 = vadd.f32 %v4387, %v4499
    %v4501 = vpop.f32.mrb[0].mxu0
    %v4502 = vadd.f32 %v4389, %v4501
    %v4503 = vpop.f32.mrb[0].mxu0
    %v4504 = vadd.f32 %v4391, %v4503
    %v4505 = vpop.f32.mrb[0].mxu0
    %v4506 = vadd.f32 %v4393, %v4505
    %4507 = vmatprep.mubr.bf16.mxu0 %v914
    %4508 = vmatmul.mubr.bf16.gmra.mrb[0].mxu0 %v913
    %v4509 = vpop.f32.mrb[0].mxu0
    %v4510 = vadd.f32 %v4397, %v4509
    %v4511 = vpop.f32.mrb[0].mxu0
    %v4512 = vadd.f32 %v4399, %v4511
    %v4513 = vpop.f32.mrb[0].mxu0
    %v4514 = vadd.f32 %v4401, %v4513
    %v4515 = vpop.f32.mrb[0].mxu0
    %v4516 = vadd.f32 %v4403, %v4515
    %4517 = vmatprep.mubr.bf16.mxu0 %v921
    %4518 = vmatmul.mubr.bf16.gmra.mrb[0].mxu0 %v920
    %v4519 = vpop.f32.mrb[0].mxu0
    %v4520 = vadd.f32 %v4407, %v4519
    %v4521 = vpop.f32.mrb[0].mxu0
    %v4522 = vadd.f32 %v4409, %v4521
    %v4523 = vpop.f32.mrb[0].mxu0
    %v4524 = vadd.f32 %v4411, %v4523
    %v4525 = vpop.f32.mrb[0].mxu0
    %v4526 = vadd.f32 %v4413, %v4525
    %4527 = vmatprep.mubr.bf16.mxu0 %v928
    %4528 = vmatmul.mubr.bf16.gmra.mrb[0].mxu0 %v927
    %v4529 = vpop.f32.mrb[0].mxu0
    %v4530 = vadd.f32 %v4417, %v4529
    %v4531 = vpop.f32.mrb[0].mxu0
    %v4532 = vadd.f32 %v4419, %v4531
    %v4533 = vpop.f32.mrb[0].mxu0
    %v4534 = vadd.f32 %v4421, %v4533
    %v4535 = vpop.f32.mrb[0].mxu0
    %v4536 = vadd.f32 %v4423, %v4535
    %4537 = vmatprep.mubr.bf16.mxu0 %v935
    %4538 = vmatmul.mubr.bf16.gmra.mrb[0].mxu0 %v934
    %v4539 = vpop.f32.mrb[0].mxu0
    %v4540 = vadd.f32 %v4427, %v4539
    %v4541 = vpop.f32.mrb[0].mxu0
    %v4542 = vadd.f32 %v4429, %v4541
    %v4543 = vpop.f32.mrb[0].mxu0
    %v4544 = vadd.f32 %v4431, %v4543
    %v4545 = vpop.f32.mrb[0].mxu0
    %v4546 = vadd.f32 %v4433, %v4545
    %4547 = vmatprep.mubr.bf16.mxu0 %v942
    %4548 = vmatmul.mubr.bf16.gmra.mrb[0].mxu0 %v941
    %v4549 = vpop.f32.mrb[0].mxu0
    %v4550 = vadd.f32 %v4437, %v4549
    %v4551 = vpop.f32.mrb[0].mxu0
    %v4552 = vadd.f32 %v4439, %v4551
    %v4553 = vpop.f32.mrb[0].mxu0
    %v4554 = vadd.f32 %v4441, %v4553
    %v4555 = vpop.f32.mrb[0].mxu0
    %v4556 = vadd.f32 %v4443, %v4555
    %4557 = vmatprep.mubr.bf16.mxu0 %v949
    %4558 = vmatmul.mubr.bf16.gmra.mrb[0].mxu0 %v948
    %v4559 = vpop.f32.mrb[0].mxu0
    %v4560 = vadd.f32 %v4447, %v4559
    %v4561 = vpop.f32.mrb[0].mxu0
    %v4562 = vadd.f32 %v4449, %v4561
    %v4563 = vpop.f32.mrb[0].mxu0
    %v4564 = vadd.f32 %v4451, %v4563
    %v4565 = vpop.f32.mrb[0].mxu0
    %v4566 = vadd.f32 %v4453, %v4565
    %4567 = vdwg.mxu0
    %4568 = vmatprep.subr.bf16.mxu0 %v2440
    %4569 = vmatpush1.bf16.msra.mxu0 %v2439
    %4570 = vmatprep.subr.bf16.mxu0 %v2448
    %4571 = vmatpush1.bf16.msra.mxu0 %v2447
    %4572 = vmatprep.subr.bf16.mxu0 %v2456
    %4573 = vmatpush1.bf16.msra.mxu0 %v2455
    %4574 = vmatprep.subr.bf16.mxu0 %v2464
    %4575 = vmatpush1.bf16.msra.mxu0 %v2463
    %4576 = vmatprep.subr.bf16.mxu0 %v2472
    %4577 = vmatpush1.bf16.msra.mxu0 %v2471
    %4578 = vmatprep.subr.bf16.mxu0 %v2480
    %4579 = vmatpush1.bf16.msra.mxu0 %v2479
    %4580 = vmatprep.subr.bf16.mxu0 %v2488
    %4581 = vmatpush1.bf16.msra.mxu0 %v2487
    %4582 = vmatprep.subr.bf16.mxu0 %v2496
    %4583 = vmatpush1.bf16.msra.mxu0 %v2495
    %4584 = vmatprep.subr.bf16.mxu0 %v2504
    %4585 = vmatpush1.bf16.msra.mxu0 %v2503
    %4586 = vmatprep.subr.bf16.mxu0 %v2512
    %4587 = vmatpush1.bf16.msra.mxu0 %v2511
    %4588 = vmatprep.subr.bf16.mxu0 %v2520
    %4589 = vmatpush1.bf16.msra.mxu0 %v2519
    %4590 = vmatprep.subr.bf16.mxu0 %v2528
    %4591 = vmatpush1.bf16.msra.mxu0 %v2527
    %4592 = vmatprep.subr.bf16.mxu0 %v2536
    %4593 = vmatpush1.bf16.msra.mxu0 %v2535
    %4594 = vmatprep.subr.bf16.mxu0 %v2544
    %4595 = vmatpush1.bf16.msra.mxu0 %v2543
    %4596 = vmatprep.subr.bf16.mxu0 %v2552
    %4597 = vmatpush1.bf16.msra.mxu0 %v2551
    %4598 = vmatprep.subr.bf16.mxu0 %v2560
    %4599 = vmatpush1.bf16.msra.mxu0 %v2559
    %4600 = vmatprep.mubr.bf16.mxu0 %v902
    %4601 = vmatmul.mubr.bf16.gmra.mrb[0].mxu0 %v901
    %v4602 = vpop.f32.mrb[0].mxu0
    %v4603 = vadd.f32 %v4490, %v4602
    %v4604 = vpop.f32.mrb[0].mxu0
    %v4605 = vadd.f32 %v4492, %v4604
    %v4606 = vpop.f32.mrb[0].mxu0
    %v4607 = vadd.f32 %v4494, %v4606
    %v4608 = vpop.f32.mrb[0].mxu0
    %v4609 = vadd.f32 %v4496, %v4608
    %4610 = vmatprep.mubr.bf16.mxu0 %v909
    %4611 = vmatmul.mubr.bf16.gmra.mrb[0].mxu0 %v908
    %v4612 = vpop.f32.mrb[0].mxu0
    %v4613 = vadd.f32 %v4500, %v4612
    %v4614 = vpop.f32.mrb[0].mxu0
    %v4615 = vadd.f32 %v4502, %v4614
    %v4616 = vpop.f32.mrb[0].mxu0
    %v4617 = vadd.f32 %v4504, %v4616
    %v4618 = vpop.f32.mrb[0].mxu0
    %v4619 = vadd.f32 %v4506, %v4618
    %4620 = vmatprep.mubr.bf16.mxu0 %v916
    %4621 = vmatmul.mubr.bf16.gmra.mrb[0].mxu0 %v915
    %v4622 = vpop.f32.mrb[0].mxu0
    %v4623 = vadd.f32 %v4510, %v4622
    %v4624 = vpop.f32.mrb[0].mxu0
    %v4625 = vadd.f32 %v4512, %v4624
    %v4626 = vpop.f32.mrb[0].mxu0
    %v4627 = vadd.f32 %v4514, %v4626
    %v4628 = vpop.f32.mrb[0].mxu0
    %v4629 = vadd.f32 %v4516, %v4628
    %4630 = vmatprep.mubr.bf16.mxu0 %v923
    %4631 = vmatmul.mubr.bf16.gmra.mrb[0].mxu0 %v922
    %v4632 = vpop.f32.mrb[0].mxu0
    %v4633 = vadd.f32 %v4520, %v4632
    %v4634 = vpop.f32.mrb[0].mxu0
    %v4635 = vadd.f32 %v4522, %v4634
    %v4636 = vpop.f32.mrb[0].mxu0
    %v4637 = vadd.f32 %v4524, %v4636
    %v4638 = vpop.f32.mrb[0].mxu0
    %v4639 = vadd.f32 %v4526, %v4638
    %4640 = vmatprep.mubr.bf16.mxu0 %v930
    %4641 = vmatmul.mubr.bf16.gmra.mrb[0].mxu0 %v929
    %v4642 = vpop.f32.mrb[0].mxu0
    %v4643 = vadd.f32 %v4530, %v4642
    %v4644 = vpop.f32.mrb[0].mxu0
    %v4645 = vadd.f32 %v4532, %v4644
    %v4646 = vpop.f32.mrb[0].mxu0
    %v4647 = vadd.f32 %v4534, %v4646
    %v4648 = vpop.f32.mrb[0].mxu0
    %v4649 = vadd.f32 %v4536, %v4648
    %4650 = vmatprep.mubr.bf16.mxu0 %v937
    %4651 = vmatmul.mubr.bf16.gmra.mrb[0].mxu0 %v936
    %v4652 = vpop.f32.mrb[0].mxu0
    %v4653 = vadd.f32 %v4540, %v4652
    %v4654 = vpop.f32.mrb[0].mxu0
    %v4655 = vadd.f32 %v4542, %v4654
    %v4656 = vpop.f32.mrb[0].mxu0
    %v4657 = vadd.f32 %v4544, %v4656
    %v4658 = vpop.f32.mrb[0].mxu0
    %v4659 = vadd.f32 %v4546, %v4658
    %4660 = vmatprep.mubr.bf16.mxu0 %v944
    %4661 = vmatmul.mubr.bf16.gmra.mrb[0].mxu0 %v943
    %v4662 = vpop.f32.mrb[0].mxu0
    %v4663 = vadd.f32 %v4550, %v4662
    %v4664 = vpop.f32.mrb[0].mxu0
    %v4665 = vadd.f32 %v4552, %v4664
    %v4666 = vpop.f32.mrb[0].mxu0
    %v4667 = vadd.f32 %v4554, %v4666
    %v4668 = vpop.f32.mrb[0].mxu0
    %v4669 = vadd.f32 %v4556, %v4668
    %4670 = vmatprep.mubr.bf16.mxu0 %v951
    %4671 = vmatmul.mubr.bf16.gmra.mrb[0].mxu0 %v950
    %v4672 = vpop.f32.mrb[0].mxu0
    %v4673 = vadd.f32 %v4560, %v4672
    %v4674 = vpop.f32.mrb[0].mxu0
    %v4675 = vadd.f32 %v4562, %v4674
    %v4676 = vpop.f32.mrb[0].mxu0
    %v4677 = vadd.f32 %v4564, %v4676
    %v4678 = vpop.f32.mrb[0].mxu0
    %v4679 = vadd.f32 %v4566, %v4678
    %4680 = vdwg.mxu0
    %4681 = vmatprep.subr.bf16.mxu0 %v2568
    %4682 = vmatpush1.bf16.msra.mxu0 %v2567
    %4683 = vmatprep.subr.bf16.mxu0 0
    %4684 = vmatpush1.bf16.msra.mxu0 0
    %4685 = vmatprep.subr.bf16.mxu0 0
    %4686 = vmatpush1.bf16.msra.mxu0 0
    %4687 = vmatprep.subr.bf16.mxu0 0
    %4688 = vmatpush1.bf16.msra.mxu0 0
    %4689 = vmatprep.subr.bf16.mxu0 0
    %4690 = vmatpush1.bf16.msra.mxu0 0
    %4691 = vmatprep.subr.bf16.mxu0 0
    %4692 = vmatpush1.bf16.msra.mxu0 0
    %4693 = vmatprep.subr.bf16.mxu0 0
    %4694 = vmatpush1.bf16.msra.mxu0 0
    %4695 = vmatprep.subr.bf16.mxu0 0
    %4696 = vmatpush1.bf16.msra.mxu0 0
    %4697 = vmatprep.subr.bf16.mxu0 0
    %4698 = vmatpush1.bf16.msra.mxu0 0
    %4699 = vmatprep.subr.bf16.mxu0 0
    %4700 = vmatpush1.bf16.msra.mxu0 0
    %4701 = vmatprep.subr.bf16.mxu0 0
    %4702 = vmatpush1.bf16.msra.mxu0 0
    %4703 = vmatprep.subr.bf16.mxu0 0
    %4704 = vmatpush1.bf16.msra.mxu0 0
    %4705 = vmatprep.subr.bf16.mxu0 0
    %4706 = vmatpush1.bf16.msra.mxu0 0
    %4707 = vmatprep.subr.bf16.mxu0 0
    %4708 = vmatpush1.bf16.msra.mxu0 0
    %4709 = vmatprep.subr.bf16.mxu0 0
    %4710 = vmatpush1.bf16.msra.mxu0 0
    %4711 = vmatprep.subr.bf16.mxu0 0
    %4712 = vmatpush1.bf16.msra.mxu0 0
    %4713 = vmatprep.mubr.bf16.mxu0 0
    %4714 = vmatmul.mubr.bf16.gmra.mrb[0].mxu0 %v2963
    %v4715 = vpop.f32.mrb[0].mxu0
    %v4716 = vadd.f32 %v4603, %v4715
    %v4717 = vpop.f32.mrb[0].mxu0
    %v4718 = vadd.f32 %v4605, %v4717
    %v4719 = vpop.f32.mrb[0].mxu0
    %v4720 = vadd.f32 %v4607, %v4719
    %v4721 = vpop.f32.mrb[0].mxu0
    %v4722 = vadd.f32 %v4609, %v4721
    %4723 = vmatprep.mubr.bf16.mxu0 0
    %4724 = vmatmul.mubr.bf16.gmra.mrb[0].mxu0 %v2966
    %v4725 = vpop.f32.mrb[0].mxu0
    %v4726 = vadd.f32 %v4613, %v4725
    %v4727 = vpop.f32.mrb[0].mxu0
    %v4728 = vadd.f32 %v4615, %v4727
    %v4729 = vpop.f32.mrb[0].mxu0
    %v4730 = vadd.f32 %v4617, %v4729
    %v4731 = vpop.f32.mrb[0].mxu0
    %v4732 = vadd.f32 %v4619, %v4731
    %4733 = vmatprep.mubr.bf16.mxu0 0
    %4734 = vmatmul.mubr.bf16.gmra.mrb[0].mxu0 %v2969
    %v4735 = vpop.f32.mrb[0].mxu0
    %v4736 = vadd.f32 %v4623, %v4735
    %v4737 = vpop.f32.mrb[0].mxu0
    %v4738 = vadd.f32 %v4625, %v4737
    %v4739 = vpop.f32.mrb[0].mxu0
    %v4740 = vadd.f32 %v4627, %v4739
    %v4741 = vpop.f32.mrb[0].mxu0
    %v4742 = vadd.f32 %v4629, %v4741
    %4743 = vmatprep.mubr.bf16.mxu0 0
    %4744 = vmatmul.mubr.bf16.gmra.mrb[0].mxu0 %v2972
    %v4745 = vpop.f32.mrb[0].mxu0
    %v4746 = vadd.f32 %v4633, %v4745
    %v4747 = vpop.f32.mrb[0].mxu0
    %v4748 = vadd.f32 %v4635, %v4747
    %v4749 = vpop.f32.mrb[0].mxu0
    %v4750 = vadd.f32 %v4637, %v4749
    %v4751 = vpop.f32.mrb[0].mxu0
    %v4752 = vadd.f32 %v4639, %v4751
    %4753 = vmatprep.mubr.bf16.mxu0 0
    %4754 = vmatmul.mubr.bf16.gmra.mrb[0].mxu0 %v2975
    %v4755 = vpop.f32.mrb[0].mxu0
    %v4756 = vadd.f32 %v4643, %v4755
    %v4757 = vpop.f32.mrb[0].mxu0
    %v4758 = vadd.f32 %v4645, %v4757
    %v4759 = vpop.f32.mrb[0].mxu0
    %v4760 = vadd.f32 %v4647, %v4759
    %v4761 = vpop.f32.mrb[0].mxu0
    %v4762 = vadd.f32 %v4649, %v4761
    %4763 = vmatprep.mubr.bf16.mxu0 0
    %4764 = vmatmul.mubr.bf16.gmra.mrb[0].mxu0 %v2978
    %v4765 = vpop.f32.mrb[0].mxu0
    %v4766 = vadd.f32 %v4653, %v4765
    %v4767 = vpop.f32.mrb[0].mxu0
    %v4768 = vadd.f32 %v4655, %v4767
    %v4769 = vpop.f32.mrb[0].mxu0
    %v4770 = vadd.f32 %v4657, %v4769
    %v4771 = vpop.f32.mrb[0].mxu0
    %v4772 = vadd.f32 %v4659, %v4771
    %4773 = vmatprep.mubr.bf16.mxu0 0
    %4774 = vmatmul.mubr.bf16.gmra.mrb[0].mxu0 %v2981
    %v4775 = vpop.f32.mrb[0].mxu0
    %v4776 = vadd.f32 %v4663, %v4775
    %v4777 = vpop.f32.mrb[0].mxu0
    %v4778 = vadd.f32 %v4665, %v4777
    %v4779 = vpop.f32.mrb[0].mxu0
    %v4780 = vadd.f32 %v4667, %v4779
    %v4781 = vpop.f32.mrb[0].mxu0
    %v4782 = vadd.f32 %v4669, %v4781
    %4783 = vmatprep.mubr.bf16.mxu0 0
    %4784 = vmatmul.mubr.bf16.gmra.mrb[0].mxu0 %v2984
    %v4785 = vpop.f32.mrb[0].mxu0
    %v4786 = vadd.f32 %v4673, %v4785
    %v4787 = vpop.f32.mrb[0].mxu0
    %v4788 = vadd.f32 %v4675, %v4787
    %v4789 = vpop.f32.mrb[0].mxu0
    %v4790 = vadd.f32 %v4677, %v4789
    %v4791 = vpop.f32.mrb[0].mxu0
    %v4792 = vadd.f32 %v4679, %v4791
    %4793 = vdwg.mxu0
    %vm4794 = vcmp.gt.f32.partialorder %v3360, 0.0
    %vm4795 = vcmp.gt.f32.partialorder %v3362, 0.0
    %vm4796 = vcmp.gt.f32.partialorder %v3812, 0.0
    %vm4797 = vcmp.gt.f32.partialorder %v3814, 0.0
    %vm4798 = vcmp.gt.f32.partialorder %v4264, 0.0
    %vm4799 = vcmp.gt.f32.partialorder %v4266, 0.0
    %vm4800 = vcmp.gt.f32.partialorder %v4716, 0.0
    %vm4801 = vcmp.gt.f32.partialorder %v4718, 0.0
    %vm4802 = vcmp.gt.f32.partialorder %v3364, 0.0
    %vm4803 = vcmp.gt.f32.partialorder %v3366, 0.0
    %vm4804 = vcmp.gt.f32.partialorder %v3816, 0.0
    %vm4805 = vcmp.gt.f32.partialorder %v3818, 0.0
    %vm4806 = vcmp.gt.f32.partialorder %v4268, 0.0
    %vm4807 = vcmp.gt.f32.partialorder %v4270, 0.0
    %vm4808 = vcmp.gt.f32.partialorder %v4720, 0.0
    %vm4809 = vcmp.gt.f32.partialorder %v4722, 0.0
    %vm4810 = vcmp.gt.f32.partialorder %v3370, 0.0
    %vm4811 = vcmp.gt.f32.partialorder %v3372, 0.0
    %vm4812 = vcmp.gt.f32.partialorder %v3822, 0.0
    %vm4813 = vcmp.gt.f32.partialorder %v3824, 0.0
    %vm4814 = vcmp.gt.f32.partialorder %v4274, 0.0
    %vm4815 = vcmp.gt.f32.partialorder %v4276, 0.0
    %vm4816 = vcmp.gt.f32.partialorder %v4726, 0.0
    %vm4817 = vcmp.gt.f32.partialorder %v4728, 0.0
    %vm4818 = vcmp.gt.f32.partialorder %v3374, 0.0
    %vm4819 = vcmp.gt.f32.partialorder %v3376, 0.0
    %vm4820 = vcmp.gt.f32.partialorder %v3826, 0.0
    %vm4821 = vcmp.gt.f32.partialorder %v3828, 0.0
    %vm4822 = vcmp.gt.f32.partialorder %v4278, 0.0
    %vm4823 = vcmp.gt.f32.partialorder %v4280, 0.0
    %vm4824 = vcmp.gt.f32.partialorder %v4730, 0.0
    %vm4825 = vcmp.gt.f32.partialorder %v4732, 0.0
    %vm4826 = vcmp.gt.f32.partialorder %v3380, 0.0
    %vm4827 = vcmp.gt.f32.partialorder %v3382, 0.0
    %vm4828 = vcmp.gt.f32.partialorder %v3832, 0.0
    %vm4829 = vcmp.gt.f32.partialorder %v3834, 0.0
    %vm4830 = vcmp.gt.f32.partialorder %v4284, 0.0
    %vm4831 = vcmp.gt.f32.partialorder %v4286, 0.0
    %vm4832 = vcmp.gt.f32.partialorder %v4736, 0.0
    %vm4833 = vcmp.gt.f32.partialorder %v4738, 0.0
    %vm4834 = vcmp.gt.f32.partialorder %v3384, 0.0
    %vm4835 = vcmp.gt.f32.partialorder %v3386, 0.0
    %vm4836 = vcmp.gt.f32.partialorder %v3836, 0.0
    %vm4837 = vcmp.gt.f32.partialorder %v3838, 0.0
    %vm4838 = vcmp.gt.f32.partialorder %v4288, 0.0
    %vm4839 = vcmp.gt.f32.partialorder %v4290, 0.0
    %vm4840 = vcmp.gt.f32.partialorder %v4740, 0.0
    %vm4841 = vcmp.gt.f32.partialorder %v4742, 0.0
    %vm4842 = vcmp.gt.f32.partialorder %v3390, 0.0
    %vm4843 = vcmp.gt.f32.partialorder %v3392, 0.0
    %vm4844 = vcmp.gt.f32.partialorder %v3842, 0.0
    %vm4845 = vcmp.gt.f32.partialorder %v3844, 0.0
    %vm4846 = vcmp.gt.f32.partialorder %v4294, 0.0
    %vm4847 = vcmp.gt.f32.partialorder %v4296, 0.0
    %vm4848 = vcmp.gt.f32.partialorder %v4746, 0.0
    %vm4849 = vcmp.gt.f32.partialorder %v4748, 0.0
    %vm4850 = vcmp.gt.f32.partialorder %v3394, 0.0
    %vm4851 = vcmp.gt.f32.partialorder %v3396, 0.0
    %vm4852 = vcmp.gt.f32.partialorder %v3846, 0.0
    %vm4853 = vcmp.gt.f32.partialorder %v3848, 0.0
    %vm4854 = vcmp.gt.f32.partialorder %v4298, 0.0
    %vm4855 = vcmp.gt.f32.partialorder %v4300, 0.0
    %vm4856 = vcmp.gt.f32.partialorder %v4750, 0.0
    %vm4857 = vcmp.gt.f32.partialorder %v4752, 0.0
    %vm4858 = vcmp.gt.f32.partialorder %v3400, 0.0
    %vm4859 = vcmp.gt.f32.partialorder %v3402, 0.0
    %vm4860 = vcmp.gt.f32.partialorder %v3852, 0.0
    %vm4861 = vcmp.gt.f32.partialorder %v3854, 0.0
    %vm4862 = vcmp.gt.f32.partialorder %v4304, 0.0
    %vm4863 = vcmp.gt.f32.partialorder %v4306, 0.0
    %vm4864 = vcmp.gt.f32.partialorder %v4756, 0.0
    %vm4865 = vcmp.gt.f32.partialorder %v4758, 0.0
    %vm4866 = vcmp.gt.f32.partialorder %v3404, 0.0
    %vm4867 = vcmp.gt.f32.partialorder %v3406, 0.0
    %vm4868 = vcmp.gt.f32.partialorder %v3856, 0.0
    %vm4869 = vcmp.gt.f32.partialorder %v3858, 0.0
    %vm4870 = vcmp.gt.f32.partialorder %v4308, 0.0
    %vm4871 = vcmp.gt.f32.partialorder %v4310, 0.0
    %vm4872 = vcmp.gt.f32.partialorder %v4760, 0.0
    %vm4873 = vcmp.gt.f32.partialorder %v4762, 0.0
    %vm4874 = vcmp.gt.f32.partialorder %v3410, 0.0
    %vm4875 = vcmp.gt.f32.partialorder %v3412, 0.0
    %vm4876 = vcmp.gt.f32.partialorder %v3862, 0.0
    %vm4877 = vcmp.gt.f32.partialorder %v3864, 0.0
    %vm4878 = vcmp.gt.f32.partialorder %v4314, 0.0
    %vm4879 = vcmp.gt.f32.partialorder %v4316, 0.0
    %vm4880 = vcmp.gt.f32.partialorder %v4766, 0.0
    %vm4881 = vcmp.gt.f32.partialorder %v4768, 0.0
    %vm4882 = vcmp.gt.f32.partialorder %v3414, 0.0
    %vm4883 = vcmp.gt.f32.partialorder %v3416, 0.0
    %vm4884 = vcmp.gt.f32.partialorder %v3866, 0.0
    %vm4885 = vcmp.gt.f32.partialorder %v3868, 0.0
    %vm4886 = vcmp.gt.f32.partialorder %v4318, 0.0
    %vm4887 = vcmp.gt.f32.partialorder %v4320, 0.0
    %vm4888 = vcmp.gt.f32.partialorder %v4770, 0.0
    %vm4889 = vcmp.gt.f32.partialorder %v4772, 0.0
    %vm4890 = vcmp.gt.f32.partialorder %v3420, 0.0
    %vm4891 = vcmp.gt.f32.partialorder %v3422, 0.0
    %vm4892 = vcmp.gt.f32.partialorder %v3872, 0.0
    %vm4893 = vcmp.gt.f32.partialorder %v3874, 0.0
    %vm4894 = vcmp.gt.f32.partialorder %v4324, 0.0
    %vm4895 = vcmp.gt.f32.partialorder %v4326, 0.0
    %vm4896 = vcmp.gt.f32.partialorder %v4776, 0.0
    %vm4897 = vcmp.gt.f32.partialorder %v4778, 0.0
    %vm4898 = vcmp.gt.f32.partialorder %v3424, 0.0
    %vm4899 = vcmp.gt.f32.partialorder %v3426, 0.0
    %vm4900 = vcmp.gt.f32.partialorder %v3876, 0.0
    %vm4901 = vcmp.gt.f32.partialorder %v3878, 0.0
    %vm4902 = vcmp.gt.f32.partialorder %v4328, 0.0
    %vm4903 = vcmp.gt.f32.partialorder %v4330, 0.0
    %vm4904 = vcmp.gt.f32.partialorder %v4780, 0.0
    %vm4905 = vcmp.gt.f32.partialorder %v4782, 0.0
    %vm4906 = vcmp.gt.f32.partialorder %v3430, 0.0
    %vm4907 = vcmp.gt.f32.partialorder %v3432, 0.0
    %vm4908 = vcmp.gt.f32.partialorder %v3882, 0.0
    %vm4909 = vcmp.gt.f32.partialorder %v3884, 0.0
    %vm4910 = vcmp.gt.f32.partialorder %v4334, 0.0
    %vm4911 = vcmp.gt.f32.partialorder %v4336, 0.0
    %vm4912 = vcmp.gt.f32.partialorder %v4786, 0.0
    %vm4913 = vcmp.gt.f32.partialorder %v4788, 0.0
    %vm4914 = vcmp.gt.f32.partialorder %v3434, 0.0
    %vm4915 = vcmp.gt.f32.partialorder %v3436, 0.0
    %vm4916 = vcmp.gt.f32.partialorder %v3886, 0.0
    %vm4917 = vcmp.gt.f32.partialorder %v3888, 0.0
    %vm4918 = vcmp.gt.f32.partialorder %v4338, 0.0
    %vm4919 = vcmp.gt.f32.partialorder %v4340, 0.0
    %vm4920 = vcmp.gt.f32.partialorder %v4790, 0.0
    %vm4921 = vcmp.gt.f32.partialorder %v4792, 0.0
    %v4922 = vmul.f32 %v3360, 0.2
    %v4923 = vmul.f32 %v3362, 0.2
    %v4924 = vmul.f32 %v3812, 0.2
    %v4925 = vmul.f32 %v3814, 0.2
    %v4926 = vmul.f32 %v4264, 0.2
    %v4927 = vmul.f32 %v4266, 0.2
    %v4928 = vmul.f32 %v4716, 0.2
    %v4929 = vmul.f32 %v4718, 0.2
    %v4930 = vmul.f32 %v3364, 0.2
    %v4931 = vmul.f32 %v3366, 0.2
    %v4932 = vmul.f32 %v3816, 0.2
    %v4933 = vmul.f32 %v3818, 0.2
    %v4934 = vmul.f32 %v4268, 0.2
    %v4935 = vmul.f32 %v4270, 0.2
    %v4936 = vmul.f32 %v4720, 0.2
    %v4937 = vmul.f32 %v4722, 0.2
    %v4938 = vmul.f32 %v3370, 0.2
    %v4939 = vmul.f32 %v3372, 0.2
    %v4940 = vmul.f32 %v3822, 0.2
    %v4941 = vmul.f32 %v3824, 0.2
    %v4942 = vmul.f32 %v4274, 0.2
    %v4943 = vmul.f32 %v4276, 0.2
    %v4944 = vmul.f32 %v4726, 0.2
    %v4945 = vmul.f32 %v4728, 0.2
    %v4946 = vmul.f32 %v3374, 0.2
    %v4947 = vmul.f32 %v3376, 0.2
    %v4948 = vmul.f32 %v3826, 0.2
    %v4949 = vmul.f32 %v3828, 0.2
    %v4950 = vmul.f32 %v4278, 0.2
    %v4951 = vmul.f32 %v4280, 0.2
    %v4952 = vmul.f32 %v4730, 0.2
    %v4953 = vmul.f32 %v4732, 0.2
    %v4954 = vmul.f32 %v3380, 0.2
    %v4955 = vmul.f32 %v3382, 0.2
    %v4956 = vmul.f32 %v3832, 0.2
    %v4957 = vmul.f32 %v3834, 0.2
    %v4958 = vmul.f32 %v4284, 0.2
    %v4959 = vmul.f32 %v4286, 0.2
    %v4960 = vmul.f32 %v4736, 0.2
    %v4961 = vmul.f32 %v4738, 0.2
    %v4962 = vmul.f32 %v3384, 0.2
    %v4963 = vmul.f32 %v3386, 0.2
    %v4964 = vmul.f32 %v3836, 0.2
    %v4965 = vmul.f32 %v3838, 0.2
    %v4966 = vmul.f32 %v4288, 0.2
    %v4967 = vmul.f32 %v4290, 0.2
    %v4968 = vmul.f32 %v4740, 0.2
    %v4969 = vmul.f32 %v4742, 0.2
    %v4970 = vmul.f32 %v3390, 0.2
    %v4971 = vmul.f32 %v3392, 0.2
    %v4972 = vmul.f32 %v3842, 0.2
    %v4973 = vmul.f32 %v3844, 0.2
    %v4974 = vmul.f32 %v4294, 0.2
    %v4975 = vmul.f32 %v4296, 0.2
    %v4976 = vmul.f32 %v4746, 0.2
    %v4977 = vmul.f32 %v4748, 0.2
    %v4978 = vmul.f32 %v3394, 0.2
    %v4979 = vmul.f32 %v3396, 0.2
    %v4980 = vmul.f32 %v3846, 0.2
    %v4981 = vmul.f32 %v3848, 0.2
    %v4982 = vmul.f32 %v4298, 0.2
    %v4983 = vmul.f32 %v4300, 0.2
    %v4984 = vmul.f32 %v4750, 0.2
    %v4985 = vmul.f32 %v4752, 0.2
    %v4986 = vmul.f32 %v3400, 0.2
    %v4987 = vmul.f32 %v3402, 0.2
    %v4988 = vmul.f32 %v3852, 0.2
    %v4989 = vmul.f32 %v3854, 0.2
    %v4990 = vmul.f32 %v4304, 0.2
    %v4991 = vmul.f32 %v4306, 0.2
    %v4992 = vmul.f32 %v4756, 0.2
    %v4993 = vmul.f32 %v4758, 0.2
    %v4994 = vmul.f32 %v3404, 0.2
    %v4995 = vmul.f32 %v3406, 0.2
    %v4996 = vmul.f32 %v3856, 0.2
    %v4997 = vmul.f32 %v3858, 0.2
    %v4998 = vmul.f32 %v4308, 0.2
    %v4999 = vmul.f32 %v4310, 0.2
    %v5000 = vmul.f32 %v4760, 0.2
    %v5001 = vmul.f32 %v4762, 0.2
    %v5002 = vmul.f32 %v3410, 0.2
    %v5003 = vmul.f32 %v3412, 0.2
    %v5004 = vmul.f32 %v3862, 0.2
    %v5005 = vmul.f32 %v3864, 0.2
    %v5006 = vmul.f32 %v4314, 0.2
    %v5007 = vmul.f32 %v4316, 0.2
    %v5008 = vmul.f32 %v4766, 0.2
    %v5009 = vmul.f32 %v4768, 0.2
    %v5010 = vmul.f32 %v3414, 0.2
    %v5011 = vmul.f32 %v3416, 0.2
    %v5012 = vmul.f32 %v3866, 0.2
    %v5013 = vmul.f32 %v3868, 0.2
    %v5014 = vmul.f32 %v4318, 0.2
    %v5015 = vmul.f32 %v4320, 0.2
    %v5016 = vmul.f32 %v4770, 0.2
    %v5017 = vmul.f32 %v4772, 0.2
    %v5018 = vmul.f32 %v3420, 0.2
    %v5019 = vmul.f32 %v3422, 0.2
    %v5020 = vmul.f32 %v3872, 0.2
    %v5021 = vmul.f32 %v3874, 0.2
    %v5022 = vmul.f32 %v4324, 0.2
    %v5023 = vmul.f32 %v4326, 0.2
    %v5024 = vmul.f32 %v4776, 0.2
    %v5025 = vmul.f32 %v4778, 0.2
    %v5026 = vmul.f32 %v3424, 0.2
    %v5027 = vmul.f32 %v3426, 0.2
    %v5028 = vmul.f32 %v3876, 0.2
    %v5029 = vmul.f32 %v3878, 0.2
    %v5030 = vmul.f32 %v4328, 0.2
    %v5031 = vmul.f32 %v4330, 0.2
    %v5032 = vmul.f32 %v4780, 0.2
    %v5033 = vmul.f32 %v4782, 0.2
    %v5034 = vmul.f32 %v3430, 0.2
    %v5035 = vmul.f32 %v3432, 0.2
    %v5036 = vmul.f32 %v3882, 0.2
    %v5037 = vmul.f32 %v3884, 0.2
    %v5038 = vmul.f32 %v4334, 0.2
    %v5039 = vmul.f32 %v4336, 0.2
    %v5040 = vmul.f32 %v4786, 0.2
    %v5041 = vmul.f32 %v4788, 0.2
    %v5042 = vmul.f32 %v3434, 0.2
    %v5043 = vmul.f32 %v3436, 0.2
    %v5044 = vmul.f32 %v3886, 0.2
    %v5045 = vmul.f32 %v3888, 0.2
    %v5046 = vmul.f32 %v4338, 0.2
    %v5047 = vmul.f32 %v4340, 0.2
    %v5048 = vmul.f32 %v4790, 0.2
    %v5049 = vmul.f32 %v4792, 0.2
    %v5050 = vsel %vm4794, %v3360, %v4922
    %v5051 = vsel %vm4795, %v3362, %v4923
    %v5052 = vsel %vm4796, %v3812, %v4924
    %v5053 = vsel %vm4797, %v3814, %v4925
    %v5054 = vsel %vm4798, %v4264, %v4926
    %v5055 = vsel %vm4799, %v4266, %v4927
    %v5056 = vsel %vm4800, %v4716, %v4928
    %v5057 = vsel %vm4801, %v4718, %v4929
    %v5058 = vsel %vm4802, %v3364, %v4930
    %v5059 = vsel %vm4803, %v3366, %v4931
    %v5060 = vsel %vm4804, %v3816, %v4932
    %v5061 = vsel %vm4805, %v3818, %v4933
    %v5062 = vsel %vm4806, %v4268, %v4934
    %v5063 = vsel %vm4807, %v4270, %v4935
    %v5064 = vsel %vm4808, %v4720, %v4936
    %v5065 = vsel %vm4809, %v4722, %v4937
    %v5066 = vsel %vm4810, %v3370, %v4938
    %v5067 = vsel %vm4811, %v3372, %v4939
    %v5068 = vsel %vm4812, %v3822, %v4940
    %v5069 = vsel %vm4813, %v3824, %v4941
    %v5070 = vsel %vm4814, %v4274, %v4942
    %v5071 = vsel %vm4815, %v4276, %v4943
    %v5072 = vsel %vm4816, %v4726, %v4944
    %v5073 = vsel %vm4817, %v4728, %v4945
    %v5074 = vsel %vm4818, %v3374, %v4946
    %v5075 = vsel %vm4819, %v3376, %v4947
    %v5076 = vsel %vm4820, %v3826, %v4948
    %v5077 = vsel %vm4821, %v3828, %v4949
    %v5078 = vsel %vm4822, %v4278, %v4950
    %v5079 = vsel %vm4823, %v4280, %v4951
    %v5080 = vsel %vm4824, %v4730, %v4952
    %v5081 = vsel %vm4825, %v4732, %v4953
    %v5082 = vsel %vm4826, %v3380, %v4954
    %v5083 = vsel %vm4827, %v3382, %v4955
    %v5084 = vsel %vm4828, %v3832, %v4956
    %v5085 = vsel %vm4829, %v3834, %v4957
    %v5086 = vsel %vm4830, %v4284, %v4958
    %v5087 = vsel %vm4831, %v4286, %v4959
    %v5088 = vsel %vm4832, %v4736, %v4960
    %v5089 = vsel %vm4833, %v4738, %v4961
    %v5090 = vsel %vm4834, %v3384, %v4962
    %v5091 = vsel %vm4835, %v3386, %v4963
    %v5092 = vsel %vm4836, %v3836, %v4964
    %v5093 = vsel %vm4837, %v3838, %v4965
    %v5094 = vsel %vm4838, %v4288, %v4966
    %v5095 = vsel %vm4839, %v4290, %v4967
    %v5096 = vsel %vm4840, %v4740, %v4968
    %v5097 = vsel %vm4841, %v4742, %v4969
    %v5098 = vsel %vm4842, %v3390, %v4970
    %v5099 = vsel %vm4843, %v3392, %v4971
    %v5100 = vsel %vm4844, %v3842, %v4972
    %v5101 = vsel %vm4845, %v3844, %v4973
    %v5102 = vsel %vm4846, %v4294, %v4974
    %v5103 = vsel %vm4847, %v4296, %v4975
    %v5104 = vsel %vm4848, %v4746, %v4976
    %v5105 = vsel %vm4849, %v4748, %v4977
    %v5106 = vsel %vm4850, %v3394, %v4978
    %v5107 = vsel %vm4851, %v3396, %v4979
    %v5108 = vsel %vm4852, %v3846, %v4980
    %v5109 = vsel %vm4853, %v3848, %v4981
    %v5110 = vsel %vm4854, %v4298, %v4982
    %v5111 = vsel %vm4855, %v4300, %v4983
    %v5112 = vsel %vm4856, %v4750, %v4984
    %v5113 = vsel %vm4857, %v4752, %v4985
    %v5114 = vsel %vm4858, %v3400, %v4986
    %v5115 = vsel %vm4859, %v3402, %v4987
    %v5116 = vsel %vm4860, %v3852, %v4988
    %v5117 = vsel %vm4861, %v3854, %v4989
    %v5118 = vsel %vm4862, %v4304, %v4990
    %v5119 = vsel %vm4863, %v4306, %v4991
    %v5120 = vsel %vm4864, %v4756, %v4992
    %v5121 = vsel %vm4865, %v4758, %v4993
    %v5122 = vsel %vm4866, %v3404, %v4994
    %v5123 = vsel %vm4867, %v3406, %v4995
    %v5124 = vsel %vm4868, %v3856, %v4996
    %v5125 = vsel %vm4869, %v3858, %v4997
    %v5126 = vsel %vm4870, %v4308, %v4998
    %v5127 = vsel %vm4871, %v4310, %v4999
    %v5128 = vsel %vm4872, %v4760, %v5000
    %v5129 = vsel %vm4873, %v4762, %v5001
    %v5130 = vsel %vm4874, %v3410, %v5002
    %v5131 = vsel %vm4875, %v3412, %v5003
    %v5132 = vsel %vm4876, %v3862, %v5004
    %v5133 = vsel %vm4877, %v3864, %v5005
    %v5134 = vsel %vm4878, %v4314, %v5006
    %v5135 = vsel %vm4879, %v4316, %v5007
    %v5136 = vsel %vm4880, %v4766, %v5008
    %v5137 = vsel %vm4881, %v4768, %v5009
    %v5138 = vsel %vm4882, %v3414, %v5010
    %v5139 = vsel %vm4883, %v3416, %v5011
    %v5140 = vsel %vm4884, %v3866, %v5012
    %v5141 = vsel %vm4885, %v3868, %v5013
    %v5142 = vsel %vm4886, %v4318, %v5014
    %v5143 = vsel %vm4887, %v4320, %v5015
    %v5144 = vsel %vm4888, %v4770, %v5016
    %v5145 = vsel %vm4889, %v4772, %v5017
    %v5146 = vsel %vm4890, %v3420, %v5018
    %v5147 = vsel %vm4891, %v3422, %v5019
    %v5148 = vsel %vm4892, %v3872, %v5020
    %v5149 = vsel %vm4893, %v3874, %v5021
    %v5150 = vsel %vm4894, %v4324, %v5022
    %v5151 = vsel %vm4895, %v4326, %v5023
    %v5152 = vsel %vm4896, %v4776, %v5024
    %v5153 = vsel %vm4897, %v4778, %v5025
    %v5154 = vsel %vm4898, %v3424, %v5026
    %v5155 = vsel %vm4899, %v3426, %v5027
    %v5156 = vsel %vm4900, %v3876, %v5028
    %v5157 = vsel %vm4901, %v3878, %v5029
    %v5158 = vsel %vm4902, %v4328, %v5030
    %v5159 = vsel %vm4903, %v4330, %v5031
    %v5160 = vsel %vm4904, %v4780, %v5032
    %v5161 = vsel %vm4905, %v4782, %v5033
    %v5162 = vsel %vm4906, %v3430, %v5034
    %v5163 = vsel %vm4907, %v3432, %v5035
    %v5164 = vsel %vm4908, %v3882, %v5036
    %v5165 = vsel %vm4909, %v3884, %v5037
    %v5166 = vsel %vm4910, %v4334, %v5038
    %v5167 = vsel %vm4911, %v4336, %v5039
    %v5168 = vsel %vm4912, %v4786, %v5040
    %v5169 = vsel %vm4913, %v4788, %v5041
    %v5170 = vsel %vm4914, %v3434, %v5042
    %v5171 = vsel %vm4915, %v3436, %v5043
    %v5172 = vsel %vm4916, %v3886, %v5044
    %v5173 = vsel %vm4917, %v3888, %v5045
    %v5174 = vsel %vm4918, %v4338, %v5046
    %v5175 = vsel %vm4919, %v4340, %v5047
    %v5176 = vsel %vm4920, %v4790, %v5048
    %v5177 = vsel %vm4921, %v4792, %v5049
    %v5178 = vpack.c.bf16 %v5058, %v5050
    %v5179 = vpack.c.bf16 %v5059, %v5051
    %v5180 = vpack.c.bf16 %v5060, %v5052
    %v5181 = vpack.c.bf16 %v5061, %v5053
    %v5182 = vpack.c.bf16 %v5062, %v5054
    %v5183 = vpack.c.bf16 %v5063, %v5055
    %v5184 = vpack.c.bf16 %v5064, %v5056
    %v5185 = vpack.c.bf16 %v5065, %v5057
    %v5186 = vpack.c.bf16 %v5074, %v5066
    %v5187 = vpack.c.bf16 %v5075, %v5067
    %v5188 = vpack.c.bf16 %v5076, %v5068
    %v5189 = vpack.c.bf16 %v5077, %v5069
    %v5190 = vpack.c.bf16 %v5078, %v5070
    %v5191 = vpack.c.bf16 %v5079, %v5071
    %v5192 = vpack.c.bf16 %v5080, %v5072
    %v5193 = vpack.c.bf16 %v5081, %v5073
    %v5194 = vpack.c.bf16 %v5090, %v5082
    %v5195 = vpack.c.bf16 %v5091, %v5083
    %v5196 = vpack.c.bf16 %v5092, %v5084
    %v5197 = vpack.c.bf16 %v5093, %v5085
    %v5198 = vpack.c.bf16 %v5094, %v5086
    %v5199 = vpack.c.bf16 %v5095, %v5087
    %v5200 = vpack.c.bf16 %v5096, %v5088
    %v5201 = vpack.c.bf16 %v5097, %v5089
    %v5202 = vpack.c.bf16 %v5106, %v5098
    %v5203 = vpack.c.bf16 %v5107, %v5099
    %v5204 = vpack.c.bf16 %v5108, %v5100
    %v5205 = vpack.c.bf16 %v5109, %v5101
    %v5206 = vpack.c.bf16 %v5110, %v5102
    %v5207 = vpack.c.bf16 %v5111, %v5103
    %v5208 = vpack.c.bf16 %v5112, %v5104
    %v5209 = vpack.c.bf16 %v5113, %v5105
    %v5210 = vpack.c.bf16 %v5122, %v5114
    %v5211 = vpack.c.bf16 %v5123, %v5115
    %v5212 = vpack.c.bf16 %v5124, %v5116
    %v5213 = vpack.c.bf16 %v5125, %v5117
    %v5214 = vpack.c.bf16 %v5126, %v5118
    %v5215 = vpack.c.bf16 %v5127, %v5119
    %v5216 = vpack.c.bf16 %v5128, %v5120
    %v5217 = vpack.c.bf16 %v5129, %v5121
    %v5218 = vpack.c.bf16 %v5138, %v5130
    %v5219 = vpack.c.bf16 %v5139, %v5131
    %v5220 = vpack.c.bf16 %v5140, %v5132
    %v5221 = vpack.c.bf16 %v5141, %v5133
    %v5222 = vpack.c.bf16 %v5142, %v5134
    %v5223 = vpack.c.bf16 %v5143, %v5135
    %v5224 = vpack.c.bf16 %v5144, %v5136
    %v5225 = vpack.c.bf16 %v5145, %v5137
    %v5226 = vpack.c.bf16 %v5154, %v5146
    %v5227 = vpack.c.bf16 %v5155, %v5147
    %v5228 = vpack.c.bf16 %v5156, %v5148
    %v5229 = vpack.c.bf16 %v5157, %v5149
    %v5230 = vpack.c.bf16 %v5158, %v5150
    %v5231 = vpack.c.bf16 %v5159, %v5151
    %v5232 = vpack.c.bf16 %v5160, %v5152
    %v5233 = vpack.c.bf16 %v5161, %v5153
    %v5234 = vpack.c.bf16 %v5170, %v5162
    %v5235 = vpack.c.bf16 %v5171, %v5163
    %v5236 = vpack.c.bf16 %v5172, %v5164
    %v5237 = vpack.c.bf16 %v5173, %v5165
    %v5238 = vpack.c.bf16 %v5174, %v5166
    %v5239 = vpack.c.bf16 %v5175, %v5167
    %v5240 = vpack.c.bf16 %v5176, %v5168
    %v5241 = vpack.c.bf16 %v5177, %v5169
    %v5242 = vld [vmem:[#allocation7] sm:$0xff]
    %v5243 = vld [vmem:[#allocation7 + $0x8] sm:$0xff]
    %v5244 = vld [vmem:[#allocation7 + $0x10] sm:$0xff]
    %v5245 = vld [vmem:[#allocation7 + $0x18] sm:$0xff]
    %v5246 = vld [vmem:[#allocation7 + $0x20] sm:$0xff]
    %v5247 = vld [vmem:[#allocation7 + $0x28] sm:$0xff]
    %v5248 = vld [vmem:[#allocation7 + $0x30] sm:$0xff]
    %v5249 = vld [vmem:[#allocation7 + $0x38] sm:$0xff]
    %v5250 = vld [vmem:[#allocation7 + $0x40] sm:$0xff]
    %v5251 = vld [vmem:[#allocation7 + $0x48] sm:$0xff]
    %v5252 = vld [vmem:[#allocation7 + $0x50] sm:$0xff]
    %v5253 = vld [vmem:[#allocation7 + $0x58] sm:$0xff]
    %v5254 = vld [vmem:[#allocation7 + $0x60] sm:$0xff]
    %v5255 = vld [vmem:[#allocation7 + $0x68] sm:$0xff]
    %v5256 = vld [vmem:[#allocation7 + $0x70] sm:$0xff]
    %v5257 = vld [vmem:[#allocation7 + $0x78] sm:$0xff]
    %v5258 = vld [vmem:[#allocation7 + $0x80] sm:$0xff]
    %v5259 = vld [vmem:[#allocation7 + $0x88] sm:$0xff]
    %v5260 = vld [vmem:[#allocation7 + $0x90] sm:$0xff]
    %v5261 = vld [vmem:[#allocation7 + $0x98] sm:$0xff]
    %v5262 = vld [vmem:[#allocation7 + $0xa0] sm:$0xff]
    %v5263 = vld [vmem:[#allocation7 + $0xa8] sm:$0xff]
    %v5264 = vld [vmem:[#allocation7 + $0xb0] sm:$0xff]
    %v5265 = vld [vmem:[#allocation7 + $0xb8] sm:$0xff]
    %v5266 = vld [vmem:[#allocation7 + $0xc0] sm:$0xff]
    %v5267 = vld [vmem:[#allocation7 + $0xc8] sm:$0xff]
    %v5268 = vld [vmem:[#allocation7 + $0xd0] sm:$0xff]
    %v5269 = vld [vmem:[#allocation7 + $0xd8] sm:$0xff]
    %v5270 = vld [vmem:[#allocation7 + $0xe0] sm:$0xff]
    %v5271 = vld [vmem:[#allocation7 + $0xe8] sm:$0xff]
    %v5272 = vld [vmem:[#allocation7 + $0xf0] sm:$0xff]
    %v5273 = vld [vmem:[#allocation7 + $0xf8] sm:$0xff]
    %v5274 = vld [vmem:[#allocation7 + $0x100] sm:$0xff]
    %v5275 = vld [vmem:[#allocation7 + $0x108] sm:$0xff]
    %v5276 = vld [vmem:[#allocation7 + $0x110] sm:$0xff]
    %v5277 = vld [vmem:[#allocation7 + $0x118] sm:$0xff]
    %v5278 = vld [vmem:[#allocation7 + $0x120] sm:$0xff]
    %v5279 = vld [vmem:[#allocation7 + $0x128] sm:$0xff]
    %v5280 = vld [vmem:[#allocation7 + $0x130] sm:$0xff]
    %v5281 = vld [vmem:[#allocation7 + $0x138] sm:$0xff]
    %v5282 = vld [vmem:[#allocation7 + $0x140] sm:$0xff]
    %v5283 = vld [vmem:[#allocation7 + $0x148] sm:$0xff]
    %v5284 = vld [vmem:[#allocation7 + $0x150] sm:$0xff]
    %v5285 = vld [vmem:[#allocation7 + $0x158] sm:$0xff]
    %v5286 = vld [vmem:[#allocation7 + $0x160] sm:$0xff]
    %v5287 = vld [vmem:[#allocation7 + $0x168] sm:$0xff]
    %v5288 = vld [vmem:[#allocation7 + $0x170] sm:$0xff]
    %v5289 = vld [vmem:[#allocation7 + $0x178] sm:$0xff]
    %v5290 = vld [vmem:[#allocation7 + $0x180] sm:$0xff]
    %v5291 = vld [vmem:[#allocation7 + $0x188] sm:$0xff]
    %v5292 = vld [vmem:[#allocation7 + $0x190] sm:$0xff]
    %v5293 = vld [vmem:[#allocation7 + $0x198] sm:$0xff]
    %v5294 = vld [vmem:[#allocation7 + $0x1a0] sm:$0xff]
    %v5295 = vld [vmem:[#allocation7 + $0x1a8] sm:$0xff]
    %v5296 = vld [vmem:[#allocation7 + $0x1b0] sm:$0xff]
    %v5297 = vld [vmem:[#allocation7 + $0x1b8] sm:$0xff]
    %v5298 = vld [vmem:[#allocation7 + $0x1c0] sm:$0xff]
    %v5299 = vld [vmem:[#allocation7 + $0x1c8] sm:$0xff]
    %v5300 = vld [vmem:[#allocation7 + $0x1d0] sm:$0xff]
    %v5301 = vld [vmem:[#allocation7 + $0x1d8] sm:$0xff]
    %v5302 = vld [vmem:[#allocation7 + $0x1e0] sm:$0xff]
    %v5303 = vld [vmem:[#allocation7 + $0x1e8] sm:$0xff]
    %v5304 = vld [vmem:[#allocation7 + $0x1f0] sm:$0xff]
    %v5305 = vld [vmem:[#allocation7 + $0x1f8] sm:$0xff]
    %v5306 = vld [vmem:[#allocation7 + $0x200] sm:$0xff]
    %v5307 = vld [vmem:[#allocation7 + $0x208] sm:$0xff]
    %v5308 = vld [vmem:[#allocation7 + $0x210] sm:$0xff]
    %v5309 = vld [vmem:[#allocation7 + $0x218] sm:$0xff]
    %v5310 = vld [vmem:[#allocation7 + $0x220] sm:$0xff]
    %v5311 = vld [vmem:[#allocation7 + $0x228] sm:$0xff]
    %v5312 = vld [vmem:[#allocation7 + $0x230] sm:$0xff]
    %v5313 = vld [vmem:[#allocation7 + $0x238] sm:$0xff]
    %v5314 = vld [vmem:[#allocation7 + $0x240] sm:$0xff]
    %v5315 = vld [vmem:[#allocation7 + $0x248] sm:$0xff]
    %v5316 = vld [vmem:[#allocation7 + $0x250] sm:$0xff]
    %v5317 = vld [vmem:[#allocation7 + $0x258] sm:$0xff]
    %v5318 = vld [vmem:[#allocation7 + $0x260] sm:$0xff]
    %v5319 = vld [vmem:[#allocation7 + $0x268] sm:$0xff]
    %v5320 = vld [vmem:[#allocation7 + $0x270] sm:$0xff]
    %v5321 = vld [vmem:[#allocation7 + $0x278] sm:$0xff]
    %v5322 = vld [vmem:[#allocation7 + $0x280] sm:$0xff]
    %v5323 = vld [vmem:[#allocation7 + $0x288] sm:$0xff]
    %v5324 = vld [vmem:[#allocation7 + $0x290] sm:$0xff]
    %v5325 = vld [vmem:[#allocation7 + $0x298] sm:$0xff]
    %v5326 = vld [vmem:[#allocation7 + $0x2a0] sm:$0xff]
    %v5327 = vld [vmem:[#allocation7 + $0x2a8] sm:$0xff]
    %v5328 = vld [vmem:[#allocation7 + $0x2b0] sm:$0xff]
    %v5329 = vld [vmem:[#allocation7 + $0x2b8] sm:$0xff]
    %v5330 = vld [vmem:[#allocation7 + $0x2c0] sm:$0xff]
    %v5331 = vld [vmem:[#allocation7 + $0x2c8] sm:$0xff]
    %v5332 = vld [vmem:[#allocation7 + $0x2d0] sm:$0xff]
    %v5333 = vld [vmem:[#allocation7 + $0x2d8] sm:$0xff]
    %v5334 = vld [vmem:[#allocation7 + $0x2e0] sm:$0xff]
    %v5335 = vld [vmem:[#allocation7 + $0x2e8] sm:$0xff]
    %v5336 = vld [vmem:[#allocation7 + $0x2f0] sm:$0xff]
    %v5337 = vld [vmem:[#allocation7 + $0x2f8] sm:$0xff]
    %v5338 = vld [vmem:[#allocation7 + $0x300] sm:$0xff]
    %v5339 = vld [vmem:[#allocation7 + $0x308] sm:$0xff]
    %v5340 = vld [vmem:[#allocation7 + $0x310] sm:$0xff]
    %v5341 = vld [vmem:[#allocation7 + $0x318] sm:$0xff]
    %v5342 = vld [vmem:[#allocation7 + $0x320] sm:$0xff]
    %v5343 = vld [vmem:[#allocation7 + $0x328] sm:$0xff]
    %v5344 = vld [vmem:[#allocation7 + $0x330] sm:$0xff]
    %v5345 = vld [vmem:[#allocation7 + $0x338] sm:$0xff]
    %v5346 = vld [vmem:[#allocation7 + $0x340] sm:$0xff]
    %v5347 = vld [vmem:[#allocation7 + $0x348] sm:$0xff]
    %v5348 = vld [vmem:[#allocation7 + $0x350] sm:$0xff]
    %v5349 = vld [vmem:[#allocation7 + $0x358] sm:$0xff]
    %v5350 = vld [vmem:[#allocation7 + $0x360] sm:$0xff]
    %v5351 = vld [vmem:[#allocation7 + $0x368] sm:$0xff]
    %v5352 = vld [vmem:[#allocation7 + $0x370] sm:$0xff]
    %v5353 = vld [vmem:[#allocation7 + $0x378] sm:$0xff]
    %v5354 = vld [vmem:[#allocation7 + $0x380] sm:$0xff]
    %v5355 = vld [vmem:[#allocation7 + $0x388] sm:$0xff]
    %v5356 = vld [vmem:[#allocation7 + $0x390] sm:$0xff]
    %v5357 = vld [vmem:[#allocation7 + $0x398] sm:$0xff]
    %v5358 = vld [vmem:[#allocation7 + $0x3a0] sm:$0xff]
    %v5359 = vld [vmem:[#allocation7 + $0x3a8] sm:$0xff]
    %v5360 = vld [vmem:[#allocation7 + $0x3b0] sm:$0xff]
    %v5361 = vld [vmem:[#allocation7 + $0x3b8] sm:$0xff]
    %v5362 = vld [vmem:[#allocation7 + $0x3c0] sm:$0xff]
    %v5363 = vld [vmem:[#allocation7 + $0x3c8] sm:$0xff]
    %v5364 = vld [vmem:[#allocation7 + $0x3d0] sm:$0xff]
    %v5365 = vld [vmem:[#allocation7 + $0x3d8] sm:$0xff]
    %v5366 = vld [vmem:[#allocation7 + $0x3e0] sm:$0xff]
    %v5367 = vld [vmem:[#allocation7 + $0x3e8] sm:$0xff]
    %v5368 = vld [vmem:[#allocation7 + $0x3f0] sm:$0xff]
    %v5369 = vld [vmem:[#allocation7 + $0x3f8] sm:$0xff]
    %v5370 = vld [vmem:[#allocation7 + $0x400] sm:$0xff]
    %v5371 = vld [vmem:[#allocation7 + $0x408] sm:$0xff]
    %v5372 = vld [vmem:[#allocation7 + $0x410] sm:$0xff]
    %v5373 = vld [vmem:[#allocation7 + $0x418] sm:$0xff]
    %v5374 = vld [vmem:[#allocation7 + $0x420] sm:$0xff]
    %v5375 = vld [vmem:[#allocation7 + $0x428] sm:$0xff]
    %v5376 = vld [vmem:[#allocation7 + $0x430] sm:$0xff]
    %v5377 = vld [vmem:[#allocation7 + $0x438] sm:$0xff]
    %v5378 = vld [vmem:[#allocation7 + $0x440] sm:$0xff]
    %v5379 = vld [vmem:[#allocation7 + $0x448] sm:$0xff]
    %v5380 = vld [vmem:[#allocation7 + $0x450] sm:$0xff]
    %v5381 = vld [vmem:[#allocation7 + $0x458] sm:$0xff]
    %v5382 = vld [vmem:[#allocation7 + $0x460] sm:$0xff]
    %v5383 = vld [vmem:[#allocation7 + $0x468] sm:$0xff]
    %v5384 = vld [vmem:[#allocation7 + $0x470] sm:$0xff]
    %v5385 = vld [vmem:[#allocation7 + $0x478] sm:$0xff]
    %v5386 = vld [vmem:[#allocation7 + $0x480] sm:$0xff]
    %v5387 = vld [vmem:[#allocation7 + $0x488] sm:$0xff]
    %v5388 = vld [vmem:[#allocation7 + $0x490] sm:$0xff]
    %v5389 = vld [vmem:[#allocation7 + $0x498] sm:$0xff]
    %v5390 = vld [vmem:[#allocation7 + $0x4a0] sm:$0xff]
    %v5391 = vld [vmem:[#allocation7 + $0x4a8] sm:$0xff]
    %v5392 = vld [vmem:[#allocation7 + $0x4b0] sm:$0xff]
    %v5393 = vld [vmem:[#allocation7 + $0x4b8] sm:$0xff]
    %v5394 = vld [vmem:[#allocation7 + $0x4c0] sm:$0xff]
    %v5395 = vld [vmem:[#allocation7 + $0x4c8] sm:$0xff]
    %v5396 = vld [vmem:[#allocation7 + $0x4d0] sm:$0xff]
    %v5397 = vld [vmem:[#allocation7 + $0x4d8] sm:$0xff]
    %v5398 = vld [vmem:[#allocation7 + $0x4e0] sm:$0xff]
    %v5399 = vld [vmem:[#allocation7 + $0x4e8] sm:$0xff]
    %v5400 = vld [vmem:[#allocation7 + $0x4f0] sm:$0xff]
    %v5401 = vld [vmem:[#allocation7 + $0x4f8] sm:$0xff]
    %v5402 = vld [vmem:[#allocation7 + $0x500] sm:$0xff]
    %v5403 = vld [vmem:[#allocation7 + $0x508] sm:$0xff]
    %v5404 = vld [vmem:[#allocation7 + $0x510] sm:$0xff]
    %v5405 = vld [vmem:[#allocation7 + $0x518] sm:$0xff]
    %v5406 = vld [vmem:[#allocation7 + $0x520] sm:$0xff]
    %v5407 = vld [vmem:[#allocation7 + $0x528] sm:$0xff]
    %v5408 = vld [vmem:[#allocation7 + $0x530] sm:$0xff]
    %v5409 = vld [vmem:[#allocation7 + $0x538] sm:$0xff]
    %v5410 = vld [vmem:[#allocation7 + $0x540] sm:$0xff]
    %v5411 = vld [vmem:[#allocation7 + $0x548] sm:$0xff]
    %v5412 = vld [vmem:[#allocation7 + $0x550] sm:$0xff]
    %v5413 = vld [vmem:[#allocation7 + $0x558] sm:$0xff]
    %v5414 = vld [vmem:[#allocation7 + $0x560] sm:$0xff]
    %v5415 = vld [vmem:[#allocation7 + $0x568] sm:$0xff]
    %v5416 = vld [vmem:[#allocation7 + $0x570] sm:$0xff]
    %v5417 = vld [vmem:[#allocation7 + $0x578] sm:$0xff]
    %v5418 = vld [vmem:[#allocation7 + $0x580] sm:$0xff]
    %v5419 = vld [vmem:[#allocation7 + $0x588] sm:$0xff]
    %v5420 = vld [vmem:[#allocation7 + $0x590] sm:$0xff]
    %v5421 = vld [vmem:[#allocation7 + $0x598] sm:$0xff]
    %v5422 = vld [vmem:[#allocation7 + $0x5a0] sm:$0xff]
    %v5423 = vld [vmem:[#allocation7 + $0x5a8] sm:$0xff]
    %v5424 = vld [vmem:[#allocation7 + $0x5b0] sm:$0xff]
    %v5425 = vld [vmem:[#allocation7 + $0x5b8] sm:$0xff]
    %v5426 = vld [vmem:[#allocation7 + $0x5c0] sm:$0xff]
    %v5427 = vld [vmem:[#allocation7 + $0x5c8] sm:$0xff]
    %v5428 = vld [vmem:[#allocation7 + $0x5d0] sm:$0xff]
    %v5429 = vld [vmem:[#allocation7 + $0x5d8] sm:$0xff]
    %v5430 = vld [vmem:[#allocation7 + $0x5e0] sm:$0xff]
    %v5431 = vld [vmem:[#allocation7 + $0x5e8] sm:$0xff]
    %v5432 = vld [vmem:[#allocation7 + $0x5f0] sm:$0xff]
    %v5433 = vld [vmem:[#allocation7 + $0x5f8] sm:$0xff]
    %v5434 = vld [vmem:[#allocation7 + $0x600] sm:$0xff]
    %v5435 = vld [vmem:[#allocation7 + $0x608] sm:$0xff]
    %v5436 = vld [vmem:[#allocation7 + $0x610] sm:$0xff]
    %v5437 = vld [vmem:[#allocation7 + $0x618] sm:$0xff]
    %v5438 = vld [vmem:[#allocation7 + $0x620] sm:$0xff]
    %v5439 = vld [vmem:[#allocation7 + $0x628] sm:$0xff]
    %v5440 = vld [vmem:[#allocation7 + $0x630] sm:$0xff]
    %v5441 = vld [vmem:[#allocation7 + $0x638] sm:$0xff]
    %v5442 = vld [vmem:[#allocation7 + $0x640] sm:$0xff]
    %v5443 = vld [vmem:[#allocation7 + $0x648] sm:$0xff]
    %v5444 = vld [vmem:[#allocation7 + $0x650] sm:$0xff]
    %v5445 = vld [vmem:[#allocation7 + $0x658] sm:$0xff]
    %v5446 = vld [vmem:[#allocation7 + $0x660] sm:$0xff]
    %v5447 = vld [vmem:[#allocation7 + $0x668] sm:$0xff]
    %v5448 = vld [vmem:[#allocation7 + $0x670] sm:$0xff]
    %v5449 = vld [vmem:[#allocation7 + $0x678] sm:$0xff]
    %v5450 = vld [vmem:[#allocation7 + $0x680] sm:$0xff]
    %v5451 = vld [vmem:[#allocation7 + $0x688] sm:$0xff]
    %v5452 = vld [vmem:[#allocation7 + $0x690] sm:$0xff]
    %v5453 = vld [vmem:[#allocation7 + $0x698] sm:$0xff]
    %v5454 = vld [vmem:[#allocation7 + $0x6a0] sm:$0xff]
    %v5455 = vld [vmem:[#allocation7 + $0x6a8] sm:$0xff]
    %v5456 = vld [vmem:[#allocation7 + $0x6b0] sm:$0xff]
    %v5457 = vld [vmem:[#allocation7 + $0x6b8] sm:$0xff]
    %v5458 = vld [vmem:[#allocation7 + $0x6c0] sm:$0xff]
    %v5459 = vld [vmem:[#allocation7 + $0x6c8] sm:$0xff]
    %v5460 = vld [vmem:[#allocation7 + $0x6d0] sm:$0xff]
    %v5461 = vld [vmem:[#allocation7 + $0x6d8] sm:$0xff]
    %v5462 = vld [vmem:[#allocation7 + $0x6e0] sm:$0xff]
    %v5463 = vld [vmem:[#allocation7 + $0x6e8] sm:$0xff]
    %v5464 = vld [vmem:[#allocation7 + $0x6f0] sm:$0xff]
    %v5465 = vld [vmem:[#allocation7 + $0x6f8] sm:$0xff]
    %v5466 = vld [vmem:[#allocation7 + $0x700] sm:$0xff]
    %v5467 = vld [vmem:[#allocation7 + $0x708] sm:$0xff]
    %v5468 = vld [vmem:[#allocation7 + $0x710] sm:$0xff]
    %v5469 = vld [vmem:[#allocation7 + $0x718] sm:$0xff]
    %v5470 = vld [vmem:[#allocation7 + $0x720] sm:$0xff]
    %v5471 = vld [vmem:[#allocation7 + $0x728] sm:$0xff]
    %v5472 = vld [vmem:[#allocation7 + $0x730] sm:$0xff]
    %v5473 = vld [vmem:[#allocation7 + $0x738] sm:$0xff]
    %v5474 = vld [vmem:[#allocation7 + $0x740] sm:$0xff]
    %v5475 = vld [vmem:[#allocation7 + $0x748] sm:$0xff]
    %v5476 = vld [vmem:[#allocation7 + $0x750] sm:$0xff]
    %v5477 = vld [vmem:[#allocation7 + $0x758] sm:$0xff]
    %v5478 = vld [vmem:[#allocation7 + $0x760] sm:$0xff]
    %v5479 = vld [vmem:[#allocation7 + $0x768] sm:$0xff]
    %v5480 = vld [vmem:[#allocation7 + $0x770] sm:$0xff]
    %v5481 = vld [vmem:[#allocation7 + $0x778] sm:$0xff]
    %v5482 = vld [vmem:[#allocation7 + $0x780] sm:$0xff]
    %v5483 = vld [vmem:[#allocation7 + $0x788] sm:$0xff]
    %v5484 = vld [vmem:[#allocation7 + $0x790] sm:$0xff]
    %v5485 = vld [vmem:[#allocation7 + $0x798] sm:$0xff]
    %v5486 = vld [vmem:[#allocation7 + $0x7a0] sm:$0xff]
    %v5487 = vld [vmem:[#allocation7 + $0x7a8] sm:$0xff]
    %v5488 = vld [vmem:[#allocation7 + $0x7b0] sm:$0xff]
    %v5489 = vld [vmem:[#allocation7 + $0x7b8] sm:$0xff]
    %v5490 = vld [vmem:[#allocation7 + $0x7c0] sm:$0xff]
    %v5491 = vld [vmem:[#allocation7 + $0x7c8] sm:$0xff]
    %v5492 = vld [vmem:[#allocation7 + $0x7d0] sm:$0xff]
    %v5493 = vld [vmem:[#allocation7 + $0x7d8] sm:$0xff]
    %v5494 = vld [vmem:[#allocation7 + $0x7e0] sm:$0xff]
    %v5495 = vld [vmem:[#allocation7 + $0x7e8] sm:$0xff]
    %v5496 = vld [vmem:[#allocation7 + $0x7f0] sm:$0xff]
    %v5497 = vld [vmem:[#allocation7 + $0x7f8] sm:$0xff]
    %v5498 = vld [vmem:[#allocation8] sm:$0xf]
    %v5500 = vlaneseq
    %v5501 = vshrl.u32 %v5500, 7
    %v5502 = vsub.s32 0, %v5501
    %v5503 = vrot.slane %v5498, %v5502
    %v5504 = vlaneseq
    %v5505 = vshrl.u32 %v5504, 7
    %v5506 = vsub.s32 1, %v5505
    %v5507 = vrot.slane %v5498, %v5506
    %v5508 = vlaneseq
    %v5509 = vshrl.u32 %v5508, 7
    %v5510 = vsub.s32 2, %v5509
    %v5511 = vrot.slane %v5498, %v5510
    %v5512 = vlaneseq
    %v5513 = vshrl.u32 %v5512, 7
    %v5514 = vsub.s32 3, %v5513
    %v5515 = vrot.slane %v5498, %v5514
    %v5776 = vunpack.c.l.b16 %v5242
    %v5777 = vunpack.c.h.b16 %v5242
    %v5778 = vunpack.c.l.b16 %v5243
    %v5779 = vunpack.c.h.b16 %v5243
    %v5780 = vunpack.c.l.b16 %v5244
    %v5781 = vunpack.c.h.b16 %v5244
    %v5782 = vunpack.c.l.b16 %v5245
    %v5783 = vunpack.c.h.b16 %v5245
    %v5784 = vunpack.c.l.b16 %v5246
    %v5785 = vunpack.c.h.b16 %v5246
    %v5786 = vunpack.c.l.b16 %v5247
    %v5787 = vunpack.c.h.b16 %v5247
    %v5788 = vunpack.c.l.b16 %v5248
    %v5789 = vunpack.c.h.b16 %v5248
    %v5790 = vunpack.c.l.b16 %v5249
    %v5791 = vunpack.c.h.b16 %v5249
    %v5792 = vunpack.c.l.b16 %v5250
    %v5793 = vunpack.c.h.b16 %v5250
    %v5794 = vunpack.c.l.b16 %v5251
    %v5795 = vunpack.c.h.b16 %v5251
    %v5796 = vunpack.c.l.b16 %v5252
    %v5797 = vunpack.c.h.b16 %v5252
    %v5798 = vunpack.c.l.b16 %v5253
    %v5799 = vunpack.c.h.b16 %v5253
    %v5800 = vunpack.c.l.b16 %v5254
    %v5801 = vunpack.c.h.b16 %v5254
    %v5802 = vunpack.c.l.b16 %v5255
    %v5803 = vunpack.c.h.b16 %v5255
    %v5804 = vunpack.c.l.b16 %v5256
    %v5805 = vunpack.c.h.b16 %v5256
    %v5806 = vunpack.c.l.b16 %v5257
    %v5807 = vunpack.c.h.b16 %v5257
    %v5808 = vunpack.c.l.b16 %v5258
    %v5809 = vunpack.c.h.b16 %v5258
    %v5810 = vunpack.c.l.b16 %v5259
    %v5811 = vunpack.c.h.b16 %v5259
    %v5812 = vunpack.c.l.b16 %v5260
    %v5813 = vunpack.c.h.b16 %v5260
    %v5814 = vunpack.c.l.b16 %v5261
    %v5815 = vunpack.c.h.b16 %v5261
    %v5816 = vunpack.c.l.b16 %v5262
    %v5817 = vunpack.c.h.b16 %v5262
    %v5818 = vunpack.c.l.b16 %v5263
    %v5819 = vunpack.c.h.b16 %v5263
    %v5820 = vunpack.c.l.b16 %v5264
    %v5821 = vunpack.c.h.b16 %v5264
    %v5822 = vunpack.c.l.b16 %v5265
    %v5823 = vunpack.c.h.b16 %v5265
    %v5824 = vunpack.c.l.b16 %v5266
    %v5825 = vunpack.c.h.b16 %v5266
    %v5826 = vunpack.c.l.b16 %v5267
    %v5827 = vunpack.c.h.b16 %v5267
    %v5828 = vunpack.c.l.b16 %v5268
    %v5829 = vunpack.c.h.b16 %v5268
    %v5830 = vunpack.c.l.b16 %v5269
    %v5831 = vunpack.c.h.b16 %v5269
    %v5832 = vunpack.c.l.b16 %v5270
    %v5833 = vunpack.c.h.b16 %v5270
    %v5834 = vunpack.c.l.b16 %v5271
    %v5835 = vunpack.c.h.b16 %v5271
    %v5836 = vunpack.c.l.b16 %v5272
    %v5837 = vunpack.c.h.b16 %v5272
    %v5838 = vunpack.c.l.b16 %v5273
    %v5839 = vunpack.c.h.b16 %v5273
    %v5840 = vunpack.c.l.b16 %v5274
    %v5841 = vunpack.c.h.b16 %v5274
    %v5842 = vunpack.c.l.b16 %v5275
    %v5843 = vunpack.c.h.b16 %v5275
    %v5844 = vunpack.c.l.b16 %v5276
    %v5845 = vunpack.c.h.b16 %v5276
    %v5846 = vunpack.c.l.b16 %v5277
    %v5847 = vunpack.c.h.b16 %v5277
    %v5848 = vunpack.c.l.b16 %v5278
    %v5849 = vunpack.c.h.b16 %v5278
    %v5850 = vunpack.c.l.b16 %v5279
    %v5851 = vunpack.c.h.b16 %v5279
    %v5852 = vunpack.c.l.b16 %v5280
    %v5853 = vunpack.c.h.b16 %v5280
    %v5854 = vunpack.c.l.b16 %v5281
    %v5855 = vunpack.c.h.b16 %v5281
    %v5856 = vunpack.c.l.b16 %v5282
    %v5857 = vunpack.c.h.b16 %v5282
    %v5858 = vunpack.c.l.b16 %v5283
    %v5859 = vunpack.c.h.b16 %v5283
    %v5860 = vunpack.c.l.b16 %v5284
    %v5861 = vunpack.c.h.b16 %v5284
    %v5862 = vunpack.c.l.b16 %v5285
    %v5863 = vunpack.c.h.b16 %v5285
    %v5864 = vunpack.c.l.b16 %v5286
    %v5865 = vunpack.c.h.b16 %v5286
    %v5866 = vunpack.c.l.b16 %v5287
    %v5867 = vunpack.c.h.b16 %v5287
    %v5868 = vunpack.c.l.b16 %v5288
    %v5869 = vunpack.c.h.b16 %v5288
    %v5870 = vunpack.c.l.b16 %v5289
    %v5871 = vunpack.c.h.b16 %v5289
    %v5872 = vunpack.c.l.b16 %v5290
    %v5873 = vunpack.c.h.b16 %v5290
    %v5874 = vunpack.c.l.b16 %v5291
    %v5875 = vunpack.c.h.b16 %v5291
    %v5876 = vunpack.c.l.b16 %v5292
    %v5877 = vunpack.c.h.b16 %v5292
    %v5878 = vunpack.c.l.b16 %v5293
    %v5879 = vunpack.c.h.b16 %v5293
    %v5880 = vunpack.c.l.b16 %v5294
    %v5881 = vunpack.c.h.b16 %v5294
    %v5882 = vunpack.c.l.b16 %v5295
    %v5883 = vunpack.c.h.b16 %v5295
    %v5884 = vunpack.c.l.b16 %v5296
    %v5885 = vunpack.c.h.b16 %v5296
    %v5886 = vunpack.c.l.b16 %v5297
    %v5887 = vunpack.c.h.b16 %v5297
    %v5888 = vunpack.c.l.b16 %v5298
    %v5889 = vunpack.c.h.b16 %v5298
    %v5890 = vunpack.c.l.b16 %v5299
    %v5891 = vunpack.c.h.b16 %v5299
    %v5892 = vunpack.c.l.b16 %v5300
    %v5893 = vunpack.c.h.b16 %v5300
    %v5894 = vunpack.c.l.b16 %v5301
    %v5895 = vunpack.c.h.b16 %v5301
    %v5896 = vunpack.c.l.b16 %v5302
    %v5897 = vunpack.c.h.b16 %v5302
    %v5898 = vunpack.c.l.b16 %v5303
    %v5899 = vunpack.c.h.b16 %v5303
    %v5900 = vunpack.c.l.b16 %v5304
    %v5901 = vunpack.c.h.b16 %v5304
    %v5902 = vunpack.c.l.b16 %v5305
    %v5903 = vunpack.c.h.b16 %v5305
    %v5904 = vunpack.c.l.b16 %v5306
    %v5905 = vunpack.c.h.b16 %v5306
    %v5906 = vunpack.c.l.b16 %v5307
    %v5907 = vunpack.c.h.b16 %v5307
    %v5908 = vunpack.c.l.b16 %v5308
    %v5909 = vunpack.c.h.b16 %v5308
    %v5910 = vunpack.c.l.b16 %v5309
    %v5911 = vunpack.c.h.b16 %v5309
    %v5912 = vunpack.c.l.b16 %v5310
    %v5913 = vunpack.c.h.b16 %v5310
    %v5914 = vunpack.c.l.b16 %v5311
    %v5915 = vunpack.c.h.b16 %v5311
    %v5916 = vunpack.c.l.b16 %v5312
    %v5917 = vunpack.c.h.b16 %v5312
    %v5918 = vunpack.c.l.b16 %v5313
    %v5919 = vunpack.c.h.b16 %v5313
    %v5920 = vunpack.c.l.b16 %v5314
    %v5921 = vunpack.c.h.b16 %v5314
    %v5922 = vunpack.c.l.b16 %v5315
    %v5923 = vunpack.c.h.b16 %v5315
    %v5924 = vunpack.c.l.b16 %v5316
    %v5925 = vunpack.c.h.b16 %v5316
    %v5926 = vunpack.c.l.b16 %v5317
    %v5927 = vunpack.c.h.b16 %v5317
    %v5928 = vunpack.c.l.b16 %v5318
    %v5929 = vunpack.c.h.b16 %v5318
    %v5930 = vunpack.c.l.b16 %v5319
    %v5931 = vunpack.c.h.b16 %v5319
    %v5932 = vunpack.c.l.b16 %v5320
    %v5933 = vunpack.c.h.b16 %v5320
    %v5934 = vunpack.c.l.b16 %v5321
    %v5935 = vunpack.c.h.b16 %v5321
    %v5936 = vunpack.c.l.b16 %v5322
    %v5937 = vunpack.c.h.b16 %v5322
    %v5938 = vunpack.c.l.b16 %v5323
    %v5939 = vunpack.c.h.b16 %v5323
    %v5940 = vunpack.c.l.b16 %v5324
    %v5941 = vunpack.c.h.b16 %v5324
    %v5942 = vunpack.c.l.b16 %v5325
    %v5943 = vunpack.c.h.b16 %v5325
    %v5944 = vunpack.c.l.b16 %v5326
    %v5945 = vunpack.c.h.b16 %v5326
    %v5946 = vunpack.c.l.b16 %v5327
    %v5947 = vunpack.c.h.b16 %v5327
    %v5948 = vunpack.c.l.b16 %v5328
    %v5949 = vunpack.c.h.b16 %v5328
    %v5950 = vunpack.c.l.b16 %v5329
    %v5951 = vunpack.c.h.b16 %v5329
    %v5952 = vunpack.c.l.b16 %v5330
    %v5953 = vunpack.c.h.b16 %v5330
    %v5954 = vunpack.c.l.b16 %v5331
    %v5955 = vunpack.c.h.b16 %v5331
    %v5956 = vunpack.c.l.b16 %v5332
    %v5957 = vunpack.c.h.b16 %v5332
    %v5958 = vunpack.c.l.b16 %v5333
    %v5959 = vunpack.c.h.b16 %v5333
    %v5960 = vunpack.c.l.b16 %v5334
    %v5961 = vunpack.c.h.b16 %v5334
    %v5962 = vunpack.c.l.b16 %v5335
    %v5963 = vunpack.c.h.b16 %v5335
    %v5964 = vunpack.c.l.b16 %v5336
    %v5965 = vunpack.c.h.b16 %v5336
    %v5966 = vunpack.c.l.b16 %v5337
    %v5967 = vunpack.c.h.b16 %v5337
    %v5968 = vunpack.c.l.b16 %v5338
    %v5969 = vunpack.c.h.b16 %v5338
    %v5970 = vunpack.c.l.b16 %v5339
    %v5971 = vunpack.c.h.b16 %v5339
    %v5972 = vunpack.c.l.b16 %v5340
    %v5973 = vunpack.c.h.b16 %v5340
    %v5974 = vunpack.c.l.b16 %v5341
    %v5975 = vunpack.c.h.b16 %v5341
    %v5976 = vunpack.c.l.b16 %v5342
    %v5977 = vunpack.c.h.b16 %v5342
    %v5978 = vunpack.c.l.b16 %v5343
    %v5979 = vunpack.c.h.b16 %v5343
    %v5980 = vunpack.c.l.b16 %v5344
    %v5981 = vunpack.c.h.b16 %v5344
    %v5982 = vunpack.c.l.b16 %v5345
    %v5983 = vunpack.c.h.b16 %v5345
    %v5984 = vunpack.c.l.b16 %v5346
    %v5985 = vunpack.c.h.b16 %v5346
    %v5986 = vunpack.c.l.b16 %v5347
    %v5987 = vunpack.c.h.b16 %v5347
    %v5988 = vunpack.c.l.b16 %v5348
    %v5989 = vunpack.c.h.b16 %v5348
    %v5990 = vunpack.c.l.b16 %v5349
    %v5991 = vunpack.c.h.b16 %v5349
    %v5992 = vunpack.c.l.b16 %v5350
    %v5993 = vunpack.c.h.b16 %v5350
    %v5994 = vunpack.c.l.b16 %v5351
    %v5995 = vunpack.c.h.b16 %v5351
    %v5996 = vunpack.c.l.b16 %v5352
    %v5997 = vunpack.c.h.b16 %v5352
    %v5998 = vunpack.c.l.b16 %v5353
    %v5999 = vunpack.c.h.b16 %v5353
    %v6000 = vunpack.c.l.b16 %v5354
    %v6001 = vunpack.c.h.b16 %v5354
    %v6002 = vunpack.c.l.b16 %v5355
    %v6003 = vunpack.c.h.b16 %v5355
    %v6004 = vunpack.c.l.b16 %v5356
    %v6005 = vunpack.c.h.b16 %v5356
    %v6006 = vunpack.c.l.b16 %v5357
    %v6007 = vunpack.c.h.b16 %v5357
    %v6008 = vunpack.c.l.b16 %v5358
    %v6009 = vunpack.c.h.b16 %v5358
    %v6010 = vunpack.c.l.b16 %v5359
    %v6011 = vunpack.c.h.b16 %v5359
    %v6012 = vunpack.c.l.b16 %v5360
    %v6013 = vunpack.c.h.b16 %v5360
    %v6014 = vunpack.c.l.b16 %v5361
    %v6015 = vunpack.c.h.b16 %v5361
    %v6016 = vunpack.c.l.b16 %v5362
    %v6017 = vunpack.c.h.b16 %v5362
    %v6018 = vunpack.c.l.b16 %v5363
    %v6019 = vunpack.c.h.b16 %v5363
    %v6020 = vunpack.c.l.b16 %v5364
    %v6021 = vunpack.c.h.b16 %v5364
    %v6022 = vunpack.c.l.b16 %v5365
    %v6023 = vunpack.c.h.b16 %v5365
    %v6024 = vunpack.c.l.b16 %v5366
    %v6025 = vunpack.c.h.b16 %v5366
    %v6026 = vunpack.c.l.b16 %v5367
    %v6027 = vunpack.c.h.b16 %v5367
    %v6028 = vunpack.c.l.b16 %v5368
    %v6029 = vunpack.c.h.b16 %v5368
    %v6030 = vunpack.c.l.b16 %v5369
    %v6031 = vunpack.c.h.b16 %v5369
    %v6032 = vunpack.c.l.b16 %v5370
    %v6033 = vunpack.c.h.b16 %v5370
    %v6034 = vunpack.c.l.b16 %v5371
    %v6035 = vunpack.c.h.b16 %v5371
    %v6036 = vunpack.c.l.b16 %v5372
    %v6037 = vunpack.c.h.b16 %v5372
    %v6038 = vunpack.c.l.b16 %v5373
    %v6039 = vunpack.c.h.b16 %v5373
    %v6040 = vunpack.c.l.b16 %v5374
    %v6041 = vunpack.c.h.b16 %v5374
    %v6042 = vunpack.c.l.b16 %v5375
    %v6043 = vunpack.c.h.b16 %v5375
    %v6044 = vunpack.c.l.b16 %v5376
    %v6045 = vunpack.c.h.b16 %v5376
    %v6046 = vunpack.c.l.b16 %v5377
    %v6047 = vunpack.c.h.b16 %v5377
    %v6048 = vunpack.c.l.b16 %v5378
    %v6049 = vunpack.c.h.b16 %v5378
    %v6050 = vunpack.c.l.b16 %v5379
    %v6051 = vunpack.c.h.b16 %v5379
    %v6052 = vunpack.c.l.b16 %v5380
    %v6053 = vunpack.c.h.b16 %v5380
    %v6054 = vunpack.c.l.b16 %v5381
    %v6055 = vunpack.c.h.b16 %v5381
    %v6056 = vunpack.c.l.b16 %v5382
    %v6057 = vunpack.c.h.b16 %v5382
    %v6058 = vunpack.c.l.b16 %v5383
    %v6059 = vunpack.c.h.b16 %v5383
    %v6060 = vunpack.c.l.b16 %v5384
    %v6061 = vunpack.c.h.b16 %v5384
    %v6062 = vunpack.c.l.b16 %v5385
    %v6063 = vunpack.c.h.b16 %v5385
    %v6064 = vunpack.c.l.b16 %v5386
    %v6065 = vunpack.c.h.b16 %v5386
    %v6066 = vunpack.c.l.b16 %v5387
    %v6067 = vunpack.c.h.b16 %v5387
    %v6068 = vunpack.c.l.b16 %v5388
    %v6069 = vunpack.c.h.b16 %v5388
    %v6070 = vunpack.c.l.b16 %v5389
    %v6071 = vunpack.c.h.b16 %v5389
    %v6072 = vunpack.c.l.b16 %v5390
    %v6073 = vunpack.c.h.b16 %v5390
    %v6074 = vunpack.c.l.b16 %v5391
    %v6075 = vunpack.c.h.b16 %v5391
    %v6076 = vunpack.c.l.b16 %v5392
    %v6077 = vunpack.c.h.b16 %v5392
    %v6078 = vunpack.c.l.b16 %v5393
    %v6079 = vunpack.c.h.b16 %v5393
    %v6080 = vunpack.c.l.b16 %v5394
    %v6081 = vunpack.c.h.b16 %v5394
    %v6082 = vunpack.c.l.b16 %v5395
    %v6083 = vunpack.c.h.b16 %v5395
    %v6084 = vunpack.c.l.b16 %v5396
    %v6085 = vunpack.c.h.b16 %v5396
    %v6086 = vunpack.c.l.b16 %v5397
    %v6087 = vunpack.c.h.b16 %v5397
    %v6088 = vunpack.c.l.b16 %v5398
    %v6089 = vunpack.c.h.b16 %v5398
    %v6090 = vunpack.c.l.b16 %v5399
    %v6091 = vunpack.c.h.b16 %v5399
    %v6092 = vunpack.c.l.b16 %v5400
    %v6093 = vunpack.c.h.b16 %v5400
    %v6094 = vunpack.c.l.b16 %v5401
    %v6095 = vunpack.c.h.b16 %v5401
    %v6096 = vunpack.c.l.b16 %v5402
    %v6097 = vunpack.c.h.b16 %v5402
    %v6098 = vunpack.c.l.b16 %v5403
    %v6099 = vunpack.c.h.b16 %v5403
    %v6100 = vunpack.c.l.b16 %v5404
    %v6101 = vunpack.c.h.b16 %v5404
    %v6102 = vunpack.c.l.b16 %v5405
    %v6103 = vunpack.c.h.b16 %v5405
    %v6104 = vunpack.c.l.b16 %v5406
    %v6105 = vunpack.c.h.b16 %v5406
    %v6106 = vunpack.c.l.b16 %v5407
    %v6107 = vunpack.c.h.b16 %v5407
    %v6108 = vunpack.c.l.b16 %v5408
    %v6109 = vunpack.c.h.b16 %v5408
    %v6110 = vunpack.c.l.b16 %v5409
    %v6111 = vunpack.c.h.b16 %v5409
    %v6112 = vunpack.c.l.b16 %v5410
    %v6113 = vunpack.c.h.b16 %v5410
    %v6114 = vunpack.c.l.b16 %v5411
    %v6115 = vunpack.c.h.b16 %v5411
    %v6116 = vunpack.c.l.b16 %v5412
    %v6117 = vunpack.c.h.b16 %v5412
    %v6118 = vunpack.c.l.b16 %v5413
    %v6119 = vunpack.c.h.b16 %v5413
    %v6120 = vunpack.c.l.b16 %v5414
    %v6121 = vunpack.c.h.b16 %v5414
    %v6122 = vunpack.c.l.b16 %v5415
    %v6123 = vunpack.c.h.b16 %v5415
    %v6124 = vunpack.c.l.b16 %v5416
    %v6125 = vunpack.c.h.b16 %v5416
    %v6126 = vunpack.c.l.b16 %v5417
    %v6127 = vunpack.c.h.b16 %v5417
    %v6128 = vunpack.c.l.b16 %v5418
    %v6129 = vunpack.c.h.b16 %v5418
    %v6130 = vunpack.c.l.b16 %v5419
    %v6131 = vunpack.c.h.b16 %v5419
    %v6132 = vunpack.c.l.b16 %v5420
    %v6133 = vunpack.c.h.b16 %v5420
    %v6134 = vunpack.c.l.b16 %v5421
    %v6135 = vunpack.c.h.b16 %v5421
    %v6136 = vunpack.c.l.b16 %v5422
    %v6137 = vunpack.c.h.b16 %v5422
    %v6138 = vunpack.c.l.b16 %v5423
    %v6139 = vunpack.c.h.b16 %v5423
    %v6140 = vunpack.c.l.b16 %v5424
    %v6141 = vunpack.c.h.b16 %v5424
    %v6142 = vunpack.c.l.b16 %v5425
    %v6143 = vunpack.c.h.b16 %v5425
    %v6144 = vunpack.c.l.b16 %v5426
    %v6145 = vunpack.c.h.b16 %v5426
    %v6146 = vunpack.c.l.b16 %v5427
    %v6147 = vunpack.c.h.b16 %v5427
    %v6148 = vunpack.c.l.b16 %v5428
    %v6149 = vunpack.c.h.b16 %v5428
    %v6150 = vunpack.c.l.b16 %v5429
    %v6151 = vunpack.c.h.b16 %v5429
    %v6152 = vunpack.c.l.b16 %v5430
    %v6153 = vunpack.c.h.b16 %v5430
    %v6154 = vunpack.c.l.b16 %v5431
    %v6155 = vunpack.c.h.b16 %v5431
    %v6156 = vunpack.c.l.b16 %v5432
    %v6157 = vunpack.c.h.b16 %v5432
    %v6158 = vunpack.c.l.b16 %v5433
    %v6159 = vunpack.c.h.b16 %v5433
    %v6160 = vunpack.c.l.b16 %v5434
    %v6161 = vunpack.c.h.b16 %v5434
    %v6162 = vunpack.c.l.b16 %v5435
    %v6163 = vunpack.c.h.b16 %v5435
    %v6164 = vunpack.c.l.b16 %v5436
    %v6165 = vunpack.c.h.b16 %v5436
    %v6166 = vunpack.c.l.b16 %v5437
    %v6167 = vunpack.c.h.b16 %v5437
    %v6168 = vunpack.c.l.b16 %v5438
    %v6169 = vunpack.c.h.b16 %v5438
    %v6170 = vunpack.c.l.b16 %v5439
    %v6171 = vunpack.c.h.b16 %v5439
    %v6172 = vunpack.c.l.b16 %v5440
    %v6173 = vunpack.c.h.b16 %v5440
    %v6174 = vunpack.c.l.b16 %v5441
    %v6175 = vunpack.c.h.b16 %v5441
    %v6176 = vunpack.c.l.b16 %v5442
    %v6177 = vunpack.c.h.b16 %v5442
    %v6178 = vunpack.c.l.b16 %v5443
    %v6179 = vunpack.c.h.b16 %v5443
    %v6180 = vunpack.c.l.b16 %v5444
    %v6181 = vunpack.c.h.b16 %v5444
    %v6182 = vunpack.c.l.b16 %v5445
    %v6183 = vunpack.c.h.b16 %v5445
    %v6184 = vunpack.c.l.b16 %v5446
    %v6185 = vunpack.c.h.b16 %v5446
    %v6186 = vunpack.c.l.b16 %v5447
    %v6187 = vunpack.c.h.b16 %v5447
    %v6188 = vunpack.c.l.b16 %v5448
    %v6189 = vunpack.c.h.b16 %v5448
    %v6190 = vunpack.c.l.b16 %v5449
    %v6191 = vunpack.c.h.b16 %v5449
    %v6192 = vunpack.c.l.b16 %v5450
    %v6193 = vunpack.c.h.b16 %v5450
    %v6194 = vunpack.c.l.b16 %v5451
    %v6195 = vunpack.c.h.b16 %v5451
    %v6196 = vunpack.c.l.b16 %v5452
    %v6197 = vunpack.c.h.b16 %v5452
    %v6198 = vunpack.c.l.b16 %v5453
    %v6199 = vunpack.c.h.b16 %v5453
    %v6200 = vunpack.c.l.b16 %v5454
    %v6201 = vunpack.c.h.b16 %v5454
    %v6202 = vunpack.c.l.b16 %v5455
    %v6203 = vunpack.c.h.b16 %v5455
    %v6204 = vunpack.c.l.b16 %v5456
    %v6205 = vunpack.c.h.b16 %v5456
    %v6206 = vunpack.c.l.b16 %v5457
    %v6207 = vunpack.c.h.b16 %v5457
    %v6208 = vunpack.c.l.b16 %v5458
    %v6209 = vunpack.c.h.b16 %v5458
    %v6210 = vunpack.c.l.b16 %v5459
    %v6211 = vunpack.c.h.b16 %v5459
    %v6212 = vunpack.c.l.b16 %v5460
    %v6213 = vunpack.c.h.b16 %v5460
    %v6214 = vunpack.c.l.b16 %v5461
    %v6215 = vunpack.c.h.b16 %v5461
    %v6216 = vunpack.c.l.b16 %v5462
    %v6217 = vunpack.c.h.b16 %v5462
    %v6218 = vunpack.c.l.b16 %v5463
    %v6219 = vunpack.c.h.b16 %v5463
    %v6220 = vunpack.c.l.b16 %v5464
    %v6221 = vunpack.c.h.b16 %v5464
    %v6222 = vunpack.c.l.b16 %v5465
    %v6223 = vunpack.c.h.b16 %v5465
    %v6224 = vunpack.c.l.b16 %v5466
    %v6225 = vunpack.c.h.b16 %v5466
    %v6226 = vunpack.c.l.b16 %v5467
    %v6227 = vunpack.c.h.b16 %v5467
    %v6228 = vunpack.c.l.b16 %v5468
    %v6229 = vunpack.c.h.b16 %v5468
    %v6230 = vunpack.c.l.b16 %v5469
    %v6231 = vunpack.c.h.b16 %v5469
    %v6232 = vunpack.c.l.b16 %v5470
    %v6233 = vunpack.c.h.b16 %v5470
    %v6234 = vunpack.c.l.b16 %v5471
    %v6235 = vunpack.c.h.b16 %v5471
    %v6236 = vunpack.c.l.b16 %v5472
    %v6237 = vunpack.c.h.b16 %v5472
    %v6238 = vunpack.c.l.b16 %v5473
    %v6239 = vunpack.c.h.b16 %v5473
    %v6240 = vunpack.c.l.b16 %v5474
    %v6241 = vunpack.c.h.b16 %v5474
    %v6242 = vunpack.c.l.b16 %v5475
    %v6243 = vunpack.c.h.b16 %v5475
    %v6244 = vunpack.c.l.b16 %v5476
    %v6245 = vunpack.c.h.b16 %v5476
    %v6246 = vunpack.c.l.b16 %v5477
    %v6247 = vunpack.c.h.b16 %v5477
    %v6248 = vunpack.c.l.b16 %v5478
    %v6249 = vunpack.c.h.b16 %v5478
    %v6250 = vunpack.c.l.b16 %v5479
    %v6251 = vunpack.c.h.b16 %v5479
    %v6252 = vunpack.c.l.b16 %v5480
    %v6253 = vunpack.c.h.b16 %v5480
    %v6254 = vunpack.c.l.b16 %v5481
    %v6255 = vunpack.c.h.b16 %v5481
    %v6256 = vunpack.c.l.b16 %v5482
    %v6257 = vunpack.c.h.b16 %v5482
    %v6258 = vunpack.c.l.b16 %v5483
    %v6259 = vunpack.c.h.b16 %v5483
    %v6260 = vunpack.c.l.b16 %v5484
    %v6261 = vunpack.c.h.b16 %v5484
    %v6262 = vunpack.c.l.b16 %v5485
    %v6263 = vunpack.c.h.b16 %v5485
    %v6264 = vunpack.c.l.b16 %v5486
    %v6265 = vunpack.c.h.b16 %v5486
    %v6266 = vunpack.c.l.b16 %v5487
    %v6267 = vunpack.c.h.b16 %v5487
    %v6268 = vunpack.c.l.b16 %v5488
    %v6269 = vunpack.c.h.b16 %v5488
    %v6270 = vunpack.c.l.b16 %v5489
    %v6271 = vunpack.c.h.b16 %v5489
    %v6272 = vunpack.c.l.b16 %v5490
    %v6273 = vunpack.c.h.b16 %v5490
    %v6274 = vunpack.c.l.b16 %v5491
    %v6275 = vunpack.c.h.b16 %v5491
    %v6276 = vunpack.c.l.b16 %v5492
    %v6277 = vunpack.c.h.b16 %v5492
    %v6278 = vunpack.c.l.b16 %v5493
    %v6279 = vunpack.c.h.b16 %v5493
    %v6280 = vunpack.c.l.b16 %v5494
    %v6281 = vunpack.c.h.b16 %v5494
    %v6282 = vunpack.c.l.b16 %v5495
    %v6283 = vunpack.c.h.b16 %v5495
    %v6284 = vunpack.c.l.b16 %v5496
    %v6285 = vunpack.c.h.b16 %v5496
    %v6286 = vunpack.c.l.b16 %v5497
    %v6287 = vunpack.c.h.b16 %v5497
    %v6288 = vpack.c.b16 %v5780, %v5776
    %v6289 = vpack.c.b16 %v5781, %v5777
    %v6290 = vpack.c.b16 %v5782, %v5778
    %v6291 = vpack.c.b16 %v5783, %v5779
    %v6292 = vpack.c.b16 %v5788, %v5784
    %v6293 = vpack.c.b16 %v5789, %v5785
    %v6294 = vpack.c.b16 %v5790, %v5786
    %v6295 = vpack.c.b16 %v5791, %v5787
    %v6296 = vpack.c.b16 %v5796, %v5792
    %v6297 = vpack.c.b16 %v5797, %v5793
    %v6298 = vpack.c.b16 %v5798, %v5794
    %v6299 = vpack.c.b16 %v5799, %v5795
    %v6300 = vpack.c.b16 %v5804, %v5800
    %v6301 = vpack.c.b16 %v5805, %v5801
    %v6302 = vpack.c.b16 %v5806, %v5802
    %v6303 = vpack.c.b16 %v5807, %v5803
    %v6304 = vpack.c.b16 %v5812, %v5808
    %v6305 = vpack.c.b16 %v5813, %v5809
    %v6306 = vpack.c.b16 %v5814, %v5810
    %v6307 = vpack.c.b16 %v5815, %v5811
    %v6308 = vpack.c.b16 %v5820, %v5816
    %v6309 = vpack.c.b16 %v5821, %v5817
    %v6310 = vpack.c.b16 %v5822, %v5818
    %v6311 = vpack.c.b16 %v5823, %v5819
    %v6312 = vpack.c.b16 %v5828, %v5824
    %v6313 = vpack.c.b16 %v5829, %v5825
    %v6314 = vpack.c.b16 %v5830, %v5826
    %v6315 = vpack.c.b16 %v5831, %v5827
    %v6316 = vpack.c.b16 %v5836, %v5832
    %v6317 = vpack.c.b16 %v5837, %v5833
    %v6318 = vpack.c.b16 %v5838, %v5834
    %v6319 = vpack.c.b16 %v5839, %v5835
    %v6320 = vpack.c.b16 %v5844, %v5840
    %v6321 = vpack.c.b16 %v5845, %v5841
    %v6322 = vpack.c.b16 %v5846, %v5842
    %v6323 = vpack.c.b16 %v5847, %v5843
    %v6324 = vpack.c.b16 %v5852, %v5848
    %v6325 = vpack.c.b16 %v5853, %v5849
    %v6326 = vpack.c.b16 %v5854, %v5850
    %v6327 = vpack.c.b16 %v5855, %v5851
    %v6328 = vpack.c.b16 %v5860, %v5856
    %v6329 = vpack.c.b16 %v5861, %v5857
    %v6330 = vpack.c.b16 %v5862, %v5858
    %v6331 = vpack.c.b16 %v5863, %v5859
    %v6332 = vpack.c.b16 %v5868, %v5864
    %v6333 = vpack.c.b16 %v5869, %v5865
    %v6334 = vpack.c.b16 %v5870, %v5866
    %v6335 = vpack.c.b16 %v5871, %v5867
    %v6336 = vpack.c.b16 %v5876, %v5872
    %v6337 = vpack.c.b16 %v5877, %v5873
    %v6338 = vpack.c.b16 %v5878, %v5874
    %v6339 = vpack.c.b16 %v5879, %v5875
    %v6340 = vpack.c.b16 %v5884, %v5880
    %v6341 = vpack.c.b16 %v5885, %v5881
    %v6342 = vpack.c.b16 %v5886, %v5882
    %v6343 = vpack.c.b16 %v5887, %v5883
    %v6344 = vpack.c.b16 %v5892, %v5888
    %v6345 = vpack.c.b16 %v5893, %v5889
    %v6346 = vpack.c.b16 %v5894, %v5890
    %v6347 = vpack.c.b16 %v5895, %v5891
    %v6348 = vpack.c.b16 %v5900, %v5896
    %v6349 = vpack.c.b16 %v5901, %v5897
    %v6350 = vpack.c.b16 %v5902, %v5898
    %v6351 = vpack.c.b16 %v5903, %v5899
    %v6352 = vpack.c.b16 %v5908, %v5904
    %v6353 = vpack.c.b16 %v5909, %v5905
    %v6354 = vpack.c.b16 %v5910, %v5906
    %v6355 = vpack.c.b16 %v5911, %v5907
    %v6356 = vpack.c.b16 %v5916, %v5912
    %v6357 = vpack.c.b16 %v5917, %v5913
    %v6358 = vpack.c.b16 %v5918, %v5914
    %v6359 = vpack.c.b16 %v5919, %v5915
    %v6360 = vpack.c.b16 %v5924, %v5920
    %v6361 = vpack.c.b16 %v5925, %v5921
    %v6362 = vpack.c.b16 %v5926, %v5922
    %v6363 = vpack.c.b16 %v5927, %v5923
    %v6364 = vpack.c.b16 %v5932, %v5928
    %v6365 = vpack.c.b16 %v5933, %v5929
    %v6366 = vpack.c.b16 %v5934, %v5930
    %v6367 = vpack.c.b16 %v5935, %v5931
    %v6368 = vpack.c.b16 %v5940, %v5936
    %v6369 = vpack.c.b16 %v5941, %v5937
    %v6370 = vpack.c.b16 %v5942, %v5938
    %v6371 = vpack.c.b16 %v5943, %v5939
    %v6372 = vpack.c.b16 %v5948, %v5944
    %v6373 = vpack.c.b16 %v5949, %v5945
    %v6374 = vpack.c.b16 %v5950, %v5946
    %v6375 = vpack.c.b16 %v5951, %v5947
    %v6376 = vpack.c.b16 %v5956, %v5952
    %v6377 = vpack.c.b16 %v5957, %v5953
    %v6378 = vpack.c.b16 %v5958, %v5954
    %v6379 = vpack.c.b16 %v5959, %v5955
    %v6380 = vpack.c.b16 %v5964, %v5960
    %v6381 = vpack.c.b16 %v5965, %v5961
    %v6382 = vpack.c.b16 %v5966, %v5962
    %v6383 = vpack.c.b16 %v5967, %v5963
    %v6384 = vpack.c.b16 %v5972, %v5968
    %v6385 = vpack.c.b16 %v5973, %v5969
    %v6386 = vpack.c.b16 %v5974, %v5970
    %v6387 = vpack.c.b16 %v5975, %v5971
    %v6388 = vpack.c.b16 %v5980, %v5976
    %v6389 = vpack.c.b16 %v5981, %v5977
    %v6390 = vpack.c.b16 %v5982, %v5978
    %v6391 = vpack.c.b16 %v5983, %v5979
    %v6392 = vpack.c.b16 %v5988, %v5984
    %v6393 = vpack.c.b16 %v5989, %v5985
    %v6394 = vpack.c.b16 %v5990, %v5986
    %v6395 = vpack.c.b16 %v5991, %v5987
    %v6396 = vpack.c.b16 %v5996, %v5992
    %v6397 = vpack.c.b16 %v5997, %v5993
    %v6398 = vpack.c.b16 %v5998, %v5994
    %v6399 = vpack.c.b16 %v5999, %v5995
    %v6400 = vpack.c.b16 %v6004, %v6000
    %v6401 = vpack.c.b16 %v6005, %v6001
    %v6402 = vpack.c.b16 %v6006, %v6002
    %v6403 = vpack.c.b16 %v6007, %v6003
    %v6404 = vpack.c.b16 %v6012, %v6008
    %v6405 = vpack.c.b16 %v6013, %v6009
    %v6406 = vpack.c.b16 %v6014, %v6010
    %v6407 = vpack.c.b16 %v6015, %v6011
    %v6408 = vpack.c.b16 %v6020, %v6016
    %v6409 = vpack.c.b16 %v6021, %v6017
    %v6410 = vpack.c.b16 %v6022, %v6018
    %v6411 = vpack.c.b16 %v6023, %v6019
    %v6412 = vpack.c.b16 %v6028, %v6024
    %v6413 = vpack.c.b16 %v6029, %v6025
    %v6414 = vpack.c.b16 %v6030, %v6026
    %v6415 = vpack.c.b16 %v6031, %v6027
    %v6416 = vpack.c.b16 %v6036, %v6032
    %v6417 = vpack.c.b16 %v6037, %v6033
    %v6418 = vpack.c.b16 %v6038, %v6034
    %v6419 = vpack.c.b16 %v6039, %v6035
    %v6420 = vpack.c.b16 %v6044, %v6040
    %v6421 = vpack.c.b16 %v6045, %v6041
    %v6422 = vpack.c.b16 %v6046, %v6042
    %v6423 = vpack.c.b16 %v6047, %v6043
    %v6424 = vpack.c.b16 %v6052, %v6048
    %v6425 = vpack.c.b16 %v6053, %v6049
    %v6426 = vpack.c.b16 %v6054, %v6050
    %v6427 = vpack.c.b16 %v6055, %v6051
    %v6428 = vpack.c.b16 %v6060, %v6056
    %v6429 = vpack.c.b16 %v6061, %v6057
    %v6430 = vpack.c.b16 %v6062, %v6058
    %v6431 = vpack.c.b16 %v6063, %v6059
    %v6432 = vpack.c.b16 %v6068, %v6064
    %v6433 = vpack.c.b16 %v6069, %v6065
    %v6434 = vpack.c.b16 %v6070, %v6066
    %v6435 = vpack.c.b16 %v6071, %v6067
    %v6436 = vpack.c.b16 %v6076, %v6072
    %v6437 = vpack.c.b16 %v6077, %v6073
    %v6438 = vpack.c.b16 %v6078, %v6074
    %v6439 = vpack.c.b16 %v6079, %v6075
    %v6440 = vpack.c.b16 %v6084, %v6080
    %v6441 = vpack.c.b16 %v6085, %v6081
    %v6442 = vpack.c.b16 %v6086, %v6082
    %v6443 = vpack.c.b16 %v6087, %v6083
    %v6444 = vpack.c.b16 %v6092, %v6088
    %v6445 = vpack.c.b16 %v6093, %v6089
    %v6446 = vpack.c.b16 %v6094, %v6090
    %v6447 = vpack.c.b16 %v6095, %v6091
    %v6448 = vpack.c.b16 %v6100, %v6096
    %v6449 = vpack.c.b16 %v6101, %v6097
    %v6450 = vpack.c.b16 %v6102, %v6098
    %v6451 = vpack.c.b16 %v6103, %v6099
    %v6452 = vpack.c.b16 %v6108, %v6104
    %v6453 = vpack.c.b16 %v6109, %v6105
    %v6454 = vpack.c.b16 %v6110, %v6106
    %v6455 = vpack.c.b16 %v6111, %v6107
    %v6456 = vpack.c.b16 %v6116, %v6112
    %v6457 = vpack.c.b16 %v6117, %v6113
    %v6458 = vpack.c.b16 %v6118, %v6114
    %v6459 = vpack.c.b16 %v6119, %v6115
    %v6460 = vpack.c.b16 %v6124, %v6120
    %v6461 = vpack.c.b16 %v6125, %v6121
    %v6462 = vpack.c.b16 %v6126, %v6122
    %v6463 = vpack.c.b16 %v6127, %v6123
    %v6464 = vpack.c.b16 %v6132, %v6128
    %v6465 = vpack.c.b16 %v6133, %v6129
    %v6466 = vpack.c.b16 %v6134, %v6130
    %v6467 = vpack.c.b16 %v6135, %v6131
    %v6468 = vpack.c.b16 %v6140, %v6136
    %v6469 = vpack.c.b16 %v6141, %v6137
    %v6470 = vpack.c.b16 %v6142, %v6138
    %v6471 = vpack.c.b16 %v6143, %v6139
    %v6472 = vpack.c.b16 %v6148, %v6144
    %v6473 = vpack.c.b16 %v6149, %v6145
    %v6474 = vpack.c.b16 %v6150, %v6146
    %v6475 = vpack.c.b16 %v6151, %v6147
    %v6476 = vpack.c.b16 %v6156, %v6152
    %v6477 = vpack.c.b16 %v6157, %v6153
    %v6478 = vpack.c.b16 %v6158, %v6154
    %v6479 = vpack.c.b16 %v6159, %v6155
    %v6480 = vpack.c.b16 %v6164, %v6160
    %v6481 = vpack.c.b16 %v6165, %v6161
    %v6482 = vpack.c.b16 %v6166, %v6162
    %v6483 = vpack.c.b16 %v6167, %v6163
    %v6484 = vpack.c.b16 %v6172, %v6168
    %v6485 = vpack.c.b16 %v6173, %v6169
    %v6486 = vpack.c.b16 %v6174, %v6170
    %v6487 = vpack.c.b16 %v6175, %v6171
    %v6488 = vpack.c.b16 %v6180, %v6176
    %v6489 = vpack.c.b16 %v6181, %v6177
    %v6490 = vpack.c.b16 %v6182, %v6178
    %v6491 = vpack.c.b16 %v6183, %v6179
    %v6492 = vpack.c.b16 %v6188, %v6184
    %v6493 = vpack.c.b16 %v6189, %v6185
    %v6494 = vpack.c.b16 %v6190, %v6186
    %v6495 = vpack.c.b16 %v6191, %v6187
    %v6496 = vpack.c.b16 %v6196, %v6192
    %v6497 = vpack.c.b16 %v6197, %v6193
    %v6498 = vpack.c.b16 %v6198, %v6194
    %v6499 = vpack.c.b16 %v6199, %v6195
    %v6500 = vpack.c.b16 %v6204, %v6200
    %v6501 = vpack.c.b16 %v6205, %v6201
    %v6502 = vpack.c.b16 %v6206, %v6202
    %v6503 = vpack.c.b16 %v6207, %v6203
    %v6504 = vpack.c.b16 %v6212, %v6208
    %v6505 = vpack.c.b16 %v6213, %v6209
    %v6506 = vpack.c.b16 %v6214, %v6210
    %v6507 = vpack.c.b16 %v6215, %v6211
    %v6508 = vpack.c.b16 %v6220, %v6216
    %v6509 = vpack.c.b16 %v6221, %v6217
    %v6510 = vpack.c.b16 %v6222, %v6218
    %v6511 = vpack.c.b16 %v6223, %v6219
    %v6512 = vpack.c.b16 %v6228, %v6224
    %v6513 = vpack.c.b16 %v6229, %v6225
    %v6514 = vpack.c.b16 %v6230, %v6226
    %v6515 = vpack.c.b16 %v6231, %v6227
    %v6516 = vpack.c.b16 %v6236, %v6232
    %v6517 = vpack.c.b16 %v6237, %v6233
    %v6518 = vpack.c.b16 %v6238, %v6234
    %v6519 = vpack.c.b16 %v6239, %v6235
    %v6520 = vpack.c.b16 %v6244, %v6240
    %v6521 = vpack.c.b16 %v6245, %v6241
    %v6522 = vpack.c.b16 %v6246, %v6242
    %v6523 = vpack.c.b16 %v6247, %v6243
    %v6524 = vpack.c.b16 %v6252, %v6248
    %v6525 = vpack.c.b16 %v6253, %v6249
    %v6526 = vpack.c.b16 %v6254, %v6250
    %v6527 = vpack.c.b16 %v6255, %v6251
    %v6528 = vpack.c.b16 %v6260, %v6256
    %v6529 = vpack.c.b16 %v6261, %v6257
    %v6530 = vpack.c.b16 %v6262, %v6258
    %v6531 = vpack.c.b16 %v6263, %v6259
    %v6532 = vpack.c.b16 %v6268, %v6264
    %v6533 = vpack.c.b16 %v6269, %v6265
    %v6534 = vpack.c.b16 %v6270, %v6266
    %v6535 = vpack.c.b16 %v6271, %v6267
    %v6536 = vpack.c.b16 %v6276, %v6272
    %v6537 = vpack.c.b16 %v6277, %v6273
    %v6538 = vpack.c.b16 %v6278, %v6274
    %v6539 = vpack.c.b16 %v6279, %v6275
    %v6540 = vpack.c.b16 %v6284, %v6280
    %v6541 = vpack.c.b16 %v6285, %v6281
    %v6542 = vpack.c.b16 %v6286, %v6282
    %v6543 = vpack.c.b16 %v6287, %v6283
    %6800 = vmatprep.subr.bf16.mxu0 %v6289
    %6801 = vmatpush1.bf16.msra.mxu0 %v6288
    %6802 = vmatprep.subr.bf16.mxu0 %v6293
    %6803 = vmatpush1.bf16.msra.mxu0 %v6292
    %6804 = vmatprep.subr.bf16.mxu0 %v6297
    %6805 = vmatpush1.bf16.msra.mxu0 %v6296
    %6806 = vmatprep.subr.bf16.mxu0 %v6301
    %6807 = vmatpush1.bf16.msra.mxu0 %v6300
    %6808 = vmatprep.subr.bf16.mxu0 %v6305
    %6809 = vmatpush1.bf16.msra.mxu0 %v6304
    %6810 = vmatprep.subr.bf16.mxu0 %v6309
    %6811 = vmatpush1.bf16.msra.mxu0 %v6308
    %6812 = vmatprep.subr.bf16.mxu0 %v6313
    %6813 = vmatpush1.bf16.msra.mxu0 %v6312
    %6814 = vmatprep.subr.bf16.mxu0 %v6317
    %6815 = vmatpush1.bf16.msra.mxu0 %v6316
    %6816 = vmatprep.subr.bf16.mxu0 %v6321
    %6817 = vmatpush1.bf16.msra.mxu0 %v6320
    %6818 = vmatprep.subr.bf16.mxu0 %v6325
    %6819 = vmatpush1.bf16.msra.mxu0 %v6324
    %6820 = vmatprep.subr.bf16.mxu0 %v6329
    %6821 = vmatpush1.bf16.msra.mxu0 %v6328
    %6822 = vmatprep.subr.bf16.mxu0 %v6333
    %6823 = vmatpush1.bf16.msra.mxu0 %v6332
    %6824 = vmatprep.subr.bf16.mxu0 %v6337
    %6825 = vmatpush1.bf16.msra.mxu0 %v6336
    %6826 = vmatprep.subr.bf16.mxu0 %v6341
    %6827 = vmatpush1.bf16.msra.mxu0 %v6340
    %6828 = vmatprep.subr.bf16.mxu0 %v6345
    %6829 = vmatpush1.bf16.msra.mxu0 %v6344
    %6830 = vmatprep.subr.bf16.mxu0 %v6349
    %6831 = vmatpush1.bf16.msra.mxu0 %v6348
    %6832 = vmatprep.mubr.bf16.mxu0 %v5179
    %6833 = vmatmul.mubr.bf16.gmra.mrb[0].mxu0 %v5178
    %v6834 = vpop.f32.mrb[0].mxu0
    %v6835 = vadd.f32 %v5503, %v6834
    %v6836 = vpop.f32.mrb[0].mxu0
    %v6837 = vadd.f32 %v5507, %v6836
    %v6838 = vpop.f32.mrb[0].mxu0
    %v6839 = vadd.f32 %v5503, %v6838
    %v6840 = vpop.f32.mrb[0].mxu0
    %v6841 = vadd.f32 %v5507, %v6840
    %6842 = vmatprep.mubr.bf16.mxu0 %v5187
    %6843 = vmatmul.mubr.bf16.gmra.mrb[0].mxu0 %v5186
    %v6844 = vpop.f32.mrb[0].mxu0
    %v6845 = vadd.f32 %v5503, %v6844
    %v6846 = vpop.f32.mrb[0].mxu0
    %v6847 = vadd.f32 %v5507, %v6846
    %v6848 = vpop.f32.mrb[0].mxu0
    %v6849 = vadd.f32 %v5503, %v6848
    %v6850 = vpop.f32.mrb[0].mxu0
    %v6851 = vadd.f32 %v5507, %v6850
    %6852 = vmatprep.mubr.bf16.mxu0 %v5195
    %6853 = vmatmul.mubr.bf16.gmra.mrb[0].mxu0 %v5194
    %v6854 = vpop.f32.mrb[0].mxu0
    %v6855 = vadd.f32 %v5503, %v6854
    %v6856 = vpop.f32.mrb[0].mxu0
    %v6857 = vadd.f32 %v5507, %v6856
    %v6858 = vpop.f32.mrb[0].mxu0
    %v6859 = vadd.f32 %v5503, %v6858
    %v6860 = vpop.f32.mrb[0].mxu0
    %v6861 = vadd.f32 %v5507, %v6860
    %6862 = vmatprep.mubr.bf16.mxu0 %v5203
    %6863 = vmatmul.mubr.bf16.gmra.mrb[0].mxu0 %v5202
    %v6864 = vpop.f32.mrb[0].mxu0
    %v6865 = vadd.f32 %v5503, %v6864
    %v6866 = vpop.f32.mrb[0].mxu0
    %v6867 = vadd.f32 %v5507, %v6866
    %v6868 = vpop.f32.mrb[0].mxu0
    %v6869 = vadd.f32 %v5503, %v6868
    %v6870 = vpop.f32.mrb[0].mxu0
    %v6871 = vadd.f32 %v5507, %v6870
    %6872 = vmatprep.mubr.bf16.mxu0 %v5211
    %6873 = vmatmul.mubr.bf16.gmra.mrb[0].mxu0 %v5210
    %v6874 = vpop.f32.mrb[0].mxu0
    %v6875 = vadd.f32 %v5503, %v6874
    %v6876 = vpop.f32.mrb[0].mxu0
    %v6877 = vadd.f32 %v5507, %v6876
    %v6878 = vpop.f32.mrb[0].mxu0
    %v6879 = vadd.f32 %v5503, %v6878
    %v6880 = vpop.f32.mrb[0].mxu0
    %v6881 = vadd.f32 %v5507, %v6880
    %6882 = vmatprep.mubr.bf16.mxu0 %v5219
    %6883 = vmatmul.mubr.bf16.gmra.mrb[0].mxu0 %v5218
    %v6884 = vpop.f32.mrb[0].mxu0
    %v6885 = vadd.f32 %v5503, %v6884
    %v6886 = vpop.f32.mrb[0].mxu0
    %v6887 = vadd.f32 %v5507, %v6886
    %v6888 = vpop.f32.mrb[0].mxu0
    %v6889 = vadd.f32 %v5503, %v6888
    %v6890 = vpop.f32.mrb[0].mxu0
    %v6891 = vadd.f32 %v5507, %v6890
    %6892 = vmatprep.mubr.bf16.mxu0 %v5227
    %6893 = vmatmul.mubr.bf16.gmra.mrb[0].mxu0 %v5226
    %v6894 = vpop.f32.mrb[0].mxu0
    %v6895 = vadd.f32 %v5503, %v6894
    %v6896 = vpop.f32.mrb[0].mxu0
    %v6897 = vadd.f32 %v5507, %v6896
    %v6898 = vpop.f32.mrb[0].mxu0
    %v6899 = vadd.f32 %v5503, %v6898
    %v6900 = vpop.f32.mrb[0].mxu0
    %v6901 = vadd.f32 %v5507, %v6900
    %6902 = vmatprep.mubr.bf16.mxu0 %v5235
    %6903 = vmatmul.mubr.bf16.gmra.mrb[0].mxu0 %v5234
    %v6904 = vpop.f32.mrb[0].mxu0
    %v6905 = vadd.f32 %v5503, %v6904
    %v6906 = vpop.f32.mrb[0].mxu0
    %v6907 = vadd.f32 %v5507, %v6906
    %v6908 = vpop.f32.mrb[0].mxu0
    %v6909 = vadd.f32 %v5503, %v6908
    %v6910 = vpop.f32.mrb[0].mxu0
    %v6911 = vadd.f32 %v5507, %v6910
    %6912 = vdwg.mxu0
    %6913 = vmatprep.subr.bf16.mxu0 %v6353
    %6914 = vmatpush1.bf16.msra.mxu0 %v6352
    %6915 = vmatprep.subr.bf16.mxu0 %v6357
    %6916 = vmatpush1.bf16.msra.mxu0 %v6356
    %6917 = vmatprep.subr.bf16.mxu0 %v6361
    %6918 = vmatpush1.bf16.msra.mxu0 %v6360
    %6919 = vmatprep.subr.bf16.mxu0 %v6365
    %6920 = vmatpush1.bf16.msra.mxu0 %v6364
    %6921 = vmatprep.subr.bf16.mxu0 %v6369
    %6922 = vmatpush1.bf16.msra.mxu0 %v6368
    %6923 = vmatprep.subr.bf16.mxu0 %v6373
    %6924 = vmatpush1.bf16.msra.mxu0 %v6372
    %6925 = vmatprep.subr.bf16.mxu0 %v6377
    %6926 = vmatpush1.bf16.msra.mxu0 %v6376
    %6927 = vmatprep.subr.bf16.mxu0 %v6381
    %6928 = vmatpush1.bf16.msra.mxu0 %v6380
    %6929 = vmatprep.subr.bf16.mxu0 %v6385
    %6930 = vmatpush1.bf16.msra.mxu0 %v6384
    %6931 = vmatprep.subr.bf16.mxu0 %v6389
    %6932 = vmatpush1.bf16.msra.mxu0 %v6388
    %6933 = vmatprep.subr.bf16.mxu0 %v6393
    %6934 = vmatpush1.bf16.msra.mxu0 %v6392
    %6935 = vmatprep.subr.bf16.mxu0 %v6397
    %6936 = vmatpush1.bf16.msra.mxu0 %v6396
    %6937 = vmatprep.subr.bf16.mxu0 %v6401
    %6938 = vmatpush1.bf16.msra.mxu0 %v6400
    %6939 = vmatprep.subr.bf16.mxu0 %v6405
    %6940 = vmatpush1.bf16.msra.mxu0 %v6404
    %6941 = vmatprep.subr.bf16.mxu0 %v6409
    %6942 = vmatpush1.bf16.msra.mxu0 %v6408
    %6943 = vmatprep.subr.bf16.mxu0 %v6413
    %6944 = vmatpush1.bf16.msra.mxu0 %v6412
    %6945 = vmatprep.mubr.bf16.mxu0 %v5181
    %6946 = vmatmul.mubr.bf16.gmra.mrb[0].mxu0 %v5180
    %v6947 = vpop.f32.mrb[0].mxu0
    %v6948 = vadd.f32 %v6835, %v6947
    %v6949 = vpop.f32.mrb[0].mxu0
    %v6950 = vadd.f32 %v6837, %v6949
    %v6951 = vpop.f32.mrb[0].mxu0
    %v6952 = vadd.f32 %v6839, %v6951
    %v6953 = vpop.f32.mrb[0].mxu0
    %v6954 = vadd.f32 %v6841, %v6953
    %6955 = vmatprep.mubr.bf16.mxu0 %v5189
    %6956 = vmatmul.mubr.bf16.gmra.mrb[0].mxu0 %v5188
    %v6957 = vpop.f32.mrb[0].mxu0
    %v6958 = vadd.f32 %v6845, %v6957
    %v6959 = vpop.f32.mrb[0].mxu0
    %v6960 = vadd.f32 %v6847, %v6959
    %v6961 = vpop.f32.mrb[0].mxu0
    %v6962 = vadd.f32 %v6849, %v6961
    %v6963 = vpop.f32.mrb[0].mxu0
    %v6964 = vadd.f32 %v6851, %v6963
    %6965 = vmatprep.mubr.bf16.mxu0 %v5197
    %6966 = vmatmul.mubr.bf16.gmra.mrb[0].mxu0 %v5196
    %v6967 = vpop.f32.mrb[0].mxu0
    %v6968 = vadd.f32 %v6855, %v6967
    %v6969 = vpop.f32.mrb[0].mxu0
    %v6970 = vadd.f32 %v6857, %v6969
    %v6971 = vpop.f32.mrb[0].mxu0
    %v6972 = vadd.f32 %v6859, %v6971
    %v6973 = vpop.f32.mrb[0].mxu0
    %v6974 = vadd.f32 %v6861, %v6973
    %6975 = vmatprep.mubr.bf16.mxu0 %v5205
    %6976 = vmatmul.mubr.bf16.gmra.mrb[0].mxu0 %v5204
    %v6977 = vpop.f32.mrb[0].mxu0
    %v6978 = vadd.f32 %v6865, %v6977
    %v6979 = vpop.f32.mrb[0].mxu0
    %v6980 = vadd.f32 %v6867, %v6979
    %v6981 = vpop.f32.mrb[0].mxu0
    %v6982 = vadd.f32 %v6869, %v6981
    %v6983 = vpop.f32.mrb[0].mxu0
    %v6984 = vadd.f32 %v6871, %v6983
    %6985 = vmatprep.mubr.bf16.mxu0 %v5213
    %6986 = vmatmul.mubr.bf16.gmra.mrb[0].mxu0 %v5212
    %v6987 = vpop.f32.mrb[0].mxu0
    %v6988 = vadd.f32 %v6875, %v6987
    %v6989 = vpop.f32.mrb[0].mxu0
    %v6990 = vadd.f32 %v6877, %v6989
    %v6991 = vpop.f32.mrb[0].mxu0
    %v6992 = vadd.f32 %v6879, %v6991
    %v6993 = vpop.f32.mrb[0].mxu0
    %v6994 = vadd.f32 %v6881, %v6993
    %6995 = vmatprep.mubr.bf16.mxu0 %v5221
    %6996 = vmatmul.mubr.bf16.gmra.mrb[0].mxu0 %v5220
    %v6997 = vpop.f32.mrb[0].mxu0
    %v6998 = vadd.f32 %v6885, %v6997
    %v6999 = vpop.f32.mrb[0].mxu0
    %v7000 = vadd.f32 %v6887, %v6999
    %v7001 = vpop.f32.mrb[0].mxu0
    %v7002 = vadd.f32 %v6889, %v7001
    %v7003 = vpop.f32.mrb[0].mxu0
    %v7004 = vadd.f32 %v6891, %v7003
    %7005 = vmatprep.mubr.bf16.mxu0 %v5229
    %7006 = vmatmul.mubr.bf16.gmra.mrb[0].mxu0 %v5228
    %v7007 = vpop.f32.mrb[0].mxu0
    %v7008 = vadd.f32 %v6895, %v7007
    %v7009 = vpop.f32.mrb[0].mxu0
    %v7010 = vadd.f32 %v6897, %v7009
    %v7011 = vpop.f32.mrb[0].mxu0
    %v7012 = vadd.f32 %v6899, %v7011
    %v7013 = vpop.f32.mrb[0].mxu0
    %v7014 = vadd.f32 %v6901, %v7013
    %7015 = vmatprep.mubr.bf16.mxu0 %v5237
    %7016 = vmatmul.mubr.bf16.gmra.mrb[0].mxu0 %v5236
    %v7017 = vpop.f32.mrb[0].mxu0
    %v7018 = vadd.f32 %v6905, %v7017
    %v7019 = vpop.f32.mrb[0].mxu0
    %v7020 = vadd.f32 %v6907, %v7019
    %v7021 = vpop.f32.mrb[0].mxu0
    %v7022 = vadd.f32 %v6909, %v7021
    %v7023 = vpop.f32.mrb[0].mxu0
    %v7024 = vadd.f32 %v6911, %v7023
    %7025 = vdwg.mxu0
    %7026 = vmatprep.subr.bf16.mxu0 %v6417
    %7027 = vmatpush1.bf16.msra.mxu0 %v6416
    %7028 = vmatprep.subr.bf16.mxu0 %v6421
    %7029 = vmatpush1.bf16.msra.mxu0 %v6420
    %7030 = vmatprep.subr.bf16.mxu0 %v6425
    %7031 = vmatpush1.bf16.msra.mxu0 %v6424
    %7032 = vmatprep.subr.bf16.mxu0 %v6429
    %7033 = vmatpush1.bf16.msra.mxu0 %v6428
    %7034 = vmatprep.subr.bf16.mxu0 %v6433
    %7035 = vmatpush1.bf16.msra.mxu0 %v6432
    %7036 = vmatprep.subr.bf16.mxu0 %v6437
    %7037 = vmatpush1.bf16.msra.mxu0 %v6436
    %7038 = vmatprep.subr.bf16.mxu0 %v6441
    %7039 = vmatpush1.bf16.msra.mxu0 %v6440
    %7040 = vmatprep.subr.bf16.mxu0 %v6445
    %7041 = vmatpush1.bf16.msra.mxu0 %v6444
    %7042 = vmatprep.subr.bf16.mxu0 %v6449
    %7043 = vmatpush1.bf16.msra.mxu0 %v6448
    %7044 = vmatprep.subr.bf16.mxu0 %v6453
    %7045 = vmatpush1.bf16.msra.mxu0 %v6452
    %7046 = vmatprep.subr.bf16.mxu0 %v6457
    %7047 = vmatpush1.bf16.msra.mxu0 %v6456
    %7048 = vmatprep.subr.bf16.mxu0 %v6461
    %7049 = vmatpush1.bf16.msra.mxu0 %v6460
    %7050 = vmatprep.subr.bf16.mxu0 %v6465
    %7051 = vmatpush1.bf16.msra.mxu0 %v6464
    %7052 = vmatprep.subr.bf16.mxu0 %v6469
    %7053 = vmatpush1.bf16.msra.mxu0 %v6468
    %7054 = vmatprep.subr.bf16.mxu0 %v6473
    %7055 = vmatpush1.bf16.msra.mxu0 %v6472
    %7056 = vmatprep.subr.bf16.mxu0 %v6477
    %7057 = vmatpush1.bf16.msra.mxu0 %v6476
    %7058 = vmatprep.mubr.bf16.mxu0 %v5183
    %7059 = vmatmul.mubr.bf16.gmra.mrb[0].mxu0 %v5182
    %v7060 = vpop.f32.mrb[0].mxu0
    %v7061 = vadd.f32 %v6948, %v7060
    %v7062 = vpop.f32.mrb[0].mxu0
    %v7063 = vadd.f32 %v6950, %v7062
    %v7064 = vpop.f32.mrb[0].mxu0
    %v7065 = vadd.f32 %v6952, %v7064
    %v7066 = vpop.f32.mrb[0].mxu0
    %v7067 = vadd.f32 %v6954, %v7066
    %7068 = vmatprep.mubr.bf16.mxu0 %v5191
    %7069 = vmatmul.mubr.bf16.gmra.mrb[0].mxu0 %v5190
    %v7070 = vpop.f32.mrb[0].mxu0
    %v7071 = vadd.f32 %v6958, %v7070
    %v7072 = vpop.f32.mrb[0].mxu0
    %v7073 = vadd.f32 %v6960, %v7072
    %v7074 = vpop.f32.mrb[0].mxu0
    %v7075 = vadd.f32 %v6962, %v7074
    %v7076 = vpop.f32.mrb[0].mxu0
    %v7077 = vadd.f32 %v6964, %v7076
    %7078 = vmatprep.mubr.bf16.mxu0 %v5199
    %7079 = vmatmul.mubr.bf16.gmra.mrb[0].mxu0 %v5198
    %v7080 = vpop.f32.mrb[0].mxu0
    %v7081 = vadd.f32 %v6968, %v7080
    %v7082 = vpop.f32.mrb[0].mxu0
    %v7083 = vadd.f32 %v6970, %v7082
    %v7084 = vpop.f32.mrb[0].mxu0
    %v7085 = vadd.f32 %v6972, %v7084
    %v7086 = vpop.f32.mrb[0].mxu0
    %v7087 = vadd.f32 %v6974, %v7086
    %7088 = vmatprep.mubr.bf16.mxu0 %v5207
    %7089 = vmatmul.mubr.bf16.gmra.mrb[0].mxu0 %v5206
    %v7090 = vpop.f32.mrb[0].mxu0
    %v7091 = vadd.f32 %v6978, %v7090
    %v7092 = vpop.f32.mrb[0].mxu0
    %v7093 = vadd.f32 %v6980, %v7092
    %v7094 = vpop.f32.mrb[0].mxu0
    %v7095 = vadd.f32 %v6982, %v7094
    %v7096 = vpop.f32.mrb[0].mxu0
    %v7097 = vadd.f32 %v6984, %v7096
    %7098 = vmatprep.mubr.bf16.mxu0 %v5215
    %7099 = vmatmul.mubr.bf16.gmra.mrb[0].mxu0 %v5214
    %v7100 = vpop.f32.mrb[0].mxu0
    %v7101 = vadd.f32 %v6988, %v7100
    %v7102 = vpop.f32.mrb[0].mxu0
    %v7103 = vadd.f32 %v6990, %v7102
    %v7104 = vpop.f32.mrb[0].mxu0
    %v7105 = vadd.f32 %v6992, %v7104
    %v7106 = vpop.f32.mrb[0].mxu0
    %v7107 = vadd.f32 %v6994, %v7106
    %7108 = vmatprep.mubr.bf16.mxu0 %v5223
    %7109 = vmatmul.mubr.bf16.gmra.mrb[0].mxu0 %v5222
    %v7110 = vpop.f32.mrb[0].mxu0
    %v7111 = vadd.f32 %v6998, %v7110
    %v7112 = vpop.f32.mrb[0].mxu0
    %v7113 = vadd.f32 %v7000, %v7112
    %v7114 = vpop.f32.mrb[0].mxu0
    %v7115 = vadd.f32 %v7002, %v7114
    %v7116 = vpop.f32.mrb[0].mxu0
    %v7117 = vadd.f32 %v7004, %v7116
    %7118 = vmatprep.mubr.bf16.mxu0 %v5231
    %7119 = vmatmul.mubr.bf16.gmra.mrb[0].mxu0 %v5230
    %v7120 = vpop.f32.mrb[0].mxu0
    %v7121 = vadd.f32 %v7008, %v7120
    %v7122 = vpop.f32.mrb[0].mxu0
    %v7123 = vadd.f32 %v7010, %v7122
    %v7124 = vpop.f32.mrb[0].mxu0
    %v7125 = vadd.f32 %v7012, %v7124
    %v7126 = vpop.f32.mrb[0].mxu0
    %v7127 = vadd.f32 %v7014, %v7126
    %7128 = vmatprep.mubr.bf16.mxu0 %v5239
    %7129 = vmatmul.mubr.bf16.gmra.mrb[0].mxu0 %v5238
    %v7130 = vpop.f32.mrb[0].mxu0
    %v7131 = vadd.f32 %v7018, %v7130
    %v7132 = vpop.f32.mrb[0].mxu0
    %v7133 = vadd.f32 %v7020, %v7132
    %v7134 = vpop.f32.mrb[0].mxu0
    %v7135 = vadd.f32 %v7022, %v7134
    %v7136 = vpop.f32.mrb[0].mxu0
    %v7137 = vadd.f32 %v7024, %v7136
    %7138 = vdwg.mxu0
    %7139 = vmatprep.subr.bf16.mxu0 %v6481
    %7140 = vmatpush1.bf16.msra.mxu0 %v6480
    %7141 = vmatprep.subr.bf16.mxu0 %v6485
    %7142 = vmatpush1.bf16.msra.mxu0 %v6484
    %7143 = vmatprep.subr.bf16.mxu0 %v6489
    %7144 = vmatpush1.bf16.msra.mxu0 %v6488
    %7145 = vmatprep.subr.bf16.mxu0 %v6493
    %7146 = vmatpush1.bf16.msra.mxu0 %v6492
    %7147 = vmatprep.subr.bf16.mxu0 %v6497
    %7148 = vmatpush1.bf16.msra.mxu0 %v6496
    %7149 = vmatprep.subr.bf16.mxu0 %v6501
    %7150 = vmatpush1.bf16.msra.mxu0 %v6500
    %7151 = vmatprep.subr.bf16.mxu0 %v6505
    %7152 = vmatpush1.bf16.msra.mxu0 %v6504
    %7153 = vmatprep.subr.bf16.mxu0 %v6509
    %7154 = vmatpush1.bf16.msra.mxu0 %v6508
    %7155 = vmatprep.subr.bf16.mxu0 %v6513
    %7156 = vmatpush1.bf16.msra.mxu0 %v6512
    %7157 = vmatprep.subr.bf16.mxu0 %v6517
    %7158 = vmatpush1.bf16.msra.mxu0 %v6516
    %7159 = vmatprep.subr.bf16.mxu0 %v6521
    %7160 = vmatpush1.bf16.msra.mxu0 %v6520
    %7161 = vmatprep.subr.bf16.mxu0 %v6525
    %7162 = vmatpush1.bf16.msra.mxu0 %v6524
    %7163 = vmatprep.subr.bf16.mxu0 %v6529
    %7164 = vmatpush1.bf16.msra.mxu0 %v6528
    %7165 = vmatprep.subr.bf16.mxu0 %v6533
    %7166 = vmatpush1.bf16.msra.mxu0 %v6532
    %7167 = vmatprep.subr.bf16.mxu0 %v6537
    %7168 = vmatpush1.bf16.msra.mxu0 %v6536
    %7169 = vmatprep.subr.bf16.mxu0 %v6541
    %7170 = vmatpush1.bf16.msra.mxu0 %v6540
    %7171 = vmatprep.mubr.bf16.mxu0 %v5185
    %7172 = vmatmul.mubr.bf16.gmra.mrb[0].mxu0 %v5184
    %v7173 = vpop.f32.mrb[0].mxu0
    %v7174 = vadd.f32 %v7061, %v7173
    %v7175 = vpop.f32.mrb[0].mxu0
    %v7176 = vadd.f32 %v7063, %v7175
    %v7177 = vpop.f32.mrb[0].mxu0
    %v7178 = vadd.f32 %v7065, %v7177
    %v7179 = vpop.f32.mrb[0].mxu0
    %v7180 = vadd.f32 %v7067, %v7179
    %7181 = vmatprep.mubr.bf16.mxu0 %v5193
    %7182 = vmatmul.mubr.bf16.gmra.mrb[0].mxu0 %v5192
    %v7183 = vpop.f32.mrb[0].mxu0
    %v7184 = vadd.f32 %v7071, %v7183
    %v7185 = vpop.f32.mrb[0].mxu0
    %v7186 = vadd.f32 %v7073, %v7185
    %v7187 = vpop.f32.mrb[0].mxu0
    %v7188 = vadd.f32 %v7075, %v7187
    %v7189 = vpop.f32.mrb[0].mxu0
    %v7190 = vadd.f32 %v7077, %v7189
    %7191 = vmatprep.mubr.bf16.mxu0 %v5201
    %7192 = vmatmul.mubr.bf16.gmra.mrb[0].mxu0 %v5200
    %v7193 = vpop.f32.mrb[0].mxu0
    %v7194 = vadd.f32 %v7081, %v7193
    %v7195 = vpop.f32.mrb[0].mxu0
    %v7196 = vadd.f32 %v7083, %v7195
    %v7197 = vpop.f32.mrb[0].mxu0
    %v7198 = vadd.f32 %v7085, %v7197
    %v7199 = vpop.f32.mrb[0].mxu0
    %v7200 = vadd.f32 %v7087, %v7199
    %7201 = vmatprep.mubr.bf16.mxu0 %v5209
    %7202 = vmatmul.mubr.bf16.gmra.mrb[0].mxu0 %v5208
    %v7203 = vpop.f32.mrb[0].mxu0
    %v7204 = vadd.f32 %v7091, %v7203
    %v7205 = vpop.f32.mrb[0].mxu0
    %v7206 = vadd.f32 %v7093, %v7205
    %v7207 = vpop.f32.mrb[0].mxu0
    %v7208 = vadd.f32 %v7095, %v7207
    %v7209 = vpop.f32.mrb[0].mxu0
    %v7210 = vadd.f32 %v7097, %v7209
    %7211 = vmatprep.mubr.bf16.mxu0 %v5217
    %7212 = vmatmul.mubr.bf16.gmra.mrb[0].mxu0 %v5216
    %v7213 = vpop.f32.mrb[0].mxu0
    %v7214 = vadd.f32 %v7101, %v7213
    %v7215 = vpop.f32.mrb[0].mxu0
    %v7216 = vadd.f32 %v7103, %v7215
    %v7217 = vpop.f32.mrb[0].mxu0
    %v7218 = vadd.f32 %v7105, %v7217
    %v7219 = vpop.f32.mrb[0].mxu0
    %v7220 = vadd.f32 %v7107, %v7219
    %7221 = vmatprep.mubr.bf16.mxu0 %v5225
    %7222 = vmatmul.mubr.bf16.gmra.mrb[0].mxu0 %v5224
    %v7223 = vpop.f32.mrb[0].mxu0
    %v7224 = vadd.f32 %v7111, %v7223
    %v7225 = vpop.f32.mrb[0].mxu0
    %v7226 = vadd.f32 %v7113, %v7225
    %v7227 = vpop.f32.mrb[0].mxu0
    %v7228 = vadd.f32 %v7115, %v7227
    %v7229 = vpop.f32.mrb[0].mxu0
    %v7230 = vadd.f32 %v7117, %v7229
    %7231 = vmatprep.mubr.bf16.mxu0 %v5233
    %7232 = vmatmul.mubr.bf16.gmra.mrb[0].mxu0 %v5232
    %v7233 = vpop.f32.mrb[0].mxu0
    %v7234 = vadd.f32 %v7121, %v7233
    %v7235 = vpop.f32.mrb[0].mxu0
    %v7236 = vadd.f32 %v7123, %v7235
    %v7237 = vpop.f32.mrb[0].mxu0
    %v7238 = vadd.f32 %v7125, %v7237
    %v7239 = vpop.f32.mrb[0].mxu0
    %v7240 = vadd.f32 %v7127, %v7239
    %7241 = vmatprep.mubr.bf16.mxu0 %v5241
    %7242 = vmatmul.mubr.bf16.gmra.mrb[0].mxu0 %v5240
    %v7243 = vpop.f32.mrb[0].mxu0
    %v7244 = vadd.f32 %v7131, %v7243
    %v7245 = vpop.f32.mrb[0].mxu0
    %v7246 = vadd.f32 %v7133, %v7245
    %v7247 = vpop.f32.mrb[0].mxu0
    %v7248 = vadd.f32 %v7135, %v7247
    %v7249 = vpop.f32.mrb[0].mxu0
    %v7250 = vadd.f32 %v7137, %v7249
    %7251 = vdwg.mxu0
    %7252 = vmatprep.subr.bf16.mxu0 %v6291
    %7253 = vmatpush1.bf16.msra.mxu0 %v6290
    %7254 = vmatprep.subr.bf16.mxu0 %v6295
    %7255 = vmatpush1.bf16.msra.mxu0 %v6294
    %7256 = vmatprep.subr.bf16.mxu0 %v6299
    %7257 = vmatpush1.bf16.msra.mxu0 %v6298
    %7258 = vmatprep.subr.bf16.mxu0 %v6303
    %7259 = vmatpush1.bf16.msra.mxu0 %v6302
    %7260 = vmatprep.subr.bf16.mxu0 %v6307
    %7261 = vmatpush1.bf16.msra.mxu0 %v6306
    %7262 = vmatprep.subr.bf16.mxu0 %v6311
    %7263 = vmatpush1.bf16.msra.mxu0 %v6310
    %7264 = vmatprep.subr.bf16.mxu0 %v6315
    %7265 = vmatpush1.bf16.msra.mxu0 %v6314
    %7266 = vmatprep.subr.bf16.mxu0 %v6319
    %7267 = vmatpush1.bf16.msra.mxu0 %v6318
    %7268 = vmatprep.subr.bf16.mxu0 %v6323
    %7269 = vmatpush1.bf16.msra.mxu0 %v6322
    %7270 = vmatprep.subr.bf16.mxu0 %v6327
    %7271 = vmatpush1.bf16.msra.mxu0 %v6326
    %7272 = vmatprep.subr.bf16.mxu0 %v6331
    %7273 = vmatpush1.bf16.msra.mxu0 %v6330
    %7274 = vmatprep.subr.bf16.mxu0 %v6335
    %7275 = vmatpush1.bf16.msra.mxu0 %v6334
    %7276 = vmatprep.subr.bf16.mxu0 %v6339
    %7277 = vmatpush1.bf16.msra.mxu0 %v6338
    %7278 = vmatprep.subr.bf16.mxu0 %v6343
    %7279 = vmatpush1.bf16.msra.mxu0 %v6342
    %7280 = vmatprep.subr.bf16.mxu0 %v6347
    %7281 = vmatpush1.bf16.msra.mxu0 %v6346
    %7282 = vmatprep.subr.bf16.mxu0 %v6351
    %7283 = vmatpush1.bf16.msra.mxu0 %v6350
    %7284 = vmatprep.mubr.bf16.mxu0 %v5179
    %7285 = vmatmul.mubr.bf16.gmra.mrb[0].mxu0 %v5178
    %v7286 = vpop.f32.mrb[0].mxu0
    %v7287 = vadd.f32 %v5511, %v7286
    %v7288 = vpop.f32.mrb[0].mxu0
    %v7289 = vadd.f32 %v5515, %v7288
    %v7290 = vpop.f32.mrb[0].mxu0
    %v7291 = vadd.f32 %v5511, %v7290
    %v7292 = vpop.f32.mrb[0].mxu0
    %v7293 = vadd.f32 %v5515, %v7292
    %7294 = vmatprep.mubr.bf16.mxu0 %v5187
    %7295 = vmatmul.mubr.bf16.gmra.mrb[0].mxu0 %v5186
    %v7296 = vpop.f32.mrb[0].mxu0
    %v7297 = vadd.f32 %v5511, %v7296
    %v7298 = vpop.f32.mrb[0].mxu0
    %v7299 = vadd.f32 %v5515, %v7298
    %v7300 = vpop.f32.mrb[0].mxu0
    %v7301 = vadd.f32 %v5511, %v7300
    %v7302 = vpop.f32.mrb[0].mxu0
    %v7303 = vadd.f32 %v5515, %v7302
    %7304 = vmatprep.mubr.bf16.mxu0 %v5195
    %7305 = vmatmul.mubr.bf16.gmra.mrb[0].mxu0 %v5194
    %v7306 = vpop.f32.mrb[0].mxu0
    %v7307 = vadd.f32 %v5511, %v7306
    %v7308 = vpop.f32.mrb[0].mxu0
    %v7309 = vadd.f32 %v5515, %v7308
    %v7310 = vpop.f32.mrb[0].mxu0
    %v7311 = vadd.f32 %v5511, %v7310
    %v7312 = vpop.f32.mrb[0].mxu0
    %v7313 = vadd.f32 %v5515, %v7312
    %7314 = vmatprep.mubr.bf16.mxu0 %v5203
    %7315 = vmatmul.mubr.bf16.gmra.mrb[0].mxu0 %v5202
    %v7316 = vpop.f32.mrb[0].mxu0
    %v7317 = vadd.f32 %v5511, %v7316
    %v7318 = vpop.f32.mrb[0].mxu0
    %v7319 = vadd.f32 %v5515, %v7318
    %v7320 = vpop.f32.mrb[0].mxu0
    %v7321 = vadd.f32 %v5511, %v7320
    %v7322 = vpop.f32.mrb[0].mxu0
    %v7323 = vadd.f32 %v5515, %v7322
    %7324 = vmatprep.mubr.bf16.mxu0 %v5211
    %7325 = vmatmul.mubr.bf16.gmra.mrb[0].mxu0 %v5210
    %v7326 = vpop.f32.mrb[0].mxu0
    %v7327 = vadd.f32 %v5511, %v7326
    %v7328 = vpop.f32.mrb[0].mxu0
    %v7329 = vadd.f32 %v5515, %v7328
    %v7330 = vpop.f32.mrb[0].mxu0
    %v7331 = vadd.f32 %v5511, %v7330
    %v7332 = vpop.f32.mrb[0].mxu0
    %v7333 = vadd.f32 %v5515, %v7332
    %7334 = vmatprep.mubr.bf16.mxu0 %v5219
    %7335 = vmatmul.mubr.bf16.gmra.mrb[0].mxu0 %v5218
    %v7336 = vpop.f32.mrb[0].mxu0
    %v7337 = vadd.f32 %v5511, %v7336
    %v7338 = vpop.f32.mrb[0].mxu0
    %v7339 = vadd.f32 %v5515, %v7338
    %v7340 = vpop.f32.mrb[0].mxu0
    %v7341 = vadd.f32 %v5511, %v7340
    %v7342 = vpop.f32.mrb[0].mxu0
    %v7343 = vadd.f32 %v5515, %v7342
    %7344 = vmatprep.mubr.bf16.mxu0 %v5227
    %7345 = vmatmul.mubr.bf16.gmra.mrb[0].mxu0 %v5226
    %v7346 = vpop.f32.mrb[0].mxu0
    %v7347 = vadd.f32 %v5511, %v7346
    %v7348 = vpop.f32.mrb[0].mxu0
    %v7349 = vadd.f32 %v5515, %v7348
    %v7350 = vpop.f32.mrb[0].mxu0
    %v7351 = vadd.f32 %v5511, %v7350
    %v7352 = vpop.f32.mrb[0].mxu0
    %v7353 = vadd.f32 %v5515, %v7352
    %7354 = vmatprep.mubr.bf16.mxu0 %v5235
    %7355 = vmatmul.mubr.bf16.gmra.mrb[0].mxu0 %v5234
    %v7356 = vpop.f32.mrb[0].mxu0
    %v7357 = vadd.f32 %v5511, %v7356
    %v7358 = vpop.f32.mrb[0].mxu0
    %v7359 = vadd.f32 %v5515, %v7358
    %v7360 = vpop.f32.mrb[0].mxu0
    %v7361 = vadd.f32 %v5511, %v7360
    %v7362 = vpop.f32.mrb[0].mxu0
    %v7363 = vadd.f32 %v5515, %v7362
    %7364 = vdwg.mxu0
    %7365 = vmatprep.subr.bf16.mxu0 %v6355
    %7366 = vmatpush1.bf16.msra.mxu0 %v6354
    %7367 = vmatprep.subr.bf16.mxu0 %v6359
    %7368 = vmatpush1.bf16.msra.mxu0 %v6358
    %7369 = vmatprep.subr.bf16.mxu0 %v6363
    %7370 = vmatpush1.bf16.msra.mxu0 %v6362
    %7371 = vmatprep.subr.bf16.mxu0 %v6367
    %7372 = vmatpush1.bf16.msra.mxu0 %v6366
    %7373 = vmatprep.subr.bf16.mxu0 %v6371
    %7374 = vmatpush1.bf16.msra.mxu0 %v6370
    %7375 = vmatprep.subr.bf16.mxu0 %v6375
    %7376 = vmatpush1.bf16.msra.mxu0 %v6374
    %7377 = vmatprep.subr.bf16.mxu0 %v6379
    %7378 = vmatpush1.bf16.msra.mxu0 %v6378
    %7379 = vmatprep.subr.bf16.mxu0 %v6383
    %7380 = vmatpush1.bf16.msra.mxu0 %v6382
    %7381 = vmatprep.subr.bf16.mxu0 %v6387
    %7382 = vmatpush1.bf16.msra.mxu0 %v6386
    %7383 = vmatprep.subr.bf16.mxu0 %v6391
    %7384 = vmatpush1.bf16.msra.mxu0 %v6390
    %7385 = vmatprep.subr.bf16.mxu0 %v6395
    %7386 = vmatpush1.bf16.msra.mxu0 %v6394
    %7387 = vmatprep.subr.bf16.mxu0 %v6399
    %7388 = vmatpush1.bf16.msra.mxu0 %v6398
    %7389 = vmatprep.subr.bf16.mxu0 %v6403
    %7390 = vmatpush1.bf16.msra.mxu0 %v6402
    %7391 = vmatprep.subr.bf16.mxu0 %v6407
    %7392 = vmatpush1.bf16.msra.mxu0 %v6406
    %7393 = vmatprep.subr.bf16.mxu0 %v6411
    %7394 = vmatpush1.bf16.msra.mxu0 %v6410
    %7395 = vmatprep.subr.bf16.mxu0 %v6415
    %7396 = vmatpush1.bf16.msra.mxu0 %v6414
    %7397 = vmatprep.mubr.bf16.mxu0 %v5181
    %7398 = vmatmul.mubr.bf16.gmra.mrb[0].mxu0 %v5180
    %v7399 = vpop.f32.mrb[0].mxu0
    %v7400 = vadd.f32 %v7287, %v7399
    %v7401 = vpop.f32.mrb[0].mxu0
    %v7402 = vadd.f32 %v7289, %v7401
    %v7403 = vpop.f32.mrb[0].mxu0
    %v7404 = vadd.f32 %v7291, %v7403
    %v7405 = vpop.f32.mrb[0].mxu0
    %v7406 = vadd.f32 %v7293, %v7405
    %7407 = vmatprep.mubr.bf16.mxu0 %v5189
    %7408 = vmatmul.mubr.bf16.gmra.mrb[0].mxu0 %v5188
    %v7409 = vpop.f32.mrb[0].mxu0
    %v7410 = vadd.f32 %v7297, %v7409
    %v7411 = vpop.f32.mrb[0].mxu0
    %v7412 = vadd.f32 %v7299, %v7411
    %v7413 = vpop.f32.mrb[0].mxu0
    %v7414 = vadd.f32 %v7301, %v7413
    %v7415 = vpop.f32.mrb[0].mxu0
    %v7416 = vadd.f32 %v7303, %v7415
    %7417 = vmatprep.mubr.bf16.mxu0 %v5197
    %7418 = vmatmul.mubr.bf16.gmra.mrb[0].mxu0 %v5196
    %v7419 = vpop.f32.mrb[0].mxu0
    %v7420 = vadd.f32 %v7307, %v7419
    %v7421 = vpop.f32.mrb[0].mxu0
    %v7422 = vadd.f32 %v7309, %v7421
    %v7423 = vpop.f32.mrb[0].mxu0
    %v7424 = vadd.f32 %v7311, %v7423
    %v7425 = vpop.f32.mrb[0].mxu0
    %v7426 = vadd.f32 %v7313, %v7425
    %7427 = vmatprep.mubr.bf16.mxu0 %v5205
    %7428 = vmatmul.mubr.bf16.gmra.mrb[0].mxu0 %v5204
    %v7429 = vpop.f32.mrb[0].mxu0
    %v7430 = vadd.f32 %v7317, %v7429
    %v7431 = vpop.f32.mrb[0].mxu0
    %v7432 = vadd.f32 %v7319, %v7431
    %v7433 = vpop.f32.mrb[0].mxu0
    %v7434 = vadd.f32 %v7321, %v7433
    %v7435 = vpop.f32.mrb[0].mxu0
    %v7436 = vadd.f32 %v7323, %v7435
    %7437 = vmatprep.mubr.bf16.mxu0 %v5213
    %7438 = vmatmul.mubr.bf16.gmra.mrb[0].mxu0 %v5212
    %v7439 = vpop.f32.mrb[0].mxu0
    %v7440 = vadd.f32 %v7327, %v7439
    %v7441 = vpop.f32.mrb[0].mxu0
    %v7442 = vadd.f32 %v7329, %v7441
    %v7443 = vpop.f32.mrb[0].mxu0
    %v7444 = vadd.f32 %v7331, %v7443
    %v7445 = vpop.f32.mrb[0].mxu0
    %v7446 = vadd.f32 %v7333, %v7445
    %7447 = vmatprep.mubr.bf16.mxu0 %v5221
    %7448 = vmatmul.mubr.bf16.gmra.mrb[0].mxu0 %v5220
    %v7449 = vpop.f32.mrb[0].mxu0
    %v7450 = vadd.f32 %v7337, %v7449
    %v7451 = vpop.f32.mrb[0].mxu0
    %v7452 = vadd.f32 %v7339, %v7451
    %v7453 = vpop.f32.mrb[0].mxu0
    %v7454 = vadd.f32 %v7341, %v7453
    %v7455 = vpop.f32.mrb[0].mxu0
    %v7456 = vadd.f32 %v7343, %v7455
    %7457 = vmatprep.mubr.bf16.mxu0 %v5229
    %7458 = vmatmul.mubr.bf16.gmra.mrb[0].mxu0 %v5228
    %v7459 = vpop.f32.mrb[0].mxu0
    %v7460 = vadd.f32 %v7347, %v7459
    %v7461 = vpop.f32.mrb[0].mxu0
    %v7462 = vadd.f32 %v7349, %v7461
    %v7463 = vpop.f32.mrb[0].mxu0
    %v7464 = vadd.f32 %v7351, %v7463
    %v7465 = vpop.f32.mrb[0].mxu0
    %v7466 = vadd.f32 %v7353, %v7465
    %7467 = vmatprep.mubr.bf16.mxu0 %v5237
    %7468 = vmatmul.mubr.bf16.gmra.mrb[0].mxu0 %v5236
    %v7469 = vpop.f32.mrb[0].mxu0
    %v7470 = vadd.f32 %v7357, %v7469
    %v7471 = vpop.f32.mrb[0].mxu0
    %v7472 = vadd.f32 %v7359, %v7471
    %v7473 = vpop.f32.mrb[0].mxu0
    %v7474 = vadd.f32 %v7361, %v7473
    %v7475 = vpop.f32.mrb[0].mxu0
    %v7476 = vadd.f32 %v7363, %v7475
    %7477 = vdwg.mxu0
    %7478 = vmatprep.subr.bf16.mxu0 %v6419
    %7479 = vmatpush1.bf16.msra.mxu0 %v6418
    %7480 = vmatprep.subr.bf16.mxu0 %v6423
    %7481 = vmatpush1.bf16.msra.mxu0 %v6422
    %7482 = vmatprep.subr.bf16.mxu0 %v6427
    %7483 = vmatpush1.bf16.msra.mxu0 %v6426
    %7484 = vmatprep.subr.bf16.mxu0 %v6431
    %7485 = vmatpush1.bf16.msra.mxu0 %v6430
    %7486 = vmatprep.subr.bf16.mxu0 %v6435
    %7487 = vmatpush1.bf16.msra.mxu0 %v6434
    %7488 = vmatprep.subr.bf16.mxu0 %v6439
    %7489 = vmatpush1.bf16.msra.mxu0 %v6438
    %7490 = vmatprep.subr.bf16.mxu0 %v6443
    %7491 = vmatpush1.bf16.msra.mxu0 %v6442
    %7492 = vmatprep.subr.bf16.mxu0 %v6447
    %7493 = vmatpush1.bf16.msra.mxu0 %v6446
    %7494 = vmatprep.subr.bf16.mxu0 %v6451
    %7495 = vmatpush1.bf16.msra.mxu0 %v6450
    %7496 = vmatprep.subr.bf16.mxu0 %v6455
    %7497 = vmatpush1.bf16.msra.mxu0 %v6454
    %7498 = vmatprep.subr.bf16.mxu0 %v6459
    %7499 = vmatpush1.bf16.msra.mxu0 %v6458
    %7500 = vmatprep.subr.bf16.mxu0 %v6463
    %7501 = vmatpush1.bf16.msra.mxu0 %v6462
    %7502 = vmatprep.subr.bf16.mxu0 %v6467
    %7503 = vmatpush1.bf16.msra.mxu0 %v6466
    %7504 = vmatprep.subr.bf16.mxu0 %v6471
    %7505 = vmatpush1.bf16.msra.mxu0 %v6470
    %7506 = vmatprep.subr.bf16.mxu0 %v6475
    %7507 = vmatpush1.bf16.msra.mxu0 %v6474
    %7508 = vmatprep.subr.bf16.mxu0 %v6479
    %7509 = vmatpush1.bf16.msra.mxu0 %v6478
    %7510 = vmatprep.mubr.bf16.mxu0 %v5183
    %7511 = vmatmul.mubr.bf16.gmra.mrb[0].mxu0 %v5182
    %v7512 = vpop.f32.mrb[0].mxu0
    %v7513 = vadd.f32 %v7400, %v7512
    %v7514 = vpop.f32.mrb[0].mxu0
    %v7515 = vadd.f32 %v7402, %v7514
    %v7516 = vpop.f32.mrb[0].mxu0
    %v7517 = vadd.f32 %v7404, %v7516
    %v7518 = vpop.f32.mrb[0].mxu0
    %v7519 = vadd.f32 %v7406, %v7518
    %7520 = vmatprep.mubr.bf16.mxu0 %v5191
    %7521 = vmatmul.mubr.bf16.gmra.mrb[0].mxu0 %v5190
    %v7522 = vpop.f32.mrb[0].mxu0
    %v7523 = vadd.f32 %v7410, %v7522
    %v7524 = vpop.f32.mrb[0].mxu0
    %v7525 = vadd.f32 %v7412, %v7524
    %v7526 = vpop.f32.mrb[0].mxu0
    %v7527 = vadd.f32 %v7414, %v7526
    %v7528 = vpop.f32.mrb[0].mxu0
    %v7529 = vadd.f32 %v7416, %v7528
    %7530 = vmatprep.mubr.bf16.mxu0 %v5199
    %7531 = vmatmul.mubr.bf16.gmra.mrb[0].mxu0 %v5198
    %v7532 = vpop.f32.mrb[0].mxu0
    %v7533 = vadd.f32 %v7420, %v7532
    %v7534 = vpop.f32.mrb[0].mxu0
    %v7535 = vadd.f32 %v7422, %v7534
    %v7536 = vpop.f32.mrb[0].mxu0
    %v7537 = vadd.f32 %v7424, %v7536
    %v7538 = vpop.f32.mrb[0].mxu0
    %v7539 = vadd.f32 %v7426, %v7538
    %7540 = vmatprep.mubr.bf16.mxu0 %v5207
    %7541 = vmatmul.mubr.bf16.gmra.mrb[0].mxu0 %v5206
    %v7542 = vpop.f32.mrb[0].mxu0
    %v7543 = vadd.f32 %v7430, %v7542
    %v7544 = vpop.f32.mrb[0].mxu0
    %v7545 = vadd.f32 %v7432, %v7544
    %v7546 = vpop.f32.mrb[0].mxu0
    %v7547 = vadd.f32 %v7434, %v7546
    %v7548 = vpop.f32.mrb[0].mxu0
    %v7549 = vadd.f32 %v7436, %v7548
    %7550 = vmatprep.mubr.bf16.mxu0 %v5215
    %7551 = vmatmul.mubr.bf16.gmra.mrb[0].mxu0 %v5214
    %v7552 = vpop.f32.mrb[0].mxu0
    %v7553 = vadd.f32 %v7440, %v7552
    %v7554 = vpop.f32.mrb[0].mxu0
    %v7555 = vadd.f32 %v7442, %v7554
    %v7556 = vpop.f32.mrb[0].mxu0
    %v7557 = vadd.f32 %v7444, %v7556
    %v7558 = vpop.f32.mrb[0].mxu0
    %v7559 = vadd.f32 %v7446, %v7558
    %7560 = vmatprep.mubr.bf16.mxu0 %v5223
    %7561 = vmatmul.mubr.bf16.gmra.mrb[0].mxu0 %v5222
    %v7562 = vpop.f32.mrb[0].mxu0
    %v7563 = vadd.f32 %v7450, %v7562
    %v7564 = vpop.f32.mrb[0].mxu0
    %v7565 = vadd.f32 %v7452, %v7564
    %v7566 = vpop.f32.mrb[0].mxu0
    %v7567 = vadd.f32 %v7454, %v7566
    %v7568 = vpop.f32.mrb[0].mxu0
    %v7569 = vadd.f32 %v7456, %v7568
    %7570 = vmatprep.mubr.bf16.mxu0 %v5231
    %7571 = vmatmul.mubr.bf16.gmra.mrb[0].mxu0 %v5230
    %v7572 = vpop.f32.mrb[0].mxu0
    %v7573 = vadd.f32 %v7460, %v7572
    %v7574 = vpop.f32.mrb[0].mxu0
    %v7575 = vadd.f32 %v7462, %v7574
    %v7576 = vpop.f32.mrb[0].mxu0
    %v7577 = vadd.f32 %v7464, %v7576
    %v7578 = vpop.f32.mrb[0].mxu0
    %v7579 = vadd.f32 %v7466, %v7578
    %7580 = vmatprep.mubr.bf16.mxu0 %v5239
    %7581 = vmatmul.mubr.bf16.gmra.mrb[0].mxu0 %v5238
    %v7582 = vpop.f32.mrb[0].mxu0
    %v7583 = vadd.f32 %v7470, %v7582
    %v7584 = vpop.f32.mrb[0].mxu0
    %v7585 = vadd.f32 %v7472, %v7584
    %v7586 = vpop.f32.mrb[0].mxu0
    %v7587 = vadd.f32 %v7474, %v7586
    %v7588 = vpop.f32.mrb[0].mxu0
    %v7589 = vadd.f32 %v7476, %v7588
    %7590 = vdwg.mxu0
    %7591 = vmatprep.subr.bf16.mxu0 %v6483
    %7592 = vmatpush1.bf16.msra.mxu0 %v6482
    %7593 = vmatprep.subr.bf16.mxu0 %v6487
    %7594 = vmatpush1.bf16.msra.mxu0 %v6486
    %7595 = vmatprep.subr.bf16.mxu0 %v6491
    %7596 = vmatpush1.bf16.msra.mxu0 %v6490
    %7597 = vmatprep.subr.bf16.mxu0 %v6495
    %7598 = vmatpush1.bf16.msra.mxu0 %v6494
    %7599 = vmatprep.subr.bf16.mxu0 %v6499
    %7600 = vmatpush1.bf16.msra.mxu0 %v6498
    %7601 = vmatprep.subr.bf16.mxu0 %v6503
    %7602 = vmatpush1.bf16.msra.mxu0 %v6502
    %7603 = vmatprep.subr.bf16.mxu0 %v6507
    %7604 = vmatpush1.bf16.msra.mxu0 %v6506
    %7605 = vmatprep.subr.bf16.mxu0 %v6511
    %7606 = vmatpush1.bf16.msra.mxu0 %v6510
    %7607 = vmatprep.subr.bf16.mxu0 %v6515
    %7608 = vmatpush1.bf16.msra.mxu0 %v6514
    %7609 = vmatprep.subr.bf16.mxu0 %v6519
    %7610 = vmatpush1.bf16.msra.mxu0 %v6518
    %7611 = vmatprep.subr.bf16.mxu0 %v6523
    %7612 = vmatpush1.bf16.msra.mxu0 %v6522
    %7613 = vmatprep.subr.bf16.mxu0 %v6527
    %7614 = vmatpush1.bf16.msra.mxu0 %v6526
    %7615 = vmatprep.subr.bf16.mxu0 %v6531
    %7616 = vmatpush1.bf16.msra.mxu0 %v6530
    %7617 = vmatprep.subr.bf16.mxu0 %v6535
    %7618 = vmatpush1.bf16.msra.mxu0 %v6534
    %7619 = vmatprep.subr.bf16.mxu0 %v6539
    %7620 = vmatpush1.bf16.msra.mxu0 %v6538
    %7621 = vmatprep.subr.bf16.mxu0 %v6543
    %7622 = vmatpush1.bf16.msra.mxu0 %v6542
    %7623 = vmatprep.mubr.bf16.mxu0 %v5185
    %7624 = vmatmul.mubr.bf16.gmra.mrb[0].mxu0 %v5184
    %v7625 = vpop.f32.mrb[0].mxu0
    %v7626 = vadd.f32 %v7513, %v7625
    %v7627 = vpop.f32.mrb[0].mxu0
    %v7628 = vadd.f32 %v7515, %v7627
    %v7629 = vpop.f32.mrb[0].mxu0
    %v7630 = vadd.f32 %v7517, %v7629
    %v7631 = vpop.f32.mrb[0].mxu0
    %v7632 = vadd.f32 %v7519, %v7631
    %7633 = vmatprep.mubr.bf16.mxu0 %v5193
    %7634 = vmatmul.mubr.bf16.gmra.mrb[0].mxu0 %v5192
    %v7635 = vpop.f32.mrb[0].mxu0
    %v7636 = vadd.f32 %v7523, %v7635
    %v7637 = vpop.f32.mrb[0].mxu0
    %v7638 = vadd.f32 %v7525, %v7637
    %v7639 = vpop.f32.mrb[0].mxu0
    %v7640 = vadd.f32 %v7527, %v7639
    %v7641 = vpop.f32.mrb[0].mxu0
    %v7642 = vadd.f32 %v7529, %v7641
    %7643 = vmatprep.mubr.bf16.mxu0 %v5201
    %7644 = vmatmul.mubr.bf16.gmra.mrb[0].mxu0 %v5200
    %v7645 = vpop.f32.mrb[0].mxu0
    %v7646 = vadd.f32 %v7533, %v7645
    %v7647 = vpop.f32.mrb[0].mxu0
    %v7648 = vadd.f32 %v7535, %v7647
    %v7649 = vpop.f32.mrb[0].mxu0
    %v7650 = vadd.f32 %v7537, %v7649
    %v7651 = vpop.f32.mrb[0].mxu0
    %v7652 = vadd.f32 %v7539, %v7651
    %7653 = vmatprep.mubr.bf16.mxu0 %v5209
    %7654 = vmatmul.mubr.bf16.gmra.mrb[0].mxu0 %v5208
    %v7655 = vpop.f32.mrb[0].mxu0
    %v7656 = vadd.f32 %v7543, %v7655
    %v7657 = vpop.f32.mrb[0].mxu0
    %v7658 = vadd.f32 %v7545, %v7657
    %v7659 = vpop.f32.mrb[0].mxu0
    %v7660 = vadd.f32 %v7547, %v7659
    %v7661 = vpop.f32.mrb[0].mxu0
    %v7662 = vadd.f32 %v7549, %v7661
    %7663 = vmatprep.mubr.bf16.mxu0 %v5217
    %7664 = vmatmul.mubr.bf16.gmra.mrb[0].mxu0 %v5216
    %v7665 = vpop.f32.mrb[0].mxu0
    %v7666 = vadd.f32 %v7553, %v7665
    %v7667 = vpop.f32.mrb[0].mxu0
    %v7668 = vadd.f32 %v7555, %v7667
    %v7669 = vpop.f32.mrb[0].mxu0
    %v7670 = vadd.f32 %v7557, %v7669
    %v7671 = vpop.f32.mrb[0].mxu0
    %v7672 = vadd.f32 %v7559, %v7671
    %7673 = vmatprep.mubr.bf16.mxu0 %v5225
    %7674 = vmatmul.mubr.bf16.gmra.mrb[0].mxu0 %v5224
    %v7675 = vpop.f32.mrb[0].mxu0
    %v7676 = vadd.f32 %v7563, %v7675
    %v7677 = vpop.f32.mrb[0].mxu0
    %v7678 = vadd.f32 %v7565, %v7677
    %v7679 = vpop.f32.mrb[0].mxu0
    %v7680 = vadd.f32 %v7567, %v7679
    %v7681 = vpop.f32.mrb[0].mxu0
    %v7682 = vadd.f32 %v7569, %v7681
    %7683 = vmatprep.mubr.bf16.mxu0 %v5233
    %7684 = vmatmul.mubr.bf16.gmra.mrb[0].mxu0 %v5232
    %v7685 = vpop.f32.mrb[0].mxu0
    %v7686 = vadd.f32 %v7573, %v7685
    %v7687 = vpop.f32.mrb[0].mxu0
    %v7688 = vadd.f32 %v7575, %v7687
    %v7689 = vpop.f32.mrb[0].mxu0
    %v7690 = vadd.f32 %v7577, %v7689
    %v7691 = vpop.f32.mrb[0].mxu0
    %v7692 = vadd.f32 %v7579, %v7691
    %7693 = vmatprep.mubr.bf16.mxu0 %v5241
    %7694 = vmatmul.mubr.bf16.gmra.mrb[0].mxu0 %v5240
    %v7695 = vpop.f32.mrb[0].mxu0
    %v7696 = vadd.f32 %v7583, %v7695
    %v7697 = vpop.f32.mrb[0].mxu0
    %v7698 = vadd.f32 %v7585, %v7697
    %v7699 = vpop.f32.mrb[0].mxu0
    %v7700 = vadd.f32 %v7587, %v7699
    %v7701 = vpop.f32.mrb[0].mxu0
    %v7702 = vadd.f32 %v7589, %v7701
    %7703 = vdwg.mxu0
    %vm7704 = vcmp.gt.f32.partialorder %v7174, 0.0
    %vm7705 = vcmp.gt.f32.partialorder %v7176, 0.0
    %vm7706 = vcmp.gt.f32.partialorder %v7626, 0.0
    %vm7707 = vcmp.gt.f32.partialorder %v7628, 0.0
    %vm7708 = vcmp.gt.f32.partialorder %v7178, 0.0
    %vm7709 = vcmp.gt.f32.partialorder %v7180, 0.0
    %vm7710 = vcmp.gt.f32.partialorder %v7630, 0.0
    %vm7711 = vcmp.gt.f32.partialorder %v7632, 0.0
    %vm7712 = vcmp.gt.f32.partialorder %v7184, 0.0
    %vm7713 = vcmp.gt.f32.partialorder %v7186, 0.0
    %vm7714 = vcmp.gt.f32.partialorder %v7636, 0.0
    %vm7715 = vcmp.gt.f32.partialorder %v7638, 0.0
    %vm7716 = vcmp.gt.f32.partialorder %v7188, 0.0
    %vm7717 = vcmp.gt.f32.partialorder %v7190, 0.0
    %vm7718 = vcmp.gt.f32.partialorder %v7640, 0.0
    %vm7719 = vcmp.gt.f32.partialorder %v7642, 0.0
    %vm7720 = vcmp.gt.f32.partialorder %v7194, 0.0
    %vm7721 = vcmp.gt.f32.partialorder %v7196, 0.0
    %vm7722 = vcmp.gt.f32.partialorder %v7646, 0.0
    %vm7723 = vcmp.gt.f32.partialorder %v7648, 0.0
    %vm7724 = vcmp.gt.f32.partialorder %v7198, 0.0
    %vm7725 = vcmp.gt.f32.partialorder %v7200, 0.0
    %vm7726 = vcmp.gt.f32.partialorder %v7650, 0.0
    %vm7727 = vcmp.gt.f32.partialorder %v7652, 0.0
    %vm7728 = vcmp.gt.f32.partialorder %v7204, 0.0
    %vm7729 = vcmp.gt.f32.partialorder %v7206, 0.0
    %vm7730 = vcmp.gt.f32.partialorder %v7656, 0.0
    %vm7731 = vcmp.gt.f32.partialorder %v7658, 0.0
    %vm7732 = vcmp.gt.f32.partialorder %v7208, 0.0
    %vm7733 = vcmp.gt.f32.partialorder %v7210, 0.0
    %vm7734 = vcmp.gt.f32.partialorder %v7660, 0.0
    %vm7735 = vcmp.gt.f32.partialorder %v7662, 0.0
    %vm7736 = vcmp.gt.f32.partialorder %v7214, 0.0
    %vm7737 = vcmp.gt.f32.partialorder %v7216, 0.0
    %vm7738 = vcmp.gt.f32.partialorder %v7666, 0.0
    %vm7739 = vcmp.gt.f32.partialorder %v7668, 0.0
    %vm7740 = vcmp.gt.f32.partialorder %v7218, 0.0
    %vm7741 = vcmp.gt.f32.partialorder %v7220, 0.0
    %vm7742 = vcmp.gt.f32.partialorder %v7670, 0.0
    %vm7743 = vcmp.gt.f32.partialorder %v7672, 0.0
    %vm7744 = vcmp.gt.f32.partialorder %v7224, 0.0
    %vm7745 = vcmp.gt.f32.partialorder %v7226, 0.0
    %vm7746 = vcmp.gt.f32.partialorder %v7676, 0.0
    %vm7747 = vcmp.gt.f32.partialorder %v7678, 0.0
    %vm7748 = vcmp.gt.f32.partialorder %v7228, 0.0
    %vm7749 = vcmp.gt.f32.partialorder %v7230, 0.0
    %vm7750 = vcmp.gt.f32.partialorder %v7680, 0.0
    %vm7751 = vcmp.gt.f32.partialorder %v7682, 0.0
    %vm7752 = vcmp.gt.f32.partialorder %v7234, 0.0
    %vm7753 = vcmp.gt.f32.partialorder %v7236, 0.0
    %vm7754 = vcmp.gt.f32.partialorder %v7686, 0.0
    %vm7755 = vcmp.gt.f32.partialorder %v7688, 0.0
    %vm7756 = vcmp.gt.f32.partialorder %v7238, 0.0
    %vm7757 = vcmp.gt.f32.partialorder %v7240, 0.0
    %vm7758 = vcmp.gt.f32.partialorder %v7690, 0.0
    %vm7759 = vcmp.gt.f32.partialorder %v7692, 0.0
    %vm7760 = vcmp.gt.f32.partialorder %v7244, 0.0
    %vm7761 = vcmp.gt.f32.partialorder %v7246, 0.0
    %vm7762 = vcmp.gt.f32.partialorder %v7696, 0.0
    %vm7763 = vcmp.gt.f32.partialorder %v7698, 0.0
    %vm7764 = vcmp.gt.f32.partialorder %v7248, 0.0
    %vm7765 = vcmp.gt.f32.partialorder %v7250, 0.0
    %vm7766 = vcmp.gt.f32.partialorder %v7700, 0.0
    %vm7767 = vcmp.gt.f32.partialorder %v7702, 0.0
    %v7768 = vmul.f32 %v7174, 0.2
    %v7769 = vmul.f32 %v7176, 0.2
    %v7770 = vmul.f32 %v7626, 0.2
    %v7771 = vmul.f32 %v7628, 0.2
    %v7772 = vmul.f32 %v7178, 0.2
    %v7773 = vmul.f32 %v7180, 0.2
    %v7774 = vmul.f32 %v7630, 0.2
    %v7775 = vmul.f32 %v7632, 0.2
    %v7776 = vmul.f32 %v7184, 0.2
    %v7777 = vmul.f32 %v7186, 0.2
    %v7778 = vmul.f32 %v7636, 0.2
    %v7779 = vmul.f32 %v7638, 0.2
    %v7780 = vmul.f32 %v7188, 0.2
    %v7781 = vmul.f32 %v7190, 0.2
    %v7782 = vmul.f32 %v7640, 0.2
    %v7783 = vmul.f32 %v7642, 0.2
    %v7784 = vmul.f32 %v7194, 0.2
    %v7785 = vmul.f32 %v7196, 0.2
    %v7786 = vmul.f32 %v7646, 0.2
    %v7787 = vmul.f32 %v7648, 0.2
    %v7788 = vmul.f32 %v7198, 0.2
    %v7789 = vmul.f32 %v7200, 0.2
    %v7790 = vmul.f32 %v7650, 0.2
    %v7791 = vmul.f32 %v7652, 0.2
    %v7792 = vmul.f32 %v7204, 0.2
    %v7793 = vmul.f32 %v7206, 0.2
    %v7794 = vmul.f32 %v7656, 0.2
    %v7795 = vmul.f32 %v7658, 0.2
    %v7796 = vmul.f32 %v7208, 0.2
    %v7797 = vmul.f32 %v7210, 0.2
    %v7798 = vmul.f32 %v7660, 0.2
    %v7799 = vmul.f32 %v7662, 0.2
    %v7800 = vmul.f32 %v7214, 0.2
    %v7801 = vmul.f32 %v7216, 0.2
    %v7802 = vmul.f32 %v7666, 0.2
    %v7803 = vmul.f32 %v7668, 0.2
    %v7804 = vmul.f32 %v7218, 0.2
    %v7805 = vmul.f32 %v7220, 0.2
    %v7806 = vmul.f32 %v7670, 0.2
    %v7807 = vmul.f32 %v7672, 0.2
    %v7808 = vmul.f32 %v7224, 0.2
    %v7809 = vmul.f32 %v7226, 0.2
    %v7810 = vmul.f32 %v7676, 0.2
    %v7811 = vmul.f32 %v7678, 0.2
    %v7812 = vmul.f32 %v7228, 0.2
    %v7813 = vmul.f32 %v7230, 0.2
    %v7814 = vmul.f32 %v7680, 0.2
    %v7815 = vmul.f32 %v7682, 0.2
    %v7816 = vmul.f32 %v7234, 0.2
    %v7817 = vmul.f32 %v7236, 0.2
    %v7818 = vmul.f32 %v7686, 0.2
    %v7819 = vmul.f32 %v7688, 0.2
    %v7820 = vmul.f32 %v7238, 0.2
    %v7821 = vmul.f32 %v7240, 0.2
    %v7822 = vmul.f32 %v7690, 0.2
    %v7823 = vmul.f32 %v7692, 0.2
    %v7824 = vmul.f32 %v7244, 0.2
    %v7825 = vmul.f32 %v7246, 0.2
    %v7826 = vmul.f32 %v7696, 0.2
    %v7827 = vmul.f32 %v7698, 0.2
    %v7828 = vmul.f32 %v7248, 0.2
    %v7829 = vmul.f32 %v7250, 0.2
    %v7830 = vmul.f32 %v7700, 0.2
    %v7831 = vmul.f32 %v7702, 0.2
    %v7832 = vsel %vm7704, %v7174, %v7768
    %v7833 = vsel %vm7705, %v7176, %v7769
    %v7834 = vsel %vm7706, %v7626, %v7770
    %v7835 = vsel %vm7707, %v7628, %v7771
    %v7836 = vsel %vm7708, %v7178, %v7772
    %v7837 = vsel %vm7709, %v7180, %v7773
    %v7838 = vsel %vm7710, %v7630, %v7774
    %v7839 = vsel %vm7711, %v7632, %v7775
    %v7840 = vsel %vm7712, %v7184, %v7776
    %v7841 = vsel %vm7713, %v7186, %v7777
    %v7842 = vsel %vm7714, %v7636, %v7778
    %v7843 = vsel %vm7715, %v7638, %v7779
    %v7844 = vsel %vm7716, %v7188, %v7780
    %v7845 = vsel %vm7717, %v7190, %v7781
    %v7846 = vsel %vm7718, %v7640, %v7782
    %v7847 = vsel %vm7719, %v7642, %v7783
    %v7848 = vsel %vm7720, %v7194, %v7784
    %v7849 = vsel %vm7721, %v7196, %v7785
    %v7850 = vsel %vm7722, %v7646, %v7786
    %v7851 = vsel %vm7723, %v7648, %v7787
    %v7852 = vsel %vm7724, %v7198, %v7788
    %v7853 = vsel %vm7725, %v7200, %v7789
    %v7854 = vsel %vm7726, %v7650, %v7790
    %v7855 = vsel %vm7727, %v7652, %v7791
    %v7856 = vsel %vm7728, %v7204, %v7792
    %v7857 = vsel %vm7729, %v7206, %v7793
    %v7858 = vsel %vm7730, %v7656, %v7794
    %v7859 = vsel %vm7731, %v7658, %v7795
    %v7860 = vsel %vm7732, %v7208, %v7796
    %v7861 = vsel %vm7733, %v7210, %v7797
    %v7862 = vsel %vm7734, %v7660, %v7798
    %v7863 = vsel %vm7735, %v7662, %v7799
    %v7864 = vsel %vm7736, %v7214, %v7800
    %v7865 = vsel %vm7737, %v7216, %v7801
    %v7866 = vsel %vm7738, %v7666, %v7802
    %v7867 = vsel %vm7739, %v7668, %v7803
    %v7868 = vsel %vm7740, %v7218, %v7804
    %v7869 = vsel %vm7741, %v7220, %v7805
    %v7870 = vsel %vm7742, %v7670, %v7806
    %v7871 = vsel %vm7743, %v7672, %v7807
    %v7872 = vsel %vm7744, %v7224, %v7808
    %v7873 = vsel %vm7745, %v7226, %v7809
    %v7874 = vsel %vm7746, %v7676, %v7810
    %v7875 = vsel %vm7747, %v7678, %v7811
    %v7876 = vsel %vm7748, %v7228, %v7812
    %v7877 = vsel %vm7749, %v7230, %v7813
    %v7878 = vsel %vm7750, %v7680, %v7814
    %v7879 = vsel %vm7751, %v7682, %v7815
    %v7880 = vsel %vm7752, %v7234, %v7816
    %v7881 = vsel %vm7753, %v7236, %v7817
    %v7882 = vsel %vm7754, %v7686, %v7818
    %v7883 = vsel %vm7755, %v7688, %v7819
    %v7884 = vsel %vm7756, %v7238, %v7820
    %v7885 = vsel %vm7757, %v7240, %v7821
    %v7886 = vsel %vm7758, %v7690, %v7822
    %v7887 = vsel %vm7759, %v7692, %v7823
    %v7888 = vsel %vm7760, %v7244, %v7824
    %v7889 = vsel %vm7761, %v7246, %v7825
    %v7890 = vsel %vm7762, %v7696, %v7826
    %v7891 = vsel %vm7763, %v7698, %v7827
    %v7892 = vsel %vm7764, %v7248, %v7828
    %v7893 = vsel %vm7765, %v7250, %v7829
    %v7894 = vsel %vm7766, %v7700, %v7830
    %v7895 = vsel %vm7767, %v7702, %v7831
    %v7896 = vpack.c.bf16 %v7836, %v7832
    %v7897 = vpack.c.bf16 %v7837, %v7833
    %v7898 = vpack.c.bf16 %v7838, %v7834
    %v7899 = vpack.c.bf16 %v7839, %v7835
    %v7900 = vpack.c.bf16 %v7844, %v7840
    %v7901 = vpack.c.bf16 %v7845, %v7841
    %v7902 = vpack.c.bf16 %v7846, %v7842
    %v7903 = vpack.c.bf16 %v7847, %v7843
    %v7904 = vpack.c.bf16 %v7852, %v7848
    %v7905 = vpack.c.bf16 %v7853, %v7849
    %v7906 = vpack.c.bf16 %v7854, %v7850
    %v7907 = vpack.c.bf16 %v7855, %v7851
    %v7908 = vpack.c.bf16 %v7860, %v7856
    %v7909 = vpack.c.bf16 %v7861, %v7857
    %v7910 = vpack.c.bf16 %v7862, %v7858
    %v7911 = vpack.c.bf16 %v7863, %v7859
    %v7912 = vpack.c.bf16 %v7868, %v7864
    %v7913 = vpack.c.bf16 %v7869, %v7865
    %v7914 = vpack.c.bf16 %v7870, %v7866
    %v7915 = vpack.c.bf16 %v7871, %v7867
    %v7916 = vpack.c.bf16 %v7876, %v7872
    %v7917 = vpack.c.bf16 %v7877, %v7873
    %v7918 = vpack.c.bf16 %v7878, %v7874
    %v7919 = vpack.c.bf16 %v7879, %v7875
    %v7920 = vpack.c.bf16 %v7884, %v7880
    %v7921 = vpack.c.bf16 %v7885, %v7881
    %v7922 = vpack.c.bf16 %v7886, %v7882
    %v7923 = vpack.c.bf16 %v7887, %v7883
    %v7924 = vpack.c.bf16 %v7892, %v7888
    %v7925 = vpack.c.bf16 %v7893, %v7889
    %v7926 = vpack.c.bf16 %v7894, %v7890
    %v7927 = vpack.c.bf16 %v7895, %v7891
    %v7928 = vld [vmem:[#allocation10] sm:$0xff]
    %v7929 = vld [vmem:[#allocation10 + $0x8] sm:$0xff]
    %v7930 = vld [vmem:[#allocation10 + $0x10] sm:$0xff]
    %v7931 = vld [vmem:[#allocation10 + $0x18] sm:$0xff]
    %v7932 = vld [vmem:[#allocation10 + $0x20] sm:$0xff]
    %v7933 = vld [vmem:[#allocation10 + $0x28] sm:$0xff]
    %v7934 = vld [vmem:[#allocation10 + $0x30] sm:$0xff]
    %v7935 = vld [vmem:[#allocation10 + $0x38] sm:$0xff]
    %v7936 = vld [vmem:[#allocation10 + $0x40] sm:$0xff]
    %v7937 = vld [vmem:[#allocation10 + $0x48] sm:$0xff]
    %v7938 = vld [vmem:[#allocation10 + $0x50] sm:$0xff]
    %v7939 = vld [vmem:[#allocation10 + $0x58] sm:$0xff]
    %v7940 = vld [vmem:[#allocation10 + $0x60] sm:$0xff]
    %v7941 = vld [vmem:[#allocation10 + $0x68] sm:$0xff]
    %v7942 = vld [vmem:[#allocation10 + $0x70] sm:$0xff]
    %v7943 = vld [vmem:[#allocation10 + $0x78] sm:$0xff]
    %v7944 = vld [vmem:[#allocation10 + $0x80] sm:$0xff]
    %v7945 = vld [vmem:[#allocation10 + $0x88] sm:$0xff]
    %v7946 = vld [vmem:[#allocation10 + $0x90] sm:$0xff]
    %v7947 = vld [vmem:[#allocation10 + $0x98] sm:$0xff]
    %v7948 = vld [vmem:[#allocation10 + $0xa0] sm:$0xff]
    %v7949 = vld [vmem:[#allocation10 + $0xa8] sm:$0xff]
    %v7950 = vld [vmem:[#allocation10 + $0xb0] sm:$0xff]
    %v7951 = vld [vmem:[#allocation10 + $0xb8] sm:$0xff]
    %v7952 = vld [vmem:[#allocation10 + $0xc0] sm:$0xff]
    %v7953 = vld [vmem:[#allocation10 + $0xc8] sm:$0xff]
    %v7954 = vld [vmem:[#allocation10 + $0xd0] sm:$0xff]
    %v7955 = vld [vmem:[#allocation10 + $0xd8] sm:$0xff]
    %v7956 = vld [vmem:[#allocation10 + $0xe0] sm:$0xff]
    %v7957 = vld [vmem:[#allocation10 + $0xe8] sm:$0xff]
    %v7958 = vld [vmem:[#allocation10 + $0xf0] sm:$0xff]
    %v7959 = vld [vmem:[#allocation10 + $0xf8] sm:$0xff]
    %v7960 = vld [vmem:[#allocation10 + $0x100] sm:$0xff]
    %v7961 = vld [vmem:[#allocation10 + $0x108] sm:$0xff]
    %v7962 = vld [vmem:[#allocation10 + $0x110] sm:$0xff]
    %v7963 = vld [vmem:[#allocation10 + $0x118] sm:$0xff]
    %v7964 = vld [vmem:[#allocation10 + $0x120] sm:$0xff]
    %v7965 = vld [vmem:[#allocation10 + $0x128] sm:$0xff]
    %v7966 = vld [vmem:[#allocation10 + $0x130] sm:$0xff]
    %v7967 = vld [vmem:[#allocation10 + $0x138] sm:$0xff]
    %v7968 = vld [vmem:[#allocation10 + $0x140] sm:$0xff]
    %v7969 = vld [vmem:[#allocation10 + $0x148] sm:$0xff]
    %v7970 = vld [vmem:[#allocation10 + $0x150] sm:$0xff]
    %v7971 = vld [vmem:[#allocation10 + $0x158] sm:$0xff]
    %v7972 = vld [vmem:[#allocation10 + $0x160] sm:$0xff]
    %v7973 = vld [vmem:[#allocation10 + $0x168] sm:$0xff]
    %v7974 = vld [vmem:[#allocation10 + $0x170] sm:$0xff]
    %v7975 = vld [vmem:[#allocation10 + $0x178] sm:$0xff]
    %v7976 = vld [vmem:[#allocation10 + $0x180] sm:$0xff]
    %v7977 = vld [vmem:[#allocation10 + $0x188] sm:$0xff]
    %v7978 = vld [vmem:[#allocation10 + $0x190] sm:$0xff]
    %v7979 = vld [vmem:[#allocation10 + $0x198] sm:$0xff]
    %v7980 = vld [vmem:[#allocation10 + $0x1a0] sm:$0xff]
    %v7981 = vld [vmem:[#allocation10 + $0x1a8] sm:$0xff]
    %v7982 = vld [vmem:[#allocation10 + $0x1b0] sm:$0xff]
    %v7983 = vld [vmem:[#allocation10 + $0x1b8] sm:$0xff]
    %v7984 = vld [vmem:[#allocation10 + $0x1c0] sm:$0xff]
    %v7985 = vld [vmem:[#allocation10 + $0x1c8] sm:$0xff]
    %v7986 = vld [vmem:[#allocation10 + $0x1d0] sm:$0xff]
    %v7987 = vld [vmem:[#allocation10 + $0x1d8] sm:$0xff]
    %v7988 = vld [vmem:[#allocation10 + $0x1e0] sm:$0xff]
    %v7989 = vld [vmem:[#allocation10 + $0x1e8] sm:$0xff]
    %v7990 = vld [vmem:[#allocation10 + $0x1f0] sm:$0xff]
    %v7991 = vld [vmem:[#allocation10 + $0x1f8] sm:$0xff]
    %v7992 = vld [vmem:[#allocation11] sm:$0x3]
    %v7994 = vlaneseq
    %v7995 = vshrl.u32 %v7994, 7
    %v7996 = vsub.s32 0, %v7995
    %v7997 = vrot.slane %v7992, %v7996
    %v7998 = vlaneseq
    %v7999 = vshrl.u32 %v7998, 7
    %v8000 = vsub.s32 1, %v7999
    %v8001 = vrot.slane %v7992, %v8000
    %v8068 = vunpack.c.l.b16 %v7928
    %v8069 = vunpack.c.h.b16 %v7928
    %v8070 = vunpack.c.l.b16 %v7929
    %v8071 = vunpack.c.h.b16 %v7929
    %v8072 = vunpack.c.l.b16 %v7930
    %v8073 = vunpack.c.h.b16 %v7930
    %v8074 = vunpack.c.l.b16 %v7931
    %v8075 = vunpack.c.h.b16 %v7931
    %v8076 = vunpack.c.l.b16 %v7932
    %v8077 = vunpack.c.h.b16 %v7932
    %v8078 = vunpack.c.l.b16 %v7933
    %v8079 = vunpack.c.h.b16 %v7933
    %v8080 = vunpack.c.l.b16 %v7934
    %v8081 = vunpack.c.h.b16 %v7934
    %v8082 = vunpack.c.l.b16 %v7935
    %v8083 = vunpack.c.h.b16 %v7935
    %v8084 = vunpack.c.l.b16 %v7936
    %v8085 = vunpack.c.h.b16 %v7936
    %v8086 = vunpack.c.l.b16 %v7937
    %v8087 = vunpack.c.h.b16 %v7937
    %v8088 = vunpack.c.l.b16 %v7938
    %v8089 = vunpack.c.h.b16 %v7938
    %v8090 = vunpack.c.l.b16 %v7939
    %v8091 = vunpack.c.h.b16 %v7939
    %v8092 = vunpack.c.l.b16 %v7940
    %v8093 = vunpack.c.h.b16 %v7940
    %v8094 = vunpack.c.l.b16 %v7941
    %v8095 = vunpack.c.h.b16 %v7941
    %v8096 = vunpack.c.l.b16 %v7942
    %v8097 = vunpack.c.h.b16 %v7942
    %v8098 = vunpack.c.l.b16 %v7943
    %v8099 = vunpack.c.h.b16 %v7943
    %v8100 = vunpack.c.l.b16 %v7944
    %v8101 = vunpack.c.h.b16 %v7944
    %v8102 = vunpack.c.l.b16 %v7945
    %v8103 = vunpack.c.h.b16 %v7945
    %v8104 = vunpack.c.l.b16 %v7946
    %v8105 = vunpack.c.h.b16 %v7946
    %v8106 = vunpack.c.l.b16 %v7947
    %v8107 = vunpack.c.h.b16 %v7947
    %v8108 = vunpack.c.l.b16 %v7948
    %v8109 = vunpack.c.h.b16 %v7948
    %v8110 = vunpack.c.l.b16 %v7949
    %v8111 = vunpack.c.h.b16 %v7949
    %v8112 = vunpack.c.l.b16 %v7950
    %v8113 = vunpack.c.h.b16 %v7950
    %v8114 = vunpack.c.l.b16 %v7951
    %v8115 = vunpack.c.h.b16 %v7951
    %v8116 = vunpack.c.l.b16 %v7952
    %v8117 = vunpack.c.h.b16 %v7952
    %v8118 = vunpack.c.l.b16 %v7953
    %v8119 = vunpack.c.h.b16 %v7953
    %v8120 = vunpack.c.l.b16 %v7954
    %v8121 = vunpack.c.h.b16 %v7954
    %v8122 = vunpack.c.l.b16 %v7955
    %v8123 = vunpack.c.h.b16 %v7955
    %v8124 = vunpack.c.l.b16 %v7956
    %v8125 = vunpack.c.h.b16 %v7956
    %v8126 = vunpack.c.l.b16 %v7957
    %v8127 = vunpack.c.h.b16 %v7957
    %v8128 = vunpack.c.l.b16 %v7958
    %v8129 = vunpack.c.h.b16 %v7958
    %v8130 = vunpack.c.l.b16 %v7959
    %v8131 = vunpack.c.h.b16 %v7959
    %v8132 = vunpack.c.l.b16 %v7960
    %v8133 = vunpack.c.h.b16 %v7960
    %v8134 = vunpack.c.l.b16 %v7961
    %v8135 = vunpack.c.h.b16 %v7961
    %v8136 = vunpack.c.l.b16 %v7962
    %v8137 = vunpack.c.h.b16 %v7962
    %v8138 = vunpack.c.l.b16 %v7963
    %v8139 = vunpack.c.h.b16 %v7963
    %v8140 = vunpack.c.l.b16 %v7964
    %v8141 = vunpack.c.h.b16 %v7964
    %v8142 = vunpack.c.l.b16 %v7965
    %v8143 = vunpack.c.h.b16 %v7965
    %v8144 = vunpack.c.l.b16 %v7966
    %v8145 = vunpack.c.h.b16 %v7966
    %v8146 = vunpack.c.l.b16 %v7967
    %v8147 = vunpack.c.h.b16 %v7967
    %v8148 = vunpack.c.l.b16 %v7968
    %v8149 = vunpack.c.h.b16 %v7968
    %v8150 = vunpack.c.l.b16 %v7969
    %v8151 = vunpack.c.h.b16 %v7969
    %v8152 = vunpack.c.l.b16 %v7970
    %v8153 = vunpack.c.h.b16 %v7970
    %v8154 = vunpack.c.l.b16 %v7971
    %v8155 = vunpack.c.h.b16 %v7971
    %v8156 = vunpack.c.l.b16 %v7972
    %v8157 = vunpack.c.h.b16 %v7972
    %v8158 = vunpack.c.l.b16 %v7973
    %v8159 = vunpack.c.h.b16 %v7973
    %v8160 = vunpack.c.l.b16 %v7974
    %v8161 = vunpack.c.h.b16 %v7974
    %v8162 = vunpack.c.l.b16 %v7975
    %v8163 = vunpack.c.h.b16 %v7975
    %v8164 = vunpack.c.l.b16 %v7976
    %v8165 = vunpack.c.h.b16 %v7976
    %v8166 = vunpack.c.l.b16 %v7977
    %v8167 = vunpack.c.h.b16 %v7977
    %v8168 = vunpack.c.l.b16 %v7978
    %v8169 = vunpack.c.h.b16 %v7978
    %v8170 = vunpack.c.l.b16 %v7979
    %v8171 = vunpack.c.h.b16 %v7979
    %v8172 = vunpack.c.l.b16 %v7980
    %v8173 = vunpack.c.h.b16 %v7980
    %v8174 = vunpack.c.l.b16 %v7981
    %v8175 = vunpack.c.h.b16 %v7981
    %v8176 = vunpack.c.l.b16 %v7982
    %v8177 = vunpack.c.h.b16 %v7982
    %v8178 = vunpack.c.l.b16 %v7983
    %v8179 = vunpack.c.h.b16 %v7983
    %v8180 = vunpack.c.l.b16 %v7984
    %v8181 = vunpack.c.h.b16 %v7984
    %v8182 = vunpack.c.l.b16 %v7985
    %v8183 = vunpack.c.h.b16 %v7985
    %v8184 = vunpack.c.l.b16 %v7986
    %v8185 = vunpack.c.h.b16 %v7986
    %v8186 = vunpack.c.l.b16 %v7987
    %v8187 = vunpack.c.h.b16 %v7987
    %v8188 = vunpack.c.l.b16 %v7988
    %v8189 = vunpack.c.h.b16 %v7988
    %v8190 = vunpack.c.l.b16 %v7989
    %v8191 = vunpack.c.h.b16 %v7989
    %v8192 = vunpack.c.l.b16 %v7990
    %v8193 = vunpack.c.h.b16 %v7990
    %v8194 = vunpack.c.l.b16 %v7991
    %v8195 = vunpack.c.h.b16 %v7991
    %v8196 = vpack.c.b16 %v8070, %v8068
    %v8197 = vpack.c.b16 %v8071, %v8069
    %v8198 = vpack.c.b16 %v8074, %v8072
    %v8199 = vpack.c.b16 %v8075, %v8073
    %v8200 = vpack.c.b16 %v8078, %v8076
    %v8201 = vpack.c.b16 %v8079, %v8077
    %v8202 = vpack.c.b16 %v8082, %v8080
    %v8203 = vpack.c.b16 %v8083, %v8081
    %v8204 = vpack.c.b16 %v8086, %v8084
    %v8205 = vpack.c.b16 %v8087, %v8085
    %v8206 = vpack.c.b16 %v8090, %v8088
    %v8207 = vpack.c.b16 %v8091, %v8089
    %v8208 = vpack.c.b16 %v8094, %v8092
    %v8209 = vpack.c.b16 %v8095, %v8093
    %v8210 = vpack.c.b16 %v8098, %v8096
    %v8211 = vpack.c.b16 %v8099, %v8097
    %v8212 = vpack.c.b16 %v8102, %v8100
    %v8213 = vpack.c.b16 %v8103, %v8101
    %v8214 = vpack.c.b16 %v8106, %v8104
    %v8215 = vpack.c.b16 %v8107, %v8105
    %v8216 = vpack.c.b16 %v8110, %v8108
    %v8217 = vpack.c.b16 %v8111, %v8109
    %v8218 = vpack.c.b16 %v8114, %v8112
    %v8219 = vpack.c.b16 %v8115, %v8113
    %v8220 = vpack.c.b16 %v8118, %v8116
    %v8221 = vpack.c.b16 %v8119, %v8117
    %v8222 = vpack.c.b16 %v8122, %v8120
    %v8223 = vpack.c.b16 %v8123, %v8121
    %v8224 = vpack.c.b16 %v8126, %v8124
    %v8225 = vpack.c.b16 %v8127, %v8125
    %v8226 = vpack.c.b16 %v8130, %v8128
    %v8227 = vpack.c.b16 %v8131, %v8129
    %v8228 = vpack.c.b16 %v8134, %v8132
    %v8229 = vpack.c.b16 %v8135, %v8133
    %v8230 = vpack.c.b16 %v8138, %v8136
    %v8231 = vpack.c.b16 %v8139, %v8137
    %v8232 = vpack.c.b16 %v8142, %v8140
    %v8233 = vpack.c.b16 %v8143, %v8141
    %v8234 = vpack.c.b16 %v8146, %v8144
    %v8235 = vpack.c.b16 %v8147, %v8145
    %v8236 = vpack.c.b16 %v8150, %v8148
    %v8237 = vpack.c.b16 %v8151, %v8149
    %v8238 = vpack.c.b16 %v8154, %v8152
    %v8239 = vpack.c.b16 %v8155, %v8153
    %v8240 = vpack.c.b16 %v8158, %v8156
    %v8241 = vpack.c.b16 %v8159, %v8157
    %v8242 = vpack.c.b16 %v8162, %v8160
    %v8243 = vpack.c.b16 %v8163, %v8161
    %v8244 = vpack.c.b16 %v8166, %v8164
    %v8245 = vpack.c.b16 %v8167, %v8165
    %v8246 = vpack.c.b16 %v8170, %v8168
    %v8247 = vpack.c.b16 %v8171, %v8169
    %v8248 = vpack.c.b16 %v8174, %v8172
    %v8249 = vpack.c.b16 %v8175, %v8173
    %v8250 = vpack.c.b16 %v8178, %v8176
    %v8251 = vpack.c.b16 %v8179, %v8177
    %v8252 = vpack.c.b16 %v8182, %v8180
    %v8253 = vpack.c.b16 %v8183, %v8181
    %v8254 = vpack.c.b16 %v8186, %v8184
    %v8255 = vpack.c.b16 %v8187, %v8185
    %v8256 = vpack.c.b16 %v8190, %v8188
    %v8257 = vpack.c.b16 %v8191, %v8189
    %v8258 = vpack.c.b16 %v8194, %v8192
    %v8259 = vpack.c.b16 %v8195, %v8193
    %8324 = vmatprep.subr.bf16.mxu0 %v8197
    %8325 = vmatpush1.bf16.msra.mxu0 %v8196
    %8326 = vmatprep.subr.bf16.mxu0 %v8199
    %8327 = vmatpush1.bf16.msra.mxu0 %v8198
    %8328 = vmatprep.subr.bf16.mxu0 %v8201
    %8329 = vmatpush1.bf16.msra.mxu0 %v8200
    %8330 = vmatprep.subr.bf16.mxu0 %v8203
    %8331 = vmatpush1.bf16.msra.mxu0 %v8202
    %8332 = vmatprep.subr.bf16.mxu0 %v8205
    %8333 = vmatpush1.bf16.msra.mxu0 %v8204
    %8334 = vmatprep.subr.bf16.mxu0 %v8207
    %8335 = vmatpush1.bf16.msra.mxu0 %v8206
    %8336 = vmatprep.subr.bf16.mxu0 %v8209
    %8337 = vmatpush1.bf16.msra.mxu0 %v8208
    %8338 = vmatprep.subr.bf16.mxu0 %v8211
    %8339 = vmatpush1.bf16.msra.mxu0 %v8210
    %8340 = vmatprep.subr.bf16.mxu0 %v8213
    %8341 = vmatpush1.bf16.msra.mxu0 %v8212
    %8342 = vmatprep.subr.bf16.mxu0 %v8215
    %8343 = vmatpush1.bf16.msra.mxu0 %v8214
    %8344 = vmatprep.subr.bf16.mxu0 %v8217
    %8345 = vmatpush1.bf16.msra.mxu0 %v8216
    %8346 = vmatprep.subr.bf16.mxu0 %v8219
    %8347 = vmatpush1.bf16.msra.mxu0 %v8218
    %8348 = vmatprep.subr.bf16.mxu0 %v8221
    %8349 = vmatpush1.bf16.msra.mxu0 %v8220
    %8350 = vmatprep.subr.bf16.mxu0 %v8223
    %8351 = vmatpush1.bf16.msra.mxu0 %v8222
    %8352 = vmatprep.subr.bf16.mxu0 %v8225
    %8353 = vmatpush1.bf16.msra.mxu0 %v8224
    %8354 = vmatprep.subr.bf16.mxu0 %v8227
    %8355 = vmatpush1.bf16.msra.mxu0 %v8226
    %8356 = vmatprep.mubr.bf16.mxu0 %v7897
    %8357 = vmatmul.mubr.bf16.gmra.mrb[0].mxu0 %v7896
    %v8358 = vpop.f32.mrb[0].mxu0
    %v8359 = vadd.f32 %v7997, %v8358
    %v8360 = vpop.f32.mrb[0].mxu0
    %v8361 = vadd.f32 %v8001, %v8360
    %v8362 = vpop.f32.mrb[0].mxu0
    %v8363 = vadd.f32 %v7997, %v8362
    %v8364 = vpop.f32.mrb[0].mxu0
    %v8365 = vadd.f32 %v8001, %v8364
    %8366 = vmatprep.mubr.bf16.mxu0 %v7901
    %8367 = vmatmul.mubr.bf16.gmra.mrb[0].mxu0 %v7900
    %v8368 = vpop.f32.mrb[0].mxu0
    %v8369 = vadd.f32 %v7997, %v8368
    %v8370 = vpop.f32.mrb[0].mxu0
    %v8371 = vadd.f32 %v8001, %v8370
    %v8372 = vpop.f32.mrb[0].mxu0
    %v8373 = vadd.f32 %v7997, %v8372
    %v8374 = vpop.f32.mrb[0].mxu0
    %v8375 = vadd.f32 %v8001, %v8374
    %8376 = vmatprep.mubr.bf16.mxu0 %v7905
    %8377 = vmatmul.mubr.bf16.gmra.mrb[0].mxu0 %v7904
    %v8378 = vpop.f32.mrb[0].mxu0
    %v8379 = vadd.f32 %v7997, %v8378
    %v8380 = vpop.f32.mrb[0].mxu0
    %v8381 = vadd.f32 %v8001, %v8380
    %v8382 = vpop.f32.mrb[0].mxu0
    %v8383 = vadd.f32 %v7997, %v8382
    %v8384 = vpop.f32.mrb[0].mxu0
    %v8385 = vadd.f32 %v8001, %v8384
    %8386 = vmatprep.mubr.bf16.mxu0 %v7909
    %8387 = vmatmul.mubr.bf16.gmra.mrb[0].mxu0 %v7908
    %v8388 = vpop.f32.mrb[0].mxu0
    %v8389 = vadd.f32 %v7997, %v8388
    %v8390 = vpop.f32.mrb[0].mxu0
    %v8391 = vadd.f32 %v8001, %v8390
    %v8392 = vpop.f32.mrb[0].mxu0
    %v8393 = vadd.f32 %v7997, %v8392
    %v8394 = vpop.f32.mrb[0].mxu0
    %v8395 = vadd.f32 %v8001, %v8394
    %8396 = vmatprep.mubr.bf16.mxu0 %v7913
    %8397 = vmatmul.mubr.bf16.gmra.mrb[0].mxu0 %v7912
    %v8398 = vpop.f32.mrb[0].mxu0
    %v8399 = vadd.f32 %v7997, %v8398
    %v8400 = vpop.f32.mrb[0].mxu0
    %v8401 = vadd.f32 %v8001, %v8400
    %v8402 = vpop.f32.mrb[0].mxu0
    %v8403 = vadd.f32 %v7997, %v8402
    %v8404 = vpop.f32.mrb[0].mxu0
    %v8405 = vadd.f32 %v8001, %v8404
    %8406 = vmatprep.mubr.bf16.mxu0 %v7917
    %8407 = vmatmul.mubr.bf16.gmra.mrb[0].mxu0 %v7916
    %v8408 = vpop.f32.mrb[0].mxu0
    %v8409 = vadd.f32 %v7997, %v8408
    %v8410 = vpop.f32.mrb[0].mxu0
    %v8411 = vadd.f32 %v8001, %v8410
    %v8412 = vpop.f32.mrb[0].mxu0
    %v8413 = vadd.f32 %v7997, %v8412
    %v8414 = vpop.f32.mrb[0].mxu0
    %v8415 = vadd.f32 %v8001, %v8414
    %8416 = vmatprep.mubr.bf16.mxu0 %v7921
    %8417 = vmatmul.mubr.bf16.gmra.mrb[0].mxu0 %v7920
    %v8418 = vpop.f32.mrb[0].mxu0
    %v8419 = vadd.f32 %v7997, %v8418
    %v8420 = vpop.f32.mrb[0].mxu0
    %v8421 = vadd.f32 %v8001, %v8420
    %v8422 = vpop.f32.mrb[0].mxu0
    %v8423 = vadd.f32 %v7997, %v8422
    %v8424 = vpop.f32.mrb[0].mxu0
    %v8425 = vadd.f32 %v8001, %v8424
    %8426 = vmatprep.mubr.bf16.mxu0 %v7925
    %8427 = vmatmul.mubr.bf16.gmra.mrb[0].mxu0 %v7924
    %v8428 = vpop.f32.mrb[0].mxu0
    %v8429 = vadd.f32 %v7997, %v8428
    %v8430 = vpop.f32.mrb[0].mxu0
    %v8431 = vadd.f32 %v8001, %v8430
    %v8432 = vpop.f32.mrb[0].mxu0
    %v8433 = vadd.f32 %v7997, %v8432
    %v8434 = vpop.f32.mrb[0].mxu0
    %v8435 = vadd.f32 %v8001, %v8434
    %8436 = vdwg.mxu0
    %8437 = vmatprep.subr.bf16.mxu0 %v8229
    %8438 = vmatpush1.bf16.msra.mxu0 %v8228
    %8439 = vmatprep.subr.bf16.mxu0 %v8231
    %8440 = vmatpush1.bf16.msra.mxu0 %v8230
    %8441 = vmatprep.subr.bf16.mxu0 %v8233
    %8442 = vmatpush1.bf16.msra.mxu0 %v8232
    %8443 = vmatprep.subr.bf16.mxu0 %v8235
    %8444 = vmatpush1.bf16.msra.mxu0 %v8234
    %8445 = vmatprep.subr.bf16.mxu0 %v8237
    %8446 = vmatpush1.bf16.msra.mxu0 %v8236
    %8447 = vmatprep.subr.bf16.mxu0 %v8239
    %8448 = vmatpush1.bf16.msra.mxu0 %v8238
    %8449 = vmatprep.subr.bf16.mxu0 %v8241
    %8450 = vmatpush1.bf16.msra.mxu0 %v8240
    %8451 = vmatprep.subr.bf16.mxu0 %v8243
    %8452 = vmatpush1.bf16.msra.mxu0 %v8242
    %8453 = vmatprep.subr.bf16.mxu0 %v8245
    %8454 = vmatpush1.bf16.msra.mxu0 %v8244
    %8455 = vmatprep.subr.bf16.mxu0 %v8247
    %8456 = vmatpush1.bf16.msra.mxu0 %v8246
    %8457 = vmatprep.subr.bf16.mxu0 %v8249
    %8458 = vmatpush1.bf16.msra.mxu0 %v8248
    %8459 = vmatprep.subr.bf16.mxu0 %v8251
    %8460 = vmatpush1.bf16.msra.mxu0 %v8250
    %8461 = vmatprep.subr.bf16.mxu0 %v8253
    %8462 = vmatpush1.bf16.msra.mxu0 %v8252
    %8463 = vmatprep.subr.bf16.mxu0 %v8255
    %8464 = vmatpush1.bf16.msra.mxu0 %v8254
    %8465 = vmatprep.subr.bf16.mxu0 %v8257
    %8466 = vmatpush1.bf16.msra.mxu0 %v8256
    %8467 = vmatprep.subr.bf16.mxu0 %v8259
    %8468 = vmatpush1.bf16.msra.mxu0 %v8258
    %8469 = vmatprep.mubr.bf16.mxu0 %v7899
    %8470 = vmatmul.mubr.bf16.gmra.mrb[0].mxu0 %v7898
    %v8471 = vpop.f32.mrb[0].mxu0
    %v8472 = vadd.f32 %v8359, %v8471
    %v8473 = vpop.f32.mrb[0].mxu0
    %v8474 = vadd.f32 %v8361, %v8473
    %v8475 = vpop.f32.mrb[0].mxu0
    %v8476 = vadd.f32 %v8363, %v8475
    %v8477 = vpop.f32.mrb[0].mxu0
    %v8478 = vadd.f32 %v8365, %v8477
    %8479 = vmatprep.mubr.bf16.mxu0 %v7903
    %8480 = vmatmul.mubr.bf16.gmra.mrb[0].mxu0 %v7902
    %v8481 = vpop.f32.mrb[0].mxu0
    %v8482 = vadd.f32 %v8369, %v8481
    %v8483 = vpop.f32.mrb[0].mxu0
    %v8484 = vadd.f32 %v8371, %v8483
    %v8485 = vpop.f32.mrb[0].mxu0
    %v8486 = vadd.f32 %v8373, %v8485
    %v8487 = vpop.f32.mrb[0].mxu0
    %v8488 = vadd.f32 %v8375, %v8487
    %8489 = vmatprep.mubr.bf16.mxu0 %v7907
    %8490 = vmatmul.mubr.bf16.gmra.mrb[0].mxu0 %v7906
    %v8491 = vpop.f32.mrb[0].mxu0
    %v8492 = vadd.f32 %v8379, %v8491
    %v8493 = vpop.f32.mrb[0].mxu0
    %v8494 = vadd.f32 %v8381, %v8493
    %v8495 = vpop.f32.mrb[0].mxu0
    %v8496 = vadd.f32 %v8383, %v8495
    %v8497 = vpop.f32.mrb[0].mxu0
    %v8498 = vadd.f32 %v8385, %v8497
    %8499 = vmatprep.mubr.bf16.mxu0 %v7911
    %8500 = vmatmul.mubr.bf16.gmra.mrb[0].mxu0 %v7910
    %v8501 = vpop.f32.mrb[0].mxu0
    %v8502 = vadd.f32 %v8389, %v8501
    %v8503 = vpop.f32.mrb[0].mxu0
    %v8504 = vadd.f32 %v8391, %v8503
    %v8505 = vpop.f32.mrb[0].mxu0
    %v8506 = vadd.f32 %v8393, %v8505
    %v8507 = vpop.f32.mrb[0].mxu0
    %v8508 = vadd.f32 %v8395, %v8507
    %8509 = vmatprep.mubr.bf16.mxu0 %v7915
    %8510 = vmatmul.mubr.bf16.gmra.mrb[0].mxu0 %v7914
    %v8511 = vpop.f32.mrb[0].mxu0
    %v8512 = vadd.f32 %v8399, %v8511
    %v8513 = vpop.f32.mrb[0].mxu0
    %v8514 = vadd.f32 %v8401, %v8513
    %v8515 = vpop.f32.mrb[0].mxu0
    %v8516 = vadd.f32 %v8403, %v8515
    %v8517 = vpop.f32.mrb[0].mxu0
    %v8518 = vadd.f32 %v8405, %v8517
    %8519 = vmatprep.mubr.bf16.mxu0 %v7919
    %8520 = vmatmul.mubr.bf16.gmra.mrb[0].mxu0 %v7918
    %v8521 = vpop.f32.mrb[0].mxu0
    %v8522 = vadd.f32 %v8409, %v8521
    %v8523 = vpop.f32.mrb[0].mxu0
    %v8524 = vadd.f32 %v8411, %v8523
    %v8525 = vpop.f32.mrb[0].mxu0
    %v8526 = vadd.f32 %v8413, %v8525
    %v8527 = vpop.f32.mrb[0].mxu0
    %v8528 = vadd.f32 %v8415, %v8527
    %8529 = vmatprep.mubr.bf16.mxu0 %v7923
    %8530 = vmatmul.mubr.bf16.gmra.mrb[0].mxu0 %v7922
    %v8531 = vpop.f32.mrb[0].mxu0
    %v8532 = vadd.f32 %v8419, %v8531
    %v8533 = vpop.f32.mrb[0].mxu0
    %v8534 = vadd.f32 %v8421, %v8533
    %v8535 = vpop.f32.mrb[0].mxu0
    %v8536 = vadd.f32 %v8423, %v8535
    %v8537 = vpop.f32.mrb[0].mxu0
    %v8538 = vadd.f32 %v8425, %v8537
    %8539 = vmatprep.mubr.bf16.mxu0 %v7927
    %8540 = vmatmul.mubr.bf16.gmra.mrb[0].mxu0 %v7926
    %v8541 = vpop.f32.mrb[0].mxu0
    %v8542 = vadd.f32 %v8429, %v8541
    %v8543 = vpop.f32.mrb[0].mxu0
    %v8544 = vadd.f32 %v8431, %v8543
    %v8545 = vpop.f32.mrb[0].mxu0
    %v8546 = vadd.f32 %v8433, %v8545
    %v8547 = vpop.f32.mrb[0].mxu0
    %v8548 = vadd.f32 %v8435, %v8547
    %8549 = vdwg.mxu0
    %vm8550 = vcmp.gt.f32.partialorder %v8472, 0.0
    %vm8551 = vcmp.gt.f32.partialorder %v8474, 0.0
    %vm8552 = vcmp.gt.f32.partialorder %v8476, 0.0
    %vm8553 = vcmp.gt.f32.partialorder %v8478, 0.0
    %vm8554 = vcmp.gt.f32.partialorder %v8482, 0.0
    %vm8555 = vcmp.gt.f32.partialorder %v8484, 0.0
    %vm8556 = vcmp.gt.f32.partialorder %v8486, 0.0
    %vm8557 = vcmp.gt.f32.partialorder %v8488, 0.0
    %vm8558 = vcmp.gt.f32.partialorder %v8492, 0.0
    %vm8559 = vcmp.gt.f32.partialorder %v8494, 0.0
    %vm8560 = vcmp.gt.f32.partialorder %v8496, 0.0
    %vm8561 = vcmp.gt.f32.partialorder %v8498, 0.0
    %vm8562 = vcmp.gt.f32.partialorder %v8502, 0.0
    %vm8563 = vcmp.gt.f32.partialorder %v8504, 0.0
    %vm8564 = vcmp.gt.f32.partialorder %v8506, 0.0
    %vm8565 = vcmp.gt.f32.partialorder %v8508, 0.0
    %vm8566 = vcmp.gt.f32.partialorder %v8512, 0.0
    %vm8567 = vcmp.gt.f32.partialorder %v8514, 0.0
    %vm8568 = vcmp.gt.f32.partialorder %v8516, 0.0
    %vm8569 = vcmp.gt.f32.partialorder %v8518, 0.0
    %vm8570 = vcmp.gt.f32.partialorder %v8522, 0.0
    %vm8571 = vcmp.gt.f32.partialorder %v8524, 0.0
    %vm8572 = vcmp.gt.f32.partialorder %v8526, 0.0
    %vm8573 = vcmp.gt.f32.partialorder %v8528, 0.0
    %vm8574 = vcmp.gt.f32.partialorder %v8532, 0.0
    %vm8575 = vcmp.gt.f32.partialorder %v8534, 0.0
    %vm8576 = vcmp.gt.f32.partialorder %v8536, 0.0
    %vm8577 = vcmp.gt.f32.partialorder %v8538, 0.0
    %vm8578 = vcmp.gt.f32.partialorder %v8542, 0.0
    %vm8579 = vcmp.gt.f32.partialorder %v8544, 0.0
    %vm8580 = vcmp.gt.f32.partialorder %v8546, 0.0
    %vm8581 = vcmp.gt.f32.partialorder %v8548, 0.0
    %v8582 = vmul.f32 %v8472, 0.2
    %v8583 = vmul.f32 %v8474, 0.2
    %v8584 = vmul.f32 %v8476, 0.2
    %v8585 = vmul.f32 %v8478, 0.2
    %v8586 = vmul.f32 %v8482, 0.2
    %v8587 = vmul.f32 %v8484, 0.2
    %v8588 = vmul.f32 %v8486, 0.2
    %v8589 = vmul.f32 %v8488, 0.2
    %v8590 = vmul.f32 %v8492, 0.2
    %v8591 = vmul.f32 %v8494, 0.2
    %v8592 = vmul.f32 %v8496, 0.2
    %v8593 = vmul.f32 %v8498, 0.2
    %v8594 = vmul.f32 %v8502, 0.2
    %v8595 = vmul.f32 %v8504, 0.2
    %v8596 = vmul.f32 %v8506, 0.2
    %v8597 = vmul.f32 %v8508, 0.2
    %v8598 = vmul.f32 %v8512, 0.2
    %v8599 = vmul.f32 %v8514, 0.2
    %v8600 = vmul.f32 %v8516, 0.2
    %v8601 = vmul.f32 %v8518, 0.2
    %v8602 = vmul.f32 %v8522, 0.2
    %v8603 = vmul.f32 %v8524, 0.2
    %v8604 = vmul.f32 %v8526, 0.2
    %v8605 = vmul.f32 %v8528, 0.2
    %v8606 = vmul.f32 %v8532, 0.2
    %v8607 = vmul.f32 %v8534, 0.2
    %v8608 = vmul.f32 %v8536, 0.2
    %v8609 = vmul.f32 %v8538, 0.2
    %v8610 = vmul.f32 %v8542, 0.2
    %v8611 = vmul.f32 %v8544, 0.2
    %v8612 = vmul.f32 %v8546, 0.2
    %v8613 = vmul.f32 %v8548, 0.2
    %v8614 = vsel %vm8550, %v8472, %v8582
    %v8615 = vsel %vm8551, %v8474, %v8583
    %v8616 = vsel %vm8552, %v8476, %v8584
    %v8617 = vsel %vm8553, %v8478, %v8585
    %v8618 = vsel %vm8554, %v8482, %v8586
    %v8619 = vsel %vm8555, %v8484, %v8587
    %v8620 = vsel %vm8556, %v8486, %v8588
    %v8621 = vsel %vm8557, %v8488, %v8589
    %v8622 = vsel %vm8558, %v8492, %v8590
    %v8623 = vsel %vm8559, %v8494, %v8591
    %v8624 = vsel %vm8560, %v8496, %v8592
    %v8625 = vsel %vm8561, %v8498, %v8593
    %v8626 = vsel %vm8562, %v8502, %v8594
    %v8627 = vsel %vm8563, %v8504, %v8595
    %v8628 = vsel %vm8564, %v8506, %v8596
    %v8629 = vsel %vm8565, %v8508, %v8597
    %v8630 = vsel %vm8566, %v8512, %v8598
    %v8631 = vsel %vm8567, %v8514, %v8599
    %v8632 = vsel %vm8568, %v8516, %v8600
    %v8633 = vsel %vm8569, %v8518, %v8601
    %v8634 = vsel %vm8570, %v8522, %v8602
    %v8635 = vsel %vm8571, %v8524, %v8603
    %v8636 = vsel %vm8572, %v8526, %v8604
    %v8637 = vsel %vm8573, %v8528, %v8605
    %v8638 = vsel %vm8574, %v8532, %v8606
    %v8639 = vsel %vm8575, %v8534, %v8607
    %v8640 = vsel %vm8576, %v8536, %v8608
    %v8641 = vsel %vm8577, %v8538, %v8609
    %v8642 = vsel %vm8578, %v8542, %v8610
    %v8643 = vsel %vm8579, %v8544, %v8611
    %v8644 = vsel %vm8580, %v8546, %v8612
    %v8645 = vsel %vm8581, %v8548, %v8613
    %v8646 = vpack.c.bf16 %v8616, %v8614
    %v8647 = vpack.c.bf16 %v8617, %v8615
    %v8648 = vpack.c.bf16 %v8620, %v8618
    %v8649 = vpack.c.bf16 %v8621, %v8619
    %v8650 = vpack.c.bf16 %v8624, %v8622
    %v8651 = vpack.c.bf16 %v8625, %v8623
    %v8652 = vpack.c.bf16 %v8628, %v8626
    %v8653 = vpack.c.bf16 %v8629, %v8627
    %v8654 = vpack.c.bf16 %v8632, %v8630
    %v8655 = vpack.c.bf16 %v8633, %v8631
    %v8656 = vpack.c.bf16 %v8636, %v8634
    %v8657 = vpack.c.bf16 %v8637, %v8635
    %v8658 = vpack.c.bf16 %v8640, %v8638
    %v8659 = vpack.c.bf16 %v8641, %v8639
    %v8660 = vpack.c.bf16 %v8644, %v8642
    %v8661 = vpack.c.bf16 %v8645, %v8643
    %v8662 = vld [vmem:[#allocation13] sm:$0xf]
    %v8663 = vld [vmem:[#allocation13 + $0x4] sm:$0xf]
    %v8664 = vld [vmem:[#allocation13 + $0x8] sm:$0xf]
    %v8665 = vld [vmem:[#allocation13 + $0xc] sm:$0xf]
    %v8666 = vld [vmem:[#allocation13 + $0x10] sm:$0xf]
    %v8667 = vld [vmem:[#allocation13 + $0x14] sm:$0xf]
    %v8668 = vld [vmem:[#allocation13 + $0x18] sm:$0xf]
    %v8669 = vld [vmem:[#allocation13 + $0x1c] sm:$0xf]
    %v8670 = vld [vmem:[#allocation13 + $0x20] sm:$0xf]
    %v8671 = vld [vmem:[#allocation13 + $0x24] sm:$0xf]
    %v8672 = vld [vmem:[#allocation13 + $0x28] sm:$0xf]
    %v8673 = vld [vmem:[#allocation13 + $0x2c] sm:$0xf]
    %v8674 = vld [vmem:[#allocation13 + $0x30] sm:$0xf]
    %v8675 = vld [vmem:[#allocation13 + $0x34] sm:$0xf]
    %v8676 = vld [vmem:[#allocation13 + $0x38] sm:$0xf]
    %v8677 = vld [vmem:[#allocation13 + $0x3c] sm:$0xf]
    %v8678 = vld [vmem:[#allocation13 + $0x40] sm:$0xf]
    %v8679 = vld [vmem:[#allocation13 + $0x44] sm:$0xf]
    %v8680 = vld [vmem:[#allocation13 + $0x48] sm:$0xf]
    %v8681 = vld [vmem:[#allocation13 + $0x4c] sm:$0xf]
    %v8682 = vld [vmem:[#allocation13 + $0x50] sm:$0xf]
    %v8683 = vld [vmem:[#allocation13 + $0x54] sm:$0xf]
    %v8684 = vld [vmem:[#allocation13 + $0x58] sm:$0xf]
    %v8685 = vld [vmem:[#allocation13 + $0x5c] sm:$0xf]
    %v8686 = vld [vmem:[#allocation13 + $0x60] sm:$0xf]
    %v8687 = vld [vmem:[#allocation13 + $0x64] sm:$0xf]
    %v8688 = vld [vmem:[#allocation13 + $0x68] sm:$0xf]
    %v8689 = vld [vmem:[#allocation13 + $0x6c] sm:$0xf]
    %v8690 = vld [vmem:[#allocation13 + $0x70] sm:$0xf]
    %v8691 = vld [vmem:[#allocation13 + $0x74] sm:$0xf]
    %v8692 = vld [vmem:[#allocation13 + $0x78] sm:$0xf]
    %v8693 = vld [vmem:[#allocation13 + $0x7c] sm:$0xf]
    %v8694 = vld [vmem:[#allocation14] sm:$0x1]
    %v8696 = vlaneseq
    %v8697 = vshrl.u32 %v8696, 7
    %v8698 = vsub.s32 0, %v8697
    %v8699 = vrot.slane %v8694, %v8698
    %v8733 = vunpack.c.l.b16 %v8662
    %v8734 = vunpack.c.l.b16 %v8663
    %v8735 = vunpack.c.l.b16 %v8664
    %v8736 = vunpack.c.l.b16 %v8665
    %v8737 = vunpack.c.l.b16 %v8666
    %v8738 = vunpack.c.l.b16 %v8667
    %v8739 = vunpack.c.l.b16 %v8668
    %v8740 = vunpack.c.l.b16 %v8669
    %v8741 = vunpack.c.l.b16 %v8670
    %v8742 = vunpack.c.l.b16 %v8671
    %v8743 = vunpack.c.l.b16 %v8672
    %v8744 = vunpack.c.l.b16 %v8673
    %v8745 = vunpack.c.l.b16 %v8674
    %v8746 = vunpack.c.l.b16 %v8675
    %v8747 = vunpack.c.l.b16 %v8676
    %v8748 = vunpack.c.l.b16 %v8677
    %v8749 = vunpack.c.l.b16 %v8678
    %v8750 = vunpack.c.l.b16 %v8679
    %v8751 = vunpack.c.l.b16 %v8680
    %v8752 = vunpack.c.l.b16 %v8681
    %v8753 = vunpack.c.l.b16 %v8682
    %v8754 = vunpack.c.l.b16 %v8683
    %v8755 = vunpack.c.l.b16 %v8684
    %v8756 = vunpack.c.l.b16 %v8685
    %v8757 = vunpack.c.l.b16 %v8686
    %v8758 = vunpack.c.l.b16 %v8687
    %v8759 = vunpack.c.l.b16 %v8688
    %v8760 = vunpack.c.l.b16 %v8689
    %v8761 = vunpack.c.l.b16 %v8690
    %v8762 = vunpack.c.l.b16 %v8691
    %v8763 = vunpack.c.l.b16 %v8692
    %v8764 = vunpack.c.l.b16 %v8693
    %v8765 = vpack.c.b16 %v8734, %v8733
    %v8766 = vpack.c.b16 %v8736, %v8735
    %v8767 = vpack.c.b16 %v8738, %v8737
    %v8768 = vpack.c.b16 %v8740, %v8739
    %v8769 = vpack.c.b16 %v8742, %v8741
    %v8770 = vpack.c.b16 %v8744, %v8743
    %v8771 = vpack.c.b16 %v8746, %v8745
    %v8772 = vpack.c.b16 %v8748, %v8747
    %v8773 = vpack.c.b16 %v8750, %v8749
    %v8774 = vpack.c.b16 %v8752, %v8751
    %v8775 = vpack.c.b16 %v8754, %v8753
    %v8776 = vpack.c.b16 %v8756, %v8755
    %v8777 = vpack.c.b16 %v8758, %v8757
    %v8778 = vpack.c.b16 %v8760, %v8759
    %v8779 = vpack.c.b16 %v8762, %v8761
    %v8780 = vpack.c.b16 %v8764, %v8763
    %8797 = vmatprep.subr.bf16.mxu0 0
    %8798 = vmatpush1.bf16.msra.mxu0 %v8765
    %8799 = vmatprep.subr.bf16.mxu0 0
    %8800 = vmatpush1.bf16.msra.mxu0 %v8766
    %8801 = vmatprep.subr.bf16.mxu0 0
    %8802 = vmatpush1.bf16.msra.mxu0 %v8767
    %8803 = vmatprep.subr.bf16.mxu0 0
    %8804 = vmatpush1.bf16.msra.mxu0 %v8768
    %8805 = vmatprep.subr.bf16.mxu0 0
    %8806 = vmatpush1.bf16.msra.mxu0 %v8769
    %8807 = vmatprep.subr.bf16.mxu0 0
    %8808 = vmatpush1.bf16.msra.mxu0 %v8770
    %8809 = vmatprep.subr.bf16.mxu0 0
    %8810 = vmatpush1.bf16.msra.mxu0 %v8771
    %8811 = vmatprep.subr.bf16.mxu0 0
    %8812 = vmatpush1.bf16.msra.mxu0 %v8772
    %8813 = vmatprep.subr.bf16.mxu0 0
    %8814 = vmatpush1.bf16.msra.mxu0 %v8773
    %8815 = vmatprep.subr.bf16.mxu0 0
    %8816 = vmatpush1.bf16.msra.mxu0 %v8774
    %8817 = vmatprep.subr.bf16.mxu0 0
    %8818 = vmatpush1.bf16.msra.mxu0 %v8775
    %8819 = vmatprep.subr.bf16.mxu0 0
    %8820 = vmatpush1.bf16.msra.mxu0 %v8776
    %8821 = vmatprep.subr.bf16.mxu0 0
    %8822 = vmatpush1.bf16.msra.mxu0 %v8777
    %8823 = vmatprep.subr.bf16.mxu0 0
    %8824 = vmatpush1.bf16.msra.mxu0 %v8778
    %8825 = vmatprep.subr.bf16.mxu0 0
    %8826 = vmatpush1.bf16.msra.mxu0 %v8779
    %8827 = vmatprep.subr.bf16.mxu0 0
    %8828 = vmatpush1.bf16.msra.mxu0 %v8780
    %8829 = vmatprep.mubr.bf16.mxu0 %v8647
    %8830 = vmatmul.mubr.bf16.gmra.mrb[0].mxu0 %v8646
    %v8831 = vpop.f32.mrb[0].mxu0
    %v8832 = vadd.f32 %v8699, %v8831
    %v8833 = vpop.f32.mrb[0].mxu0
    %v8834 = vpop.f32.mrb[0].mxu0
    %v8835 = vadd.f32 %v8699, %v8834
    %v8836 = vpop.f32.mrb[0].mxu0
    %8837 = vmatprep.mubr.bf16.mxu0 %v8649
    %8838 = vmatmul.mubr.bf16.gmra.mrb[0].mxu0 %v8648
    %v8839 = vpop.f32.mrb[0].mxu0
    %v8840 = vadd.f32 %v8699, %v8839
    %v8841 = vpop.f32.mrb[0].mxu0
    %v8842 = vpop.f32.mrb[0].mxu0
    %v8843 = vadd.f32 %v8699, %v8842
    %v8844 = vpop.f32.mrb[0].mxu0
    %8845 = vmatprep.mubr.bf16.mxu0 %v8651
    %8846 = vmatmul.mubr.bf16.gmra.mrb[0].mxu0 %v8650
    %v8847 = vpop.f32.mrb[0].mxu0
    %v8848 = vadd.f32 %v8699, %v8847
    %v8849 = vpop.f32.mrb[0].mxu0
    %v8850 = vpop.f32.mrb[0].mxu0
    %v8851 = vadd.f32 %v8699, %v8850
    %v8852 = vpop.f32.mrb[0].mxu0
    %8853 = vmatprep.mubr.bf16.mxu0 %v8653
    %8854 = vmatmul.mubr.bf16.gmra.mrb[0].mxu0 %v8652
    %v8855 = vpop.f32.mrb[0].mxu0
    %v8856 = vadd.f32 %v8699, %v8855
    %v8857 = vpop.f32.mrb[0].mxu0
    %v8858 = vpop.f32.mrb[0].mxu0
    %v8859 = vadd.f32 %v8699, %v8858
    %v8860 = vpop.f32.mrb[0].mxu0
    %8861 = vmatprep.mubr.bf16.mxu0 %v8655
    %8862 = vmatmul.mubr.bf16.gmra.mrb[0].mxu0 %v8654
    %v8863 = vpop.f32.mrb[0].mxu0
    %v8864 = vadd.f32 %v8699, %v8863
    %v8865 = vpop.f32.mrb[0].mxu0
    %v8866 = vpop.f32.mrb[0].mxu0
    %v8867 = vadd.f32 %v8699, %v8866
    %v8868 = vpop.f32.mrb[0].mxu0
    %8869 = vmatprep.mubr.bf16.mxu0 %v8657
    %8870 = vmatmul.mubr.bf16.gmra.mrb[0].mxu0 %v8656
    %v8871 = vpop.f32.mrb[0].mxu0
    %v8872 = vadd.f32 %v8699, %v8871
    %v8873 = vpop.f32.mrb[0].mxu0
    %v8874 = vpop.f32.mrb[0].mxu0
    %v8875 = vadd.f32 %v8699, %v8874
    %v8876 = vpop.f32.mrb[0].mxu0
    %8877 = vmatprep.mubr.bf16.mxu0 %v8659
    %8878 = vmatmul.mubr.bf16.gmra.mrb[0].mxu0 %v8658
    %v8879 = vpop.f32.mrb[0].mxu0
    %v8880 = vadd.f32 %v8699, %v8879
    %v8881 = vpop.f32.mrb[0].mxu0
    %v8882 = vpop.f32.mrb[0].mxu0
    %v8883 = vadd.f32 %v8699, %v8882
    %v8884 = vpop.f32.mrb[0].mxu0
    %8885 = vmatprep.mubr.bf16.mxu0 %v8661
    %8886 = vmatmul.mubr.bf16.gmra.mrb[0].mxu0 %v8660
    %v8887 = vpop.f32.mrb[0].mxu0
    %v8888 = vadd.f32 %v8699, %v8887
    %v8889 = vpop.f32.mrb[0].mxu0
    %v8890 = vpop.f32.mrb[0].mxu0
    %v8891 = vadd.f32 %v8699, %v8890
    %v8892 = vpop.f32.mrb[0].mxu0
    %8893 = vdwg.mxu0
    %v8894 = vxor.u32 %v8832, 2147483648
    %v8895 = vxor.u32 %v8835, 2147483648
    %v8896 = vxor.u32 %v8840, 2147483648
    %v8897 = vxor.u32 %v8843, 2147483648
    %v8898 = vxor.u32 %v8848, 2147483648
    %v8899 = vxor.u32 %v8851, 2147483648
    %v8900 = vxor.u32 %v8856, 2147483648
    %v8901 = vxor.u32 %v8859, 2147483648
    %v8902 = vxor.u32 %v8864, 2147483648
    %v8903 = vxor.u32 %v8867, 2147483648
    %v8904 = vxor.u32 %v8872, 2147483648
    %v8905 = vxor.u32 %v8875, 2147483648
    %v8906 = vxor.u32 %v8880, 2147483648
    %v8907 = vxor.u32 %v8883, 2147483648
    %v8908 = vxor.u32 %v8888, 2147483648
    %v8909 = vxor.u32 %v8891, 2147483648
    %v8910 = vmul.f32 %v8894, 1.442695
    %v8911 = vpow.pop %v8910
    %v8912 = vmul.f32 %v8895, 1.442695
    %v8913 = vpow.pop %v8912
    %v8914 = vmul.f32 %v8896, 1.442695
    %v8915 = vpow.pop %v8914
    %v8916 = vmul.f32 %v8897, 1.442695
    %v8917 = vpow.pop %v8916
    %v8918 = vmul.f32 %v8898, 1.442695
    %v8919 = vpow.pop %v8918
    %v8920 = vmul.f32 %v8899, 1.442695
    %v8921 = vpow.pop %v8920
    %v8922 = vmul.f32 %v8900, 1.442695
    %v8923 = vpow.pop %v8922
    %v8924 = vmul.f32 %v8901, 1.442695
    %v8925 = vpow.pop %v8924
    %v8926 = vmul.f32 %v8902, 1.442695
    %v8927 = vpow.pop %v8926
    %v8928 = vmul.f32 %v8903, 1.442695
    %v8929 = vpow.pop %v8928
    %v8930 = vmul.f32 %v8904, 1.442695
    %v8931 = vpow.pop %v8930
    %v8932 = vmul.f32 %v8905, 1.442695
    %v8933 = vpow.pop %v8932
    %v8934 = vmul.f32 %v8906, 1.442695
    %v8935 = vpow.pop %v8934
    %v8936 = vmul.f32 %v8907, 1.442695
    %v8937 = vpow.pop %v8936
    %v8938 = vmul.f32 %v8908, 1.442695
    %v8939 = vpow.pop %v8938
    %v8940 = vmul.f32 %v8909, 1.442695
    %v8941 = vpow.pop %v8940
    %v8942 = vadd.f32 %v8911, 1.0
    %v8943 = vadd.f32 %v8913, 1.0
    %v8944 = vadd.f32 %v8915, 1.0
    %v8945 = vadd.f32 %v8917, 1.0
    %v8946 = vadd.f32 %v8919, 1.0
    %v8947 = vadd.f32 %v8921, 1.0
    %v8948 = vadd.f32 %v8923, 1.0
    %v8949 = vadd.f32 %v8925, 1.0
    %v8950 = vadd.f32 %v8927, 1.0
    %v8951 = vadd.f32 %v8929, 1.0
    %v8952 = vadd.f32 %v8931, 1.0
    %v8953 = vadd.f32 %v8933, 1.0
    %v8954 = vadd.f32 %v8935, 1.0
    %v8955 = vadd.f32 %v8937, 1.0
    %v8956 = vadd.f32 %v8939, 1.0
    %v8957 = vadd.f32 %v8941, 1.0
    %v8958 = vrcp.pop %v8942
    %v8959 = vmul.f32 1.0, %v8958
    %v8960 = vrcp.pop %v8943
    %v8961 = vmul.f32 1.0, %v8960
    %v8962 = vrcp.pop %v8944
    %v8963 = vmul.f32 1.0, %v8962
    %v8964 = vrcp.pop %v8945
    %v8965 = vmul.f32 1.0, %v8964
    %v8966 = vrcp.pop %v8946
    %v8967 = vmul.f32 1.0, %v8966
    %v8968 = vrcp.pop %v8947
    %v8969 = vmul.f32 1.0, %v8968
    %v8970 = vrcp.pop %v8948
    %v8971 = vmul.f32 1.0, %v8970
    %v8972 = vrcp.pop %v8949
    %v8973 = vmul.f32 1.0, %v8972
    %v8974 = vrcp.pop %v8950
    %v8975 = vmul.f32 1.0, %v8974
    %v8976 = vrcp.pop %v8951
    %v8977 = vmul.f32 1.0, %v8976
    %v8978 = vrcp.pop %v8952
    %v8979 = vmul.f32 1.0, %v8978
    %v8980 = vrcp.pop %v8953
    %v8981 = vmul.f32 1.0, %v8980
    %v8982 = vrcp.pop %v8954
    %v8983 = vmul.f32 1.0, %v8982
    %v8984 = vrcp.pop %v8955
    %v8985 = vmul.f32 1.0, %v8984
    %v8986 = vrcp.pop %v8956
    %v8987 = vmul.f32 1.0, %v8986
    %v8988 = vrcp.pop %v8957
    %v8989 = vmul.f32 1.0, %v8988
    %8990 = vst [vmem:[#allocation16] sm:$0xff] %v8959
    %8991 = vst [vmem:[#allocation16 + $0x8] sm:$0xff] %v8961
    %8992 = vst [vmem:[#allocation16 + $0x10] sm:$0xff] %v8963
    %8993 = vst [vmem:[#allocation16 + $0x18] sm:$0xff] %v8965
    %8994 = vst [vmem:[#allocation16 + $0x20] sm:$0xff] %v8967
    %8995 = vst [vmem:[#allocation16 + $0x28] sm:$0xff] %v8969
    %8996 = vst [vmem:[#allocation16 + $0x30] sm:$0xff] %v8971
    %8997 = vst [vmem:[#allocation16 + $0x38] sm:$0xff] %v8973
    %8998 = vst [vmem:[#allocation16 + $0x40] sm:$0xff] %v8975
    %8999 = vst [vmem:[#allocation16 + $0x48] sm:$0xff] %v8977
    %9000 = vst [vmem:[#allocation16 + $0x50] sm:$0xff] %v8979
    %9001 = vst [vmem:[#allocation16 + $0x58] sm:$0xff] %v8981
    %9002 = vst [vmem:[#allocation16 + $0x60] sm:$0xff] %v8983
    %9003 = vst [vmem:[#allocation16 + $0x68] sm:$0xff] %v8985
    %9004 = vst [vmem:[#allocation16 + $0x70] sm:$0xff] %v8987
    %9005 = vst [vmem:[#allocation16 + $0x78] sm:$0xff] %v8989
    // Predicated region
    $region70: #{tpu_custom_call.1} parent=1 // pred_check
      _
    $region71: #{tpu_custom_call.1} parent=1 // pred_check_branch
      %9007 = sbr.rel (0) target = $region73
    $region72: #{tpu_custom_call.1} parent=1 // pred_region
      %s9009 = ssub.s32 2048, 2048
      %9010 = vsyncadd [#allocation4], %s9009
      %s9011 = sshll.u32 [#allocation16], 4
      %s9012 = int_to_ptr.vmem [resolvable:$true] %s9011
      %9017 = dma.vmem_to_hbm [thread:$0]  %s9012, 2048, %s9, [#allocation4], 128, 128, 8
    $region73: #{tpu_custom_call.1} parent=1 // pred_fallthru
      _
    // Predicated region
    $region74: #{tpu_custom_call.1} parent=1 // pred_check
      _
    $region75: #{tpu_custom_call.1} parent=1 // pred_check_branch
      %9019 = sbr.rel (0) target = $region77
    $region76: #{tpu_custom_call.1} parent=1 // pred_region
      %9020 = dma.done [#allocation4], 2048
    $region77: #{tpu_custom_call.1} parent=1 // pred_fallthru
      _
    %9021 = vsyncpa [#allocation3], 1
    %9022 = vsyncpa [#allocation6], 1
    %9023 = vsyncpa [#allocation9], 1
    %9024 = vsyncpa [#allocation12], 1
    %9025 = vsyncpa [#allocation15], 1
    %9026 = vsyncpa [#allocation4], 1

</llo_original>
